<compile_context>
chip_gen: v7x
topology: tpu7x:2x2x1
jax: 0.10.0
libtpu: 0.0.40
codegen_flags: <defaults>
</compile_context>

<pallas_src>
import math
import functools

import jax
import jax.numpy as jnp
from jax import lax
from jax.experimental import pallas as pl
from jax.experimental.pallas import tpu as pltpu

_NEG_INF = -1e9      # finite stand-in for the -inf entries of the PyTorch mask
_LANE = 128
_SUBLANE = 8


# ------------------------- in-kernel math helpers -------------------------

def _gelu_tanh(x):
    # TODO(synk): PyTorch F.gelu default is exact-erf; tanh approx (~1e-3 abs dev)
    # keeps the transcendental on the EUP slot.
    c = math.sqrt(2.0 / math.pi)
    return 0.5 * x * (1.0 + jnp.tanh(c * (x + 0.044715 * x * x * x)))


def _sigmoid(x):
    return 1.0 / (1.0 + jnp.exp(-x))


def _silu(x):
    return x * _sigmoid(x)


def _softplus(x):                       # numerically stable log(1 + exp(x))
    return jnp.maximum(x, 0.0) + jnp.log(1.0 + jnp.exp(-jnp.abs(x)))


def _softmax_last(x):
    m = jnp.max(x, axis=-1, keepdims=True)
    e = jnp.exp(x - m)
    return e * pl.reciprocal(jnp.sum(e, axis=-1, keepdims=True), approx=True)


def _layernorm(x, g, b, eps=1e-5):
    mu = jnp.mean(x, axis=-1, keepdims=True)
    var = jnp.mean((x - mu) ** 2, axis=-1, keepdims=True)
    return (x - mu) * lax.rsqrt(var + eps) * g + b


# ------------------------------- the kernel -------------------------------

def _option_transformer_kernel(n_layers, n_head, head_dim, *refs):
    (x_ref, bias_ref,
     sa_qkv_w, sa_qkv_b, sa_out_w, sa_out_b,
     ca_q_w, ca_q_b, ca_k_blk, ca_v_blk, ca_out_w, ca_out_b,
     ff1_w, ff1_b, ff2_w, ff2_b,
     ln1_g, ln1_b, ln2_g, ln2_b, ln3_g, ln3_b,
     p_w1, p_b1, p_w2, p_b2,
     d_w1, d_b1, d_w2, d_b2,
     price_ref, delta_ref) = refs

    H, Dh = n_head, head_dim
    Dmem = ca_k_blk.shape[-1] // H           # memory length of the CA block-diag K

    x = x_ref[...]                           # (S, D) f32 residual stream
    bias = bias_ref[...]                     # (1, S) additive key-padding mask

    # Statically unrolled layer loop; all weights stay VMEM-resident.
    for l in range(n_layers):
        x16 = x.astype(jnp.bfloat16)

        # ---- self-attention: one fused QKV matmul (D -> 3*H*Dh lanes), then
        #      per-head score/context on static lane slices, fused output proj.
        qkv = jnp.dot(x16, sa_qkv_w[l],
                      preferred_element_type=jnp.float32) + sa_qkv_b[l]   # (S, 3*H*Dh)
        ctx = []
        for h in range(H):
            q = qkv[:, h * Dh:(h + 1) * Dh]                  # 1/sqrt(Dh) pre-folded
            k = qkv[:, (H + h) * Dh:(H + h + 1) * Dh]
            v = qkv[:, (2 * H + h) * Dh:(2 * H + h + 1) * Dh]
            s = lax.dot_general(q, k, (((1,), (1,)), ((), ())),
                                preferred_element_type=jnp.float32) + bias
            ctx.append(jnp.dot(_softmax_last(s), v,
                               preferred_element_type=jnp.float32))
        sa = jnp.dot(jnp.concatenate(ctx, axis=-1).astype(jnp.bfloat16), sa_out_w[l],
                     preferred_element_type=jnp.float32) + sa_out_b[l]
        x = _layernorm(x + sa, ln1_g[l], ln1_b[l])

        # ---- cross-attention over the constant causal-mask "memory": K/V were
        #      precomputed per layer in the wrapper (f32, scale folded into K) and
        #      packed block-diagonally, so scores + context are two lane-dense
        #      matmuls; only the per-head softmax needs slicing.
        q_ca = jnp.dot(x.astype(jnp.bfloat16), ca_q_w[l],
                       preferred_element_type=jnp.float32) + ca_q_b[l]    # (S, H*Dh)
        s_all = jnp.dot(q_ca, ca_k_blk[l],
                        preferred_element_type=jnp.float32)               # (S, H*Dmem)
        p_all = jnp.concatenate(
            [_softmax_last(s_all[:, h * Dmem:(h + 1) * Dmem]) for h in range(H)],
            axis=-1)                                                      # (S, H*Dmem)
        ctx_ca = jnp.dot(p_all, ca_v_blk[l],
                         preferred_element_type=jnp.float32)              # (S, H*Dh)
        ca = jnp.dot(ctx_ca.astype(jnp.bfloat16), ca_out_w[l],
                     preferred_element_type=jnp.float32) + ca_out_b[l]
        x = _layernorm(x + ca, ln2_g[l], ln2_b[l])

        # ---- feed-forward (the only real MXU work at these shapes)
        x16 = x.astype(jnp.bfloat16)
        hdn = _gelu_tanh(jnp.dot(x16, ff1_w[l],
                                 preferred_element_type=jnp.float32) + ff1_b[l])
        ff = jnp.dot(hdn.astype(jnp.bfloat16), ff2_w[l],
                     preferred_element_type=jnp.float32) + ff2_b[l]
        x = _layernorm(x + ff, ln3_g[l], ln3_b[l])

    # ---- heads: lane-dense (S, 128) outputs (1-wide projections zero-padded).
    x16 = x.astype(jnp.bfloat16)
    ph = _silu(jnp.dot(x16, p_w1[...], preferred_element_type=jnp.float32) + p_b1[...])
    price_ref[...] = _softplus(
        jnp.dot(ph.astype(jnp.bfloat16), p_w2[...],
                preferred_element_type=jnp.float32) + p_b2[...])
    dh = _silu(jnp.dot(x16, d_w1[...], preferred_element_type=jnp.float32) + d_b1[...])
    delta_ref[...] = _sigmoid(
        jnp.dot(dh.astype(jnp.bfloat16), d_w2[...],
                preferred_element_type=jnp.float32) + d_b2[...])


# ------------------------------ JAX wrapper -------------------------------

def option_transformer_forward(X, params, *, n_head, n_mcmc, n_features):
    """X: (batch, n_assets, n_mcmc) float32 -> (price (batch,1), delta (batch,1))."""
    B = X.shape[0]
    f32, bf16 = jnp.float32, jnp.bfloat16

    # --- glue: quantile features (torch.quantile default 'linear' interpolation;
    #     q grid = linspace(0, n_mcmc-1, F)/n_mcmc matches the reference exactly) ---
    # TODO(synk): torch.quantile needs a sort, which has no clean Pallas TPU
    # equivalent; quantiles run in plain JAX, the transformer runs in Pallas.
    q = jnp.linspace(0.0, n_mcmc - 1, n_features) / n_mcmc
    Xq = jnp.quantile(X.astype(f32), q, axis=2)                   # (F, B, A)
    X_input = jnp.transpose(Xq, (1, 0, 2)).reshape(B, -1)         # (B, F*A) == (seq, d_model)
    d_model = X_input.shape[-1]

    (sa_qkv_w, sa_qkv_b, sa_out_w, sa_out_b,
     ca_qkv_w, ca_qkv_b, ca_out_w, ca_out_b,
     ff1_w, ff1_b, ff2_w, ff2_b,
     ln_g, ln_b,
     p_w1, p_b1, p_w2, p_b2,
     d_w1, d_b1, d_w2, d_b2) = params

    L, _, H, D, Dh = sa_qkv_w.shape
    assert H == n_head and D == d_model and D % H == 0
    HDh = H * Dh
    Dmem = D                                   # memory = (D, D) causal mask
    scale = 1.0 / math.sqrt(Dh)

    # Sublane-pad the sequence (= batch) axis; padded key rows are masked out of
    # self-attention with an additive bias and sliced off afterwards.
    seq_pad = max(_SUBLANE, ((B + _SUBLANE - 1) // _SUBLANE) * _SUBLANE)
    x_pad = jnp.zeros((seq_pad, D), f32).at[:B].set(X_input.astype(f32))
    self_bias = jnp.where(jnp.arange(seq_pad) < B, 0.0, _NEG_INF).astype(f32)[None, :]

    bf = lambda a: a.astype(bf16)              # bf16 weight storage, f32 accumulation

    # --- self-attention: fused QKV weight (D, 3*H*Dh), 1/sqrt(Dh) folded into Q ---
    saw = sa_qkv_w.at[:, 0].multiply(scale)
    sab = sa_qkv_b.at[:, 0].multiply(scale)
    sa_qkv_w_f = jnp.transpose(saw, (0, 3, 1, 2, 4)).reshape(L, D, 3 * HDh)
    sa_qkv_b_f = sab.reshape(L, 1, 3 * HDh)
    sa_out_w_f = sa_out_w.reshape(L, HDh, D)

    # --- cross-attention: the "memory" is the constant causal mask, so K/V are
    #     precomputed per layer (f32) and packed block-diagonally.  Note: the
    #     reference passes -inf here (its output is NaN); -1e9 keeps it finite. ---
    row = jnp.arange(Dmem)[:, None]
    col = jnp.arange(Dmem)[None, :]
    mem = jnp.where(col > row, _NEG_INF, 0.0).astype(f32)                 # (Dmem, D)
    K_ca = (jnp.einsum('md,lhde->lhme', mem, ca_qkv_w[:, 1])
            + ca_qkv_b[:, 1]) * scale                                     # (L,H,Dmem,Dh)
    V_ca = jnp.einsum('md,lhde->lhme', mem, ca_qkv_w[:, 2]) + ca_qkv_b[:, 2]
    K_blk = jnp.zeros((L, HDh, H * Dmem), f32)
    V_blk = jnp.zeros((L, H * Dmem, HDh), f32)
    for h in range(H):
        K_blk = K_blk.at[:, h * Dh:(h + 1) * Dh, h * Dmem:(h + 1) * Dmem].set(
            jnp.swapaxes(K_ca[:, h], 1, 2))
        V_blk = V_blk.at[:, h * Dmem:(h + 1) * Dmem, h * Dh:(h + 1) * Dh].set(V_ca[:, h])
    ca_q_w_f = jnp.transpose(ca_qkv_w[:, 0], (0, 2, 1, 3)).reshape(L, D, HDh)
    ca_q_b_f = ca_qkv_b[:, 0].reshape(L, 1, HDh)
    ca_out_w_f = ca_out_w.reshape(L, HDh, D)

    # --- lane-dense outputs: zero-pad the 1-wide head projections to 128 lanes ---
    def pad_out(w, b):
        wp = jnp.zeros((D, _LANE), f32).at[:, :1].set(w)
        bp = jnp.zeros((1, _LANE), f32).at[:, :1].set(b)
        return wp, bp
    p_w2p, p_b2p = pad_out(p_w2, p_b2)
    d_w2p, d_b2p = pad_out(d_w2, d_b2)

    inputs = [
        x_pad, self_bias,
        bf(sa_qkv_w_f), sa_qkv_b_f, bf(sa_out_w_f), sa_out_b,
        bf(ca_q_w_f), ca_q_b_f, K_blk, V_blk, bf(ca_out_w_f), ca_out_b,
        bf(ff1_w), ff1_b, bf(ff2_w), ff2_b,
        ln_g[:, 0], ln_b[:, 0], ln_g[:, 1], ln_b[:, 1], ln_g[:, 2], ln_b[:, 2],
        bf(p_w1), p_b1, bf(p_w2p), p_b2p,
        bf(d_w1), d_b1, bf(d_w2p), d_b2p,
    ]

    out_shape = (jax.ShapeDtypeStruct((seq_pad, _LANE), f32),
                 jax.ShapeDtypeStruct((seq_pad, _LANE), f32))

    # VMEM budget: everything is resident (no grid), so size it from the actual
    # footprint with headroom, clamped per-generation (~55% of physical VMEM).
    total_bytes = sum(int(a.nbytes) for a in inputs) + 2 * seq_pad * _LANE * 4
    try:
        vmem_cap = int(pltpu.get_tpu_info().vmem_capacity_bytes)
    except Exception:
        vmem_cap = 64 << 20                      # conservative v7x physical VMEM
    vmem_limit = int(min(max(4 * total_bytes, 8 << 20), (vmem_cap * 55) // 100))

    kernel = functools.partial(_option_transformer_kernel, L, H, Dh)
    price_pad, delta_pad = pl.pallas_call(
        kernel,
        out_shape=out_shape,
        compiler_params=pltpu.CompilerParams(vmem_limit_bytes=vmem_limit),
    )(*inputs)
    return price_pad[:B, :1], delta_pad[:B, :1]


def init_params(key, d_model, n_layers, n_head, d_ff=2048):
    """Deterministic synthetic parameters.

    Attention weights use a per-head layout (L,3,H,D,Dh)/(L,H,Dh,D); all Linear
    weights are (in, out) so every matmul is x @ W + b with no transposes.
    """
    D, L, F, H = d_model, n_layers, d_ff, n_head
    Dh = D // H
    keys = iter(jax.random.split(key, 24))

    def w(shape, scale):
        return jax.random.normal(next(keys), shape, jnp.float32) * scale

    s_d, s_f = 1.0 / math.sqrt(D), 1.0 / math.sqrt(F)
    sa_qkv_w, sa_qkv_b = w((L, 3, H, D, Dh), s_d), w((L, 3, H, 1, Dh), 0.01)
    sa_out_w, sa_out_b = w((L, H, Dh, D), s_d), w((L, 1, D), 0.01)
    ca_qkv_w, ca_qkv_b = w((L, 3, H, D, Dh), s_d), w((L, 3, H, 1, Dh), 0.01)
    ca_out_w, ca_out_b = w((L, H, Dh, D), s_d), w((L, 1, D), 0.01)
    ff1_w, ff1_b = w((L, D, F), s_d), w((L, 1, F), 0.01)
    ff2_w, ff2_b = w((L, F, D), s_f), w((L, 1, D), 0.01)
    ln_g = jnp.ones((L, 3, 1, D), jnp.float32)     # [norm1, norm2, norm3]
    ln_b = jnp.zeros((L, 3, 1, D), jnp.float32)
    p_w1, p_b1 = w((D, D), s_d), w((1, D), 0.01)
    p_w2, p_b2 = w((D, 1), s_d), w((1, 1), 0.01)
    d_w1, d_b1 = w((D, D), s_d), w((1, D), 0.01)
    d_w2, d_b2 = w((D, 1), s_d), w((1, 1), 0.01)
    return [sa_qkv_w, sa_qkv_b, sa_out_w, sa_out_b,
            ca_qkv_w, ca_qkv_b, ca_out_w, ca_out_b,
            ff1_w, ff1_b, ff2_w, ff2_b,
            ln_g, ln_b,
            p_w1, p_b1, p_w2, p_b2, d_w1, d_b1, d_w2, d_b2]


if __name__ == "__main__":
    # Small shapes consistent with the module: d_model = n_features * n_assets.
    n_features, n_assets, n_mcmc = 8, 4, 16
    d_model = n_features * n_assets       # 32
    n_layers, n_head = 2, 4               # d_model % n_head == 0
    batch = 2                             # becomes the (unbatched) sequence length

    key = jax.random.PRNGKey(0)
    kx, kp = jax.random.split(key)
    X = jax.random.normal(kx, (batch, n_assets, n_mcmc), jnp.float32)
    params = init_params(kp, d_model, n_layers, n_head)

    price, delta = option_transformer_forward(
        X, params, n_head=n_head, n_mcmc=n_mcmc, n_features=n_features)
    jax.block_until_ready((price, delta))

    assert price.shape == (batch, 1) and delta.shape == (batch, 1)
    assert bool(jnp.all(jnp.isfinite(price))) and bool(jnp.all(jnp.isfinite(delta)))
    print("KERNEL_OK")
</pallas_src>

<mosaic_0001>
module attributes {stable_mosaic.version = 11 : i64} {
  func.func @_option_transformer_kernel(%arg0: memref<8x32xf32, #tpu.memory_space<vmem>>, %arg1: memref<1x8xf32, #tpu.memory_space<vmem>>, %arg2: memref<2x32x96xbf16, #tpu.memory_space<vmem>>, %arg3: memref<2x1x96xf32, #tpu.memory_space<vmem>>, %arg4: memref<2x32x32xbf16, #tpu.memory_space<vmem>>, %arg5: memref<2x1x32xf32, #tpu.memory_space<vmem>>, %arg6: memref<2x32x32xbf16, #tpu.memory_space<vmem>>, %arg7: memref<2x1x32xf32, #tpu.memory_space<vmem>>, %arg8: memref<2x32x128xf32, #tpu.memory_space<vmem>>, %arg9: memref<2x128x32xf32, #tpu.memory_space<vmem>>, %arg10: memref<2x32x32xbf16, #tpu.memory_space<vmem>>, %arg11: memref<2x1x32xf32, #tpu.memory_space<vmem>>, %arg12: memref<2x32x2048xbf16, #tpu.memory_space<vmem>>, %arg13: memref<2x1x2048xf32, #tpu.memory_space<vmem>>, %arg14: memref<2x2048x32xbf16, #tpu.memory_space<vmem>>, %arg15: memref<2x1x32xf32, #tpu.memory_space<vmem>>, %arg16: memref<2x1x32xf32, #tpu.memory_space<vmem>>, %arg17: memref<2x1x32xf32, #tpu.memory_space<vmem>>, %arg18: memref<2x1x32xf32, #tpu.memory_space<vmem>>, %arg19: memref<2x1x32xf32, #tpu.memory_space<vmem>>, %arg20: memref<2x1x32xf32, #tpu.memory_space<vmem>>, %arg21: memref<2x1x32xf32, #tpu.memory_space<vmem>>, %arg22: memref<32x32xbf16, #tpu.memory_space<vmem>>, %arg23: memref<1x32xf32, #tpu.memory_space<vmem>>, %arg24: memref<32x128xbf16, #tpu.memory_space<vmem>>, %arg25: memref<1x128xf32, #tpu.memory_space<vmem>>, %arg26: memref<32x32xbf16, #tpu.memory_space<vmem>>, %arg27: memref<1x32xf32, #tpu.memory_space<vmem>>, %arg28: memref<32x128xbf16, #tpu.memory_space<vmem>>, %arg29: memref<1x128xf32, #tpu.memory_space<vmem>>, %arg30: memref<8x128xf32, #tpu.memory_space<vmem>>, %arg31: memref<8x128xf32, #tpu.memory_space<vmem>>) attributes {dimension_semantics = [], scalar_prefetch = 0 : i64, scratch_operands = 0 : i64, tpu.core_type = #tpu.core_type<tc>} {
    %c0 = arith.constant 0 : index
    %c0_0 = arith.constant 0 : index
    %0 = vector.load %arg0[%c0, %c0_0] : memref<8x32xf32, #tpu.memory_space<vmem>>, vector<8x32xf32>
    %c0_1 = arith.constant 0 : index
    %c0_2 = arith.constant 0 : index
    %1 = vector.load %arg1[%c0_1, %c0_2] : memref<1x8xf32, #tpu.memory_space<vmem>>, vector<1x8xf32>
    %2 = arith.truncf %0 : vector<8x32xf32> to vector<8x32xbf16>
    %c0_3 = arith.constant 0 : index
    %c0_4 = arith.constant 0 : index
    %c0_5 = arith.constant 0 : index
    %3 = vector.load %arg2[%c0_3, %c0_4, %c0_5] : memref<2x32x96xbf16, #tpu.memory_space<vmem>>, vector<1x32x96xbf16>
    %4 = vector.shape_cast %3 : vector<1x32x96xbf16> to vector<32x96xbf16>
    %cst = arith.constant dense<0.000000e+00> : vector<8x96xf32>
    %5 = tpu.matmul %2, %4, %cst {dimension_numbers = #tpu.dot_dimension_numbers<[1], [0], [0], [1], [0, 0, 1, 1], [], []>} : vector<8x32xbf16>, vector<32x96xbf16>, vector<8x96xf32> -> vector<8x96xf32>
    %c0_6 = arith.constant 0 : index
    %c0_7 = arith.constant 0 : index
    %c0_8 = arith.constant 0 : index
    %6 = vector.load %arg3[%c0_6, %c0_7, %c0_8] : memref<2x1x96xf32, #tpu.memory_space<vmem>>, vector<1x1x96xf32>
    %7 = vector.shape_cast %6 : vector<1x1x96xf32> to vector<1x96xf32>
    %8 = vector.broadcast %7 : vector<1x96xf32> to vector<8x96xf32>
    %9 = arith.addf %5, %8 : vector<8x96xf32>
    %10 = vector.extract_strided_slice %9 {offsets = [0, 0], sizes = [8, 8], strides = [1, 1]} : vector<8x96xf32> to vector<8x8xf32>
    %11 = vector.extract_strided_slice %9 {offsets = [0, 32], sizes = [8, 8], strides = [1, 1]} : vector<8x96xf32> to vector<8x8xf32>
    %12 = vector.extract_strided_slice %9 {offsets = [0, 64], sizes = [8, 8], strides = [1, 1]} : vector<8x96xf32> to vector<8x8xf32>
    %cst_9 = arith.constant dense<0.000000e+00> : vector<8x8xf32>
    %13 = tpu.matmul %10, %11, %cst_9 {dimension_numbers = #tpu.dot_dimension_numbers<[1], [1], [0], [0], [0, 0, 1, 0], [], []>} : vector<8x8xf32>, vector<8x8xf32>, vector<8x8xf32> -> vector<8x8xf32>
    %14 = vector.broadcast %1 : vector<1x8xf32> to vector<8x8xf32>
    %15 = arith.addf %13, %14 : vector<8x8xf32>
    %cst_10 = arith.constant dense<0xFF800000> : vector<8xf32>
    %16 = vector.multi_reduction <maximumf>, %15, %cst_10 [1] : vector<8x8xf32> to vector<8xf32>
    %17 = vector.shape_cast %16 : vector<8xf32> to vector<8x1xf32>
    %18 = vector.broadcast %17 : vector<8x1xf32> to vector<8x8xf32>
    %19 = arith.subf %15, %18 : vector<8x8xf32>
    %20 = math.exp %19 : vector<8x8xf32>
    %cst_11 = arith.constant dense<0.000000e+00> : vector<8xf32>
    %21 = vector.multi_reduction <add>, %20, %cst_11 [1] : vector<8x8xf32> to vector<8xf32>
    %22 = vector.shape_cast %21 : vector<8xf32> to vector<8x1xf32>
    %23 = tpu.reciprocal %22 {approx = true} : vector<8x1xf32> -> vector<8x1xf32>
    %24 = vector.broadcast %23 : vector<8x1xf32> to vector<8x8xf32>
    %25 = arith.mulf %20, %24 : vector<8x8xf32>
    %cst_12 = arith.constant dense<0.000000e+00> : vector<8x8xf32>
    %26 = tpu.matmul %25, %12, %cst_12 {dimension_numbers = #tpu.dot_dimension_numbers<[1], [0], [0], [1], [0, 0, 1, 1], [], []>} : vector<8x8xf32>, vector<8x8xf32>, vector<8x8xf32> -> vector<8x8xf32>
    %27 = vector.extract_strided_slice %9 {offsets = [0, 8], sizes = [8, 8], strides = [1, 1]} : vector<8x96xf32> to vector<8x8xf32>
    %28 = vector.extract_strided_slice %9 {offsets = [0, 40], sizes = [8, 8], strides = [1, 1]} : vector<8x96xf32> to vector<8x8xf32>
    %29 = vector.extract_strided_slice %9 {offsets = [0, 72], sizes = [8, 8], strides = [1, 1]} : vector<8x96xf32> to vector<8x8xf32>
    %cst_13 = arith.constant dense<0.000000e+00> : vector<8x8xf32>
    %30 = tpu.matmul %27, %28, %cst_13 {dimension_numbers = #tpu.dot_dimension_numbers<[1], [1], [0], [0], [0, 0, 1, 0], [], []>} : vector<8x8xf32>, vector<8x8xf32>, vector<8x8xf32> -> vector<8x8xf32>
    %31 = vector.broadcast %1 : vector<1x8xf32> to vector<8x8xf32>
    %32 = arith.addf %30, %31 : vector<8x8xf32>
    %cst_14 = arith.constant dense<0xFF800000> : vector<8xf32>
    %33 = vector.multi_reduction <maximumf>, %32, %cst_14 [1] : vector<8x8xf32> to vector<8xf32>
    %34 = vector.shape_cast %33 : vector<8xf32> to vector<8x1xf32>
    %35 = vector.broadcast %34 : vector<8x1xf32> to vector<8x8xf32>
    %36 = arith.subf %32, %35 : vector<8x8xf32>
    %37 = math.exp %36 : vector<8x8xf32>
    %cst_15 = arith.constant dense<0.000000e+00> : vector<8xf32>
    %38 = vector.multi_reduction <add>, %37, %cst_15 [1] : vector<8x8xf32> to vector<8xf32>
    %39 = vector.shape_cast %38 : vector<8xf32> to vector<8x1xf32>
    %40 = tpu.reciprocal %39 {approx = true} : vector<8x1xf32> -> vector<8x1xf32>
    %41 = vector.broadcast %40 : vector<8x1xf32> to vector<8x8xf32>
    %42 = arith.mulf %37, %41 : vector<8x8xf32>
    %cst_16 = arith.constant dense<0.000000e+00> : vector<8x8xf32>
    %43 = tpu.matmul %42, %29, %cst_16 {dimension_numbers = #tpu.dot_dimension_numbers<[1], [0], [0], [1], [0, 0, 1, 1], [], []>} : vector<8x8xf32>, vector<8x8xf32>, vector<8x8xf32> -> vector<8x8xf32>
    %44 = vector.extract_strided_slice %9 {offsets = [0, 16], sizes = [8, 8], strides = [1, 1]} : vector<8x96xf32> to vector<8x8xf32>
    %45 = vector.extract_strided_slice %9 {offsets = [0, 48], sizes = [8, 8], strides = [1, 1]} : vector<8x96xf32> to vector<8x8xf32>
    %46 = vector.extract_strided_slice %9 {offsets = [0, 80], sizes = [8, 8], strides = [1, 1]} : vector<8x96xf32> to vector<8x8xf32>
    %cst_17 = arith.constant dense<0.000000e+00> : vector<8x8xf32>
    %47 = tpu.matmul %44, %45, %cst_17 {dimension_numbers = #tpu.dot_dimension_numbers<[1], [1], [0], [0], [0, 0, 1, 0], [], []>} : vector<8x8xf32>, vector<8x8xf32>, vector<8x8xf32> -> vector<8x8xf32>
    %48 = vector.broadcast %1 : vector<1x8xf32> to vector<8x8xf32>
    %49 = arith.addf %47, %48 : vector<8x8xf32>
    %cst_18 = arith.constant dense<0xFF800000> : vector<8xf32>
    %50 = vector.multi_reduction <maximumf>, %49, %cst_18 [1] : vector<8x8xf32> to vector<8xf32>
    %51 = vector.shape_cast %50 : vector<8xf32> to vector<8x1xf32>
    %52 = vector.broadcast %51 : vector<8x1xf32> to vector<8x8xf32>
    %53 = arith.subf %49, %52 : vector<8x8xf32>
    %54 = math.exp %53 : vector<8x8xf32>
    %cst_19 = arith.constant dense<0.000000e+00> : vector<8xf32>
    %55 = vector.multi_reduction <add>, %54, %cst_19 [1] : vector<8x8xf32> to vector<8xf32>
    %56 = vector.shape_cast %55 : vector<8xf32> to vector<8x1xf32>
    %57 = tpu.reciprocal %56 {approx = true} : vector<8x1xf32> -> vector<8x1xf32>
    %58 = vector.broadcast %57 : vector<8x1xf32> to vector<8x8xf32>
    %59 = arith.mulf %54, %58 : vector<8x8xf32>
    %cst_20 = arith.constant dense<0.000000e+00> : vector<8x8xf32>
    %60 = tpu.matmul %59, %46, %cst_20 {dimension_numbers = #tpu.dot_dimension_numbers<[1], [0], [0], [1], [0, 0, 1, 1], [], []>} : vector<8x8xf32>, vector<8x8xf32>, vector<8x8xf32> -> vector<8x8xf32>
    %61 = vector.extract_strided_slice %9 {offsets = [0, 24], sizes = [8, 8], strides = [1, 1]} : vector<8x96xf32> to vector<8x8xf32>
    %62 = vector.extract_strided_slice %9 {offsets = [0, 56], sizes = [8, 8], strides = [1, 1]} : vector<8x96xf32> to vector<8x8xf32>
    %63 = vector.extract_strided_slice %9 {offsets = [0, 88], sizes = [8, 8], strides = [1, 1]} : vector<8x96xf32> to vector<8x8xf32>
    %cst_21 = arith.constant dense<0.000000e+00> : vector<8x8xf32>
    %64 = tpu.matmul %61, %62, %cst_21 {dimension_numbers = #tpu.dot_dimension_numbers<[1], [1], [0], [0], [0, 0, 1, 0], [], []>} : vector<8x8xf32>, vector<8x8xf32>, vector<8x8xf32> -> vector<8x8xf32>
    %65 = vector.broadcast %1 : vector<1x8xf32> to vector<8x8xf32>
    %66 = arith.addf %64, %65 : vector<8x8xf32>
    %cst_22 = arith.constant dense<0xFF800000> : vector<8xf32>
    %67 = vector.multi_reduction <maximumf>, %66, %cst_22 [1] : vector<8x8xf32> to vector<8xf32>
    %68 = vector.shape_cast %67 : vector<8xf32> to vector<8x1xf32>
    %69 = vector.broadcast %68 : vector<8x1xf32> to vector<8x8xf32>
    %70 = arith.subf %66, %69 : vector<8x8xf32>
    %71 = math.exp %70 : vector<8x8xf32>
    %cst_23 = arith.constant dense<0.000000e+00> : vector<8xf32>
    %72 = vector.multi_reduction <add>, %71, %cst_23 [1] : vector<8x8xf32> to vector<8xf32>
    %73 = vector.shape_cast %72 : vector<8xf32> to vector<8x1xf32>
    %74 = tpu.reciprocal %73 {approx = true} : vector<8x1xf32> -> vector<8x1xf32>
    %75 = vector.broadcast %74 : vector<8x1xf32> to vector<8x8xf32>
    %76 = arith.mulf %71, %75 : vector<8x8xf32>
    %cst_24 = arith.constant dense<0.000000e+00> : vector<8x8xf32>
    %77 = tpu.matmul %76, %63, %cst_24 {dimension_numbers = #tpu.dot_dimension_numbers<[1], [0], [0], [1], [0, 0, 1, 1], [], []>} : vector<8x8xf32>, vector<8x8xf32>, vector<8x8xf32> -> vector<8x8xf32>
    %78 = tpu.concatenate %26, %43, %60, %77 in 1 : vector<8x8xf32>, vector<8x8xf32>, vector<8x8xf32>, vector<8x8xf32> -> vector<8x32xf32>
    %79 = arith.truncf %78 : vector<8x32xf32> to vector<8x32xbf16>
    %c0_25 = arith.constant 0 : index
    %c0_26 = arith.constant 0 : index
    %c0_27 = arith.constant 0 : index
    %80 = vector.load %arg4[%c0_25, %c0_26, %c0_27] : memref<2x32x32xbf16, #tpu.memory_space<vmem>>, vector<1x32x32xbf16>
    %81 = vector.shape_cast %80 : vector<1x32x32xbf16> to vector<32x32xbf16>
    %cst_28 = arith.constant dense<0.000000e+00> : vector<8x32xf32>
    %82 = tpu.matmul %79, %81, %cst_28 {dimension_numbers = #tpu.dot_dimension_numbers<[1], [0], [0], [1], [0, 0, 1, 1], [], []>} : vector<8x32xbf16>, vector<32x32xbf16>, vector<8x32xf32> -> vector<8x32xf32>
    %c0_29 = arith.constant 0 : index
    %c0_30 = arith.constant 0 : index
    %c0_31 = arith.constant 0 : index
    %83 = vector.load %arg5[%c0_29, %c0_30, %c0_31] : memref<2x1x32xf32, #tpu.memory_space<vmem>>, vector<1x1x32xf32>
    %84 = vector.shape_cast %83 : vector<1x1x32xf32> to vector<1x32xf32>
    %85 = vector.broadcast %84 : vector<1x32xf32> to vector<8x32xf32>
    %86 = arith.addf %82, %85 : vector<8x32xf32>
    %87 = arith.addf %0, %86 : vector<8x32xf32>
    %c0_32 = arith.constant 0 : index
    %c0_33 = arith.constant 0 : index
    %c0_34 = arith.constant 0 : index
    %88 = vector.load %arg16[%c0_32, %c0_33, %c0_34] : memref<2x1x32xf32, #tpu.memory_space<vmem>>, vector<1x1x32xf32>
    %89 = vector.shape_cast %88 : vector<1x1x32xf32> to vector<1x32xf32>
    %c0_35 = arith.constant 0 : index
    %c0_36 = arith.constant 0 : index
    %c0_37 = arith.constant 0 : index
    %90 = vector.load %arg17[%c0_35, %c0_36, %c0_37] : memref<2x1x32xf32, #tpu.memory_space<vmem>>, vector<1x1x32xf32>
    %91 = vector.shape_cast %90 : vector<1x1x32xf32> to vector<1x32xf32>
    %cst_38 = arith.constant dense<0.000000e+00> : vector<8xf32>
    %92 = vector.multi_reduction <add>, %87, %cst_38 [1] : vector<8x32xf32> to vector<8xf32>
    %93 = vector.shape_cast %92 : vector<8xf32> to vector<8x1xf32>
    %cst_39 = arith.constant 3.200000e+01 : f32
    %94 = vector.broadcast %cst_39 : f32 to vector<8x1xf32>
    %95 = arith.divf %93, %94 : vector<8x1xf32>
    %96 = vector.broadcast %95 : vector<8x1xf32> to vector<8x32xf32>
    %97 = arith.subf %87, %96 : vector<8x32xf32>
    %98 = arith.mulf %97, %97 : vector<8x32xf32>
    %cst_40 = arith.constant dense<0.000000e+00> : vector<8xf32>
    %99 = vector.multi_reduction <add>, %98, %cst_40 [1] : vector<8x32xf32> to vector<8xf32>
    %100 = vector.shape_cast %99 : vector<8xf32> to vector<8x1xf32>
    %cst_41 = arith.constant 3.200000e+01 : f32
    %101 = vector.broadcast %cst_41 : f32 to vector<8x1xf32>
    %102 = arith.divf %100, %101 : vector<8x1xf32>
    %103 = vector.broadcast %95 : vector<8x1xf32> to vector<8x32xf32>
    %104 = arith.subf %87, %103 : vector<8x32xf32>
    %cst_42 = arith.constant 9.99999974E-6 : f32
    %105 = vector.broadcast %cst_42 : f32 to vector<8x1xf32>
    %106 = arith.addf %102, %105 : vector<8x1xf32>
    %107 = math.rsqrt %106 : vector<8x1xf32>
    %108 = vector.broadcast %107 : vector<8x1xf32> to vector<8x32xf32>
    %109 = arith.mulf %104, %108 : vector<8x32xf32>
    %110 = vector.broadcast %89 : vector<1x32xf32> to vector<8x32xf32>
    %111 = arith.mulf %109, %110 : vector<8x32xf32>
    %112 = vector.broadcast %91 : vector<1x32xf32> to vector<8x32xf32>
    %113 = arith.addf %111, %112 : vector<8x32xf32>
    %114 = arith.truncf %113 : vector<8x32xf32> to vector<8x32xbf16>
    %c0_43 = arith.constant 0 : index
    %c0_44 = arith.constant 0 : index
    %c0_45 = arith.constant 0 : index
    %115 = vector.load %arg6[%c0_43, %c0_44, %c0_45] : memref<2x32x32xbf16, #tpu.memory_space<vmem>>, vector<1x32x32xbf16>
    %116 = vector.shape_cast %115 : vector<1x32x32xbf16> to vector<32x32xbf16>
    %cst_46 = arith.constant dense<0.000000e+00> : vector<8x32xf32>
    %117 = tpu.matmul %114, %116, %cst_46 {dimension_numbers = #tpu.dot_dimension_numbers<[1], [0], [0], [1], [0, 0, 1, 1], [], []>} : vector<8x32xbf16>, vector<32x32xbf16>, vector<8x32xf32> -> vector<8x32xf32>
    %c0_47 = arith.constant 0 : index
    %c0_48 = arith.constant 0 : index
    %c0_49 = arith.constant 0 : index
    %118 = vector.load %arg7[%c0_47, %c0_48, %c0_49] : memref<2x1x32xf32, #tpu.memory_space<vmem>>, vector<1x1x32xf32>
    %119 = vector.shape_cast %118 : vector<1x1x32xf32> to vector<1x32xf32>
    %120 = vector.broadcast %119 : vector<1x32xf32> to vector<8x32xf32>
    %121 = arith.addf %117, %120 : vector<8x32xf32>
    %c0_50 = arith.constant 0 : index
    %c0_51 = arith.constant 0 : index
    %c0_52 = arith.constant 0 : index
    %122 = vector.load %arg8[%c0_50, %c0_51, %c0_52] : memref<2x32x128xf32, #tpu.memory_space<vmem>>, vector<1x32x128xf32>
    %123 = vector.shape_cast %122 : vector<1x32x128xf32> to vector<32x128xf32>
    %cst_53 = arith.constant dense<0.000000e+00> : vector<8x128xf32>
    %124 = tpu.matmul %121, %123, %cst_53 {dimension_numbers = #tpu.dot_dimension_numbers<[1], [0], [0], [1], [0, 0, 1, 1], [], []>} : vector<8x32xf32>, vector<32x128xf32>, vector<8x128xf32> -> vector<8x128xf32>
    %125 = vector.extract_strided_slice %124 {offsets = [0, 0], sizes = [8, 32], strides = [1, 1]} : vector<8x128xf32> to vector<8x32xf32>
    %cst_54 = arith.constant dense<0xFF800000> : vector<8xf32>
    %126 = vector.multi_reduction <maximumf>, %125, %cst_54 [1] : vector<8x32xf32> to vector<8xf32>
    %127 = vector.shape_cast %126 : vector<8xf32> to vector<8x1xf32>
    %128 = vector.broadcast %127 : vector<8x1xf32> to vector<8x32xf32>
    %129 = arith.subf %125, %128 : vector<8x32xf32>
    %130 = math.exp %129 : vector<8x32xf32>
    %cst_55 = arith.constant dense<0.000000e+00> : vector<8xf32>
    %131 = vector.multi_reduction <add>, %130, %cst_55 [1] : vector<8x32xf32> to vector<8xf32>
    %132 = vector.shape_cast %131 : vector<8xf32> to vector<8x1xf32>
    %133 = tpu.reciprocal %132 {approx = true} : vector<8x1xf32> -> vector<8x1xf32>
    %134 = vector.broadcast %133 : vector<8x1xf32> to vector<8x32xf32>
    %135 = arith.mulf %130, %134 : vector<8x32xf32>
    %136 = vector.extract_strided_slice %124 {offsets = [0, 32], sizes = [8, 32], strides = [1, 1]} : vector<8x128xf32> to vector<8x32xf32>
    %cst_56 = arith.constant dense<0xFF800000> : vector<8xf32>
    %137 = vector.multi_reduction <maximumf>, %136, %cst_56 [1] : vector<8x32xf32> to vector<8xf32>
    %138 = vector.shape_cast %137 : vector<8xf32> to vector<8x1xf32>
    %139 = vector.broadcast %138 : vector<8x1xf32> to vector<8x32xf32>
    %140 = arith.subf %136, %139 : vector<8x32xf32>
    %141 = math.exp %140 : vector<8x32xf32>
    %cst_57 = arith.constant dense<0.000000e+00> : vector<8xf32>
    %142 = vector.multi_reduction <add>, %141, %cst_57 [1] : vector<8x32xf32> to vector<8xf32>
    %143 = vector.shape_cast %142 : vector<8xf32> to vector<8x1xf32>
    %144 = tpu.reciprocal %143 {approx = true} : vector<8x1xf32> -> vector<8x1xf32>
    %145 = vector.broadcast %144 : vector<8x1xf32> to vector<8x32xf32>
    %146 = arith.mulf %141, %145 : vector<8x32xf32>
    %147 = vector.extract_strided_slice %124 {offsets = [0, 64], sizes = [8, 32], strides = [1, 1]} : vector<8x128xf32> to vector<8x32xf32>
    %cst_58 = arith.constant dense<0xFF800000> : vector<8xf32>
    %148 = vector.multi_reduction <maximumf>, %147, %cst_58 [1] : vector<8x32xf32> to vector<8xf32>
    %149 = vector.shape_cast %148 : vector<8xf32> to vector<8x1xf32>
    %150 = vector.broadcast %149 : vector<8x1xf32> to vector<8x32xf32>
    %151 = arith.subf %147, %150 : vector<8x32xf32>
    %152 = math.exp %151 : vector<8x32xf32>
    %cst_59 = arith.constant dense<0.000000e+00> : vector<8xf32>
    %153 = vector.multi_reduction <add>, %152, %cst_59 [1] : vector<8x32xf32> to vector<8xf32>
    %154 = vector.shape_cast %153 : vector<8xf32> to vector<8x1xf32>
    %155 = tpu.reciprocal %154 {approx = true} : vector<8x1xf32> -> vector<8x1xf32>
    %156 = vector.broadcast %155 : vector<8x1xf32> to vector<8x32xf32>
    %157 = arith.mulf %152, %156 : vector<8x32xf32>
    %158 = vector.extract_strided_slice %124 {offsets = [0, 96], sizes = [8, 32], strides = [1, 1]} : vector<8x128xf32> to vector<8x32xf32>
    %cst_60 = arith.constant dense<0xFF800000> : vector<8xf32>
    %159 = vector.multi_reduction <maximumf>, %158, %cst_60 [1] : vector<8x32xf32> to vector<8xf32>
    %160 = vector.shape_cast %159 : vector<8xf32> to vector<8x1xf32>
    %161 = vector.broadcast %160 : vector<8x1xf32> to vector<8x32xf32>
    %162 = arith.subf %158, %161 : vector<8x32xf32>
    %163 = math.exp %162 : vector<8x32xf32>
    %cst_61 = arith.constant dense<0.000000e+00> : vector<8xf32>
    %164 = vector.multi_reduction <add>, %163, %cst_61 [1] : vector<8x32xf32> to vector<8xf32>
    %165 = vector.shape_cast %164 : vector<8xf32> to vector<8x1xf32>
    %166 = tpu.reciprocal %165 {approx = true} : vector<8x1xf32> -> vector<8x1xf32>
    %167 = vector.broadcast %166 : vector<8x1xf32> to vector<8x32xf32>
    %168 = arith.mulf %163, %167 : vector<8x32xf32>
    %169 = tpu.concatenate %135, %146, %157, %168 in 1 : vector<8x32xf32>, vector<8x32xf32>, vector<8x32xf32>, vector<8x32xf32> -> vector<8x128xf32>
    %c0_62 = arith.constant 0 : index
    %c0_63 = arith.constant 0 : index
    %c0_64 = arith.constant 0 : index
    %170 = vector.load %arg9[%c0_62, %c0_63, %c0_64] : memref<2x128x32xf32, #tpu.memory_space<vmem>>, vector<1x128x32xf32>
    %171 = vector.shape_cast %170 : vector<1x128x32xf32> to vector<128x32xf32>
    %cst_65 = arith.constant dense<0.000000e+00> : vector<8x32xf32>
    %172 = tpu.matmul %169, %171, %cst_65 {dimension_numbers = #tpu.dot_dimension_numbers<[1], [0], [0], [1], [0, 0, 1, 1], [], []>} : vector<8x128xf32>, vector<128x32xf32>, vector<8x32xf32> -> vector<8x32xf32>
    %173 = arith.truncf %172 : vector<8x32xf32> to vector<8x32xbf16>
    %c0_66 = arith.constant 0 : index
    %c0_67 = arith.constant 0 : index
    %c0_68 = arith.constant 0 : index
    %174 = vector.load %arg10[%c0_66, %c0_67, %c0_68] : memref<2x32x32xbf16, #tpu.memory_space<vmem>>, vector<1x32x32xbf16>
    %175 = vector.shape_cast %174 : vector<1x32x32xbf16> to vector<32x32xbf16>
    %cst_69 = arith.constant dense<0.000000e+00> : vector<8x32xf32>
    %176 = tpu.matmul %173, %175, %cst_69 {dimension_numbers = #tpu.dot_dimension_numbers<[1], [0], [0], [1], [0, 0, 1, 1], [], []>} : vector<8x32xbf16>, vector<32x32xbf16>, vector<8x32xf32> -> vector<8x32xf32>
    %c0_70 = arith.constant 0 : index
    %c0_71 = arith.constant 0 : index
    %c0_72 = arith.constant 0 : index
    %177 = vector.load %arg11[%c0_70, %c0_71, %c0_72] : memref<2x1x32xf32, #tpu.memory_space<vmem>>, vector<1x1x32xf32>
    %178 = vector.shape_cast %177 : vector<1x1x32xf32> to vector<1x32xf32>
    %179 = vector.broadcast %178 : vector<1x32xf32> to vector<8x32xf32>
    %180 = arith.addf %176, %179 : vector<8x32xf32>
    %181 = arith.addf %113, %180 : vector<8x32xf32>
    %c0_73 = arith.constant 0 : index
    %c0_74 = arith.constant 0 : index
    %c0_75 = arith.constant 0 : index
    %182 = vector.load %arg18[%c0_73, %c0_74, %c0_75] : memref<2x1x32xf32, #tpu.memory_space<vmem>>, vector<1x1x32xf32>
    %183 = vector.shape_cast %182 : vector<1x1x32xf32> to vector<1x32xf32>
    %c0_76 = arith.constant 0 : index
    %c0_77 = arith.constant 0 : index
    %c0_78 = arith.constant 0 : index
    %184 = vector.load %arg19[%c0_76, %c0_77, %c0_78] : memref<2x1x32xf32, #tpu.memory_space<vmem>>, vector<1x1x32xf32>
    %185 = vector.shape_cast %184 : vector<1x1x32xf32> to vector<1x32xf32>
    %cst_79 = arith.constant dense<0.000000e+00> : vector<8xf32>
    %186 = vector.multi_reduction <add>, %181, %cst_79 [1] : vector<8x32xf32> to vector<8xf32>
    %187 = vector.shape_cast %186 : vector<8xf32> to vector<8x1xf32>
    %cst_80 = arith.constant 3.200000e+01 : f32
    %188 = vector.broadcast %cst_80 : f32 to vector<8x1xf32>
    %189 = arith.divf %187, %188 : vector<8x1xf32>
    %190 = vector.broadcast %189 : vector<8x1xf32> to vector<8x32xf32>
    %191 = arith.subf %181, %190 : vector<8x32xf32>
    %192 = arith.mulf %191, %191 : vector<8x32xf32>
    %cst_81 = arith.constant dense<0.000000e+00> : vector<8xf32>
    %193 = vector.multi_reduction <add>, %192, %cst_81 [1] : vector<8x32xf32> to vector<8xf32>
    %194 = vector.shape_cast %193 : vector<8xf32> to vector<8x1xf32>
    %cst_82 = arith.constant 3.200000e+01 : f32
    %195 = vector.broadcast %cst_82 : f32 to vector<8x1xf32>
    %196 = arith.divf %194, %195 : vector<8x1xf32>
    %197 = vector.broadcast %189 : vector<8x1xf32> to vector<8x32xf32>
    %198 = arith.subf %181, %197 : vector<8x32xf32>
    %cst_83 = arith.constant 9.99999974E-6 : f32
    %199 = vector.broadcast %cst_83 : f32 to vector<8x1xf32>
    %200 = arith.addf %196, %199 : vector<8x1xf32>
    %201 = math.rsqrt %200 : vector<8x1xf32>
    %202 = vector.broadcast %201 : vector<8x1xf32> to vector<8x32xf32>
    %203 = arith.mulf %198, %202 : vector<8x32xf32>
    %204 = vector.broadcast %183 : vector<1x32xf32> to vector<8x32xf32>
    %205 = arith.mulf %203, %204 : vector<8x32xf32>
    %206 = vector.broadcast %185 : vector<1x32xf32> to vector<8x32xf32>
    %207 = arith.addf %205, %206 : vector<8x32xf32>
    %208 = arith.truncf %207 : vector<8x32xf32> to vector<8x32xbf16>
    %c0_84 = arith.constant 0 : index
    %c0_85 = arith.constant 0 : index
    %c0_86 = arith.constant 0 : index
    %209 = vector.load %arg12[%c0_84, %c0_85, %c0_86] : memref<2x32x2048xbf16, #tpu.memory_space<vmem>>, vector<1x32x2048xbf16>
    %210 = vector.shape_cast %209 : vector<1x32x2048xbf16> to vector<32x2048xbf16>
    %cst_87 = arith.constant dense<0.000000e+00> : vector<8x2048xf32>
    %211 = tpu.matmul %208, %210, %cst_87 {dimension_numbers = #tpu.dot_dimension_numbers<[1], [0], [0], [1], [0, 0, 1, 1], [], []>} : vector<8x32xbf16>, vector<32x2048xbf16>, vector<8x2048xf32> -> vector<8x2048xf32>
    %c0_88 = arith.constant 0 : index
    %c0_89 = arith.constant 0 : index
    %c0_90 = arith.constant 0 : index
    %212 = vector.load %arg13[%c0_88, %c0_89, %c0_90] : memref<2x1x2048xf32, #tpu.memory_space<vmem>>, vector<1x1x2048xf32>
    %213 = vector.shape_cast %212 : vector<1x1x2048xf32> to vector<1x2048xf32>
    %214 = vector.broadcast %213 : vector<1x2048xf32> to vector<8x2048xf32>
    %215 = arith.addf %211, %214 : vector<8x2048xf32>
    %cst_91 = arith.constant 5.000000e-01 : f32
    %216 = vector.broadcast %cst_91 : f32 to vector<8x2048xf32>
    %217 = arith.mulf %216, %215 : vector<8x2048xf32>
    %cst_92 = arith.constant 4.471500e-02 : f32
    %218 = vector.broadcast %cst_92 : f32 to vector<8x2048xf32>
    %219 = arith.mulf %218, %215 : vector<8x2048xf32>
    %220 = arith.mulf %219, %215 : vector<8x2048xf32>
    %221 = arith.mulf %220, %215 : vector<8x2048xf32>
    %222 = arith.addf %215, %221 : vector<8x2048xf32>
    %cst_93 = arith.constant 0.797884583 : f32
    %223 = vector.broadcast %cst_93 : f32 to vector<8x2048xf32>
    %224 = arith.mulf %223, %222 : vector<8x2048xf32>
    %225 = math.tanh %224 : vector<8x2048xf32>
    %cst_94 = arith.constant 1.000000e+00 : f32
    %226 = vector.broadcast %cst_94 : f32 to vector<8x2048xf32>
    %227 = arith.addf %226, %225 : vector<8x2048xf32>
    %228 = arith.mulf %217, %227 : vector<8x2048xf32>
    %229 = arith.truncf %228 : vector<8x2048xf32> to vector<8x2048xbf16>
    %c0_95 = arith.constant 0 : index
    %c0_96 = arith.constant 0 : index
    %c0_97 = arith.constant 0 : index
    %230 = vector.load %arg14[%c0_95, %c0_96, %c0_97] : memref<2x2048x32xbf16, #tpu.memory_space<vmem>>, vector<1x2048x32xbf16>
    %231 = vector.shape_cast %230 : vector<1x2048x32xbf16> to vector<2048x32xbf16>
    %cst_98 = arith.constant dense<0.000000e+00> : vector<8x32xf32>
    %232 = tpu.matmul %229, %231, %cst_98 {dimension_numbers = #tpu.dot_dimension_numbers<[1], [0], [0], [1], [0, 0, 1, 1], [], []>} : vector<8x2048xbf16>, vector<2048x32xbf16>, vector<8x32xf32> -> vector<8x32xf32>
    %c0_99 = arith.constant 0 : index
    %c0_100 = arith.constant 0 : index
    %c0_101 = arith.constant 0 : index
    %233 = vector.load %arg15[%c0_99, %c0_100, %c0_101] : memref<2x1x32xf32, #tpu.memory_space<vmem>>, vector<1x1x32xf32>
    %234 = vector.shape_cast %233 : vector<1x1x32xf32> to vector<1x32xf32>
    %235 = vector.broadcast %234 : vector<1x32xf32> to vector<8x32xf32>
    %236 = arith.addf %232, %235 : vector<8x32xf32>
    %237 = arith.addf %207, %236 : vector<8x32xf32>
    %c0_102 = arith.constant 0 : index
    %c0_103 = arith.constant 0 : index
    %c0_104 = arith.constant 0 : index
    %238 = vector.load %arg20[%c0_102, %c0_103, %c0_104] : memref<2x1x32xf32, #tpu.memory_space<vmem>>, vector<1x1x32xf32>
    %239 = vector.shape_cast %238 : vector<1x1x32xf32> to vector<1x32xf32>
    %c0_105 = arith.constant 0 : index
    %c0_106 = arith.constant 0 : index
    %c0_107 = arith.constant 0 : index
    %240 = vector.load %arg21[%c0_105, %c0_106, %c0_107] : memref<2x1x32xf32, #tpu.memory_space<vmem>>, vector<1x1x32xf32>
    %241 = vector.shape_cast %240 : vector<1x1x32xf32> to vector<1x32xf32>
    %cst_108 = arith.constant dense<0.000000e+00> : vector<8xf32>
    %242 = vector.multi_reduction <add>, %237, %cst_108 [1] : vector<8x32xf32> to vector<8xf32>
    %243 = vector.shape_cast %242 : vector<8xf32> to vector<8x1xf32>
    %cst_109 = arith.constant 3.200000e+01 : f32
    %244 = vector.broadcast %cst_109 : f32 to vector<8x1xf32>
    %245 = arith.divf %243, %244 : vector<8x1xf32>
    %246 = vector.broadcast %245 : vector<8x1xf32> to vector<8x32xf32>
    %247 = arith.subf %237, %246 : vector<8x32xf32>
    %248 = arith.mulf %247, %247 : vector<8x32xf32>
    %cst_110 = arith.constant dense<0.000000e+00> : vector<8xf32>
    %249 = vector.multi_reduction <add>, %248, %cst_110 [1] : vector<8x32xf32> to vector<8xf32>
    %250 = vector.shape_cast %249 : vector<8xf32> to vector<8x1xf32>
    %cst_111 = arith.constant 3.200000e+01 : f32
    %251 = vector.broadcast %cst_111 : f32 to vector<8x1xf32>
    %252 = arith.divf %250, %251 : vector<8x1xf32>
    %253 = vector.broadcast %245 : vector<8x1xf32> to vector<8x32xf32>
    %254 = arith.subf %237, %253 : vector<8x32xf32>
    %cst_112 = arith.constant 9.99999974E-6 : f32
    %255 = vector.broadcast %cst_112 : f32 to vector<8x1xf32>
    %256 = arith.addf %252, %255 : vector<8x1xf32>
    %257 = math.rsqrt %256 : vector<8x1xf32>
    %258 = vector.broadcast %257 : vector<8x1xf32> to vector<8x32xf32>
    %259 = arith.mulf %254, %258 : vector<8x32xf32>
    %260 = vector.broadcast %239 : vector<1x32xf32> to vector<8x32xf32>
    %261 = arith.mulf %259, %260 : vector<8x32xf32>
    %262 = vector.broadcast %241 : vector<1x32xf32> to vector<8x32xf32>
    %263 = arith.addf %261, %262 : vector<8x32xf32>
    %264 = arith.truncf %263 : vector<8x32xf32> to vector<8x32xbf16>
    %c1 = arith.constant 1 : index
    %c0_113 = arith.constant 0 : index
    %c0_114 = arith.constant 0 : index
    %265 = vector.load %arg2[%c1, %c0_113, %c0_114] : memref<2x32x96xbf16, #tpu.memory_space<vmem>>, vector<1x32x96xbf16>
    %266 = vector.shape_cast %265 : vector<1x32x96xbf16> to vector<32x96xbf16>
    %cst_115 = arith.constant dense<0.000000e+00> : vector<8x96xf32>
    %267 = tpu.matmul %264, %266, %cst_115 {dimension_numbers = #tpu.dot_dimension_numbers<[1], [0], [0], [1], [0, 0, 1, 1], [], []>} : vector<8x32xbf16>, vector<32x96xbf16>, vector<8x96xf32> -> vector<8x96xf32>
    %c1_116 = arith.constant 1 : index
    %c0_117 = arith.constant 0 : index
    %c0_118 = arith.constant 0 : index
    %268 = vector.load %arg3[%c1_116, %c0_117, %c0_118] : memref<2x1x96xf32, #tpu.memory_space<vmem>>, vector<1x1x96xf32>
    %269 = vector.shape_cast %268 : vector<1x1x96xf32> to vector<1x96xf32>
    %270 = vector.broadcast %269 : vector<1x96xf32> to vector<8x96xf32>
    %271 = arith.addf %267, %270 : vector<8x96xf32>
    %272 = vector.extract_strided_slice %271 {offsets = [0, 0], sizes = [8, 8], strides = [1, 1]} : vector<8x96xf32> to vector<8x8xf32>
    %273 = vector.extract_strided_slice %271 {offsets = [0, 32], sizes = [8, 8], strides = [1, 1]} : vector<8x96xf32> to vector<8x8xf32>
    %274 = vector.extract_strided_slice %271 {offsets = [0, 64], sizes = [8, 8], strides = [1, 1]} : vector<8x96xf32> to vector<8x8xf32>
    %cst_119 = arith.constant dense<0.000000e+00> : vector<8x8xf32>
    %275 = tpu.matmul %272, %273, %cst_119 {dimension_numbers = #tpu.dot_dimension_numbers<[1], [1], [0], [0], [0, 0, 1, 0], [], []>} : vector<8x8xf32>, vector<8x8xf32>, vector<8x8xf32> -> vector<8x8xf32>
    %276 = vector.broadcast %1 : vector<1x8xf32> to vector<8x8xf32>
    %277 = arith.addf %275, %276 : vector<8x8xf32>
    %cst_120 = arith.constant dense<0xFF800000> : vector<8xf32>
    %278 = vector.multi_reduction <maximumf>, %277, %cst_120 [1] : vector<8x8xf32> to vector<8xf32>
    %279 = vector.shape_cast %278 : vector<8xf32> to vector<8x1xf32>
    %280 = vector.broadcast %279 : vector<8x1xf32> to vector<8x8xf32>
    %281 = arith.subf %277, %280 : vector<8x8xf32>
    %282 = math.exp %281 : vector<8x8xf32>
    %cst_121 = arith.constant dense<0.000000e+00> : vector<8xf32>
    %283 = vector.multi_reduction <add>, %282, %cst_121 [1] : vector<8x8xf32> to vector<8xf32>
    %284 = vector.shape_cast %283 : vector<8xf32> to vector<8x1xf32>
    %285 = tpu.reciprocal %284 {approx = true} : vector<8x1xf32> -> vector<8x1xf32>
    %286 = vector.broadcast %285 : vector<8x1xf32> to vector<8x8xf32>
    %287 = arith.mulf %282, %286 : vector<8x8xf32>
    %cst_122 = arith.constant dense<0.000000e+00> : vector<8x8xf32>
    %288 = tpu.matmul %287, %274, %cst_122 {dimension_numbers = #tpu.dot_dimension_numbers<[1], [0], [0], [1], [0, 0, 1, 1], [], []>} : vector<8x8xf32>, vector<8x8xf32>, vector<8x8xf32> -> vector<8x8xf32>
    %289 = vector.extract_strided_slice %271 {offsets = [0, 8], sizes = [8, 8], strides = [1, 1]} : vector<8x96xf32> to vector<8x8xf32>
    %290 = vector.extract_strided_slice %271 {offsets = [0, 40], sizes = [8, 8], strides = [1, 1]} : vector<8x96xf32> to vector<8x8xf32>
    %291 = vector.extract_strided_slice %271 {offsets = [0, 72], sizes = [8, 8], strides = [1, 1]} : vector<8x96xf32> to vector<8x8xf32>
    %cst_123 = arith.constant dense<0.000000e+00> : vector<8x8xf32>
    %292 = tpu.matmul %289, %290, %cst_123 {dimension_numbers = #tpu.dot_dimension_numbers<[1], [1], [0], [0], [0, 0, 1, 0], [], []>} : vector<8x8xf32>, vector<8x8xf32>, vector<8x8xf32> -> vector<8x8xf32>
    %293 = vector.broadcast %1 : vector<1x8xf32> to vector<8x8xf32>
    %294 = arith.addf %292, %293 : vector<8x8xf32>
    %cst_124 = arith.constant dense<0xFF800000> : vector<8xf32>
    %295 = vector.multi_reduction <maximumf>, %294, %cst_124 [1] : vector<8x8xf32> to vector<8xf32>
    %296 = vector.shape_cast %295 : vector<8xf32> to vector<8x1xf32>
    %297 = vector.broadcast %296 : vector<8x1xf32> to vector<8x8xf32>
    %298 = arith.subf %294, %297 : vector<8x8xf32>
    %299 = math.exp %298 : vector<8x8xf32>
    %cst_125 = arith.constant dense<0.000000e+00> : vector<8xf32>
    %300 = vector.multi_reduction <add>, %299, %cst_125 [1] : vector<8x8xf32> to vector<8xf32>
    %301 = vector.shape_cast %300 : vector<8xf32> to vector<8x1xf32>
    %302 = tpu.reciprocal %301 {approx = true} : vector<8x1xf32> -> vector<8x1xf32>
    %303 = vector.broadcast %302 : vector<8x1xf32> to vector<8x8xf32>
    %304 = arith.mulf %299, %303 : vector<8x8xf32>
    %cst_126 = arith.constant dense<0.000000e+00> : vector<8x8xf32>
    %305 = tpu.matmul %304, %291, %cst_126 {dimension_numbers = #tpu.dot_dimension_numbers<[1], [0], [0], [1], [0, 0, 1, 1], [], []>} : vector<8x8xf32>, vector<8x8xf32>, vector<8x8xf32> -> vector<8x8xf32>
    %306 = vector.extract_strided_slice %271 {offsets = [0, 16], sizes = [8, 8], strides = [1, 1]} : vector<8x96xf32> to vector<8x8xf32>
    %307 = vector.extract_strided_slice %271 {offsets = [0, 48], sizes = [8, 8], strides = [1, 1]} : vector<8x96xf32> to vector<8x8xf32>
    %308 = vector.extract_strided_slice %271 {offsets = [0, 80], sizes = [8, 8], strides = [1, 1]} : vector<8x96xf32> to vector<8x8xf32>
    %cst_127 = arith.constant dense<0.000000e+00> : vector<8x8xf32>
    %309 = tpu.matmul %306, %307, %cst_127 {dimension_numbers = #tpu.dot_dimension_numbers<[1], [1], [0], [0], [0, 0, 1, 0], [], []>} : vector<8x8xf32>, vector<8x8xf32>, vector<8x8xf32> -> vector<8x8xf32>
    %310 = vector.broadcast %1 : vector<1x8xf32> to vector<8x8xf32>
    %311 = arith.addf %309, %310 : vector<8x8xf32>
    %cst_128 = arith.constant dense<0xFF800000> : vector<8xf32>
    %312 = vector.multi_reduction <maximumf>, %311, %cst_128 [1] : vector<8x8xf32> to vector<8xf32>
    %313 = vector.shape_cast %312 : vector<8xf32> to vector<8x1xf32>
    %314 = vector.broadcast %313 : vector<8x1xf32> to vector<8x8xf32>
    %315 = arith.subf %311, %314 : vector<8x8xf32>
    %316 = math.exp %315 : vector<8x8xf32>
    %cst_129 = arith.constant dense<0.000000e+00> : vector<8xf32>
    %317 = vector.multi_reduction <add>, %316, %cst_129 [1] : vector<8x8xf32> to vector<8xf32>
    %318 = vector.shape_cast %317 : vector<8xf32> to vector<8x1xf32>
    %319 = tpu.reciprocal %318 {approx = true} : vector<8x1xf32> -> vector<8x1xf32>
    %320 = vector.broadcast %319 : vector<8x1xf32> to vector<8x8xf32>
    %321 = arith.mulf %316, %320 : vector<8x8xf32>
    %cst_130 = arith.constant dense<0.000000e+00> : vector<8x8xf32>
    %322 = tpu.matmul %321, %308, %cst_130 {dimension_numbers = #tpu.dot_dimension_numbers<[1], [0], [0], [1], [0, 0, 1, 1], [], []>} : vector<8x8xf32>, vector<8x8xf32>, vector<8x8xf32> -> vector<8x8xf32>
    %323 = vector.extract_strided_slice %271 {offsets = [0, 24], sizes = [8, 8], strides = [1, 1]} : vector<8x96xf32> to vector<8x8xf32>
    %324 = vector.extract_strided_slice %271 {offsets = [0, 56], sizes = [8, 8], strides = [1, 1]} : vector<8x96xf32> to vector<8x8xf32>
    %325 = vector.extract_strided_slice %271 {offsets = [0, 88], sizes = [8, 8], strides = [1, 1]} : vector<8x96xf32> to vector<8x8xf32>
    %cst_131 = arith.constant dense<0.000000e+00> : vector<8x8xf32>
    %326 = tpu.matmul %323, %324, %cst_131 {dimension_numbers = #tpu.dot_dimension_numbers<[1], [1], [0], [0], [0, 0, 1, 0], [], []>} : vector<8x8xf32>, vector<8x8xf32>, vector<8x8xf32> -> vector<8x8xf32>
    %327 = vector.broadcast %1 : vector<1x8xf32> to vector<8x8xf32>
    %328 = arith.addf %326, %327 : vector<8x8xf32>
    %cst_132 = arith.constant dense<0xFF800000> : vector<8xf32>
    %329 = vector.multi_reduction <maximumf>, %328, %cst_132 [1] : vector<8x8xf32> to vector<8xf32>
    %330 = vector.shape_cast %329 : vector<8xf32> to vector<8x1xf32>
    %331 = vector.broadcast %330 : vector<8x1xf32> to vector<8x8xf32>
    %332 = arith.subf %328, %331 : vector<8x8xf32>
    %333 = math.exp %332 : vector<8x8xf32>
    %cst_133 = arith.constant dense<0.000000e+00> : vector<8xf32>
    %334 = vector.multi_reduction <add>, %333, %cst_133 [1] : vector<8x8xf32> to vector<8xf32>
    %335 = vector.shape_cast %334 : vector<8xf32> to vector<8x1xf32>
    %336 = tpu.reciprocal %335 {approx = true} : vector<8x1xf32> -> vector<8x1xf32>
    %337 = vector.broadcast %336 : vector<8x1xf32> to vector<8x8xf32>
    %338 = arith.mulf %333, %337 : vector<8x8xf32>
    %cst_134 = arith.constant dense<0.000000e+00> : vector<8x8xf32>
    %339 = tpu.matmul %338, %325, %cst_134 {dimension_numbers = #tpu.dot_dimension_numbers<[1], [0], [0], [1], [0, 0, 1, 1], [], []>} : vector<8x8xf32>, vector<8x8xf32>, vector<8x8xf32> -> vector<8x8xf32>
    %340 = tpu.concatenate %288, %305, %322, %339 in 1 : vector<8x8xf32>, vector<8x8xf32>, vector<8x8xf32>, vector<8x8xf32> -> vector<8x32xf32>
    %341 = arith.truncf %340 : vector<8x32xf32> to vector<8x32xbf16>
    %c1_135 = arith.constant 1 : index
    %c0_136 = arith.constant 0 : index
    %c0_137 = arith.constant 0 : index
    %342 = vector.load %arg4[%c1_135, %c0_136, %c0_137] : memref<2x32x32xbf16, #tpu.memory_space<vmem>>, vector<1x32x32xbf16>
    %343 = vector.shape_cast %342 : vector<1x32x32xbf16> to vector<32x32xbf16>
    %cst_138 = arith.constant dense<0.000000e+00> : vector<8x32xf32>
    %344 = tpu.matmul %341, %343, %cst_138 {dimension_numbers = #tpu.dot_dimension_numbers<[1], [0], [0], [1], [0, 0, 1, 1], [], []>} : vector<8x32xbf16>, vector<32x32xbf16>, vector<8x32xf32> -> vector<8x32xf32>
    %c1_139 = arith.constant 1 : index
    %c0_140 = arith.constant 0 : index
    %c0_141 = arith.constant 0 : index
    %345 = vector.load %arg5[%c1_139, %c0_140, %c0_141] : memref<2x1x32xf32, #tpu.memory_space<vmem>>, vector<1x1x32xf32>
    %346 = vector.shape_cast %345 : vector<1x1x32xf32> to vector<1x32xf32>
    %347 = vector.broadcast %346 : vector<1x32xf32> to vector<8x32xf32>
    %348 = arith.addf %344, %347 : vector<8x32xf32>
    %349 = arith.addf %263, %348 : vector<8x32xf32>
    %c1_142 = arith.constant 1 : index
    %c0_143 = arith.constant 0 : index
    %c0_144 = arith.constant 0 : index
    %350 = vector.load %arg16[%c1_142, %c0_143, %c0_144] : memref<2x1x32xf32, #tpu.memory_space<vmem>>, vector<1x1x32xf32>
    %351 = vector.shape_cast %350 : vector<1x1x32xf32> to vector<1x32xf32>
    %c1_145 = arith.constant 1 : index
    %c0_146 = arith.constant 0 : index
    %c0_147 = arith.constant 0 : index
    %352 = vector.load %arg17[%c1_145, %c0_146, %c0_147] : memref<2x1x32xf32, #tpu.memory_space<vmem>>, vector<1x1x32xf32>
    %353 = vector.shape_cast %352 : vector<1x1x32xf32> to vector<1x32xf32>
    %cst_148 = arith.constant dense<0.000000e+00> : vector<8xf32>
    %354 = vector.multi_reduction <add>, %349, %cst_148 [1] : vector<8x32xf32> to vector<8xf32>
    %355 = vector.shape_cast %354 : vector<8xf32> to vector<8x1xf32>
    %cst_149 = arith.constant 3.200000e+01 : f32
    %356 = vector.broadcast %cst_149 : f32 to vector<8x1xf32>
    %357 = arith.divf %355, %356 : vector<8x1xf32>
    %358 = vector.broadcast %357 : vector<8x1xf32> to vector<8x32xf32>
    %359 = arith.subf %349, %358 : vector<8x32xf32>
    %360 = arith.mulf %359, %359 : vector<8x32xf32>
    %cst_150 = arith.constant dense<0.000000e+00> : vector<8xf32>
    %361 = vector.multi_reduction <add>, %360, %cst_150 [1] : vector<8x32xf32> to vector<8xf32>
    %362 = vector.shape_cast %361 : vector<8xf32> to vector<8x1xf32>
    %cst_151 = arith.constant 3.200000e+01 : f32
    %363 = vector.broadcast %cst_151 : f32 to vector<8x1xf32>
    %364 = arith.divf %362, %363 : vector<8x1xf32>
    %365 = vector.broadcast %357 : vector<8x1xf32> to vector<8x32xf32>
    %366 = arith.subf %349, %365 : vector<8x32xf32>
    %cst_152 = arith.constant 9.99999974E-6 : f32
    %367 = vector.broadcast %cst_152 : f32 to vector<8x1xf32>
    %368 = arith.addf %364, %367 : vector<8x1xf32>
    %369 = math.rsqrt %368 : vector<8x1xf32>
    %370 = vector.broadcast %369 : vector<8x1xf32> to vector<8x32xf32>
    %371 = arith.mulf %366, %370 : vector<8x32xf32>
    %372 = vector.broadcast %351 : vector<1x32xf32> to vector<8x32xf32>
    %373 = arith.mulf %371, %372 : vector<8x32xf32>
    %374 = vector.broadcast %353 : vector<1x32xf32> to vector<8x32xf32>
    %375 = arith.addf %373, %374 : vector<8x32xf32>
    %376 = arith.truncf %375 : vector<8x32xf32> to vector<8x32xbf16>
    %c1_153 = arith.constant 1 : index
    %c0_154 = arith.constant 0 : index
    %c0_155 = arith.constant 0 : index
    %377 = vector.load %arg6[%c1_153, %c0_154, %c0_155] : memref<2x32x32xbf16, #tpu.memory_space<vmem>>, vector<1x32x32xbf16>
    %378 = vector.shape_cast %377 : vector<1x32x32xbf16> to vector<32x32xbf16>
    %cst_156 = arith.constant dense<0.000000e+00> : vector<8x32xf32>
    %379 = tpu.matmul %376, %378, %cst_156 {dimension_numbers = #tpu.dot_dimension_numbers<[1], [0], [0], [1], [0, 0, 1, 1], [], []>} : vector<8x32xbf16>, vector<32x32xbf16>, vector<8x32xf32> -> vector<8x32xf32>
    %c1_157 = arith.constant 1 : index
    %c0_158 = arith.constant 0 : index
    %c0_159 = arith.constant 0 : index
    %380 = vector.load %arg7[%c1_157, %c0_158, %c0_159] : memref<2x1x32xf32, #tpu.memory_space<vmem>>, vector<1x1x32xf32>
    %381 = vector.shape_cast %380 : vector<1x1x32xf32> to vector<1x32xf32>
    %382 = vector.broadcast %381 : vector<1x32xf32> to vector<8x32xf32>
    %383 = arith.addf %379, %382 : vector<8x32xf32>
    %c1_160 = arith.constant 1 : index
    %c0_161 = arith.constant 0 : index
    %c0_162 = arith.constant 0 : index
    %384 = vector.load %arg8[%c1_160, %c0_161, %c0_162] : memref<2x32x128xf32, #tpu.memory_space<vmem>>, vector<1x32x128xf32>
    %385 = vector.shape_cast %384 : vector<1x32x128xf32> to vector<32x128xf32>
    %cst_163 = arith.constant dense<0.000000e+00> : vector<8x128xf32>
    %386 = tpu.matmul %383, %385, %cst_163 {dimension_numbers = #tpu.dot_dimension_numbers<[1], [0], [0], [1], [0, 0, 1, 1], [], []>} : vector<8x32xf32>, vector<32x128xf32>, vector<8x128xf32> -> vector<8x128xf32>
    %387 = vector.extract_strided_slice %386 {offsets = [0, 0], sizes = [8, 32], strides = [1, 1]} : vector<8x128xf32> to vector<8x32xf32>
    %cst_164 = arith.constant dense<0xFF800000> : vector<8xf32>
    %388 = vector.multi_reduction <maximumf>, %387, %cst_164 [1] : vector<8x32xf32> to vector<8xf32>
    %389 = vector.shape_cast %388 : vector<8xf32> to vector<8x1xf32>
    %390 = vector.broadcast %389 : vector<8x1xf32> to vector<8x32xf32>
    %391 = arith.subf %387, %390 : vector<8x32xf32>
    %392 = math.exp %391 : vector<8x32xf32>
    %cst_165 = arith.constant dense<0.000000e+00> : vector<8xf32>
    %393 = vector.multi_reduction <add>, %392, %cst_165 [1] : vector<8x32xf32> to vector<8xf32>
    %394 = vector.shape_cast %393 : vector<8xf32> to vector<8x1xf32>
    %395 = tpu.reciprocal %394 {approx = true} : vector<8x1xf32> -> vector<8x1xf32>
    %396 = vector.broadcast %395 : vector<8x1xf32> to vector<8x32xf32>
    %397 = arith.mulf %392, %396 : vector<8x32xf32>
    %398 = vector.extract_strided_slice %386 {offsets = [0, 32], sizes = [8, 32], strides = [1, 1]} : vector<8x128xf32> to vector<8x32xf32>
    %cst_166 = arith.constant dense<0xFF800000> : vector<8xf32>
    %399 = vector.multi_reduction <maximumf>, %398, %cst_166 [1] : vector<8x32xf32> to vector<8xf32>
    %400 = vector.shape_cast %399 : vector<8xf32> to vector<8x1xf32>
    %401 = vector.broadcast %400 : vector<8x1xf32> to vector<8x32xf32>
    %402 = arith.subf %398, %401 : vector<8x32xf32>
    %403 = math.exp %402 : vector<8x32xf32>
    %cst_167 = arith.constant dense<0.000000e+00> : vector<8xf32>
    %404 = vector.multi_reduction <add>, %403, %cst_167 [1] : vector<8x32xf32> to vector<8xf32>
    %405 = vector.shape_cast %404 : vector<8xf32> to vector<8x1xf32>
    %406 = tpu.reciprocal %405 {approx = true} : vector<8x1xf32> -> vector<8x1xf32>
    %407 = vector.broadcast %406 : vector<8x1xf32> to vector<8x32xf32>
    %408 = arith.mulf %403, %407 : vector<8x32xf32>
    %409 = vector.extract_strided_slice %386 {offsets = [0, 64], sizes = [8, 32], strides = [1, 1]} : vector<8x128xf32> to vector<8x32xf32>
    %cst_168 = arith.constant dense<0xFF800000> : vector<8xf32>
    %410 = vector.multi_reduction <maximumf>, %409, %cst_168 [1] : vector<8x32xf32> to vector<8xf32>
    %411 = vector.shape_cast %410 : vector<8xf32> to vector<8x1xf32>
    %412 = vector.broadcast %411 : vector<8x1xf32> to vector<8x32xf32>
    %413 = arith.subf %409, %412 : vector<8x32xf32>
    %414 = math.exp %413 : vector<8x32xf32>
    %cst_169 = arith.constant dense<0.000000e+00> : vector<8xf32>
    %415 = vector.multi_reduction <add>, %414, %cst_169 [1] : vector<8x32xf32> to vector<8xf32>
    %416 = vector.shape_cast %415 : vector<8xf32> to vector<8x1xf32>
    %417 = tpu.reciprocal %416 {approx = true} : vector<8x1xf32> -> vector<8x1xf32>
    %418 = vector.broadcast %417 : vector<8x1xf32> to vector<8x32xf32>
    %419 = arith.mulf %414, %418 : vector<8x32xf32>
    %420 = vector.extract_strided_slice %386 {offsets = [0, 96], sizes = [8, 32], strides = [1, 1]} : vector<8x128xf32> to vector<8x32xf32>
    %cst_170 = arith.constant dense<0xFF800000> : vector<8xf32>
    %421 = vector.multi_reduction <maximumf>, %420, %cst_170 [1] : vector<8x32xf32> to vector<8xf32>
    %422 = vector.shape_cast %421 : vector<8xf32> to vector<8x1xf32>
    %423 = vector.broadcast %422 : vector<8x1xf32> to vector<8x32xf32>
    %424 = arith.subf %420, %423 : vector<8x32xf32>
    %425 = math.exp %424 : vector<8x32xf32>
    %cst_171 = arith.constant dense<0.000000e+00> : vector<8xf32>
    %426 = vector.multi_reduction <add>, %425, %cst_171 [1] : vector<8x32xf32> to vector<8xf32>
    %427 = vector.shape_cast %426 : vector<8xf32> to vector<8x1xf32>
    %428 = tpu.reciprocal %427 {approx = true} : vector<8x1xf32> -> vector<8x1xf32>
    %429 = vector.broadcast %428 : vector<8x1xf32> to vector<8x32xf32>
    %430 = arith.mulf %425, %429 : vector<8x32xf32>
    %431 = tpu.concatenate %397, %408, %419, %430 in 1 : vector<8x32xf32>, vector<8x32xf32>, vector<8x32xf32>, vector<8x32xf32> -> vector<8x128xf32>
    %c1_172 = arith.constant 1 : index
    %c0_173 = arith.constant 0 : index
    %c0_174 = arith.constant 0 : index
    %432 = vector.load %arg9[%c1_172, %c0_173, %c0_174] : memref<2x128x32xf32, #tpu.memory_space<vmem>>, vector<1x128x32xf32>
    %433 = vector.shape_cast %432 : vector<1x128x32xf32> to vector<128x32xf32>
    %cst_175 = arith.constant dense<0.000000e+00> : vector<8x32xf32>
    %434 = tpu.matmul %431, %433, %cst_175 {dimension_numbers = #tpu.dot_dimension_numbers<[1], [0], [0], [1], [0, 0, 1, 1], [], []>} : vector<8x128xf32>, vector<128x32xf32>, vector<8x32xf32> -> vector<8x32xf32>
    %435 = arith.truncf %434 : vector<8x32xf32> to vector<8x32xbf16>
    %c1_176 = arith.constant 1 : index
    %c0_177 = arith.constant 0 : index
    %c0_178 = arith.constant 0 : index
    %436 = vector.load %arg10[%c1_176, %c0_177, %c0_178] : memref<2x32x32xbf16, #tpu.memory_space<vmem>>, vector<1x32x32xbf16>
    %437 = vector.shape_cast %436 : vector<1x32x32xbf16> to vector<32x32xbf16>
    %cst_179 = arith.constant dense<0.000000e+00> : vector<8x32xf32>
    %438 = tpu.matmul %435, %437, %cst_179 {dimension_numbers = #tpu.dot_dimension_numbers<[1], [0], [0], [1], [0, 0, 1, 1], [], []>} : vector<8x32xbf16>, vector<32x32xbf16>, vector<8x32xf32> -> vector<8x32xf32>
    %c1_180 = arith.constant 1 : index
    %c0_181 = arith.constant 0 : index
    %c0_182 = arith.constant 0 : index
    %439 = vector.load %arg11[%c1_180, %c0_181, %c0_182] : memref<2x1x32xf32, #tpu.memory_space<vmem>>, vector<1x1x32xf32>
    %440 = vector.shape_cast %439 : vector<1x1x32xf32> to vector<1x32xf32>
    %441 = vector.broadcast %440 : vector<1x32xf32> to vector<8x32xf32>
    %442 = arith.addf %438, %441 : vector<8x32xf32>
    %443 = arith.addf %375, %442 : vector<8x32xf32>
    %c1_183 = arith.constant 1 : index
    %c0_184 = arith.constant 0 : index
    %c0_185 = arith.constant 0 : index
    %444 = vector.load %arg18[%c1_183, %c0_184, %c0_185] : memref<2x1x32xf32, #tpu.memory_space<vmem>>, vector<1x1x32xf32>
    %445 = vector.shape_cast %444 : vector<1x1x32xf32> to vector<1x32xf32>
    %c1_186 = arith.constant 1 : index
    %c0_187 = arith.constant 0 : index
    %c0_188 = arith.constant 0 : index
    %446 = vector.load %arg19[%c1_186, %c0_187, %c0_188] : memref<2x1x32xf32, #tpu.memory_space<vmem>>, vector<1x1x32xf32>
    %447 = vector.shape_cast %446 : vector<1x1x32xf32> to vector<1x32xf32>
    %cst_189 = arith.constant dense<0.000000e+00> : vector<8xf32>
    %448 = vector.multi_reduction <add>, %443, %cst_189 [1] : vector<8x32xf32> to vector<8xf32>
    %449 = vector.shape_cast %448 : vector<8xf32> to vector<8x1xf32>
    %cst_190 = arith.constant 3.200000e+01 : f32
    %450 = vector.broadcast %cst_190 : f32 to vector<8x1xf32>
    %451 = arith.divf %449, %450 : vector<8x1xf32>
    %452 = vector.broadcast %451 : vector<8x1xf32> to vector<8x32xf32>
    %453 = arith.subf %443, %452 : vector<8x32xf32>
    %454 = arith.mulf %453, %453 : vector<8x32xf32>
    %cst_191 = arith.constant dense<0.000000e+00> : vector<8xf32>
    %455 = vector.multi_reduction <add>, %454, %cst_191 [1] : vector<8x32xf32> to vector<8xf32>
    %456 = vector.shape_cast %455 : vector<8xf32> to vector<8x1xf32>
    %cst_192 = arith.constant 3.200000e+01 : f32
    %457 = vector.broadcast %cst_192 : f32 to vector<8x1xf32>
    %458 = arith.divf %456, %457 : vector<8x1xf32>
    %459 = vector.broadcast %451 : vector<8x1xf32> to vector<8x32xf32>
    %460 = arith.subf %443, %459 : vector<8x32xf32>
    %cst_193 = arith.constant 9.99999974E-6 : f32
    %461 = vector.broadcast %cst_193 : f32 to vector<8x1xf32>
    %462 = arith.addf %458, %461 : vector<8x1xf32>
    %463 = math.rsqrt %462 : vector<8x1xf32>
    %464 = vector.broadcast %463 : vector<8x1xf32> to vector<8x32xf32>
    %465 = arith.mulf %460, %464 : vector<8x32xf32>
    %466 = vector.broadcast %445 : vector<1x32xf32> to vector<8x32xf32>
    %467 = arith.mulf %465, %466 : vector<8x32xf32>
    %468 = vector.broadcast %447 : vector<1x32xf32> to vector<8x32xf32>
    %469 = arith.addf %467, %468 : vector<8x32xf32>
    %470 = arith.truncf %469 : vector<8x32xf32> to vector<8x32xbf16>
    %c1_194 = arith.constant 1 : index
    %c0_195 = arith.constant 0 : index
    %c0_196 = arith.constant 0 : index
    %471 = vector.load %arg12[%c1_194, %c0_195, %c0_196] : memref<2x32x2048xbf16, #tpu.memory_space<vmem>>, vector<1x32x2048xbf16>
    %472 = vector.shape_cast %471 : vector<1x32x2048xbf16> to vector<32x2048xbf16>
    %cst_197 = arith.constant dense<0.000000e+00> : vector<8x2048xf32>
    %473 = tpu.matmul %470, %472, %cst_197 {dimension_numbers = #tpu.dot_dimension_numbers<[1], [0], [0], [1], [0, 0, 1, 1], [], []>} : vector<8x32xbf16>, vector<32x2048xbf16>, vector<8x2048xf32> -> vector<8x2048xf32>
    %c1_198 = arith.constant 1 : index
    %c0_199 = arith.constant 0 : index
    %c0_200 = arith.constant 0 : index
    %474 = vector.load %arg13[%c1_198, %c0_199, %c0_200] : memref<2x1x2048xf32, #tpu.memory_space<vmem>>, vector<1x1x2048xf32>
    %475 = vector.shape_cast %474 : vector<1x1x2048xf32> to vector<1x2048xf32>
    %476 = vector.broadcast %475 : vector<1x2048xf32> to vector<8x2048xf32>
    %477 = arith.addf %473, %476 : vector<8x2048xf32>
    %cst_201 = arith.constant 5.000000e-01 : f32
    %478 = vector.broadcast %cst_201 : f32 to vector<8x2048xf32>
    %479 = arith.mulf %478, %477 : vector<8x2048xf32>
    %cst_202 = arith.constant 4.471500e-02 : f32
    %480 = vector.broadcast %cst_202 : f32 to vector<8x2048xf32>
    %481 = arith.mulf %480, %477 : vector<8x2048xf32>
    %482 = arith.mulf %481, %477 : vector<8x2048xf32>
    %483 = arith.mulf %482, %477 : vector<8x2048xf32>
    %484 = arith.addf %477, %483 : vector<8x2048xf32>
    %cst_203 = arith.constant 0.797884583 : f32
    %485 = vector.broadcast %cst_203 : f32 to vector<8x2048xf32>
    %486 = arith.mulf %485, %484 : vector<8x2048xf32>
    %487 = math.tanh %486 : vector<8x2048xf32>
    %cst_204 = arith.constant 1.000000e+00 : f32
    %488 = vector.broadcast %cst_204 : f32 to vector<8x2048xf32>
    %489 = arith.addf %488, %487 : vector<8x2048xf32>
    %490 = arith.mulf %479, %489 : vector<8x2048xf32>
    %491 = arith.truncf %490 : vector<8x2048xf32> to vector<8x2048xbf16>
    %c1_205 = arith.constant 1 : index
    %c0_206 = arith.constant 0 : index
    %c0_207 = arith.constant 0 : index
    %492 = vector.load %arg14[%c1_205, %c0_206, %c0_207] : memref<2x2048x32xbf16, #tpu.memory_space<vmem>>, vector<1x2048x32xbf16>
    %493 = vector.shape_cast %492 : vector<1x2048x32xbf16> to vector<2048x32xbf16>
    %cst_208 = arith.constant dense<0.000000e+00> : vector<8x32xf32>
    %494 = tpu.matmul %491, %493, %cst_208 {dimension_numbers = #tpu.dot_dimension_numbers<[1], [0], [0], [1], [0, 0, 1, 1], [], []>} : vector<8x2048xbf16>, vector<2048x32xbf16>, vector<8x32xf32> -> vector<8x32xf32>
    %c1_209 = arith.constant 1 : index
    %c0_210 = arith.constant 0 : index
    %c0_211 = arith.constant 0 : index
    %495 = vector.load %arg15[%c1_209, %c0_210, %c0_211] : memref<2x1x32xf32, #tpu.memory_space<vmem>>, vector<1x1x32xf32>
    %496 = vector.shape_cast %495 : vector<1x1x32xf32> to vector<1x32xf32>
    %497 = vector.broadcast %496 : vector<1x32xf32> to vector<8x32xf32>
    %498 = arith.addf %494, %497 : vector<8x32xf32>
    %499 = arith.addf %469, %498 : vector<8x32xf32>
    %c1_212 = arith.constant 1 : index
    %c0_213 = arith.constant 0 : index
    %c0_214 = arith.constant 0 : index
    %500 = vector.load %arg20[%c1_212, %c0_213, %c0_214] : memref<2x1x32xf32, #tpu.memory_space<vmem>>, vector<1x1x32xf32>
    %501 = vector.shape_cast %500 : vector<1x1x32xf32> to vector<1x32xf32>
    %c1_215 = arith.constant 1 : index
    %c0_216 = arith.constant 0 : index
    %c0_217 = arith.constant 0 : index
    %502 = vector.load %arg21[%c1_215, %c0_216, %c0_217] : memref<2x1x32xf32, #tpu.memory_space<vmem>>, vector<1x1x32xf32>
    %503 = vector.shape_cast %502 : vector<1x1x32xf32> to vector<1x32xf32>
    %cst_218 = arith.constant dense<0.000000e+00> : vector<8xf32>
    %504 = vector.multi_reduction <add>, %499, %cst_218 [1] : vector<8x32xf32> to vector<8xf32>
    %505 = vector.shape_cast %504 : vector<8xf32> to vector<8x1xf32>
    %cst_219 = arith.constant 3.200000e+01 : f32
    %506 = vector.broadcast %cst_219 : f32 to vector<8x1xf32>
    %507 = arith.divf %505, %506 : vector<8x1xf32>
    %508 = vector.broadcast %507 : vector<8x1xf32> to vector<8x32xf32>
    %509 = arith.subf %499, %508 : vector<8x32xf32>
    %510 = arith.mulf %509, %509 : vector<8x32xf32>
    %cst_220 = arith.constant dense<0.000000e+00> : vector<8xf32>
    %511 = vector.multi_reduction <add>, %510, %cst_220 [1] : vector<8x32xf32> to vector<8xf32>
    %512 = vector.shape_cast %511 : vector<8xf32> to vector<8x1xf32>
    %cst_221 = arith.constant 3.200000e+01 : f32
    %513 = vector.broadcast %cst_221 : f32 to vector<8x1xf32>
    %514 = arith.divf %512, %513 : vector<8x1xf32>
    %515 = vector.broadcast %507 : vector<8x1xf32> to vector<8x32xf32>
    %516 = arith.subf %499, %515 : vector<8x32xf32>
    %cst_222 = arith.constant 9.99999974E-6 : f32
    %517 = vector.broadcast %cst_222 : f32 to vector<8x1xf32>
    %518 = arith.addf %514, %517 : vector<8x1xf32>
    %519 = math.rsqrt %518 : vector<8x1xf32>
    %520 = vector.broadcast %519 : vector<8x1xf32> to vector<8x32xf32>
    %521 = arith.mulf %516, %520 : vector<8x32xf32>
    %522 = vector.broadcast %501 : vector<1x32xf32> to vector<8x32xf32>
    %523 = arith.mulf %521, %522 : vector<8x32xf32>
    %524 = vector.broadcast %503 : vector<1x32xf32> to vector<8x32xf32>
    %525 = arith.addf %523, %524 : vector<8x32xf32>
    %526 = arith.truncf %525 : vector<8x32xf32> to vector<8x32xbf16>
    %c0_223 = arith.constant 0 : index
    %c0_224 = arith.constant 0 : index
    %527 = vector.load %arg22[%c0_223, %c0_224] : memref<32x32xbf16, #tpu.memory_space<vmem>>, vector<32x32xbf16>
    %cst_225 = arith.constant dense<0.000000e+00> : vector<8x32xf32>
    %528 = tpu.matmul %526, %527, %cst_225 {dimension_numbers = #tpu.dot_dimension_numbers<[1], [0], [0], [1], [0, 0, 1, 1], [], []>} : vector<8x32xbf16>, vector<32x32xbf16>, vector<8x32xf32> -> vector<8x32xf32>
    %c0_226 = arith.constant 0 : index
    %c0_227 = arith.constant 0 : index
    %529 = vector.load %arg23[%c0_226, %c0_227] : memref<1x32xf32, #tpu.memory_space<vmem>>, vector<1x32xf32>
    %530 = vector.broadcast %529 : vector<1x32xf32> to vector<8x32xf32>
    %531 = arith.addf %528, %530 : vector<8x32xf32>
    %cst_228 = arith.constant 0.000000e+00 : f32
    %532 = vector.broadcast %cst_228 : f32 to vector<8x32xf32>
    %533 = arith.subf %532, %531 : vector<8x32xf32>
    %534 = math.exp %533 : vector<8x32xf32>
    %cst_229 = arith.constant 1.000000e+00 : f32
    %535 = vector.broadcast %cst_229 : f32 to vector<8x32xf32>
    %536 = arith.addf %535, %534 : vector<8x32xf32>
    %cst_230 = arith.constant 1.000000e+00 : f32
    %537 = vector.broadcast %cst_230 : f32 to vector<8x32xf32>
    %538 = arith.divf %537, %536 : vector<8x32xf32>
    %539 = arith.mulf %531, %538 : vector<8x32xf32>
    %540 = arith.truncf %539 : vector<8x32xf32> to vector<8x32xbf16>
    %c0_231 = arith.constant 0 : index
    %c0_232 = arith.constant 0 : index
    %541 = vector.load %arg24[%c0_231, %c0_232] : memref<32x128xbf16, #tpu.memory_space<vmem>>, vector<32x128xbf16>
    %cst_233 = arith.constant dense<0.000000e+00> : vector<8x128xf32>
    %542 = tpu.matmul %540, %541, %cst_233 {dimension_numbers = #tpu.dot_dimension_numbers<[1], [0], [0], [1], [0, 0, 1, 1], [], []>} : vector<8x32xbf16>, vector<32x128xbf16>, vector<8x128xf32> -> vector<8x128xf32>
    %c0_234 = arith.constant 0 : index
    %c0_235 = arith.constant 0 : index
    %543 = vector.load %arg25[%c0_234, %c0_235] : memref<1x128xf32, #tpu.memory_space<vmem>>, vector<1x128xf32>
    %544 = vector.broadcast %543 : vector<1x128xf32> to vector<8x128xf32>
    %545 = arith.addf %542, %544 : vector<8x128xf32>
    %cst_236 = arith.constant 0.000000e+00 : f32
    %546 = vector.broadcast %cst_236 : f32 to vector<8x128xf32>
    %547 = arith.maximumf %545, %546 : vector<8x128xf32>
    %548 = math.absf %545 : vector<8x128xf32>
    %cst_237 = arith.constant 0.000000e+00 : f32
    %549 = vector.broadcast %cst_237 : f32 to vector<8x128xf32>
    %550 = arith.subf %549, %548 : vector<8x128xf32>
    %551 = math.exp %550 : vector<8x128xf32>
    %cst_238 = arith.constant 1.000000e+00 : f32
    %552 = vector.broadcast %cst_238 : f32 to vector<8x128xf32>
    %553 = arith.addf %552, %551 : vector<8x128xf32>
    %554 = math.log %553 : vector<8x128xf32>
    %555 = arith.addf %547, %554 : vector<8x128xf32>
    %c0_239 = arith.constant 0 : index
    %c0_240 = arith.constant 0 : index
    %556 = vector.load %arg30[%c0_239, %c0_240] : memref<8x128xf32, #tpu.memory_space<vmem>>, vector<8x128xf32>
    tpu.vector_store %arg30[%c0_239, %c0_240], %555 {strides = array<i32>} : memref<8x128xf32, #tpu.memory_space<vmem>>, vector<8x128xf32>,
    %c0_241 = arith.constant 0 : index
    %c0_242 = arith.constant 0 : index
    %557 = vector.load %arg26[%c0_241, %c0_242] : memref<32x32xbf16, #tpu.memory_space<vmem>>, vector<32x32xbf16>
    %cst_243 = arith.constant dense<0.000000e+00> : vector<8x32xf32>
    %558 = tpu.matmul %526, %557, %cst_243 {dimension_numbers = #tpu.dot_dimension_numbers<[1], [0], [0], [1], [0, 0, 1, 1], [], []>} : vector<8x32xbf16>, vector<32x32xbf16>, vector<8x32xf32> -> vector<8x32xf32>
    %c0_244 = arith.constant 0 : index
    %c0_245 = arith.constant 0 : index
    %559 = vector.load %arg27[%c0_244, %c0_245] : memref<1x32xf32, #tpu.memory_space<vmem>>, vector<1x32xf32>
    %560 = vector.broadcast %559 : vector<1x32xf32> to vector<8x32xf32>
    %561 = arith.addf %558, %560 : vector<8x32xf32>
    %cst_246 = arith.constant 0.000000e+00 : f32
    %562 = vector.broadcast %cst_246 : f32 to vector<8x32xf32>
    %563 = arith.subf %562, %561 : vector<8x32xf32>
    %564 = math.exp %563 : vector<8x32xf32>
    %cst_247 = arith.constant 1.000000e+00 : f32
    %565 = vector.broadcast %cst_247 : f32 to vector<8x32xf32>
    %566 = arith.addf %565, %564 : vector<8x32xf32>
    %cst_248 = arith.constant 1.000000e+00 : f32
    %567 = vector.broadcast %cst_248 : f32 to vector<8x32xf32>
    %568 = arith.divf %567, %566 : vector<8x32xf32>
    %569 = arith.mulf %561, %568 : vector<8x32xf32>
    %570 = arith.truncf %569 : vector<8x32xf32> to vector<8x32xbf16>
    %c0_249 = arith.constant 0 : index
    %c0_250 = arith.constant 0 : index
    %571 = vector.load %arg28[%c0_249, %c0_250] : memref<32x128xbf16, #tpu.memory_space<vmem>>, vector<32x128xbf16>
    %cst_251 = arith.constant dense<0.000000e+00> : vector<8x128xf32>
    %572 = tpu.matmul %570, %571, %cst_251 {dimension_numbers = #tpu.dot_dimension_numbers<[1], [0], [0], [1], [0, 0, 1, 1], [], []>} : vector<8x32xbf16>, vector<32x128xbf16>, vector<8x128xf32> -> vector<8x128xf32>
    %c0_252 = arith.constant 0 : index
    %c0_253 = arith.constant 0 : index
    %573 = vector.load %arg29[%c0_252, %c0_253] : memref<1x128xf32, #tpu.memory_space<vmem>>, vector<1x128xf32>
    %574 = vector.broadcast %573 : vector<1x128xf32> to vector<8x128xf32>
    %575 = arith.addf %572, %574 : vector<8x128xf32>
    %cst_254 = arith.constant 0.000000e+00 : f32
    %576 = vector.broadcast %cst_254 : f32 to vector<8x128xf32>
    %577 = arith.subf %576, %575 : vector<8x128xf32>
    %578 = math.exp %577 : vector<8x128xf32>
    %cst_255 = arith.constant 1.000000e+00 : f32
    %579 = vector.broadcast %cst_255 : f32 to vector<8x128xf32>
    %580 = arith.addf %579, %578 : vector<8x128xf32>
    %cst_256 = arith.constant 1.000000e+00 : f32
    %581 = vector.broadcast %cst_256 : f32 to vector<8x128xf32>
    %582 = arith.divf %581, %580 : vector<8x128xf32>
    %c0_257 = arith.constant 0 : index
    %c0_258 = arith.constant 0 : index
    %583 = vector.load %arg31[%c0_257, %c0_258] : memref<8x128xf32, #tpu.memory_space<vmem>>, vector<8x128xf32>
    tpu.vector_store %arg31[%c0_257, %c0_258], %582 {strides = array<i32>} : memref<8x128xf32, #tpu.memory_space<vmem>>, vector<8x128xf32>,
    return
  }
}

</mosaic_0001>

<llo_original>
// kernel: tpu_custom_call.1
$region0: #{tpu_custom_call.1}
  #allocation0 [shape = 'u32[]', space=smem, size = 0x4, offset = 0x4, fixed_abs, tag = 'smem constant byte address 0x4 - core index']
  #allocation1 [shape = 'u32[144,128]{1,0:T(1,128)}', space=vmem, size = 0x12000, scoped, tag = 'internal scratch']
  %s0 = inlined_call_operand.smem [shape: u32[32], index: -1, kind: input, shape index: {}]
  %s1 = sld [smem:[%s0]]
  %s2 = scalar_lea.smem %s0, 1
  %s3 = sld [smem:[%s2]]
  %s4 = scalar_lea.smem %s0, 2
  %s5 = sld [smem:[%s4]]
  %s6 = scalar_lea.smem %s0, 3
  %s7 = sld [smem:[%s6]]
  %s8 = scalar_lea.smem %s0, 4
  %s9 = sld [smem:[%s8]]
  %s10 = scalar_lea.smem %s0, 5
  %s11 = sld [smem:[%s10]]
  %s12 = scalar_lea.smem %s0, 6
  %s13 = sld [smem:[%s12]]
  %s14 = scalar_lea.smem %s0, 7
  %s15 = sld [smem:[%s14]]
  %s16 = scalar_lea.smem %s0, 8
  %s17 = sld [smem:[%s16]]
  %s18 = scalar_lea.smem %s0, 9
  %s19 = sld [smem:[%s18]]
  %s20 = scalar_lea.smem %s0, 10
  %s21 = sld [smem:[%s20]]
  %s22 = scalar_lea.smem %s0, 11
  %s23 = sld [smem:[%s22]]
  %s24 = scalar_lea.smem %s0, 12
  %s25 = sld [smem:[%s24]]
  %s26 = scalar_lea.smem %s0, 13
  %s27 = sld [smem:[%s26]]
  %s28 = scalar_lea.smem %s0, 14
  %s29 = sld [smem:[%s28]]
  %s30 = scalar_lea.smem %s0, 15
  %s31 = sld [smem:[%s30]]
  %s32 = scalar_lea.smem %s0, 16
  %s33 = sld [smem:[%s32]]
  %s34 = scalar_lea.smem %s0, 17
  %s35 = sld [smem:[%s34]]
  %s36 = scalar_lea.smem %s0, 18
  %s37 = sld [smem:[%s36]]
  %s38 = scalar_lea.smem %s0, 19
  %s39 = sld [smem:[%s38]]
  %s40 = scalar_lea.smem %s0, 20
  %s41 = sld [smem:[%s40]]
  %s42 = scalar_lea.smem %s0, 21
  %s43 = sld [smem:[%s42]]
  %s44 = scalar_lea.smem %s0, 22
  %s45 = sld [smem:[%s44]]
  %s46 = scalar_lea.smem %s0, 23
  %s47 = sld [smem:[%s46]]
  %s48 = scalar_lea.smem %s0, 24
  %s49 = sld [smem:[%s48]]
  %s50 = scalar_lea.smem %s0, 25
  %s51 = sld [smem:[%s50]]
  %s52 = scalar_lea.smem %s0, 26
  %s53 = sld [smem:[%s52]]
  %s54 = scalar_lea.smem %s0, 27
  %s55 = sld [smem:[%s54]]
  %s56 = scalar_lea.smem %s0, 28
  %s57 = sld [smem:[%s56]]
  %s58 = scalar_lea.smem %s0, 29
  %s59 = sld [smem:[%s58]]
  %s60 = scalar_lea.smem %s0, 30
  %s61 = sld [smem:[%s60]]
  %s62 = scalar_lea.smem %s0, 31
  %s63 = sld [smem:[%s62]]
  %64 = xla_tuple %s61, %s63
  %s65 = sld [smem:[#allocation0]]
  $region138: #{tpu_custom_call.1} parent=0
    _
  %s67 = ssub.s32 1, %s65
  %s68 = scalar_select 0, %s67, %s65
  $region1: #{tpu_custom_call.1} parent=0
    #allocation2 [shape = 'u8[4096]{0}', space=vmem, size = 0x1000, scoped, tag = 'output window, operand 0, single buffered']
    #allocation3 [shape = 's32[1]{0}', space=sflag, size = 0x4, scoped, tag = 'scoped memory for tpu_custom_call.1']
    #allocation4 [shape = 'u8[4096]{0}', space=vmem, size = 0x1000, scoped, tag = 'output window, operand 1, single buffered']
    #allocation5 [shape = 's32[1]{0}', space=sflag, size = 0x4, scoped, tag = 'scoped memory for tpu_custom_call.1']
    %69 = vsyncpa [#allocation3], 0
    %70 = vsyncpa [#allocation5], 0
    // Predicated region
    $region2: #{tpu_custom_call.1} parent=1 // pred_check
      _
    $region3: #{tpu_custom_call.1} parent=1 // pred_check_branch
      %72 = sbr.rel (0) target = $region5
    $region4: #{tpu_custom_call.1} parent=1 // pred_region
      _
    $region5: #{tpu_custom_call.1} parent=1 // pred_fallthru
      _
    // Predicated region
    $region6: #{tpu_custom_call.1} parent=1 // pred_check
      _
    $region7: #{tpu_custom_call.1} parent=1 // pred_check_branch
      %74 = sbr.rel (0) target = $region9
    $region8: #{tpu_custom_call.1} parent=1 // pred_region
      _
    $region9: #{tpu_custom_call.1} parent=1 // pred_fallthru
      _
    // Predicated region
    $region10: #{tpu_custom_call.1} parent=1 // pred_check
      _
    $region11: #{tpu_custom_call.1} parent=1 // pred_check_branch
      %76 = sbr.rel (0) target = $region13
    $region12: #{tpu_custom_call.1} parent=1 // pred_region
      _
    $region13: #{tpu_custom_call.1} parent=1 // pred_fallthru
      _
    // Predicated region
    $region14: #{tpu_custom_call.1} parent=1 // pred_check
      _
    $region15: #{tpu_custom_call.1} parent=1 // pred_check_branch
      %78 = sbr.rel (0) target = $region17
    $region16: #{tpu_custom_call.1} parent=1 // pred_region
      _
    $region17: #{tpu_custom_call.1} parent=1 // pred_fallthru
      _
    // Predicated region
    $region18: #{tpu_custom_call.1} parent=1 // pred_check
      _
    $region19: #{tpu_custom_call.1} parent=1 // pred_check_branch
      %80 = sbr.rel (0) target = $region21
    $region20: #{tpu_custom_call.1} parent=1 // pred_region
      _
    $region21: #{tpu_custom_call.1} parent=1 // pred_fallthru
      _
    // Predicated region
    $region22: #{tpu_custom_call.1} parent=1 // pred_check
      _
    $region23: #{tpu_custom_call.1} parent=1 // pred_check_branch
      %82 = sbr.rel (0) target = $region25
    $region24: #{tpu_custom_call.1} parent=1 // pred_region
      _
    $region25: #{tpu_custom_call.1} parent=1 // pred_fallthru
      _
    // Predicated region
    $region26: #{tpu_custom_call.1} parent=1 // pred_check
      _
    $region27: #{tpu_custom_call.1} parent=1 // pred_check_branch
      %84 = sbr.rel (0) target = $region29
    $region28: #{tpu_custom_call.1} parent=1 // pred_region
      _
    $region29: #{tpu_custom_call.1} parent=1 // pred_fallthru
      _
    // Predicated region
    $region30: #{tpu_custom_call.1} parent=1 // pred_check
      _
    $region31: #{tpu_custom_call.1} parent=1 // pred_check_branch
      %86 = sbr.rel (0) target = $region33
    $region32: #{tpu_custom_call.1} parent=1 // pred_region
      _
    $region33: #{tpu_custom_call.1} parent=1 // pred_fallthru
      _
    // Predicated region
    $region34: #{tpu_custom_call.1} parent=1 // pred_check
      _
    $region35: #{tpu_custom_call.1} parent=1 // pred_check_branch
      %88 = sbr.rel (0) target = $region37
    $region36: #{tpu_custom_call.1} parent=1 // pred_region
      _
    $region37: #{tpu_custom_call.1} parent=1 // pred_fallthru
      _
    // Predicated region
    $region38: #{tpu_custom_call.1} parent=1 // pred_check
      _
    $region39: #{tpu_custom_call.1} parent=1 // pred_check_branch
      %90 = sbr.rel (0) target = $region41
    $region40: #{tpu_custom_call.1} parent=1 // pred_region
      _
    $region41: #{tpu_custom_call.1} parent=1 // pred_fallthru
      _
    // Predicated region
    $region42: #{tpu_custom_call.1} parent=1 // pred_check
      _
    $region43: #{tpu_custom_call.1} parent=1 // pred_check_branch
      %92 = sbr.rel (0) target = $region45
    $region44: #{tpu_custom_call.1} parent=1 // pred_region
      _
    $region45: #{tpu_custom_call.1} parent=1 // pred_fallthru
      _
    // Predicated region
    $region46: #{tpu_custom_call.1} parent=1 // pred_check
      _
    $region47: #{tpu_custom_call.1} parent=1 // pred_check_branch
      %94 = sbr.rel (0) target = $region49
    $region48: #{tpu_custom_call.1} parent=1 // pred_region
      _
    $region49: #{tpu_custom_call.1} parent=1 // pred_fallthru
      _
    // Predicated region
    $region50: #{tpu_custom_call.1} parent=1 // pred_check
      _
    $region51: #{tpu_custom_call.1} parent=1 // pred_check_branch
      %96 = sbr.rel (0) target = $region53
    $region52: #{tpu_custom_call.1} parent=1 // pred_region
      _
    $region53: #{tpu_custom_call.1} parent=1 // pred_fallthru
      _
    // Predicated region
    $region54: #{tpu_custom_call.1} parent=1 // pred_check
      _
    $region55: #{tpu_custom_call.1} parent=1 // pred_check_branch
      %98 = sbr.rel (0) target = $region57
    $region56: #{tpu_custom_call.1} parent=1 // pred_region
      _
    $region57: #{tpu_custom_call.1} parent=1 // pred_fallthru
      _
    // Predicated region
    $region58: #{tpu_custom_call.1} parent=1 // pred_check
      _
    $region59: #{tpu_custom_call.1} parent=1 // pred_check_branch
      %100 = sbr.rel (0) target = $region61
    $region60: #{tpu_custom_call.1} parent=1 // pred_region
      _
    $region61: #{tpu_custom_call.1} parent=1 // pred_fallthru
      _
    // Predicated region
    $region62: #{tpu_custom_call.1} parent=1 // pred_check
      _
    $region63: #{tpu_custom_call.1} parent=1 // pred_check_branch
      %102 = sbr.rel (0) target = $region65
    $region64: #{tpu_custom_call.1} parent=1 // pred_region
      _
    $region65: #{tpu_custom_call.1} parent=1 // pred_fallthru
      _
    // Predicated region
    $region66: #{tpu_custom_call.1} parent=1 // pred_check
      _
    $region67: #{tpu_custom_call.1} parent=1 // pred_check_branch
      %104 = sbr.rel (0) target = $region69
    $region68: #{tpu_custom_call.1} parent=1 // pred_region
      _
    $region69: #{tpu_custom_call.1} parent=1 // pred_fallthru
      _
    // Predicated region
    $region70: #{tpu_custom_call.1} parent=1 // pred_check
      _
    $region71: #{tpu_custom_call.1} parent=1 // pred_check_branch
      %106 = sbr.rel (0) target = $region73
    $region72: #{tpu_custom_call.1} parent=1 // pred_region
      _
    $region73: #{tpu_custom_call.1} parent=1 // pred_fallthru
      _
    // Predicated region
    $region74: #{tpu_custom_call.1} parent=1 // pred_check
      _
    $region75: #{tpu_custom_call.1} parent=1 // pred_check_branch
      %108 = sbr.rel (0) target = $region77
    $region76: #{tpu_custom_call.1} parent=1 // pred_region
      _
    $region77: #{tpu_custom_call.1} parent=1 // pred_fallthru
      _
    // Predicated region
    $region78: #{tpu_custom_call.1} parent=1 // pred_check
      _
    $region79: #{tpu_custom_call.1} parent=1 // pred_check_branch
      %110 = sbr.rel (0) target = $region81
    $region80: #{tpu_custom_call.1} parent=1 // pred_region
      _
    $region81: #{tpu_custom_call.1} parent=1 // pred_fallthru
      _
    // Predicated region
    $region82: #{tpu_custom_call.1} parent=1 // pred_check
      _
    $region83: #{tpu_custom_call.1} parent=1 // pred_check_branch
      %112 = sbr.rel (0) target = $region85
    $region84: #{tpu_custom_call.1} parent=1 // pred_region
      _
    $region85: #{tpu_custom_call.1} parent=1 // pred_fallthru
      _
    // Predicated region
    $region86: #{tpu_custom_call.1} parent=1 // pred_check
      _
    $region87: #{tpu_custom_call.1} parent=1 // pred_check_branch
      %114 = sbr.rel (0) target = $region89
    $region88: #{tpu_custom_call.1} parent=1 // pred_region
      _
    $region89: #{tpu_custom_call.1} parent=1 // pred_fallthru
      _
    // Predicated region
    $region90: #{tpu_custom_call.1} parent=1 // pred_check
      _
    $region91: #{tpu_custom_call.1} parent=1 // pred_check_branch
      %116 = sbr.rel (0) target = $region93
    $region92: #{tpu_custom_call.1} parent=1 // pred_region
      _
    $region93: #{tpu_custom_call.1} parent=1 // pred_fallthru
      _
    // Predicated region
    $region94: #{tpu_custom_call.1} parent=1 // pred_check
      _
    $region95: #{tpu_custom_call.1} parent=1 // pred_check_branch
      %118 = sbr.rel (0) target = $region97
    $region96: #{tpu_custom_call.1} parent=1 // pred_region
      _
    $region97: #{tpu_custom_call.1} parent=1 // pred_fallthru
      _
    // Predicated region
    $region98: #{tpu_custom_call.1} parent=1 // pred_check
      _
    $region99: #{tpu_custom_call.1} parent=1 // pred_check_branch
      %120 = sbr.rel (0) target = $region101
    $region100: #{tpu_custom_call.1} parent=1 // pred_region
      _
    $region101: #{tpu_custom_call.1} parent=1 // pred_fallthru
      _
    // Predicated region
    $region102: #{tpu_custom_call.1} parent=1 // pred_check
      _
    $region103: #{tpu_custom_call.1} parent=1 // pred_check_branch
      %122 = sbr.rel (0) target = $region105
    $region104: #{tpu_custom_call.1} parent=1 // pred_region
      _
    $region105: #{tpu_custom_call.1} parent=1 // pred_fallthru
      _
    // Predicated region
    $region106: #{tpu_custom_call.1} parent=1 // pred_check
      _
    $region107: #{tpu_custom_call.1} parent=1 // pred_check_branch
      %124 = sbr.rel (0) target = $region109
    $region108: #{tpu_custom_call.1} parent=1 // pred_region
      _
    $region109: #{tpu_custom_call.1} parent=1 // pred_fallthru
      _
    // Predicated region
    $region110: #{tpu_custom_call.1} parent=1 // pred_check
      _
    $region111: #{tpu_custom_call.1} parent=1 // pred_check_branch
      %126 = sbr.rel (0) target = $region113
    $region112: #{tpu_custom_call.1} parent=1 // pred_region
      _
    $region113: #{tpu_custom_call.1} parent=1 // pred_fallthru
      _
    // Predicated region
    $region114: #{tpu_custom_call.1} parent=1 // pred_check
      _
    $region115: #{tpu_custom_call.1} parent=1 // pred_check_branch
      %128 = sbr.rel (0) target = $region117
    $region116: #{tpu_custom_call.1} parent=1 // pred_region
      _
    $region117: #{tpu_custom_call.1} parent=1 // pred_fallthru
      _
    // Predicated region
    $region118: #{tpu_custom_call.1} parent=1 // pred_check
      _
    $region119: #{tpu_custom_call.1} parent=1 // pred_check_branch
      %130 = sbr.rel (0) target = $region121
    $region120: #{tpu_custom_call.1} parent=1 // pred_region
      _
    $region121: #{tpu_custom_call.1} parent=1 // pred_fallthru
      _
    %v132 = vld [vmem:[%s1] sm:$0xff]
    %v133 = vld [vmem:[%s3] sm:$0x1]
    %v134 = vpack.c.bf16 %v132, %v132
    %v135 = vld [vmem:[%s5] sm:$0xf]
    %v136 = vld [vmem:[%s5 + $0x4] sm:$0xf]
    %v137 = vld [vmem:[%s5 + $0x8] sm:$0xf]
    %v138 = vld [vmem:[%s5 + $0xc] sm:$0xf]
    %v139 = vld [vmem:[%s7] sm:$0x1]
    %v141 = vlaneseq
    %v142 = vshrl.u32 %v141, 7
    %v143 = vsub.s32 0, %v142
    %v144 = vrot.slane %v139, %v143
    %v150 = vunpack.c.l.b16 %v135
    %v151 = vunpack.c.l.b16 %v136
    %v152 = vunpack.c.l.b16 %v137
    %v153 = vunpack.c.l.b16 %v138
    %v154 = vpack.c.b16 %v151, %v150
    %v155 = vpack.c.b16 %v153, %v152
    %vm158 = vcmask 261120
    %v160 = vsel %vm158, %v134, 0
    %162 = vmatprep.subr.bf16.mxu0 0
    %163 = vmatpush1.bf16.msra.mxu0 %v154
    %164 = vmatprep.subr.bf16.mxu0 0
    %165 = vmatpush1.bf16.msra.mxu0 %v155
    %166 = vmatprep.subr.bf16.mxu0 0
    %167 = vmatpush1.bf16.msra.mxu0 0
    %168 = vmatprep.subr.bf16.mxu0 0
    %169 = vmatpush1.bf16.msra.mxu0 0
    %170 = vmatprep.subr.bf16.mxu0 0
    %171 = vmatpush1.bf16.msra.mxu0 0
    %172 = vmatprep.subr.bf16.mxu0 0
    %173 = vmatpush1.bf16.msra.mxu0 0
    %174 = vmatprep.subr.bf16.mxu0 0
    %175 = vmatpush1.bf16.msra.mxu0 0
    %176 = vmatprep.subr.bf16.mxu0 0
    %177 = vmatpush1.bf16.msra.mxu0 0
    %178 = vmatprep.subr.bf16.mxu0 0
    %179 = vmatpush1.bf16.msra.mxu0 0
    %180 = vmatprep.subr.bf16.mxu0 0
    %181 = vmatpush1.bf16.msra.mxu0 0
    %182 = vmatprep.subr.bf16.mxu0 0
    %183 = vmatpush1.bf16.msra.mxu0 0
    %184 = vmatprep.subr.bf16.mxu0 0
    %185 = vmatpush1.bf16.msra.mxu0 0
    %186 = vmatprep.subr.bf16.mxu0 0
    %187 = vmatpush1.bf16.msra.mxu0 0
    %188 = vmatprep.subr.bf16.mxu0 0
    %189 = vmatpush1.bf16.msra.mxu0 0
    %190 = vmatprep.subr.bf16.mxu0 0
    %191 = vmatpush1.bf16.msra.mxu0 0
    %192 = vmatprep.subr.bf16.mxu0 0
    %193 = vmatpush1.bf16.msra.mxu0 0
    %194 = vmatprep.mubr.bf16.mxu0 0
    %195 = vmatmul.mubr.bf16.gmra.mrb[0].mxu0 %v160
    %v196 = vpop.f32.mrb[0].mxu0
    %v197 = vadd.f32 %v144, %v196
    %v198 = vpop.f32.mrb[0].mxu0
    %v199 = vpop.f32.mrb[0].mxu0
    %v200 = vpop.f32.mrb[0].mxu0
    %201 = vdwg.mxu0
    %v203 = vlaneseq
    %v204 = vshrl.u32 %v203, 7
    %v205 = vsub.s32 0, %v204
    %v206 = vrot.slane %v133, %v205
    %209 = vrot.lane.b32.xlu0 %v197, 96
    %v210 = vpop.permute.xlu0 %209
    %vm211 = vcmask 64512
    %v212 = vsel %vm211, %v197, 0
    %v214 = vsel %vm211, %v210, 0
    %216 = vmatprep.subr.mxu0 0.0
    %217 = vmatpush1.xpose.msra.mxu0 %v214
    %218 = vmatprep.subr.mxu0 0.0
    %219 = vmatpush1.xpose.msra.mxu0 0.0
    %220 = vmatprep.subr.mxu0 0.0
    %221 = vmatpush1.xpose.msra.mxu0 0.0
    %222 = vmatprep.subr.mxu0 0.0
    %223 = vmatpush1.xpose.msra.mxu0 0.0
    %224 = vmatprep.subr.mxu0 0.0
    %225 = vmatpush1.xpose.msra.mxu0 0.0
    %226 = vmatprep.subr.mxu0 0.0
    %227 = vmatpush1.xpose.msra.mxu0 0.0
    %228 = vmatprep.subr.mxu0 0.0
    %229 = vmatpush1.xpose.msra.mxu0 0.0
    %230 = vmatprep.subr.mxu0 0.0
    %231 = vmatpush1.xpose.msra.mxu0 0.0
    %232 = vmatprep.subr.mxu0 0.0
    %233 = vmatpush1.xpose.msra.mxu0 0.0
    %234 = vmatprep.subr.mxu0 0.0
    %235 = vmatpush1.xpose.msra.mxu0 0.0
    %236 = vmatprep.subr.mxu0 0.0
    %237 = vmatpush1.xpose.msra.mxu0 0.0
    %238 = vmatprep.subr.mxu0 0.0
    %239 = vmatpush1.xpose.msra.mxu0 0.0
    %240 = vmatprep.subr.mxu0 0.0
    %241 = vmatpush1.xpose.msra.mxu0 0.0
    %242 = vmatprep.subr.mxu0 0.0
    %243 = vmatpush1.xpose.msra.mxu0 0.0
    %244 = vmatprep.subr.mxu0 0.0
    %245 = vmatpush1.xpose.msra.mxu0 0.0
    %246 = vmatprep.subr.mxu0 0.0
    %247 = vmatpush1.xpose.msra.mxu0 0.0
    %248 = vmatprep.subr.mxu0 0.0
    %249 = vmatpush1.xpose.msra.mxu0 0.0
    %250 = vmatprep.subr.mxu0 0.0
    %251 = vmatpush1.xpose.msra.mxu0 0.0
    %252 = vmatprep.subr.mxu0 0.0
    %253 = vmatpush1.xpose.msra.mxu0 0.0
    %254 = vmatprep.subr.mxu0 0.0
    %255 = vmatpush1.xpose.msra.mxu0 0.0
    %256 = vmatprep.subr.mxu0 0.0
    %257 = vmatpush1.xpose.msra.mxu0 0.0
    %258 = vmatprep.subr.mxu0 0.0
    %259 = vmatpush1.xpose.msra.mxu0 0.0
    %260 = vmatprep.subr.mxu0 0.0
    %261 = vmatpush1.xpose.msra.mxu0 0.0
    %262 = vmatprep.subr.mxu0 0.0
    %263 = vmatpush1.xpose.msra.mxu0 0.0
    %264 = vmatprep.subr.mxu0 0.0
    %265 = vmatpush1.xpose.msra.mxu0 0.0
    %266 = vmatprep.subr.mxu0 0.0
    %267 = vmatpush1.xpose.msra.mxu0 0.0
    %268 = vmatprep.subr.mxu0 0.0
    %269 = vmatpush1.xpose.msra.mxu0 0.0
    %270 = vmatprep.subr.mxu0 0.0
    %271 = vmatpush1.xpose.msra.mxu0 0.0
    %272 = vmatprep.subr.mxu0 0.0
    %273 = vmatpush1.xpose.msra.mxu0 0.0
    %274 = vmatprep.subr.mxu0 0.0
    %275 = vmatpush1.xpose.msra.mxu0 0.0
    %276 = vmatprep.subr.mxu0 0.0
    %277 = vmatpush1.xpose.msra.mxu0 0.0
    %278 = vmatprep.subr.mxu0 0.0
    %279 = vmatpush1.xpose.msra.mxu0 0.0
    %280 = vmatprep.mubr.f32.mxu0 0.0
    %281 = vmatmul.mubr.f32.gmra.mrb[0].mxu0 %v212
    %v282 = vpop.f32.mrb[0].mxu0
    %v283 = vadd.f32 %v206, %v282
    %v284 = vpop.f32.mrb[0].mxu0
    %285 = vdwg.mxu0
    %v286 = vsel %vm211, %v283, -inf
    %287 = vmax.xlane.f32.xlu0 %v286
    %v288 = vpop.xlane.xlu0 %287
    %v289 = vsub.f32 %v283, %v288
    %v290 = vmul.f32 %v289, 1.442695
    %v291 = vpow.pop %v290
    %v292 = vsel %vm211, %v291, 0.0
    %293 = vadd.xlane.f32.xlu0 %v292
    %v294 = vpop.xlane.xlu0 %293
    %v295 = vrcp.pop %v294
    %v296 = vmul.f32 %v291, %v295
    %297 = vrot.lane.b32.xlu0 %v197, 64
    %v298 = vpop.permute.xlu0 %297
    %v301 = vsel %vm211, %v296, 0
    %303 = vmatprep.subr.mxu0 0.0
    %304 = vmatpush1.msra.mxu0 %v298
    %305 = vmatprep.subr.mxu0 0.0
    %306 = vmatpush1.msra.mxu0 0.0
    %307 = vmatprep.subr.mxu0 0.0
    %308 = vmatpush1.msra.mxu0 0.0
    %309 = vmatprep.subr.mxu0 0.0
    %310 = vmatpush1.msra.mxu0 0.0
    %311 = vmatprep.subr.mxu0 0.0
    %312 = vmatpush1.msra.mxu0 0.0
    %313 = vmatprep.subr.mxu0 0.0
    %314 = vmatpush1.msra.mxu0 0.0
    %315 = vmatprep.subr.mxu0 0.0
    %316 = vmatpush1.msra.mxu0 0.0
    %317 = vmatprep.subr.mxu0 0.0
    %318 = vmatpush1.msra.mxu0 0.0
    %319 = vmatprep.subr.mxu0 0.0
    %320 = vmatpush1.msra.mxu0 0.0
    %321 = vmatprep.subr.mxu0 0.0
    %322 = vmatpush1.msra.mxu0 0.0
    %323 = vmatprep.subr.mxu0 0.0
    %324 = vmatpush1.msra.mxu0 0.0
    %325 = vmatprep.subr.mxu0 0.0
    %326 = vmatpush1.msra.mxu0 0.0
    %327 = vmatprep.subr.mxu0 0.0
    %328 = vmatpush1.msra.mxu0 0.0
    %329 = vmatprep.subr.mxu0 0.0
    %330 = vmatpush1.msra.mxu0 0.0
    %331 = vmatprep.subr.mxu0 0.0
    %332 = vmatpush1.msra.mxu0 0.0
    %333 = vmatprep.subr.mxu0 0.0
    %334 = vmatpush1.msra.mxu0 0.0
    %335 = vmatprep.subr.mxu0 0.0
    %336 = vmatpush1.msra.mxu0 0.0
    %337 = vmatprep.subr.mxu0 0.0
    %338 = vmatpush1.msra.mxu0 0.0
    %339 = vmatprep.subr.mxu0 0.0
    %340 = vmatpush1.msra.mxu0 0.0
    %341 = vmatprep.subr.mxu0 0.0
    %342 = vmatpush1.msra.mxu0 0.0
    %343 = vmatprep.subr.mxu0 0.0
    %344 = vmatpush1.msra.mxu0 0.0
    %345 = vmatprep.subr.mxu0 0.0
    %346 = vmatpush1.msra.mxu0 0.0
    %347 = vmatprep.subr.mxu0 0.0
    %348 = vmatpush1.msra.mxu0 0.0
    %349 = vmatprep.subr.mxu0 0.0
    %350 = vmatpush1.msra.mxu0 0.0
    %351 = vmatprep.subr.mxu0 0.0
    %352 = vmatpush1.msra.mxu0 0.0
    %353 = vmatprep.subr.mxu0 0.0
    %354 = vmatpush1.msra.mxu0 0.0
    %355 = vmatprep.subr.mxu0 0.0
    %356 = vmatpush1.msra.mxu0 0.0
    %357 = vmatprep.subr.mxu0 0.0
    %358 = vmatpush1.msra.mxu0 0.0
    %359 = vmatprep.subr.mxu0 0.0
    %360 = vmatpush1.msra.mxu0 0.0
    %361 = vmatprep.subr.mxu0 0.0
    %362 = vmatpush1.msra.mxu0 0.0
    %363 = vmatprep.subr.mxu0 0.0
    %364 = vmatpush1.msra.mxu0 0.0
    %365 = vmatprep.subr.mxu0 0.0
    %366 = vmatpush1.msra.mxu0 0.0
    %367 = vmatprep.mubr.f32.mxu0 0.0
    %368 = vmatmul.mubr.f32.gmra.mrb[0].mxu0 %v301
    %v369 = vpop.f32.mrb[0].mxu0
    %v370 = vadd.f32 0.0, %v369
    %v371 = vpop.f32.mrb[0].mxu0
    %372 = vdwg.mxu0
    %373 = vrot.lane.b32.xlu0 %v197, 120
    %v374 = vpop.permute.xlu0 %373
    %375 = vrot.lane.b32.xlu0 %v197, 88
    %v376 = vpop.permute.xlu0 %375
    %v377 = vsel %vm211, %v374, 0
    %v379 = vsel %vm211, %v376, 0
    %381 = vmatprep.subr.mxu0 0.0
    %382 = vmatpush1.xpose.msra.mxu0 %v379
    %383 = vmatprep.subr.mxu0 0.0
    %384 = vmatpush1.xpose.msra.mxu0 0.0
    %385 = vmatprep.subr.mxu0 0.0
    %386 = vmatpush1.xpose.msra.mxu0 0.0
    %387 = vmatprep.subr.mxu0 0.0
    %388 = vmatpush1.xpose.msra.mxu0 0.0
    %389 = vmatprep.subr.mxu0 0.0
    %390 = vmatpush1.xpose.msra.mxu0 0.0
    %391 = vmatprep.subr.mxu0 0.0
    %392 = vmatpush1.xpose.msra.mxu0 0.0
    %393 = vmatprep.subr.mxu0 0.0
    %394 = vmatpush1.xpose.msra.mxu0 0.0
    %395 = vmatprep.subr.mxu0 0.0
    %396 = vmatpush1.xpose.msra.mxu0 0.0
    %397 = vmatprep.subr.mxu0 0.0
    %398 = vmatpush1.xpose.msra.mxu0 0.0
    %399 = vmatprep.subr.mxu0 0.0
    %400 = vmatpush1.xpose.msra.mxu0 0.0
    %401 = vmatprep.subr.mxu0 0.0
    %402 = vmatpush1.xpose.msra.mxu0 0.0
    %403 = vmatprep.subr.mxu0 0.0
    %404 = vmatpush1.xpose.msra.mxu0 0.0
    %405 = vmatprep.subr.mxu0 0.0
    %406 = vmatpush1.xpose.msra.mxu0 0.0
    %407 = vmatprep.subr.mxu0 0.0
    %408 = vmatpush1.xpose.msra.mxu0 0.0
    %409 = vmatprep.subr.mxu0 0.0
    %410 = vmatpush1.xpose.msra.mxu0 0.0
    %411 = vmatprep.subr.mxu0 0.0
    %412 = vmatpush1.xpose.msra.mxu0 0.0
    %413 = vmatprep.subr.mxu0 0.0
    %414 = vmatpush1.xpose.msra.mxu0 0.0
    %415 = vmatprep.subr.mxu0 0.0
    %416 = vmatpush1.xpose.msra.mxu0 0.0
    %417 = vmatprep.subr.mxu0 0.0
    %418 = vmatpush1.xpose.msra.mxu0 0.0
    %419 = vmatprep.subr.mxu0 0.0
    %420 = vmatpush1.xpose.msra.mxu0 0.0
    %421 = vmatprep.subr.mxu0 0.0
    %422 = vmatpush1.xpose.msra.mxu0 0.0
    %423 = vmatprep.subr.mxu0 0.0
    %424 = vmatpush1.xpose.msra.mxu0 0.0
    %425 = vmatprep.subr.mxu0 0.0
    %426 = vmatpush1.xpose.msra.mxu0 0.0
    %427 = vmatprep.subr.mxu0 0.0
    %428 = vmatpush1.xpose.msra.mxu0 0.0
    %429 = vmatprep.subr.mxu0 0.0
    %430 = vmatpush1.xpose.msra.mxu0 0.0
    %431 = vmatprep.subr.mxu0 0.0
    %432 = vmatpush1.xpose.msra.mxu0 0.0
    %433 = vmatprep.subr.mxu0 0.0
    %434 = vmatpush1.xpose.msra.mxu0 0.0
    %435 = vmatprep.subr.mxu0 0.0
    %436 = vmatpush1.xpose.msra.mxu0 0.0
    %437 = vmatprep.subr.mxu0 0.0
    %438 = vmatpush1.xpose.msra.mxu0 0.0
    %439 = vmatprep.subr.mxu0 0.0
    %440 = vmatpush1.xpose.msra.mxu0 0.0
    %441 = vmatprep.subr.mxu0 0.0
    %442 = vmatpush1.xpose.msra.mxu0 0.0
    %443 = vmatprep.subr.mxu0 0.0
    %444 = vmatpush1.xpose.msra.mxu0 0.0
    %445 = vmatprep.mubr.f32.mxu0 0.0
    %446 = vmatmul.mubr.f32.gmra.mrb[0].mxu0 %v377
    %v447 = vpop.f32.mrb[0].mxu0
    %v448 = vadd.f32 %v206, %v447
    %v449 = vpop.f32.mrb[0].mxu0
    %450 = vdwg.mxu0
    %v451 = vsel %vm211, %v448, -inf
    %452 = vmax.xlane.f32.xlu0 %v451
    %v453 = vpop.xlane.xlu0 %452
    %v454 = vsub.f32 %v448, %v453
    %v455 = vmul.f32 %v454, 1.442695
    %v456 = vpow.pop %v455
    %v457 = vsel %vm211, %v456, 0.0
    %458 = vadd.xlane.f32.xlu0 %v457
    %v459 = vpop.xlane.xlu0 %458
    %v460 = vrcp.pop %v459
    %v461 = vmul.f32 %v456, %v460
    %462 = vrot.lane.b32.xlu0 %v197, 56
    %v463 = vpop.permute.xlu0 %462
    %v466 = vsel %vm211, %v461, 0
    %468 = vmatprep.subr.mxu0 0.0
    %469 = vmatpush1.msra.mxu0 %v463
    %470 = vmatprep.subr.mxu0 0.0
    %471 = vmatpush1.msra.mxu0 0.0
    %472 = vmatprep.subr.mxu0 0.0
    %473 = vmatpush1.msra.mxu0 0.0
    %474 = vmatprep.subr.mxu0 0.0
    %475 = vmatpush1.msra.mxu0 0.0
    %476 = vmatprep.subr.mxu0 0.0
    %477 = vmatpush1.msra.mxu0 0.0
    %478 = vmatprep.subr.mxu0 0.0
    %479 = vmatpush1.msra.mxu0 0.0
    %480 = vmatprep.subr.mxu0 0.0
    %481 = vmatpush1.msra.mxu0 0.0
    %482 = vmatprep.subr.mxu0 0.0
    %483 = vmatpush1.msra.mxu0 0.0
    %484 = vmatprep.subr.mxu0 0.0
    %485 = vmatpush1.msra.mxu0 0.0
    %486 = vmatprep.subr.mxu0 0.0
    %487 = vmatpush1.msra.mxu0 0.0
    %488 = vmatprep.subr.mxu0 0.0
    %489 = vmatpush1.msra.mxu0 0.0
    %490 = vmatprep.subr.mxu0 0.0
    %491 = vmatpush1.msra.mxu0 0.0
    %492 = vmatprep.subr.mxu0 0.0
    %493 = vmatpush1.msra.mxu0 0.0
    %494 = vmatprep.subr.mxu0 0.0
    %495 = vmatpush1.msra.mxu0 0.0
    %496 = vmatprep.subr.mxu0 0.0
    %497 = vmatpush1.msra.mxu0 0.0
    %498 = vmatprep.subr.mxu0 0.0
    %499 = vmatpush1.msra.mxu0 0.0
    %500 = vmatprep.subr.mxu0 0.0
    %501 = vmatpush1.msra.mxu0 0.0
    %502 = vmatprep.subr.mxu0 0.0
    %503 = vmatpush1.msra.mxu0 0.0
    %504 = vmatprep.subr.mxu0 0.0
    %505 = vmatpush1.msra.mxu0 0.0
    %506 = vmatprep.subr.mxu0 0.0
    %507 = vmatpush1.msra.mxu0 0.0
    %508 = vmatprep.subr.mxu0 0.0
    %509 = vmatpush1.msra.mxu0 0.0
    %510 = vmatprep.subr.mxu0 0.0
    %511 = vmatpush1.msra.mxu0 0.0
    %512 = vmatprep.subr.mxu0 0.0
    %513 = vmatpush1.msra.mxu0 0.0
    %514 = vmatprep.subr.mxu0 0.0
    %515 = vmatpush1.msra.mxu0 0.0
    %516 = vmatprep.subr.mxu0 0.0
    %517 = vmatpush1.msra.mxu0 0.0
    %518 = vmatprep.subr.mxu0 0.0
    %519 = vmatpush1.msra.mxu0 0.0
    %520 = vmatprep.subr.mxu0 0.0
    %521 = vmatpush1.msra.mxu0 0.0
    %522 = vmatprep.subr.mxu0 0.0
    %523 = vmatpush1.msra.mxu0 0.0
    %524 = vmatprep.subr.mxu0 0.0
    %525 = vmatpush1.msra.mxu0 0.0
    %526 = vmatprep.subr.mxu0 0.0
    %527 = vmatpush1.msra.mxu0 0.0
    %528 = vmatprep.subr.mxu0 0.0
    %529 = vmatpush1.msra.mxu0 0.0
    %530 = vmatprep.subr.mxu0 0.0
    %531 = vmatpush1.msra.mxu0 0.0
    %532 = vmatprep.mubr.f32.mxu0 0.0
    %533 = vmatmul.mubr.f32.gmra.mrb[0].mxu0 %v466
    %v534 = vpop.f32.mrb[0].mxu0
    %v535 = vadd.f32 0.0, %v534
    %v536 = vpop.f32.mrb[0].mxu0
    %537 = vdwg.mxu0
    %538 = vrot.lane.b32.xlu0 %v197, 112
    %v539 = vpop.permute.xlu0 %538
    %540 = vrot.lane.b32.xlu0 %v197, 80
    %v541 = vpop.permute.xlu0 %540
    %v542 = vsel %vm211, %v539, 0
    %v544 = vsel %vm211, %v541, 0
    %546 = vmatprep.subr.mxu0 0.0
    %547 = vmatpush1.xpose.msra.mxu0 %v544
    %548 = vmatprep.subr.mxu0 0.0
    %549 = vmatpush1.xpose.msra.mxu0 0.0
    %550 = vmatprep.subr.mxu0 0.0
    %551 = vmatpush1.xpose.msra.mxu0 0.0
    %552 = vmatprep.subr.mxu0 0.0
    %553 = vmatpush1.xpose.msra.mxu0 0.0
    %554 = vmatprep.subr.mxu0 0.0
    %555 = vmatpush1.xpose.msra.mxu0 0.0
    %556 = vmatprep.subr.mxu0 0.0
    %557 = vmatpush1.xpose.msra.mxu0 0.0
    %558 = vmatprep.subr.mxu0 0.0
    %559 = vmatpush1.xpose.msra.mxu0 0.0
    %560 = vmatprep.subr.mxu0 0.0
    %561 = vmatpush1.xpose.msra.mxu0 0.0
    %562 = vmatprep.subr.mxu0 0.0
    %563 = vmatpush1.xpose.msra.mxu0 0.0
    %564 = vmatprep.subr.mxu0 0.0
    %565 = vmatpush1.xpose.msra.mxu0 0.0
    %566 = vmatprep.subr.mxu0 0.0
    %567 = vmatpush1.xpose.msra.mxu0 0.0
    %568 = vmatprep.subr.mxu0 0.0
    %569 = vmatpush1.xpose.msra.mxu0 0.0
    %570 = vmatprep.subr.mxu0 0.0
    %571 = vmatpush1.xpose.msra.mxu0 0.0
    %572 = vmatprep.subr.mxu0 0.0
    %573 = vmatpush1.xpose.msra.mxu0 0.0
    %574 = vmatprep.subr.mxu0 0.0
    %575 = vmatpush1.xpose.msra.mxu0 0.0
    %576 = vmatprep.subr.mxu0 0.0
    %577 = vmatpush1.xpose.msra.mxu0 0.0
    %578 = vmatprep.subr.mxu0 0.0
    %579 = vmatpush1.xpose.msra.mxu0 0.0
    %580 = vmatprep.subr.mxu0 0.0
    %581 = vmatpush1.xpose.msra.mxu0 0.0
    %582 = vmatprep.subr.mxu0 0.0
    %583 = vmatpush1.xpose.msra.mxu0 0.0
    %584 = vmatprep.subr.mxu0 0.0
    %585 = vmatpush1.xpose.msra.mxu0 0.0
    %586 = vmatprep.subr.mxu0 0.0
    %587 = vmatpush1.xpose.msra.mxu0 0.0
    %588 = vmatprep.subr.mxu0 0.0
    %589 = vmatpush1.xpose.msra.mxu0 0.0
    %590 = vmatprep.subr.mxu0 0.0
    %591 = vmatpush1.xpose.msra.mxu0 0.0
    %592 = vmatprep.subr.mxu0 0.0
    %593 = vmatpush1.xpose.msra.mxu0 0.0
    %594 = vmatprep.subr.mxu0 0.0
    %595 = vmatpush1.xpose.msra.mxu0 0.0
    %596 = vmatprep.subr.mxu0 0.0
    %597 = vmatpush1.xpose.msra.mxu0 0.0
    %598 = vmatprep.subr.mxu0 0.0
    %599 = vmatpush1.xpose.msra.mxu0 0.0
    %600 = vmatprep.subr.mxu0 0.0
    %601 = vmatpush1.xpose.msra.mxu0 0.0
    %602 = vmatprep.subr.mxu0 0.0
    %603 = vmatpush1.xpose.msra.mxu0 0.0
    %604 = vmatprep.subr.mxu0 0.0
    %605 = vmatpush1.xpose.msra.mxu0 0.0
    %606 = vmatprep.subr.mxu0 0.0
    %607 = vmatpush1.xpose.msra.mxu0 0.0
    %608 = vmatprep.subr.mxu0 0.0
    %609 = vmatpush1.xpose.msra.mxu0 0.0
    %610 = vmatprep.mubr.f32.mxu0 0.0
    %611 = vmatmul.mubr.f32.gmra.mrb[0].mxu0 %v542
    %v612 = vpop.f32.mrb[0].mxu0
    %v613 = vadd.f32 %v206, %v612
    %v614 = vpop.f32.mrb[0].mxu0
    %615 = vdwg.mxu0
    %v616 = vsel %vm211, %v613, -inf
    %617 = vmax.xlane.f32.xlu0 %v616
    %v618 = vpop.xlane.xlu0 %617
    %v619 = vsub.f32 %v613, %v618
    %v620 = vmul.f32 %v619, 1.442695
    %v621 = vpow.pop %v620
    %v622 = vsel %vm211, %v621, 0.0
    %623 = vadd.xlane.f32.xlu0 %v622
    %v624 = vpop.xlane.xlu0 %623
    %v625 = vrcp.pop %v624
    %v626 = vmul.f32 %v621, %v625
    %627 = vrot.lane.b32.xlu0 %v197, 48
    %v628 = vpop.permute.xlu0 %627
    %v631 = vsel %vm211, %v626, 0
    %633 = vmatprep.subr.mxu0 0.0
    %634 = vmatpush1.msra.mxu0 %v628
    %635 = vmatprep.subr.mxu0 0.0
    %636 = vmatpush1.msra.mxu0 0.0
    %637 = vmatprep.subr.mxu0 0.0
    %638 = vmatpush1.msra.mxu0 0.0
    %639 = vmatprep.subr.mxu0 0.0
    %640 = vmatpush1.msra.mxu0 0.0
    %641 = vmatprep.subr.mxu0 0.0
    %642 = vmatpush1.msra.mxu0 0.0
    %643 = vmatprep.subr.mxu0 0.0
    %644 = vmatpush1.msra.mxu0 0.0
    %645 = vmatprep.subr.mxu0 0.0
    %646 = vmatpush1.msra.mxu0 0.0
    %647 = vmatprep.subr.mxu0 0.0
    %648 = vmatpush1.msra.mxu0 0.0
    %649 = vmatprep.subr.mxu0 0.0
    %650 = vmatpush1.msra.mxu0 0.0
    %651 = vmatprep.subr.mxu0 0.0
    %652 = vmatpush1.msra.mxu0 0.0
    %653 = vmatprep.subr.mxu0 0.0
    %654 = vmatpush1.msra.mxu0 0.0
    %655 = vmatprep.subr.mxu0 0.0
    %656 = vmatpush1.msra.mxu0 0.0
    %657 = vmatprep.subr.mxu0 0.0
    %658 = vmatpush1.msra.mxu0 0.0
    %659 = vmatprep.subr.mxu0 0.0
    %660 = vmatpush1.msra.mxu0 0.0
    %661 = vmatprep.subr.mxu0 0.0
    %662 = vmatpush1.msra.mxu0 0.0
    %663 = vmatprep.subr.mxu0 0.0
    %664 = vmatpush1.msra.mxu0 0.0
    %665 = vmatprep.subr.mxu0 0.0
    %666 = vmatpush1.msra.mxu0 0.0
    %667 = vmatprep.subr.mxu0 0.0
    %668 = vmatpush1.msra.mxu0 0.0
    %669 = vmatprep.subr.mxu0 0.0
    %670 = vmatpush1.msra.mxu0 0.0
    %671 = vmatprep.subr.mxu0 0.0
    %672 = vmatpush1.msra.mxu0 0.0
    %673 = vmatprep.subr.mxu0 0.0
    %674 = vmatpush1.msra.mxu0 0.0
    %675 = vmatprep.subr.mxu0 0.0
    %676 = vmatpush1.msra.mxu0 0.0
    %677 = vmatprep.subr.mxu0 0.0
    %678 = vmatpush1.msra.mxu0 0.0
    %679 = vmatprep.subr.mxu0 0.0
    %680 = vmatpush1.msra.mxu0 0.0
    %681 = vmatprep.subr.mxu0 0.0
    %682 = vmatpush1.msra.mxu0 0.0
    %683 = vmatprep.subr.mxu0 0.0
    %684 = vmatpush1.msra.mxu0 0.0
    %685 = vmatprep.subr.mxu0 0.0
    %686 = vmatpush1.msra.mxu0 0.0
    %687 = vmatprep.subr.mxu0 0.0
    %688 = vmatpush1.msra.mxu0 0.0
    %689 = vmatprep.subr.mxu0 0.0
    %690 = vmatpush1.msra.mxu0 0.0
    %691 = vmatprep.subr.mxu0 0.0
    %692 = vmatpush1.msra.mxu0 0.0
    %693 = vmatprep.subr.mxu0 0.0
    %694 = vmatpush1.msra.mxu0 0.0
    %695 = vmatprep.subr.mxu0 0.0
    %696 = vmatpush1.msra.mxu0 0.0
    %697 = vmatprep.mubr.f32.mxu0 0.0
    %698 = vmatmul.mubr.f32.gmra.mrb[0].mxu0 %v631
    %v699 = vpop.f32.mrb[0].mxu0
    %v700 = vadd.f32 0.0, %v699
    %v701 = vpop.f32.mrb[0].mxu0
    %702 = vdwg.mxu0
    %703 = vrot.lane.b32.xlu0 %v197, 104
    %v704 = vpop.permute.xlu0 %703
    %705 = vrot.lane.b32.xlu0 %v197, 72
    %v706 = vpop.permute.xlu0 %705
    %v707 = vsel %vm211, %v704, 0
    %v709 = vsel %vm211, %v706, 0
    %711 = vmatprep.subr.mxu0 0.0
    %712 = vmatpush1.xpose.msra.mxu0 %v709
    %713 = vmatprep.subr.mxu0 0.0
    %714 = vmatpush1.xpose.msra.mxu0 0.0
    %715 = vmatprep.subr.mxu0 0.0
    %716 = vmatpush1.xpose.msra.mxu0 0.0
    %717 = vmatprep.subr.mxu0 0.0
    %718 = vmatpush1.xpose.msra.mxu0 0.0
    %719 = vmatprep.subr.mxu0 0.0
    %720 = vmatpush1.xpose.msra.mxu0 0.0
    %721 = vmatprep.subr.mxu0 0.0
    %722 = vmatpush1.xpose.msra.mxu0 0.0
    %723 = vmatprep.subr.mxu0 0.0
    %724 = vmatpush1.xpose.msra.mxu0 0.0
    %725 = vmatprep.subr.mxu0 0.0
    %726 = vmatpush1.xpose.msra.mxu0 0.0
    %727 = vmatprep.subr.mxu0 0.0
    %728 = vmatpush1.xpose.msra.mxu0 0.0
    %729 = vmatprep.subr.mxu0 0.0
    %730 = vmatpush1.xpose.msra.mxu0 0.0
    %731 = vmatprep.subr.mxu0 0.0
    %732 = vmatpush1.xpose.msra.mxu0 0.0
    %733 = vmatprep.subr.mxu0 0.0
    %734 = vmatpush1.xpose.msra.mxu0 0.0
    %735 = vmatprep.subr.mxu0 0.0
    %736 = vmatpush1.xpose.msra.mxu0 0.0
    %737 = vmatprep.subr.mxu0 0.0
    %738 = vmatpush1.xpose.msra.mxu0 0.0
    %739 = vmatprep.subr.mxu0 0.0
    %740 = vmatpush1.xpose.msra.mxu0 0.0
    %741 = vmatprep.subr.mxu0 0.0
    %742 = vmatpush1.xpose.msra.mxu0 0.0
    %743 = vmatprep.subr.mxu0 0.0
    %744 = vmatpush1.xpose.msra.mxu0 0.0
    %745 = vmatprep.subr.mxu0 0.0
    %746 = vmatpush1.xpose.msra.mxu0 0.0
    %747 = vmatprep.subr.mxu0 0.0
    %748 = vmatpush1.xpose.msra.mxu0 0.0
    %749 = vmatprep.subr.mxu0 0.0
    %750 = vmatpush1.xpose.msra.mxu0 0.0
    %751 = vmatprep.subr.mxu0 0.0
    %752 = vmatpush1.xpose.msra.mxu0 0.0
    %753 = vmatprep.subr.mxu0 0.0
    %754 = vmatpush1.xpose.msra.mxu0 0.0
    %755 = vmatprep.subr.mxu0 0.0
    %756 = vmatpush1.xpose.msra.mxu0 0.0
    %757 = vmatprep.subr.mxu0 0.0
    %758 = vmatpush1.xpose.msra.mxu0 0.0
    %759 = vmatprep.subr.mxu0 0.0
    %760 = vmatpush1.xpose.msra.mxu0 0.0
    %761 = vmatprep.subr.mxu0 0.0
    %762 = vmatpush1.xpose.msra.mxu0 0.0
    %763 = vmatprep.subr.mxu0 0.0
    %764 = vmatpush1.xpose.msra.mxu0 0.0
    %765 = vmatprep.subr.mxu0 0.0
    %766 = vmatpush1.xpose.msra.mxu0 0.0
    %767 = vmatprep.subr.mxu0 0.0
    %768 = vmatpush1.xpose.msra.mxu0 0.0
    %769 = vmatprep.subr.mxu0 0.0
    %770 = vmatpush1.xpose.msra.mxu0 0.0
    %771 = vmatprep.subr.mxu0 0.0
    %772 = vmatpush1.xpose.msra.mxu0 0.0
    %773 = vmatprep.subr.mxu0 0.0
    %774 = vmatpush1.xpose.msra.mxu0 0.0
    %775 = vmatprep.mubr.f32.mxu0 0.0
    %776 = vmatmul.mubr.f32.gmra.mrb[0].mxu0 %v707
    %v777 = vpop.f32.mrb[0].mxu0
    %v778 = vadd.f32 %v206, %v777
    %v779 = vpop.f32.mrb[0].mxu0
    %780 = vdwg.mxu0
    %v781 = vsel %vm211, %v778, -inf
    %782 = vmax.xlane.f32.xlu0 %v781
    %v783 = vpop.xlane.xlu0 %782
    %v784 = vsub.f32 %v778, %v783
    %v785 = vmul.f32 %v784, 1.442695
    %v786 = vpow.pop %v785
    %v787 = vsel %vm211, %v786, 0.0
    %788 = vadd.xlane.f32.xlu0 %v787
    %v789 = vpop.xlane.xlu0 %788
    %v790 = vrcp.pop %v789
    %v791 = vmul.f32 %v786, %v790
    %792 = vrot.lane.b32.xlu0 %v197, 40
    %v793 = vpop.permute.xlu0 %792
    %v796 = vsel %vm211, %v791, 0
    %798 = vmatprep.subr.mxu0 0.0
    %799 = vmatpush1.msra.mxu0 %v793
    %800 = vmatprep.subr.mxu0 0.0
    %801 = vmatpush1.msra.mxu0 0.0
    %802 = vmatprep.subr.mxu0 0.0
    %803 = vmatpush1.msra.mxu0 0.0
    %804 = vmatprep.subr.mxu0 0.0
    %805 = vmatpush1.msra.mxu0 0.0
    %806 = vmatprep.subr.mxu0 0.0
    %807 = vmatpush1.msra.mxu0 0.0
    %808 = vmatprep.subr.mxu0 0.0
    %809 = vmatpush1.msra.mxu0 0.0
    %810 = vmatprep.subr.mxu0 0.0
    %811 = vmatpush1.msra.mxu0 0.0
    %812 = vmatprep.subr.mxu0 0.0
    %813 = vmatpush1.msra.mxu0 0.0
    %814 = vmatprep.subr.mxu0 0.0
    %815 = vmatpush1.msra.mxu0 0.0
    %816 = vmatprep.subr.mxu0 0.0
    %817 = vmatpush1.msra.mxu0 0.0
    %818 = vmatprep.subr.mxu0 0.0
    %819 = vmatpush1.msra.mxu0 0.0
    %820 = vmatprep.subr.mxu0 0.0
    %821 = vmatpush1.msra.mxu0 0.0
    %822 = vmatprep.subr.mxu0 0.0
    %823 = vmatpush1.msra.mxu0 0.0
    %824 = vmatprep.subr.mxu0 0.0
    %825 = vmatpush1.msra.mxu0 0.0
    %826 = vmatprep.subr.mxu0 0.0
    %827 = vmatpush1.msra.mxu0 0.0
    %828 = vmatprep.subr.mxu0 0.0
    %829 = vmatpush1.msra.mxu0 0.0
    %830 = vmatprep.subr.mxu0 0.0
    %831 = vmatpush1.msra.mxu0 0.0
    %832 = vmatprep.subr.mxu0 0.0
    %833 = vmatpush1.msra.mxu0 0.0
    %834 = vmatprep.subr.mxu0 0.0
    %835 = vmatpush1.msra.mxu0 0.0
    %836 = vmatprep.subr.mxu0 0.0
    %837 = vmatpush1.msra.mxu0 0.0
    %838 = vmatprep.subr.mxu0 0.0
    %839 = vmatpush1.msra.mxu0 0.0
    %840 = vmatprep.subr.mxu0 0.0
    %841 = vmatpush1.msra.mxu0 0.0
    %842 = vmatprep.subr.mxu0 0.0
    %843 = vmatpush1.msra.mxu0 0.0
    %844 = vmatprep.subr.mxu0 0.0
    %845 = vmatpush1.msra.mxu0 0.0
    %846 = vmatprep.subr.mxu0 0.0
    %847 = vmatpush1.msra.mxu0 0.0
    %848 = vmatprep.subr.mxu0 0.0
    %849 = vmatpush1.msra.mxu0 0.0
    %850 = vmatprep.subr.mxu0 0.0
    %851 = vmatpush1.msra.mxu0 0.0
    %852 = vmatprep.subr.mxu0 0.0
    %853 = vmatpush1.msra.mxu0 0.0
    %854 = vmatprep.subr.mxu0 0.0
    %855 = vmatpush1.msra.mxu0 0.0
    %856 = vmatprep.subr.mxu0 0.0
    %857 = vmatpush1.msra.mxu0 0.0
    %858 = vmatprep.subr.mxu0 0.0
    %859 = vmatpush1.msra.mxu0 0.0
    %860 = vmatprep.subr.mxu0 0.0
    %861 = vmatpush1.msra.mxu0 0.0
    %862 = vmatprep.mubr.f32.mxu0 0.0
    %863 = vmatmul.mubr.f32.gmra.mrb[0].mxu0 %v796
    %v864 = vpop.f32.mrb[0].mxu0
    %v865 = vadd.f32 0.0, %v864
    %v866 = vpop.f32.mrb[0].mxu0
    %867 = vdwg.mxu0
    %869 = vrot.lane.b32.xlu0 %v535, 8
    %v870 = vpop.permute.xlu0 %869
    %873 = vrot.lane.b32.xlu0 %v700, 16
    %v874 = vpop.permute.xlu0 %873
    %877 = vrot.lane.b32.xlu0 %v865, 24
    %v878 = vpop.permute.xlu0 %877
    %v880 = vsel %vm211, %v370, %v870
    %vm881 = vcmask 130048
    %v882 = vsel %vm881, %v880, %v874
    %vm883 = vcmask 195584
    %v884 = vsel %vm883, %v882, %v878
    %v885 = vpack.c.bf16 %v884, %v884
    %v886 = vld [vmem:[%s9] sm:$0xf]
    %v887 = vld [vmem:[%s9 + $0x4] sm:$0xf]
    %v888 = vld [vmem:[%s9 + $0x8] sm:$0xf]
    %v889 = vld [vmem:[%s9 + $0xc] sm:$0xf]
    %v890 = vld [vmem:[%s11] sm:$0x1]
    %v892 = vlaneseq
    %v893 = vshrl.u32 %v892, 7
    %v894 = vsub.s32 0, %v893
    %v895 = vrot.slane %v890, %v894
    %v901 = vunpack.c.l.b16 %v886
    %v902 = vunpack.c.l.b16 %v887
    %v903 = vunpack.c.l.b16 %v888
    %v904 = vunpack.c.l.b16 %v889
    %v905 = vpack.c.b16 %v902, %v901
    %v906 = vpack.c.b16 %v904, %v903
    %v910 = vsel %vm158, %v885, 0
    %912 = vmatprep.subr.bf16.mxu0 0
    %913 = vmatpush1.bf16.msra.mxu0 %v905
    %914 = vmatprep.subr.bf16.mxu0 0
    %915 = vmatpush1.bf16.msra.mxu0 %v906
    %916 = vmatprep.subr.bf16.mxu0 0
    %917 = vmatpush1.bf16.msra.mxu0 0
    %918 = vmatprep.subr.bf16.mxu0 0
    %919 = vmatpush1.bf16.msra.mxu0 0
    %920 = vmatprep.subr.bf16.mxu0 0
    %921 = vmatpush1.bf16.msra.mxu0 0
    %922 = vmatprep.subr.bf16.mxu0 0
    %923 = vmatpush1.bf16.msra.mxu0 0
    %924 = vmatprep.subr.bf16.mxu0 0
    %925 = vmatpush1.bf16.msra.mxu0 0
    %926 = vmatprep.subr.bf16.mxu0 0
    %927 = vmatpush1.bf16.msra.mxu0 0
    %928 = vmatprep.subr.bf16.mxu0 0
    %929 = vmatpush1.bf16.msra.mxu0 0
    %930 = vmatprep.subr.bf16.mxu0 0
    %931 = vmatpush1.bf16.msra.mxu0 0
    %932 = vmatprep.subr.bf16.mxu0 0
    %933 = vmatpush1.bf16.msra.mxu0 0
    %934 = vmatprep.subr.bf16.mxu0 0
    %935 = vmatpush1.bf16.msra.mxu0 0
    %936 = vmatprep.subr.bf16.mxu0 0
    %937 = vmatpush1.bf16.msra.mxu0 0
    %938 = vmatprep.subr.bf16.mxu0 0
    %939 = vmatpush1.bf16.msra.mxu0 0
    %940 = vmatprep.subr.bf16.mxu0 0
    %941 = vmatpush1.bf16.msra.mxu0 0
    %942 = vmatprep.subr.bf16.mxu0 0
    %943 = vmatpush1.bf16.msra.mxu0 0
    %944 = vmatprep.mubr.bf16.mxu0 0
    %945 = vmatmul.mubr.bf16.gmra.mrb[0].mxu0 %v910
    %v946 = vpop.f32.mrb[0].mxu0
    %v947 = vadd.f32 %v895, %v946
    %v948 = vpop.f32.mrb[0].mxu0
    %v949 = vpop.f32.mrb[0].mxu0
    %v950 = vpop.f32.mrb[0].mxu0
    %951 = vdwg.mxu0
    %v952 = vadd.f32 %v132, %v947
    %v953 = vld [vmem:[%s33] sm:$0x1]
    %v954 = vld [vmem:[%s35] sm:$0x1]
    %v955 = vsel %vm158, %v952, 0.0
    %956 = vadd.xlane.f32.xlu0 %v955
    %v957 = vpop.xlane.xlu0 %956
    %v958 = vrcp.pop 32.0
    %v959 = vmul.f32 %v957, %v958
    %v960 = vsub.f32 %v952, %v959
    %v961 = vmul.f32 %v960, %v960
    %v962 = vsel %vm158, %v961, 0.0
    %963 = vadd.xlane.f32.xlu0 %v962
    %v964 = vpop.xlane.xlu0 %963
    %v965 = vmul.f32 %v964, %v958
    %v966 = vadd.f32 %v965, 1e-05
    %v967 = vrsqrt.pop %v966
    %v968 = vmul.f32 %v960, %v967
    %v970 = vlaneseq
    %v971 = vshrl.u32 %v970, 7
    %v972 = vsub.s32 0, %v971
    %v973 = vrot.slane %v953, %v972
    %v975 = vmul.f32 %v968, %v973
    %v977 = vlaneseq
    %v978 = vshrl.u32 %v977, 7
    %v979 = vsub.s32 0, %v978
    %v980 = vrot.slane %v954, %v979
    %v982 = vadd.f32 %v975, %v980
    %v983 = vpack.c.bf16 %v982, %v982
    %v984 = vld [vmem:[%s13] sm:$0xf]
    %v985 = vld [vmem:[%s13 + $0x4] sm:$0xf]
    %v986 = vld [vmem:[%s13 + $0x8] sm:$0xf]
    %v987 = vld [vmem:[%s13 + $0xc] sm:$0xf]
    %v988 = vld [vmem:[%s15] sm:$0x1]
    %v990 = vlaneseq
    %v991 = vshrl.u32 %v990, 7
    %v992 = vsub.s32 0, %v991
    %v993 = vrot.slane %v988, %v992
    %v999 = vunpack.c.l.b16 %v984
    %v1000 = vunpack.c.l.b16 %v985
    %v1001 = vunpack.c.l.b16 %v986
    %v1002 = vunpack.c.l.b16 %v987
    %v1003 = vpack.c.b16 %v1000, %v999
    %v1004 = vpack.c.b16 %v1002, %v1001
    %v1008 = vsel %vm158, %v983, 0
    %1010 = vmatprep.subr.bf16.mxu0 0
    %1011 = vmatpush1.bf16.msra.mxu0 %v1003
    %1012 = vmatprep.subr.bf16.mxu0 0
    %1013 = vmatpush1.bf16.msra.mxu0 %v1004
    %1014 = vmatprep.subr.bf16.mxu0 0
    %1015 = vmatpush1.bf16.msra.mxu0 0
    %1016 = vmatprep.subr.bf16.mxu0 0
    %1017 = vmatpush1.bf16.msra.mxu0 0
    %1018 = vmatprep.subr.bf16.mxu0 0
    %1019 = vmatpush1.bf16.msra.mxu0 0
    %1020 = vmatprep.subr.bf16.mxu0 0
    %1021 = vmatpush1.bf16.msra.mxu0 0
    %1022 = vmatprep.subr.bf16.mxu0 0
    %1023 = vmatpush1.bf16.msra.mxu0 0
    %1024 = vmatprep.subr.bf16.mxu0 0
    %1025 = vmatpush1.bf16.msra.mxu0 0
    %1026 = vmatprep.subr.bf16.mxu0 0
    %1027 = vmatpush1.bf16.msra.mxu0 0
    %1028 = vmatprep.subr.bf16.mxu0 0
    %1029 = vmatpush1.bf16.msra.mxu0 0
    %1030 = vmatprep.subr.bf16.mxu0 0
    %1031 = vmatpush1.bf16.msra.mxu0 0
    %1032 = vmatprep.subr.bf16.mxu0 0
    %1033 = vmatpush1.bf16.msra.mxu0 0
    %1034 = vmatprep.subr.bf16.mxu0 0
    %1035 = vmatpush1.bf16.msra.mxu0 0
    %1036 = vmatprep.subr.bf16.mxu0 0
    %1037 = vmatpush1.bf16.msra.mxu0 0
    %1038 = vmatprep.subr.bf16.mxu0 0
    %1039 = vmatpush1.bf16.msra.mxu0 0
    %1040 = vmatprep.subr.bf16.mxu0 0
    %1041 = vmatpush1.bf16.msra.mxu0 0
    %1042 = vmatprep.mubr.bf16.mxu0 0
    %1043 = vmatmul.mubr.bf16.gmra.mrb[0].mxu0 %v1008
    %v1044 = vpop.f32.mrb[0].mxu0
    %v1045 = vadd.f32 %v993, %v1044
    %v1046 = vpop.f32.mrb[0].mxu0
    %v1047 = vpop.f32.mrb[0].mxu0
    %v1048 = vpop.f32.mrb[0].mxu0
    %1049 = vdwg.mxu0
    %v1050 = vld [vmem:[%s17] sm:$0xff]
    %v1051 = vld [vmem:[%s17 + $0x8] sm:$0xff]
    %v1052 = vld [vmem:[%s17 + $0x10] sm:$0xff]
    %v1053 = vld [vmem:[%s17 + $0x18] sm:$0xff]
    %v1055 = vsel %vm158, %v1045, 0
    %1057 = vmatprep.subr.mxu0 0.0
    %1058 = vmatpush1.msra.mxu0 %v1050
    %1059 = vmatprep.subr.mxu0 0.0
    %1060 = vmatpush1.msra.mxu0 %v1051
    %1061 = vmatprep.subr.mxu0 0.0
    %1062 = vmatpush1.msra.mxu0 %v1052
    %1063 = vmatprep.subr.mxu0 0.0
    %1064 = vmatpush1.msra.mxu0 %v1053
    %1065 = vmatprep.subr.mxu0 0.0
    %1066 = vmatpush1.msra.mxu0 0.0
    %1067 = vmatprep.subr.mxu0 0.0
    %1068 = vmatpush1.msra.mxu0 0.0
    %1069 = vmatprep.subr.mxu0 0.0
    %1070 = vmatpush1.msra.mxu0 0.0
    %1071 = vmatprep.subr.mxu0 0.0
    %1072 = vmatpush1.msra.mxu0 0.0
    %1073 = vmatprep.subr.mxu0 0.0
    %1074 = vmatpush1.msra.mxu0 0.0
    %1075 = vmatprep.subr.mxu0 0.0
    %1076 = vmatpush1.msra.mxu0 0.0
    %1077 = vmatprep.subr.mxu0 0.0
    %1078 = vmatpush1.msra.mxu0 0.0
    %1079 = vmatprep.subr.mxu0 0.0
    %1080 = vmatpush1.msra.mxu0 0.0
    %1081 = vmatprep.subr.mxu0 0.0
    %1082 = vmatpush1.msra.mxu0 0.0
    %1083 = vmatprep.subr.mxu0 0.0
    %1084 = vmatpush1.msra.mxu0 0.0
    %1085 = vmatprep.subr.mxu0 0.0
    %1086 = vmatpush1.msra.mxu0 0.0
    %1087 = vmatprep.subr.mxu0 0.0
    %1088 = vmatpush1.msra.mxu0 0.0
    %1089 = vmatprep.subr.mxu0 0.0
    %1090 = vmatpush1.msra.mxu0 0.0
    %1091 = vmatprep.subr.mxu0 0.0
    %1092 = vmatpush1.msra.mxu0 0.0
    %1093 = vmatprep.subr.mxu0 0.0
    %1094 = vmatpush1.msra.mxu0 0.0
    %1095 = vmatprep.subr.mxu0 0.0
    %1096 = vmatpush1.msra.mxu0 0.0
    %1097 = vmatprep.subr.mxu0 0.0
    %1098 = vmatpush1.msra.mxu0 0.0
    %1099 = vmatprep.subr.mxu0 0.0
    %1100 = vmatpush1.msra.mxu0 0.0
    %1101 = vmatprep.subr.mxu0 0.0
    %1102 = vmatpush1.msra.mxu0 0.0
    %1103 = vmatprep.subr.mxu0 0.0
    %1104 = vmatpush1.msra.mxu0 0.0
    %1105 = vmatprep.subr.mxu0 0.0
    %1106 = vmatpush1.msra.mxu0 0.0
    %1107 = vmatprep.subr.mxu0 0.0
    %1108 = vmatpush1.msra.mxu0 0.0
    %1109 = vmatprep.subr.mxu0 0.0
    %1110 = vmatpush1.msra.mxu0 0.0
    %1111 = vmatprep.subr.mxu0 0.0
    %1112 = vmatpush1.msra.mxu0 0.0
    %1113 = vmatprep.subr.mxu0 0.0
    %1114 = vmatpush1.msra.mxu0 0.0
    %1115 = vmatprep.subr.mxu0 0.0
    %1116 = vmatpush1.msra.mxu0 0.0
    %1117 = vmatprep.subr.mxu0 0.0
    %1118 = vmatpush1.msra.mxu0 0.0
    %1119 = vmatprep.subr.mxu0 0.0
    %1120 = vmatpush1.msra.mxu0 0.0
    %1121 = vmatprep.mubr.f32.mxu0 0.0
    %1122 = vmatmul.mubr.f32.gmra.mrb[0].mxu0 %v1055
    %v1123 = vpop.f32.mrb[0].mxu0
    %v1124 = vadd.f32 0.0, %v1123
    %v1125 = vpop.f32.mrb[0].mxu0
    %1126 = vdwg.mxu0
    %v1127 = vsel %vm158, %v1124, -inf
    %1128 = vmax.xlane.f32.xlu0 %v1127
    %v1129 = vpop.xlane.xlu0 %1128
    %v1130 = vsub.f32 %v1124, %v1129
    %v1131 = vmul.f32 %v1130, 1.442695
    %v1132 = vpow.pop %v1131
    %v1133 = vsel %vm158, %v1132, 0.0
    %1134 = vadd.xlane.f32.xlu0 %v1133
    %v1135 = vpop.xlane.xlu0 %1134
    %v1136 = vrcp.pop %v1135
    %v1137 = vmul.f32 %v1132, %v1136
    %vm1138 = vcmask 523520
    %v1139 = vsel %vm1138, %v1124, -inf
    %1140 = vmax.xlane.f32.xlu0 %v1139
    %v1141 = vpop.xlane.xlu0 %1140
    %v1142 = vsub.f32 %v1124, %v1141
    %v1143 = vmul.f32 %v1142, 1.442695
    %v1144 = vpow.pop %v1143
    %1146 = vrot.lane.b32.xlu0 %v1144, 96
    %v1147 = vpop.permute.xlu0 %1146
    %v1149 = vsel %vm158, %v1147, 0.0
    %1150 = vadd.xlane.f32.xlu0 %v1149
    %v1151 = vpop.xlane.xlu0 %1150
    %v1152 = vrcp.pop %v1151
    %v1153 = vmul.f32 %v1144, %v1152
    %vm1154 = vcmask 785920
    %v1155 = vsel %vm1154, %v1124, -inf
    %1156 = vmax.xlane.f32.xlu0 %v1155
    %v1157 = vpop.xlane.xlu0 %1156
    %v1158 = vsub.f32 %v1124, %v1157
    %v1159 = vmul.f32 %v1158, 1.442695
    %v1160 = vpow.pop %v1159
    %1162 = vrot.lane.b32.xlu0 %v1160, 64
    %v1163 = vpop.permute.xlu0 %1162
    %v1165 = vsel %vm158, %v1163, 0.0
    %1166 = vadd.xlane.f32.xlu0 %v1165
    %v1167 = vpop.xlane.xlu0 %1166
    %v1168 = vrcp.pop %v1167
    %v1169 = vmul.f32 %v1160, %v1168
    %vm1170 = vcmask 1048320
    %v1171 = vsel %vm1170, %v1124, -inf
    %1172 = vmax.xlane.f32.xlu0 %v1171
    %v1173 = vpop.xlane.xlu0 %1172
    %v1174 = vsub.f32 %v1124, %v1173
    %v1175 = vmul.f32 %v1174, 1.442695
    %v1176 = vpow.pop %v1175
    %1178 = vrot.lane.b32.xlu0 %v1176, 32
    %v1179 = vpop.permute.xlu0 %1178
    %v1181 = vsel %vm158, %v1179, 0.0
    %1182 = vadd.xlane.f32.xlu0 %v1181
    %v1183 = vpop.xlane.xlu0 %1182
    %v1184 = vrcp.pop %v1183
    %v1185 = vmul.f32 %v1176, %v1184
    %v1186 = vsel %vm158, %v1137, %v1153
    %vm1187 = vcmask 523264
    %v1188 = vsel %vm1187, %v1186, %v1169
    %vm1189 = vcmask 785408
    %v1190 = vsel %vm1189, %v1188, %v1185
    %v1191 = vld [vmem:[%s19] sm:$0xff]
    %v1192 = vld [vmem:[%s19 + $0x8] sm:$0xff]
    %v1193 = vld [vmem:[%s19 + $0x10] sm:$0xff]
    %v1194 = vld [vmem:[%s19 + $0x18] sm:$0xff]
    %v1195 = vld [vmem:[%s19 + $0x20] sm:$0xff]
    %v1196 = vld [vmem:[%s19 + $0x28] sm:$0xff]
    %v1197 = vld [vmem:[%s19 + $0x30] sm:$0xff]
    %v1198 = vld [vmem:[%s19 + $0x38] sm:$0xff]
    %v1199 = vld [vmem:[%s19 + $0x40] sm:$0xff]
    %v1200 = vld [vmem:[%s19 + $0x48] sm:$0xff]
    %v1201 = vld [vmem:[%s19 + $0x50] sm:$0xff]
    %v1202 = vld [vmem:[%s19 + $0x58] sm:$0xff]
    %v1203 = vld [vmem:[%s19 + $0x60] sm:$0xff]
    %v1204 = vld [vmem:[%s19 + $0x68] sm:$0xff]
    %v1205 = vld [vmem:[%s19 + $0x70] sm:$0xff]
    %v1206 = vld [vmem:[%s19 + $0x78] sm:$0xff]
    %1207 = vmatprep.subr.mxu0 0.0
    %1208 = vmatpush1.msra.mxu0 %v1191
    %1209 = vmatprep.subr.mxu0 0.0
    %1210 = vmatpush1.msra.mxu0 %v1192
    %1211 = vmatprep.subr.mxu0 0.0
    %1212 = vmatpush1.msra.mxu0 %v1193
    %1213 = vmatprep.subr.mxu0 0.0
    %1214 = vmatpush1.msra.mxu0 %v1194
    %1215 = vmatprep.subr.mxu0 0.0
    %1216 = vmatpush1.msra.mxu0 %v1195
    %1217 = vmatprep.subr.mxu0 0.0
    %1218 = vmatpush1.msra.mxu0 %v1196
    %1219 = vmatprep.subr.mxu0 0.0
    %1220 = vmatpush1.msra.mxu0 %v1197
    %1221 = vmatprep.subr.mxu0 0.0
    %1222 = vmatpush1.msra.mxu0 %v1198
    %1223 = vmatprep.subr.mxu0 0.0
    %1224 = vmatpush1.msra.mxu0 %v1199
    %1225 = vmatprep.subr.mxu0 0.0
    %1226 = vmatpush1.msra.mxu0 %v1200
    %1227 = vmatprep.subr.mxu0 0.0
    %1228 = vmatpush1.msra.mxu0 %v1201
    %1229 = vmatprep.subr.mxu0 0.0
    %1230 = vmatpush1.msra.mxu0 %v1202
    %1231 = vmatprep.subr.mxu0 0.0
    %1232 = vmatpush1.msra.mxu0 %v1203
    %1233 = vmatprep.subr.mxu0 0.0
    %1234 = vmatpush1.msra.mxu0 %v1204
    %1235 = vmatprep.subr.mxu0 0.0
    %1236 = vmatpush1.msra.mxu0 %v1205
    %1237 = vmatprep.subr.mxu0 0.0
    %1238 = vmatpush1.msra.mxu0 %v1206
    %1239 = vmatprep.subr.mxu0 0.0
    %1240 = vmatpush1.msra.mxu0 0.0
    %1241 = vmatprep.subr.mxu0 0.0
    %1242 = vmatpush1.msra.mxu0 0.0
    %1243 = vmatprep.subr.mxu0 0.0
    %1244 = vmatpush1.msra.mxu0 0.0
    %1245 = vmatprep.subr.mxu0 0.0
    %1246 = vmatpush1.msra.mxu0 0.0
    %1247 = vmatprep.subr.mxu0 0.0
    %1248 = vmatpush1.msra.mxu0 0.0
    %1249 = vmatprep.subr.mxu0 0.0
    %1250 = vmatpush1.msra.mxu0 0.0
    %1251 = vmatprep.subr.mxu0 0.0
    %1252 = vmatpush1.msra.mxu0 0.0
    %1253 = vmatprep.subr.mxu0 0.0
    %1254 = vmatpush1.msra.mxu0 0.0
    %1255 = vmatprep.subr.mxu0 0.0
    %1256 = vmatpush1.msra.mxu0 0.0
    %1257 = vmatprep.subr.mxu0 0.0
    %1258 = vmatpush1.msra.mxu0 0.0
    %1259 = vmatprep.subr.mxu0 0.0
    %1260 = vmatpush1.msra.mxu0 0.0
    %1261 = vmatprep.subr.mxu0 0.0
    %1262 = vmatpush1.msra.mxu0 0.0
    %1263 = vmatprep.subr.mxu0 0.0
    %1264 = vmatpush1.msra.mxu0 0.0
    %1265 = vmatprep.subr.mxu0 0.0
    %1266 = vmatpush1.msra.mxu0 0.0
    %1267 = vmatprep.subr.mxu0 0.0
    %1268 = vmatpush1.msra.mxu0 0.0
    %1269 = vmatprep.subr.mxu0 0.0
    %1270 = vmatpush1.msra.mxu0 0.0
    %1271 = vmatprep.mubr.f32.mxu0 0.0
    %1272 = vmatmul.mubr.f32.gmra.mrb[0].mxu0 %v1190
    %v1273 = vpop.f32.mrb[0].mxu0
    %v1274 = vadd.f32 0.0, %v1273
    %v1275 = vpop.f32.mrb[0].mxu0
    %1276 = vdwg.mxu0
    %v1277 = vpack.c.bf16 %v1274, %v1274
    %v1278 = vld [vmem:[%s21] sm:$0xf]
    %v1279 = vld [vmem:[%s21 + $0x4] sm:$0xf]
    %v1280 = vld [vmem:[%s21 + $0x8] sm:$0xf]
    %v1281 = vld [vmem:[%s21 + $0xc] sm:$0xf]
    %v1282 = vld [vmem:[%s23] sm:$0x1]
    %v1284 = vlaneseq
    %v1285 = vshrl.u32 %v1284, 7
    %v1286 = vsub.s32 0, %v1285
    %v1287 = vrot.slane %v1282, %v1286
    %v1293 = vunpack.c.l.b16 %v1278
    %v1294 = vunpack.c.l.b16 %v1279
    %v1295 = vunpack.c.l.b16 %v1280
    %v1296 = vunpack.c.l.b16 %v1281
    %v1297 = vpack.c.b16 %v1294, %v1293
    %v1298 = vpack.c.b16 %v1296, %v1295
    %v1302 = vsel %vm158, %v1277, 0
    %1304 = vmatprep.subr.bf16.mxu0 0
    %1305 = vmatpush1.bf16.msra.mxu0 %v1297
    %1306 = vmatprep.subr.bf16.mxu0 0
    %1307 = vmatpush1.bf16.msra.mxu0 %v1298
    %1308 = vmatprep.subr.bf16.mxu0 0
    %1309 = vmatpush1.bf16.msra.mxu0 0
    %1310 = vmatprep.subr.bf16.mxu0 0
    %1311 = vmatpush1.bf16.msra.mxu0 0
    %1312 = vmatprep.subr.bf16.mxu0 0
    %1313 = vmatpush1.bf16.msra.mxu0 0
    %1314 = vmatprep.subr.bf16.mxu0 0
    %1315 = vmatpush1.bf16.msra.mxu0 0
    %1316 = vmatprep.subr.bf16.mxu0 0
    %1317 = vmatpush1.bf16.msra.mxu0 0
    %1318 = vmatprep.subr.bf16.mxu0 0
    %1319 = vmatpush1.bf16.msra.mxu0 0
    %1320 = vmatprep.subr.bf16.mxu0 0
    %1321 = vmatpush1.bf16.msra.mxu0 0
    %1322 = vmatprep.subr.bf16.mxu0 0
    %1323 = vmatpush1.bf16.msra.mxu0 0
    %1324 = vmatprep.subr.bf16.mxu0 0
    %1325 = vmatpush1.bf16.msra.mxu0 0
    %1326 = vmatprep.subr.bf16.mxu0 0
    %1327 = vmatpush1.bf16.msra.mxu0 0
    %1328 = vmatprep.subr.bf16.mxu0 0
    %1329 = vmatpush1.bf16.msra.mxu0 0
    %1330 = vmatprep.subr.bf16.mxu0 0
    %1331 = vmatpush1.bf16.msra.mxu0 0
    %1332 = vmatprep.subr.bf16.mxu0 0
    %1333 = vmatpush1.bf16.msra.mxu0 0
    %1334 = vmatprep.subr.bf16.mxu0 0
    %1335 = vmatpush1.bf16.msra.mxu0 0
    %1336 = vmatprep.mubr.bf16.mxu0 0
    %1337 = vmatmul.mubr.bf16.gmra.mrb[0].mxu0 %v1302
    %v1338 = vpop.f32.mrb[0].mxu0
    %v1339 = vadd.f32 %v1287, %v1338
    %v1340 = vpop.f32.mrb[0].mxu0
    %v1341 = vpop.f32.mrb[0].mxu0
    %v1342 = vpop.f32.mrb[0].mxu0
    %1343 = vdwg.mxu0
    %v1344 = vadd.f32 %v982, %v1339
    %v1345 = vld [vmem:[%s37] sm:$0x1]
    %v1346 = vld [vmem:[%s39] sm:$0x1]
    %v1347 = vsel %vm158, %v1344, 0.0
    %1348 = vadd.xlane.f32.xlu0 %v1347
    %v1349 = vpop.xlane.xlu0 %1348
    %v1350 = vmul.f32 %v1349, %v958
    %v1351 = vsub.f32 %v1344, %v1350
    %v1352 = vmul.f32 %v1351, %v1351
    %v1353 = vsel %vm158, %v1352, 0.0
    %1354 = vadd.xlane.f32.xlu0 %v1353
    %v1355 = vpop.xlane.xlu0 %1354
    %v1356 = vmul.f32 %v1355, %v958
    %v1357 = vadd.f32 %v1356, 1e-05
    %v1358 = vrsqrt.pop %v1357
    %v1359 = vmul.f32 %v1351, %v1358
    %v1361 = vlaneseq
    %v1362 = vshrl.u32 %v1361, 7
    %v1363 = vsub.s32 0, %v1362
    %v1364 = vrot.slane %v1345, %v1363
    %v1366 = vmul.f32 %v1359, %v1364
    %v1368 = vlaneseq
    %v1369 = vshrl.u32 %v1368, 7
    %v1370 = vsub.s32 0, %v1369
    %v1371 = vrot.slane %v1346, %v1370
    %v1373 = vadd.f32 %v1366, %v1371
    %v1374 = vpack.c.bf16 %v1373, %v1373
    %v1375 = vld [vmem:[%s25] sm:$0xff]
    %v1376 = vld [vmem:[%s25 + $0x8] sm:$0xff]
    %v1377 = vld [vmem:[%s25 + $0x10] sm:$0xff]
    %v1378 = vld [vmem:[%s25 + $0x18] sm:$0xff]
    %v1379 = vld [vmem:[%s25 + $0x20] sm:$0xff]
    %v1380 = vld [vmem:[%s25 + $0x28] sm:$0xff]
    %v1381 = vld [vmem:[%s25 + $0x30] sm:$0xff]
    %v1382 = vld [vmem:[%s25 + $0x38] sm:$0xff]
    %v1383 = vld [vmem:[%s25 + $0x40] sm:$0xff]
    %v1384 = vld [vmem:[%s25 + $0x48] sm:$0xff]
    %v1385 = vld [vmem:[%s25 + $0x50] sm:$0xff]
    %v1386 = vld [vmem:[%s25 + $0x58] sm:$0xff]
    %v1387 = vld [vmem:[%s25 + $0x60] sm:$0xff]
    %v1388 = vld [vmem:[%s25 + $0x68] sm:$0xff]
    %v1389 = vld [vmem:[%s25 + $0x70] sm:$0xff]
    %v1390 = vld [vmem:[%s25 + $0x78] sm:$0xff]
    %v1391 = vld [vmem:[%s25 + $0x80] sm:$0xff]
    %v1392 = vld [vmem:[%s25 + $0x88] sm:$0xff]
    %v1393 = vld [vmem:[%s25 + $0x90] sm:$0xff]
    %v1394 = vld [vmem:[%s25 + $0x98] sm:$0xff]
    %v1395 = vld [vmem:[%s25 + $0xa0] sm:$0xff]
    %v1396 = vld [vmem:[%s25 + $0xa8] sm:$0xff]
    %v1397 = vld [vmem:[%s25 + $0xb0] sm:$0xff]
    %v1398 = vld [vmem:[%s25 + $0xb8] sm:$0xff]
    %v1399 = vld [vmem:[%s25 + $0xc0] sm:$0xff]
    %v1400 = vld [vmem:[%s25 + $0xc8] sm:$0xff]
    %v1401 = vld [vmem:[%s25 + $0xd0] sm:$0xff]
    %v1402 = vld [vmem:[%s25 + $0xd8] sm:$0xff]
    %v1403 = vld [vmem:[%s25 + $0xe0] sm:$0xff]
    %v1404 = vld [vmem:[%s25 + $0xe8] sm:$0xff]
    %v1405 = vld [vmem:[%s25 + $0xf0] sm:$0xff]
    %v1406 = vld [vmem:[%s25 + $0xf8] sm:$0xff]
    %v1407 = vld [vmem:[%s27] sm:$0xff]
    %v1408 = vld [vmem:[%s27 + $0x8] sm:$0xff]
    %v1411 = vlaneseq
    %v1412 = vshrl.u32 %v1411, 7
    %v1413 = vsub.s32 0, %v1412
    %v1414 = vrot.slane %v1407, %v1413
    %v1415 = vlaneseq
    %v1416 = vshrl.u32 %v1415, 7
    %v1417 = vsub.s32 1, %v1416
    %v1418 = vrot.slane %v1407, %v1417
    %v1419 = vlaneseq
    %v1420 = vshrl.u32 %v1419, 7
    %v1421 = vsub.s32 2, %v1420
    %v1422 = vrot.slane %v1407, %v1421
    %v1423 = vlaneseq
    %v1424 = vshrl.u32 %v1423, 7
    %v1425 = vsub.s32 3, %v1424
    %v1426 = vrot.slane %v1407, %v1425
    %v1427 = vlaneseq
    %v1428 = vshrl.u32 %v1427, 7
    %v1429 = vsub.s32 4, %v1428
    %v1430 = vrot.slane %v1407, %v1429
    %v1431 = vlaneseq
    %v1432 = vshrl.u32 %v1431, 7
    %v1433 = vsub.s32 5, %v1432
    %v1434 = vrot.slane %v1407, %v1433
    %v1435 = vlaneseq
    %v1436 = vshrl.u32 %v1435, 7
    %v1437 = vsub.s32 6, %v1436
    %v1438 = vrot.slane %v1407, %v1437
    %v1439 = vlaneseq
    %v1440 = vshrl.u32 %v1439, 7
    %v1441 = vsub.s32 7, %v1440
    %v1442 = vrot.slane %v1407, %v1441
    %v1443 = vlaneseq
    %v1444 = vshrl.u32 %v1443, 7
    %v1445 = vsub.s32 0, %v1444
    %v1446 = vrot.slane %v1408, %v1445
    %v1447 = vlaneseq
    %v1448 = vshrl.u32 %v1447, 7
    %v1449 = vsub.s32 1, %v1448
    %v1450 = vrot.slane %v1408, %v1449
    %v1451 = vlaneseq
    %v1452 = vshrl.u32 %v1451, 7
    %v1453 = vsub.s32 2, %v1452
    %v1454 = vrot.slane %v1408, %v1453
    %v1455 = vlaneseq
    %v1456 = vshrl.u32 %v1455, 7
    %v1457 = vsub.s32 3, %v1456
    %v1458 = vrot.slane %v1408, %v1457
    %v1459 = vlaneseq
    %v1460 = vshrl.u32 %v1459, 7
    %v1461 = vsub.s32 4, %v1460
    %v1462 = vrot.slane %v1408, %v1461
    %v1463 = vlaneseq
    %v1464 = vshrl.u32 %v1463, 7
    %v1465 = vsub.s32 5, %v1464
    %v1466 = vrot.slane %v1408, %v1465
    %v1467 = vlaneseq
    %v1468 = vshrl.u32 %v1467, 7
    %v1469 = vsub.s32 6, %v1468
    %v1470 = vrot.slane %v1408, %v1469
    %v1471 = vlaneseq
    %v1472 = vshrl.u32 %v1471, 7
    %v1473 = vsub.s32 7, %v1472
    %v1474 = vrot.slane %v1408, %v1473
    %v1523 = vunpack.c.l.b16 %v1375
    %v1524 = vunpack.c.h.b16 %v1375
    %v1525 = vunpack.c.l.b16 %v1376
    %v1526 = vunpack.c.h.b16 %v1376
    %v1527 = vunpack.c.l.b16 %v1377
    %v1528 = vunpack.c.h.b16 %v1377
    %v1529 = vunpack.c.l.b16 %v1378
    %v1530 = vunpack.c.h.b16 %v1378
    %v1531 = vunpack.c.l.b16 %v1379
    %v1532 = vunpack.c.h.b16 %v1379
    %v1533 = vunpack.c.l.b16 %v1380
    %v1534 = vunpack.c.h.b16 %v1380
    %v1535 = vunpack.c.l.b16 %v1381
    %v1536 = vunpack.c.h.b16 %v1381
    %v1537 = vunpack.c.l.b16 %v1382
    %v1538 = vunpack.c.h.b16 %v1382
    %v1539 = vunpack.c.l.b16 %v1383
    %v1540 = vunpack.c.h.b16 %v1383
    %v1541 = vunpack.c.l.b16 %v1384
    %v1542 = vunpack.c.h.b16 %v1384
    %v1543 = vunpack.c.l.b16 %v1385
    %v1544 = vunpack.c.h.b16 %v1385
    %v1545 = vunpack.c.l.b16 %v1386
    %v1546 = vunpack.c.h.b16 %v1386
    %v1547 = vunpack.c.l.b16 %v1387
    %v1548 = vunpack.c.h.b16 %v1387
    %v1549 = vunpack.c.l.b16 %v1388
    %v1550 = vunpack.c.h.b16 %v1388
    %v1551 = vunpack.c.l.b16 %v1389
    %v1552 = vunpack.c.h.b16 %v1389
    %v1553 = vunpack.c.l.b16 %v1390
    %v1554 = vunpack.c.h.b16 %v1390
    %v1555 = vunpack.c.l.b16 %v1391
    %v1556 = vunpack.c.h.b16 %v1391
    %v1557 = vunpack.c.l.b16 %v1392
    %v1558 = vunpack.c.h.b16 %v1392
    %v1559 = vunpack.c.l.b16 %v1393
    %v1560 = vunpack.c.h.b16 %v1393
    %v1561 = vunpack.c.l.b16 %v1394
    %v1562 = vunpack.c.h.b16 %v1394
    %v1563 = vunpack.c.l.b16 %v1395
    %v1564 = vunpack.c.h.b16 %v1395
    %v1565 = vunpack.c.l.b16 %v1396
    %v1566 = vunpack.c.h.b16 %v1396
    %v1567 = vunpack.c.l.b16 %v1397
    %v1568 = vunpack.c.h.b16 %v1397
    %v1569 = vunpack.c.l.b16 %v1398
    %v1570 = vunpack.c.h.b16 %v1398
    %v1571 = vunpack.c.l.b16 %v1399
    %v1572 = vunpack.c.h.b16 %v1399
    %v1573 = vunpack.c.l.b16 %v1400
    %v1574 = vunpack.c.h.b16 %v1400
    %v1575 = vunpack.c.l.b16 %v1401
    %v1576 = vunpack.c.h.b16 %v1401
    %v1577 = vunpack.c.l.b16 %v1402
    %v1578 = vunpack.c.h.b16 %v1402
    %v1579 = vunpack.c.l.b16 %v1403
    %v1580 = vunpack.c.h.b16 %v1403
    %v1581 = vunpack.c.l.b16 %v1404
    %v1582 = vunpack.c.h.b16 %v1404
    %v1583 = vunpack.c.l.b16 %v1405
    %v1584 = vunpack.c.h.b16 %v1405
    %v1585 = vunpack.c.l.b16 %v1406
    %v1586 = vunpack.c.h.b16 %v1406
    %v1587 = vpack.c.b16 %v1539, %v1523
    %v1588 = vpack.c.b16 %v1540, %v1524
    %v1589 = vpack.c.b16 %v1541, %v1525
    %v1590 = vpack.c.b16 %v1542, %v1526
    %v1591 = vpack.c.b16 %v1543, %v1527
    %v1592 = vpack.c.b16 %v1544, %v1528
    %v1593 = vpack.c.b16 %v1545, %v1529
    %v1594 = vpack.c.b16 %v1546, %v1530
    %v1595 = vpack.c.b16 %v1547, %v1531
    %v1596 = vpack.c.b16 %v1548, %v1532
    %v1597 = vpack.c.b16 %v1549, %v1533
    %v1598 = vpack.c.b16 %v1550, %v1534
    %v1599 = vpack.c.b16 %v1551, %v1535
    %v1600 = vpack.c.b16 %v1552, %v1536
    %v1601 = vpack.c.b16 %v1553, %v1537
    %v1602 = vpack.c.b16 %v1554, %v1538
    %v1603 = vpack.c.b16 %v1571, %v1555
    %v1604 = vpack.c.b16 %v1572, %v1556
    %v1605 = vpack.c.b16 %v1573, %v1557
    %v1606 = vpack.c.b16 %v1574, %v1558
    %v1607 = vpack.c.b16 %v1575, %v1559
    %v1608 = vpack.c.b16 %v1576, %v1560
    %v1609 = vpack.c.b16 %v1577, %v1561
    %v1610 = vpack.c.b16 %v1578, %v1562
    %v1611 = vpack.c.b16 %v1579, %v1563
    %v1612 = vpack.c.b16 %v1580, %v1564
    %v1613 = vpack.c.b16 %v1581, %v1565
    %v1614 = vpack.c.b16 %v1582, %v1566
    %v1615 = vpack.c.b16 %v1583, %v1567
    %v1616 = vpack.c.b16 %v1584, %v1568
    %v1617 = vpack.c.b16 %v1585, %v1569
    %v1618 = vpack.c.b16 %v1586, %v1570
    %v1652 = vsel %vm158, %v1374, 0
    %1654 = vmatprep.subr.bf16.mxu0 %v1588
    %1655 = vmatpush1.bf16.msra.mxu0 %v1587
    %1656 = vmatprep.subr.bf16.mxu0 %v1604
    %1657 = vmatpush1.bf16.msra.mxu0 %v1603
    %1658 = vmatprep.subr.bf16.mxu0 0
    %1659 = vmatpush1.bf16.msra.mxu0 0
    %1660 = vmatprep.subr.bf16.mxu0 0
    %1661 = vmatpush1.bf16.msra.mxu0 0
    %1662 = vmatprep.subr.bf16.mxu0 0
    %1663 = vmatpush1.bf16.msra.mxu0 0
    %1664 = vmatprep.subr.bf16.mxu0 0
    %1665 = vmatpush1.bf16.msra.mxu0 0
    %1666 = vmatprep.subr.bf16.mxu0 0
    %1667 = vmatpush1.bf16.msra.mxu0 0
    %1668 = vmatprep.subr.bf16.mxu0 0
    %1669 = vmatpush1.bf16.msra.mxu0 0
    %1670 = vmatprep.subr.bf16.mxu0 0
    %1671 = vmatpush1.bf16.msra.mxu0 0
    %1672 = vmatprep.subr.bf16.mxu0 0
    %1673 = vmatpush1.bf16.msra.mxu0 0
    %1674 = vmatprep.subr.bf16.mxu0 0
    %1675 = vmatpush1.bf16.msra.mxu0 0
    %1676 = vmatprep.subr.bf16.mxu0 0
    %1677 = vmatpush1.bf16.msra.mxu0 0
    %1678 = vmatprep.subr.bf16.mxu0 0
    %1679 = vmatpush1.bf16.msra.mxu0 0
    %1680 = vmatprep.subr.bf16.mxu0 0
    %1681 = vmatpush1.bf16.msra.mxu0 0
    %1682 = vmatprep.subr.bf16.mxu0 0
    %1683 = vmatpush1.bf16.msra.mxu0 0
    %1684 = vmatprep.subr.bf16.mxu0 0
    %1685 = vmatpush1.bf16.msra.mxu0 0
    %1686 = vmatprep.mubr.bf16.mxu0 0
    %1687 = vmatmul.mubr.bf16.gmra.mrb[0].mxu0 %v1652
    %v1688 = vpop.f32.mrb[0].mxu0
    %v1689 = vadd.f32 %v1414, %v1688
    %v1690 = vpop.f32.mrb[0].mxu0
    %v1691 = vadd.f32 %v1418, %v1690
    %v1692 = vpop.f32.mrb[0].mxu0
    %v1693 = vpop.f32.mrb[0].mxu0
    %1694 = vdwg.mxu0
    %1695 = vmatprep.subr.bf16.mxu0 %v1590
    %1696 = vmatpush1.bf16.msra.mxu0 %v1589
    %1697 = vmatprep.subr.bf16.mxu0 %v1606
    %1698 = vmatpush1.bf16.msra.mxu0 %v1605
    %1699 = vmatprep.subr.bf16.mxu0 0
    %1700 = vmatpush1.bf16.msra.mxu0 0
    %1701 = vmatprep.subr.bf16.mxu0 0
    %1702 = vmatpush1.bf16.msra.mxu0 0
    %1703 = vmatprep.subr.bf16.mxu0 0
    %1704 = vmatpush1.bf16.msra.mxu0 0
    %1705 = vmatprep.subr.bf16.mxu0 0
    %1706 = vmatpush1.bf16.msra.mxu0 0
    %1707 = vmatprep.subr.bf16.mxu0 0
    %1708 = vmatpush1.bf16.msra.mxu0 0
    %1709 = vmatprep.subr.bf16.mxu0 0
    %1710 = vmatpush1.bf16.msra.mxu0 0
    %1711 = vmatprep.subr.bf16.mxu0 0
    %1712 = vmatpush1.bf16.msra.mxu0 0
    %1713 = vmatprep.subr.bf16.mxu0 0
    %1714 = vmatpush1.bf16.msra.mxu0 0
    %1715 = vmatprep.subr.bf16.mxu0 0
    %1716 = vmatpush1.bf16.msra.mxu0 0
    %1717 = vmatprep.subr.bf16.mxu0 0
    %1718 = vmatpush1.bf16.msra.mxu0 0
    %1719 = vmatprep.subr.bf16.mxu0 0
    %1720 = vmatpush1.bf16.msra.mxu0 0
    %1721 = vmatprep.subr.bf16.mxu0 0
    %1722 = vmatpush1.bf16.msra.mxu0 0
    %1723 = vmatprep.subr.bf16.mxu0 0
    %1724 = vmatpush1.bf16.msra.mxu0 0
    %1725 = vmatprep.subr.bf16.mxu0 0
    %1726 = vmatpush1.bf16.msra.mxu0 0
    %1727 = vmatprep.mubr.bf16.mxu0 0
    %1728 = vmatmul.mubr.bf16.gmra.mrb[0].mxu0 %v1652
    %v1729 = vpop.f32.mrb[0].mxu0
    %v1730 = vadd.f32 %v1422, %v1729
    %v1731 = vpop.f32.mrb[0].mxu0
    %v1732 = vadd.f32 %v1426, %v1731
    %v1733 = vpop.f32.mrb[0].mxu0
    %v1734 = vpop.f32.mrb[0].mxu0
    %1735 = vdwg.mxu0
    %1736 = vmatprep.subr.bf16.mxu0 %v1592
    %1737 = vmatpush1.bf16.msra.mxu0 %v1591
    %1738 = vmatprep.subr.bf16.mxu0 %v1608
    %1739 = vmatpush1.bf16.msra.mxu0 %v1607
    %1740 = vmatprep.subr.bf16.mxu0 0
    %1741 = vmatpush1.bf16.msra.mxu0 0
    %1742 = vmatprep.subr.bf16.mxu0 0
    %1743 = vmatpush1.bf16.msra.mxu0 0
    %1744 = vmatprep.subr.bf16.mxu0 0
    %1745 = vmatpush1.bf16.msra.mxu0 0
    %1746 = vmatprep.subr.bf16.mxu0 0
    %1747 = vmatpush1.bf16.msra.mxu0 0
    %1748 = vmatprep.subr.bf16.mxu0 0
    %1749 = vmatpush1.bf16.msra.mxu0 0
    %1750 = vmatprep.subr.bf16.mxu0 0
    %1751 = vmatpush1.bf16.msra.mxu0 0
    %1752 = vmatprep.subr.bf16.mxu0 0
    %1753 = vmatpush1.bf16.msra.mxu0 0
    %1754 = vmatprep.subr.bf16.mxu0 0
    %1755 = vmatpush1.bf16.msra.mxu0 0
    %1756 = vmatprep.subr.bf16.mxu0 0
    %1757 = vmatpush1.bf16.msra.mxu0 0
    %1758 = vmatprep.subr.bf16.mxu0 0
    %1759 = vmatpush1.bf16.msra.mxu0 0
    %1760 = vmatprep.subr.bf16.mxu0 0
    %1761 = vmatpush1.bf16.msra.mxu0 0
    %1762 = vmatprep.subr.bf16.mxu0 0
    %1763 = vmatpush1.bf16.msra.mxu0 0
    %1764 = vmatprep.subr.bf16.mxu0 0
    %1765 = vmatpush1.bf16.msra.mxu0 0
    %1766 = vmatprep.subr.bf16.mxu0 0
    %1767 = vmatpush1.bf16.msra.mxu0 0
    %1768 = vmatprep.mubr.bf16.mxu0 0
    %1769 = vmatmul.mubr.bf16.gmra.mrb[0].mxu0 %v1652
    %v1770 = vpop.f32.mrb[0].mxu0
    %v1771 = vadd.f32 %v1430, %v1770
    %v1772 = vpop.f32.mrb[0].mxu0
    %v1773 = vadd.f32 %v1434, %v1772
    %v1774 = vpop.f32.mrb[0].mxu0
    %v1775 = vpop.f32.mrb[0].mxu0
    %1776 = vdwg.mxu0
    %1777 = vmatprep.subr.bf16.mxu0 %v1594
    %1778 = vmatpush1.bf16.msra.mxu0 %v1593
    %1779 = vmatprep.subr.bf16.mxu0 %v1610
    %1780 = vmatpush1.bf16.msra.mxu0 %v1609
    %1781 = vmatprep.subr.bf16.mxu0 0
    %1782 = vmatpush1.bf16.msra.mxu0 0
    %1783 = vmatprep.subr.bf16.mxu0 0
    %1784 = vmatpush1.bf16.msra.mxu0 0
    %1785 = vmatprep.subr.bf16.mxu0 0
    %1786 = vmatpush1.bf16.msra.mxu0 0
    %1787 = vmatprep.subr.bf16.mxu0 0
    %1788 = vmatpush1.bf16.msra.mxu0 0
    %1789 = vmatprep.subr.bf16.mxu0 0
    %1790 = vmatpush1.bf16.msra.mxu0 0
    %1791 = vmatprep.subr.bf16.mxu0 0
    %1792 = vmatpush1.bf16.msra.mxu0 0
    %1793 = vmatprep.subr.bf16.mxu0 0
    %1794 = vmatpush1.bf16.msra.mxu0 0
    %1795 = vmatprep.subr.bf16.mxu0 0
    %1796 = vmatpush1.bf16.msra.mxu0 0
    %1797 = vmatprep.subr.bf16.mxu0 0
    %1798 = vmatpush1.bf16.msra.mxu0 0
    %1799 = vmatprep.subr.bf16.mxu0 0
    %1800 = vmatpush1.bf16.msra.mxu0 0
    %1801 = vmatprep.subr.bf16.mxu0 0
    %1802 = vmatpush1.bf16.msra.mxu0 0
    %1803 = vmatprep.subr.bf16.mxu0 0
    %1804 = vmatpush1.bf16.msra.mxu0 0
    %1805 = vmatprep.subr.bf16.mxu0 0
    %1806 = vmatpush1.bf16.msra.mxu0 0
    %1807 = vmatprep.subr.bf16.mxu0 0
    %1808 = vmatpush1.bf16.msra.mxu0 0
    %1809 = vmatprep.mubr.bf16.mxu0 0
    %1810 = vmatmul.mubr.bf16.gmra.mrb[0].mxu0 %v1652
    %v1811 = vpop.f32.mrb[0].mxu0
    %v1812 = vadd.f32 %v1438, %v1811
    %v1813 = vpop.f32.mrb[0].mxu0
    %v1814 = vadd.f32 %v1442, %v1813
    %v1815 = vpop.f32.mrb[0].mxu0
    %v1816 = vpop.f32.mrb[0].mxu0
    %1817 = vdwg.mxu0
    %1818 = vmatprep.subr.bf16.mxu0 %v1596
    %1819 = vmatpush1.bf16.msra.mxu0 %v1595
    %1820 = vmatprep.subr.bf16.mxu0 %v1612
    %1821 = vmatpush1.bf16.msra.mxu0 %v1611
    %1822 = vmatprep.subr.bf16.mxu0 0
    %1823 = vmatpush1.bf16.msra.mxu0 0
    %1824 = vmatprep.subr.bf16.mxu0 0
    %1825 = vmatpush1.bf16.msra.mxu0 0
    %1826 = vmatprep.subr.bf16.mxu0 0
    %1827 = vmatpush1.bf16.msra.mxu0 0
    %1828 = vmatprep.subr.bf16.mxu0 0
    %1829 = vmatpush1.bf16.msra.mxu0 0
    %1830 = vmatprep.subr.bf16.mxu0 0
    %1831 = vmatpush1.bf16.msra.mxu0 0
    %1832 = vmatprep.subr.bf16.mxu0 0
    %1833 = vmatpush1.bf16.msra.mxu0 0
    %1834 = vmatprep.subr.bf16.mxu0 0
    %1835 = vmatpush1.bf16.msra.mxu0 0
    %1836 = vmatprep.subr.bf16.mxu0 0
    %1837 = vmatpush1.bf16.msra.mxu0 0
    %1838 = vmatprep.subr.bf16.mxu0 0
    %1839 = vmatpush1.bf16.msra.mxu0 0
    %1840 = vmatprep.subr.bf16.mxu0 0
    %1841 = vmatpush1.bf16.msra.mxu0 0
    %1842 = vmatprep.subr.bf16.mxu0 0
    %1843 = vmatpush1.bf16.msra.mxu0 0
    %1844 = vmatprep.subr.bf16.mxu0 0
    %1845 = vmatpush1.bf16.msra.mxu0 0
    %1846 = vmatprep.subr.bf16.mxu0 0
    %1847 = vmatpush1.bf16.msra.mxu0 0
    %1848 = vmatprep.subr.bf16.mxu0 0
    %1849 = vmatpush1.bf16.msra.mxu0 0
    %1850 = vmatprep.mubr.bf16.mxu0 0
    %1851 = vmatmul.mubr.bf16.gmra.mrb[0].mxu0 %v1652
    %v1852 = vpop.f32.mrb[0].mxu0
    %v1853 = vadd.f32 %v1446, %v1852
    %v1854 = vpop.f32.mrb[0].mxu0
    %v1855 = vadd.f32 %v1450, %v1854
    %v1856 = vpop.f32.mrb[0].mxu0
    %v1857 = vpop.f32.mrb[0].mxu0
    %1858 = vdwg.mxu0
    %1859 = vmatprep.subr.bf16.mxu0 %v1598
    %1860 = vmatpush1.bf16.msra.mxu0 %v1597
    %1861 = vmatprep.subr.bf16.mxu0 %v1614
    %1862 = vmatpush1.bf16.msra.mxu0 %v1613
    %1863 = vmatprep.subr.bf16.mxu0 0
    %1864 = vmatpush1.bf16.msra.mxu0 0
    %1865 = vmatprep.subr.bf16.mxu0 0
    %1866 = vmatpush1.bf16.msra.mxu0 0
    %1867 = vmatprep.subr.bf16.mxu0 0
    %1868 = vmatpush1.bf16.msra.mxu0 0
    %1869 = vmatprep.subr.bf16.mxu0 0
    %1870 = vmatpush1.bf16.msra.mxu0 0
    %1871 = vmatprep.subr.bf16.mxu0 0
    %1872 = vmatpush1.bf16.msra.mxu0 0
    %1873 = vmatprep.subr.bf16.mxu0 0
    %1874 = vmatpush1.bf16.msra.mxu0 0
    %1875 = vmatprep.subr.bf16.mxu0 0
    %1876 = vmatpush1.bf16.msra.mxu0 0
    %1877 = vmatprep.subr.bf16.mxu0 0
    %1878 = vmatpush1.bf16.msra.mxu0 0
    %1879 = vmatprep.subr.bf16.mxu0 0
    %1880 = vmatpush1.bf16.msra.mxu0 0
    %1881 = vmatprep.subr.bf16.mxu0 0
    %1882 = vmatpush1.bf16.msra.mxu0 0
    %1883 = vmatprep.subr.bf16.mxu0 0
    %1884 = vmatpush1.bf16.msra.mxu0 0
    %1885 = vmatprep.subr.bf16.mxu0 0
    %1886 = vmatpush1.bf16.msra.mxu0 0
    %1887 = vmatprep.subr.bf16.mxu0 0
    %1888 = vmatpush1.bf16.msra.mxu0 0
    %1889 = vmatprep.subr.bf16.mxu0 0
    %1890 = vmatpush1.bf16.msra.mxu0 0
    %1891 = vmatprep.mubr.bf16.mxu0 0
    %1892 = vmatmul.mubr.bf16.gmra.mrb[0].mxu0 %v1652
    %v1893 = vpop.f32.mrb[0].mxu0
    %v1894 = vadd.f32 %v1454, %v1893
    %v1895 = vpop.f32.mrb[0].mxu0
    %v1896 = vadd.f32 %v1458, %v1895
    %v1897 = vpop.f32.mrb[0].mxu0
    %v1898 = vpop.f32.mrb[0].mxu0
    %1899 = vdwg.mxu0
    %1900 = vmatprep.subr.bf16.mxu0 %v1600
    %1901 = vmatpush1.bf16.msra.mxu0 %v1599
    %1902 = vmatprep.subr.bf16.mxu0 %v1616
    %1903 = vmatpush1.bf16.msra.mxu0 %v1615
    %1904 = vmatprep.subr.bf16.mxu0 0
    %1905 = vmatpush1.bf16.msra.mxu0 0
    %1906 = vmatprep.subr.bf16.mxu0 0
    %1907 = vmatpush1.bf16.msra.mxu0 0
    %1908 = vmatprep.subr.bf16.mxu0 0
    %1909 = vmatpush1.bf16.msra.mxu0 0
    %1910 = vmatprep.subr.bf16.mxu0 0
    %1911 = vmatpush1.bf16.msra.mxu0 0
    %1912 = vmatprep.subr.bf16.mxu0 0
    %1913 = vmatpush1.bf16.msra.mxu0 0
    %1914 = vmatprep.subr.bf16.mxu0 0
    %1915 = vmatpush1.bf16.msra.mxu0 0
    %1916 = vmatprep.subr.bf16.mxu0 0
    %1917 = vmatpush1.bf16.msra.mxu0 0
    %1918 = vmatprep.subr.bf16.mxu0 0
    %1919 = vmatpush1.bf16.msra.mxu0 0
    %1920 = vmatprep.subr.bf16.mxu0 0
    %1921 = vmatpush1.bf16.msra.mxu0 0
    %1922 = vmatprep.subr.bf16.mxu0 0
    %1923 = vmatpush1.bf16.msra.mxu0 0
    %1924 = vmatprep.subr.bf16.mxu0 0
    %1925 = vmatpush1.bf16.msra.mxu0 0
    %1926 = vmatprep.subr.bf16.mxu0 0
    %1927 = vmatpush1.bf16.msra.mxu0 0
    %1928 = vmatprep.subr.bf16.mxu0 0
    %1929 = vmatpush1.bf16.msra.mxu0 0
    %1930 = vmatprep.subr.bf16.mxu0 0
    %1931 = vmatpush1.bf16.msra.mxu0 0
    %1932 = vmatprep.mubr.bf16.mxu0 0
    %1933 = vmatmul.mubr.bf16.gmra.mrb[0].mxu0 %v1652
    %v1934 = vpop.f32.mrb[0].mxu0
    %v1935 = vadd.f32 %v1462, %v1934
    %v1936 = vpop.f32.mrb[0].mxu0
    %v1937 = vadd.f32 %v1466, %v1936
    %v1938 = vpop.f32.mrb[0].mxu0
    %v1939 = vpop.f32.mrb[0].mxu0
    %1940 = vdwg.mxu0
    %1941 = vmatprep.subr.bf16.mxu0 %v1602
    %1942 = vmatpush1.bf16.msra.mxu0 %v1601
    %1943 = vmatprep.subr.bf16.mxu0 %v1618
    %1944 = vmatpush1.bf16.msra.mxu0 %v1617
    %1945 = vmatprep.subr.bf16.mxu0 0
    %1946 = vmatpush1.bf16.msra.mxu0 0
    %1947 = vmatprep.subr.bf16.mxu0 0
    %1948 = vmatpush1.bf16.msra.mxu0 0
    %1949 = vmatprep.subr.bf16.mxu0 0
    %1950 = vmatpush1.bf16.msra.mxu0 0
    %1951 = vmatprep.subr.bf16.mxu0 0
    %1952 = vmatpush1.bf16.msra.mxu0 0
    %1953 = vmatprep.subr.bf16.mxu0 0
    %1954 = vmatpush1.bf16.msra.mxu0 0
    %1955 = vmatprep.subr.bf16.mxu0 0
    %1956 = vmatpush1.bf16.msra.mxu0 0
    %1957 = vmatprep.subr.bf16.mxu0 0
    %1958 = vmatpush1.bf16.msra.mxu0 0
    %1959 = vmatprep.subr.bf16.mxu0 0
    %1960 = vmatpush1.bf16.msra.mxu0 0
    %1961 = vmatprep.subr.bf16.mxu0 0
    %1962 = vmatpush1.bf16.msra.mxu0 0
    %1963 = vmatprep.subr.bf16.mxu0 0
    %1964 = vmatpush1.bf16.msra.mxu0 0
    %1965 = vmatprep.subr.bf16.mxu0 0
    %1966 = vmatpush1.bf16.msra.mxu0 0
    %1967 = vmatprep.subr.bf16.mxu0 0
    %1968 = vmatpush1.bf16.msra.mxu0 0
    %1969 = vmatprep.subr.bf16.mxu0 0
    %1970 = vmatpush1.bf16.msra.mxu0 0
    %1971 = vmatprep.subr.bf16.mxu0 0
    %1972 = vmatpush1.bf16.msra.mxu0 0
    %1973 = vmatprep.mubr.bf16.mxu0 0
    %1974 = vmatmul.mubr.bf16.gmra.mrb[0].mxu0 %v1652
    %v1975 = vpop.f32.mrb[0].mxu0
    %v1976 = vadd.f32 %v1470, %v1975
    %v1977 = vpop.f32.mrb[0].mxu0
    %v1978 = vadd.f32 %v1474, %v1977
    %v1979 = vpop.f32.mrb[0].mxu0
    %v1980 = vpop.f32.mrb[0].mxu0
    %1981 = vdwg.mxu0
    %v1982 = vmul.f32 %v1689, 0.5
    %v1983 = vmul.f32 %v1691, 0.5
    %v1984 = vmul.f32 %v1730, 0.5
    %v1985 = vmul.f32 %v1732, 0.5
    %v1986 = vmul.f32 %v1771, 0.5
    %v1987 = vmul.f32 %v1773, 0.5
    %v1988 = vmul.f32 %v1812, 0.5
    %v1989 = vmul.f32 %v1814, 0.5
    %v1990 = vmul.f32 %v1853, 0.5
    %v1991 = vmul.f32 %v1855, 0.5
    %v1992 = vmul.f32 %v1894, 0.5
    %v1993 = vmul.f32 %v1896, 0.5
    %v1994 = vmul.f32 %v1935, 0.5
    %v1995 = vmul.f32 %v1937, 0.5
    %v1996 = vmul.f32 %v1976, 0.5
    %v1997 = vmul.f32 %v1978, 0.5
    %v1998 = vmul.f32 %v1689, 0.044715
    %v1999 = vmul.f32 %v1691, 0.044715
    %v2000 = vmul.f32 %v1730, 0.044715
    %v2001 = vmul.f32 %v1732, 0.044715
    %v2002 = vmul.f32 %v1771, 0.044715
    %v2003 = vmul.f32 %v1773, 0.044715
    %v2004 = vmul.f32 %v1812, 0.044715
    %v2005 = vmul.f32 %v1814, 0.044715
    %v2006 = vmul.f32 %v1853, 0.044715
    %v2007 = vmul.f32 %v1855, 0.044715
    %v2008 = vmul.f32 %v1894, 0.044715
    %v2009 = vmul.f32 %v1896, 0.044715
    %v2010 = vmul.f32 %v1935, 0.044715
    %v2011 = vmul.f32 %v1937, 0.044715
    %v2012 = vmul.f32 %v1976, 0.044715
    %v2013 = vmul.f32 %v1978, 0.044715
    %v2014 = vmul.f32 %v1998, %v1689
    %v2015 = vmul.f32 %v1999, %v1691
    %v2016 = vmul.f32 %v2000, %v1730
    %v2017 = vmul.f32 %v2001, %v1732
    %v2018 = vmul.f32 %v2002, %v1771
    %v2019 = vmul.f32 %v2003, %v1773
    %v2020 = vmul.f32 %v2004, %v1812
    %v2021 = vmul.f32 %v2005, %v1814
    %v2022 = vmul.f32 %v2006, %v1853
    %v2023 = vmul.f32 %v2007, %v1855
    %v2024 = vmul.f32 %v2008, %v1894
    %v2025 = vmul.f32 %v2009, %v1896
    %v2026 = vmul.f32 %v2010, %v1935
    %v2027 = vmul.f32 %v2011, %v1937
    %v2028 = vmul.f32 %v2012, %v1976
    %v2029 = vmul.f32 %v2013, %v1978
    %v2030 = vmul.f32 %v2014, %v1689
    %v2031 = vmul.f32 %v2015, %v1691
    %v2032 = vmul.f32 %v2016, %v1730
    %v2033 = vmul.f32 %v2017, %v1732
    %v2034 = vmul.f32 %v2018, %v1771
    %v2035 = vmul.f32 %v2019, %v1773
    %v2036 = vmul.f32 %v2020, %v1812
    %v2037 = vmul.f32 %v2021, %v1814
    %v2038 = vmul.f32 %v2022, %v1853
    %v2039 = vmul.f32 %v2023, %v1855
    %v2040 = vmul.f32 %v2024, %v1894
    %v2041 = vmul.f32 %v2025, %v1896
    %v2042 = vmul.f32 %v2026, %v1935
    %v2043 = vmul.f32 %v2027, %v1937
    %v2044 = vmul.f32 %v2028, %v1976
    %v2045 = vmul.f32 %v2029, %v1978
    %v2046 = vadd.f32 %v1689, %v2030
    %v2047 = vadd.f32 %v1691, %v2031
    %v2048 = vadd.f32 %v1730, %v2032
    %v2049 = vadd.f32 %v1732, %v2033
    %v2050 = vadd.f32 %v1771, %v2034
    %v2051 = vadd.f32 %v1773, %v2035
    %v2052 = vadd.f32 %v1812, %v2036
    %v2053 = vadd.f32 %v1814, %v2037
    %v2054 = vadd.f32 %v1853, %v2038
    %v2055 = vadd.f32 %v1855, %v2039
    %v2056 = vadd.f32 %v1894, %v2040
    %v2057 = vadd.f32 %v1896, %v2041
    %v2058 = vadd.f32 %v1935, %v2042
    %v2059 = vadd.f32 %v1937, %v2043
    %v2060 = vadd.f32 %v1976, %v2044
    %v2061 = vadd.f32 %v1978, %v2045
    %v2062 = vmul.f32 %v2046, 0.7978846
    %v2063 = vmul.f32 %v2047, 0.7978846
    %v2064 = vmul.f32 %v2048, 0.7978846
    %v2065 = vmul.f32 %v2049, 0.7978846
    %v2066 = vmul.f32 %v2050, 0.7978846
    %v2067 = vmul.f32 %v2051, 0.7978846
    %v2068 = vmul.f32 %v2052, 0.7978846
    %v2069 = vmul.f32 %v2053, 0.7978846
    %v2070 = vmul.f32 %v2054, 0.7978846
    %v2071 = vmul.f32 %v2055, 0.7978846
    %v2072 = vmul.f32 %v2056, 0.7978846
    %v2073 = vmul.f32 %v2057, 0.7978846
    %v2074 = vmul.f32 %v2058, 0.7978846
    %v2075 = vmul.f32 %v2059, 0.7978846
    %v2076 = vmul.f32 %v2060, 0.7978846
    %v2077 = vmul.f32 %v2061, 0.7978846
    %v2078 = vtanh.pop %v2062
    %v2079 = vtanh.pop %v2063
    %v2080 = vtanh.pop %v2064
    %v2081 = vtanh.pop %v2065
    %v2082 = vtanh.pop %v2066
    %v2083 = vtanh.pop %v2067
    %v2084 = vtanh.pop %v2068
    %v2085 = vtanh.pop %v2069
    %v2086 = vtanh.pop %v2070
    %v2087 = vtanh.pop %v2071
    %v2088 = vtanh.pop %v2072
    %v2089 = vtanh.pop %v2073
    %v2090 = vtanh.pop %v2074
    %v2091 = vtanh.pop %v2075
    %v2092 = vtanh.pop %v2076
    %v2093 = vtanh.pop %v2077
    %v2094 = vadd.f32 %v2078, 1.0
    %v2095 = vadd.f32 %v2079, 1.0
    %v2096 = vadd.f32 %v2080, 1.0
    %v2097 = vadd.f32 %v2081, 1.0
    %v2098 = vadd.f32 %v2082, 1.0
    %v2099 = vadd.f32 %v2083, 1.0
    %v2100 = vadd.f32 %v2084, 1.0
    %v2101 = vadd.f32 %v2085, 1.0
    %v2102 = vadd.f32 %v2086, 1.0
    %v2103 = vadd.f32 %v2087, 1.0
    %v2104 = vadd.f32 %v2088, 1.0
    %v2105 = vadd.f32 %v2089, 1.0
    %v2106 = vadd.f32 %v2090, 1.0
    %v2107 = vadd.f32 %v2091, 1.0
    %v2108 = vadd.f32 %v2092, 1.0
    %v2109 = vadd.f32 %v2093, 1.0
    %v2110 = vmul.f32 %v1982, %v2094
    %v2111 = vmul.f32 %v1983, %v2095
    %v2112 = vmul.f32 %v1984, %v2096
    %v2113 = vmul.f32 %v1985, %v2097
    %v2114 = vmul.f32 %v1986, %v2098
    %v2115 = vmul.f32 %v1987, %v2099
    %v2116 = vmul.f32 %v1988, %v2100
    %v2117 = vmul.f32 %v1989, %v2101
    %v2118 = vmul.f32 %v1990, %v2102
    %v2119 = vmul.f32 %v1991, %v2103
    %v2120 = vmul.f32 %v1992, %v2104
    %v2121 = vmul.f32 %v1993, %v2105
    %v2122 = vmul.f32 %v1994, %v2106
    %v2123 = vmul.f32 %v1995, %v2107
    %v2124 = vmul.f32 %v1996, %v2108
    %v2125 = vmul.f32 %v1997, %v2109
    %v2126 = vpack.c.bf16 %v2110, %v2110
    %v2127 = vpack.c.bf16 %v2111, %v2111
    %v2128 = vpack.c.bf16 %v2112, %v2112
    %v2129 = vpack.c.bf16 %v2113, %v2113
    %v2130 = vpack.c.bf16 %v2114, %v2114
    %v2131 = vpack.c.bf16 %v2115, %v2115
    %v2132 = vpack.c.bf16 %v2116, %v2116
    %v2133 = vpack.c.bf16 %v2117, %v2117
    %v2134 = vpack.c.bf16 %v2118, %v2118
    %v2135 = vpack.c.bf16 %v2119, %v2119
    %v2136 = vpack.c.bf16 %v2120, %v2120
    %v2137 = vpack.c.bf16 %v2121, %v2121
    %v2138 = vpack.c.bf16 %v2122, %v2122
    %v2139 = vpack.c.bf16 %v2123, %v2123
    %v2140 = vpack.c.bf16 %v2124, %v2124
    %v2141 = vpack.c.bf16 %v2125, %v2125
    %v2142 = vld [vmem:[%s29] sm:$0xf]
    %v2143 = vld [vmem:[%s29 + $0x4] sm:$0xf]
    %v2144 = vld [vmem:[%s29 + $0x8] sm:$0xf]
    %v2145 = vld [vmem:[%s29 + $0xc] sm:$0xf]
    %v2146 = vld [vmem:[%s29 + $0x10] sm:$0xf]
    %v2147 = vld [vmem:[%s29 + $0x14] sm:$0xf]
    %v2148 = vld [vmem:[%s29 + $0x18] sm:$0xf]
    %v2149 = vld [vmem:[%s29 + $0x1c] sm:$0xf]
    %v2150 = vld [vmem:[%s29 + $0x20] sm:$0xf]
    %v2151 = vld [vmem:[%s29 + $0x24] sm:$0xf]
    %v2152 = vld [vmem:[%s29 + $0x28] sm:$0xf]
    %v2153 = vld [vmem:[%s29 + $0x2c] sm:$0xf]
    %v2154 = vld [vmem:[%s29 + $0x30] sm:$0xf]
    %v2155 = vld [vmem:[%s29 + $0x34] sm:$0xf]
    %v2156 = vld [vmem:[%s29 + $0x38] sm:$0xf]
    %v2157 = vld [vmem:[%s29 + $0x3c] sm:$0xf]
    %v2158 = vld [vmem:[%s29 + $0x40] sm:$0xf]
    %v2159 = vld [vmem:[%s29 + $0x44] sm:$0xf]
    %v2160 = vld [vmem:[%s29 + $0x48] sm:$0xf]
    %v2161 = vld [vmem:[%s29 + $0x4c] sm:$0xf]
    %v2162 = vld [vmem:[%s29 + $0x50] sm:$0xf]
    %v2163 = vld [vmem:[%s29 + $0x54] sm:$0xf]
    %v2164 = vld [vmem:[%s29 + $0x58] sm:$0xf]
    %v2165 = vld [vmem:[%s29 + $0x5c] sm:$0xf]
    %v2166 = vld [vmem:[%s29 + $0x60] sm:$0xf]
    %v2167 = vld [vmem:[%s29 + $0x64] sm:$0xf]
    %v2168 = vld [vmem:[%s29 + $0x68] sm:$0xf]
    %v2169 = vld [vmem:[%s29 + $0x6c] sm:$0xf]
    %v2170 = vld [vmem:[%s29 + $0x70] sm:$0xf]
    %v2171 = vld [vmem:[%s29 + $0x74] sm:$0xf]
    %v2172 = vld [vmem:[%s29 + $0x78] sm:$0xf]
    %v2173 = vld [vmem:[%s29 + $0x7c] sm:$0xf]
    %v2174 = vld [vmem:[%s29 + $0x80] sm:$0xf]
    %v2175 = vld [vmem:[%s29 + $0x84] sm:$0xf]
    %v2176 = vld [vmem:[%s29 + $0x88] sm:$0xf]
    %v2177 = vld [vmem:[%s29 + $0x8c] sm:$0xf]
    %v2178 = vld [vmem:[%s29 + $0x90] sm:$0xf]
    %v2179 = vld [vmem:[%s29 + $0x94] sm:$0xf]
    %v2180 = vld [vmem:[%s29 + $0x98] sm:$0xf]
    %v2181 = vld [vmem:[%s29 + $0x9c] sm:$0xf]
    %v2182 = vld [vmem:[%s29 + $0xa0] sm:$0xf]
    %v2183 = vld [vmem:[%s29 + $0xa4] sm:$0xf]
    %v2184 = vld [vmem:[%s29 + $0xa8] sm:$0xf]
    %v2185 = vld [vmem:[%s29 + $0xac] sm:$0xf]
    %v2186 = vld [vmem:[%s29 + $0xb0] sm:$0xf]
    %v2187 = vld [vmem:[%s29 + $0xb4] sm:$0xf]
    %v2188 = vld [vmem:[%s29 + $0xb8] sm:$0xf]
    %v2189 = vld [vmem:[%s29 + $0xbc] sm:$0xf]
    %v2190 = vld [vmem:[%s29 + $0xc0] sm:$0xf]
    %v2191 = vld [vmem:[%s29 + $0xc4] sm:$0xf]
    %v2192 = vld [vmem:[%s29 + $0xc8] sm:$0xf]
    %v2193 = vld [vmem:[%s29 + $0xcc] sm:$0xf]
    %v2194 = vld [vmem:[%s29 + $0xd0] sm:$0xf]
    %v2195 = vld [vmem:[%s29 + $0xd4] sm:$0xf]
    %v2196 = vld [vmem:[%s29 + $0xd8] sm:$0xf]
    %v2197 = vld [vmem:[%s29 + $0xdc] sm:$0xf]
    %v2198 = vld [vmem:[%s29 + $0xe0] sm:$0xf]
    %v2199 = vld [vmem:[%s29 + $0xe4] sm:$0xf]
    %v2200 = vld [vmem:[%s29 + $0xe8] sm:$0xf]
    %v2201 = vld [vmem:[%s29 + $0xec] sm:$0xf]
    %v2202 = vld [vmem:[%s29 + $0xf0] sm:$0xf]
    %v2203 = vld [vmem:[%s29 + $0xf4] sm:$0xf]
    %v2204 = vld [vmem:[%s29 + $0xf8] sm:$0xf]
    %v2205 = vld [vmem:[%s29 + $0xfc] sm:$0xf]
    %v2206 = vld [vmem:[%s29 + $0x100] sm:$0xf]
    %v2207 = vld [vmem:[%s29 + $0x104] sm:$0xf]
    %v2208 = vld [vmem:[%s29 + $0x108] sm:$0xf]
    %v2209 = vld [vmem:[%s29 + $0x10c] sm:$0xf]
    %v2210 = vld [vmem:[%s29 + $0x110] sm:$0xf]
    %v2211 = vld [vmem:[%s29 + $0x114] sm:$0xf]
    %v2212 = vld [vmem:[%s29 + $0x118] sm:$0xf]
    %v2213 = vld [vmem:[%s29 + $0x11c] sm:$0xf]
    %v2214 = vld [vmem:[%s29 + $0x120] sm:$0xf]
    %v2215 = vld [vmem:[%s29 + $0x124] sm:$0xf]
    %v2216 = vld [vmem:[%s29 + $0x128] sm:$0xf]
    %v2217 = vld [vmem:[%s29 + $0x12c] sm:$0xf]
    %v2218 = vld [vmem:[%s29 + $0x130] sm:$0xf]
    %v2219 = vld [vmem:[%s29 + $0x134] sm:$0xf]
    %v2220 = vld [vmem:[%s29 + $0x138] sm:$0xf]
    %v2221 = vld [vmem:[%s29 + $0x13c] sm:$0xf]
    %v2222 = vld [vmem:[%s29 + $0x140] sm:$0xf]
    %v2223 = vld [vmem:[%s29 + $0x144] sm:$0xf]
    %v2224 = vld [vmem:[%s29 + $0x148] sm:$0xf]
    %v2225 = vld [vmem:[%s29 + $0x14c] sm:$0xf]
    %v2226 = vld [vmem:[%s29 + $0x150] sm:$0xf]
    %v2227 = vld [vmem:[%s29 + $0x154] sm:$0xf]
    %v2228 = vld [vmem:[%s29 + $0x158] sm:$0xf]
    %v2229 = vld [vmem:[%s29 + $0x15c] sm:$0xf]
    %v2230 = vld [vmem:[%s29 + $0x160] sm:$0xf]
    %v2231 = vld [vmem:[%s29 + $0x164] sm:$0xf]
    %v2232 = vld [vmem:[%s29 + $0x168] sm:$0xf]
    %v2233 = vld [vmem:[%s29 + $0x16c] sm:$0xf]
    %v2234 = vld [vmem:[%s29 + $0x170] sm:$0xf]
    %v2235 = vld [vmem:[%s29 + $0x174] sm:$0xf]
    %v2236 = vld [vmem:[%s29 + $0x178] sm:$0xf]
    %v2237 = vld [vmem:[%s29 + $0x17c] sm:$0xf]
    %v2238 = vld [vmem:[%s29 + $0x180] sm:$0xf]
    %v2239 = vld [vmem:[%s29 + $0x184] sm:$0xf]
    %v2240 = vld [vmem:[%s29 + $0x188] sm:$0xf]
    %v2241 = vld [vmem:[%s29 + $0x18c] sm:$0xf]
    %v2242 = vld [vmem:[%s29 + $0x190] sm:$0xf]
    %v2243 = vld [vmem:[%s29 + $0x194] sm:$0xf]
    %v2244 = vld [vmem:[%s29 + $0x198] sm:$0xf]
    %v2245 = vld [vmem:[%s29 + $0x19c] sm:$0xf]
    %v2246 = vld [vmem:[%s29 + $0x1a0] sm:$0xf]
    %v2247 = vld [vmem:[%s29 + $0x1a4] sm:$0xf]
    %v2248 = vld [vmem:[%s29 + $0x1a8] sm:$0xf]
    %v2249 = vld [vmem:[%s29 + $0x1ac] sm:$0xf]
    %v2250 = vld [vmem:[%s29 + $0x1b0] sm:$0xf]
    %v2251 = vld [vmem:[%s29 + $0x1b4] sm:$0xf]
    %v2252 = vld [vmem:[%s29 + $0x1b8] sm:$0xf]
    %v2253 = vld [vmem:[%s29 + $0x1bc] sm:$0xf]
    %v2254 = vld [vmem:[%s29 + $0x1c0] sm:$0xf]
    %v2255 = vld [vmem:[%s29 + $0x1c4] sm:$0xf]
    %v2256 = vld [vmem:[%s29 + $0x1c8] sm:$0xf]
    %v2257 = vld [vmem:[%s29 + $0x1cc] sm:$0xf]
    %v2258 = vld [vmem:[%s29 + $0x1d0] sm:$0xf]
    %v2259 = vld [vmem:[%s29 + $0x1d4] sm:$0xf]
    %v2260 = vld [vmem:[%s29 + $0x1d8] sm:$0xf]
    %v2261 = vld [vmem:[%s29 + $0x1dc] sm:$0xf]
    %v2262 = vld [vmem:[%s29 + $0x1e0] sm:$0xf]
    %v2263 = vld [vmem:[%s29 + $0x1e4] sm:$0xf]
    %v2264 = vld [vmem:[%s29 + $0x1e8] sm:$0xf]
    %v2265 = vld [vmem:[%s29 + $0x1ec] sm:$0xf]
    %v2266 = vld [vmem:[%s29 + $0x1f0] sm:$0xf]
    %v2267 = vld [vmem:[%s29 + $0x1f4] sm:$0xf]
    %v2268 = vld [vmem:[%s29 + $0x1f8] sm:$0xf]
    %v2269 = vld [vmem:[%s29 + $0x1fc] sm:$0xf]
    %v2270 = vld [vmem:[%s29 + $0x200] sm:$0xf]
    %v2271 = vld [vmem:[%s29 + $0x204] sm:$0xf]
    %v2272 = vld [vmem:[%s29 + $0x208] sm:$0xf]
    %v2273 = vld [vmem:[%s29 + $0x20c] sm:$0xf]
    %v2274 = vld [vmem:[%s29 + $0x210] sm:$0xf]
    %v2275 = vld [vmem:[%s29 + $0x214] sm:$0xf]
    %v2276 = vld [vmem:[%s29 + $0x218] sm:$0xf]
    %v2277 = vld [vmem:[%s29 + $0x21c] sm:$0xf]
    %v2278 = vld [vmem:[%s29 + $0x220] sm:$0xf]
    %v2279 = vld [vmem:[%s29 + $0x224] sm:$0xf]
    %v2280 = vld [vmem:[%s29 + $0x228] sm:$0xf]
    %v2281 = vld [vmem:[%s29 + $0x22c] sm:$0xf]
    %v2282 = vld [vmem:[%s29 + $0x230] sm:$0xf]
    %v2283 = vld [vmem:[%s29 + $0x234] sm:$0xf]
    %v2284 = vld [vmem:[%s29 + $0x238] sm:$0xf]
    %v2285 = vld [vmem:[%s29 + $0x23c] sm:$0xf]
    %v2286 = vld [vmem:[%s29 + $0x240] sm:$0xf]
    %v2287 = vld [vmem:[%s29 + $0x244] sm:$0xf]
    %v2288 = vld [vmem:[%s29 + $0x248] sm:$0xf]
    %v2289 = vld [vmem:[%s29 + $0x24c] sm:$0xf]
    %v2290 = vld [vmem:[%s29 + $0x250] sm:$0xf]
    %v2291 = vld [vmem:[%s29 + $0x254] sm:$0xf]
    %v2292 = vld [vmem:[%s29 + $0x258] sm:$0xf]
    %v2293 = vld [vmem:[%s29 + $0x25c] sm:$0xf]
    %v2294 = vld [vmem:[%s29 + $0x260] sm:$0xf]
    %v2295 = vld [vmem:[%s29 + $0x264] sm:$0xf]
    %v2296 = vld [vmem:[%s29 + $0x268] sm:$0xf]
    %v2297 = vld [vmem:[%s29 + $0x26c] sm:$0xf]
    %v2298 = vld [vmem:[%s29 + $0x270] sm:$0xf]
    %v2299 = vld [vmem:[%s29 + $0x274] sm:$0xf]
    %v2300 = vld [vmem:[%s29 + $0x278] sm:$0xf]
    %v2301 = vld [vmem:[%s29 + $0x27c] sm:$0xf]
    %v2302 = vld [vmem:[%s29 + $0x280] sm:$0xf]
    %v2303 = vld [vmem:[%s29 + $0x284] sm:$0xf]
    %v2304 = vld [vmem:[%s29 + $0x288] sm:$0xf]
    %v2305 = vld [vmem:[%s29 + $0x28c] sm:$0xf]
    %v2306 = vld [vmem:[%s29 + $0x290] sm:$0xf]
    %v2307 = vld [vmem:[%s29 + $0x294] sm:$0xf]
    %v2308 = vld [vmem:[%s29 + $0x298] sm:$0xf]
    %v2309 = vld [vmem:[%s29 + $0x29c] sm:$0xf]
    %v2310 = vld [vmem:[%s29 + $0x2a0] sm:$0xf]
    %v2311 = vld [vmem:[%s29 + $0x2a4] sm:$0xf]
    %v2312 = vld [vmem:[%s29 + $0x2a8] sm:$0xf]
    %v2313 = vld [vmem:[%s29 + $0x2ac] sm:$0xf]
    %v2314 = vld [vmem:[%s29 + $0x2b0] sm:$0xf]
    %v2315 = vld [vmem:[%s29 + $0x2b4] sm:$0xf]
    %v2316 = vld [vmem:[%s29 + $0x2b8] sm:$0xf]
    %v2317 = vld [vmem:[%s29 + $0x2bc] sm:$0xf]
    %v2318 = vld [vmem:[%s29 + $0x2c0] sm:$0xf]
    %v2319 = vld [vmem:[%s29 + $0x2c4] sm:$0xf]
    %v2320 = vld [vmem:[%s29 + $0x2c8] sm:$0xf]
    %v2321 = vld [vmem:[%s29 + $0x2cc] sm:$0xf]
    %v2322 = vld [vmem:[%s29 + $0x2d0] sm:$0xf]
    %v2323 = vld [vmem:[%s29 + $0x2d4] sm:$0xf]
    %v2324 = vld [vmem:[%s29 + $0x2d8] sm:$0xf]
    %v2325 = vld [vmem:[%s29 + $0x2dc] sm:$0xf]
    %v2326 = vld [vmem:[%s29 + $0x2e0] sm:$0xf]
    %v2327 = vld [vmem:[%s29 + $0x2e4] sm:$0xf]
    %v2328 = vld [vmem:[%s29 + $0x2e8] sm:$0xf]
    %v2329 = vld [vmem:[%s29 + $0x2ec] sm:$0xf]
    %v2330 = vld [vmem:[%s29 + $0x2f0] sm:$0xf]
    %v2331 = vld [vmem:[%s29 + $0x2f4] sm:$0xf]
    %v2332 = vld [vmem:[%s29 + $0x2f8] sm:$0xf]
    %v2333 = vld [vmem:[%s29 + $0x2fc] sm:$0xf]
    %v2334 = vld [vmem:[%s29 + $0x300] sm:$0xf]
    %v2335 = vld [vmem:[%s29 + $0x304] sm:$0xf]
    %v2336 = vld [vmem:[%s29 + $0x308] sm:$0xf]
    %v2337 = vld [vmem:[%s29 + $0x30c] sm:$0xf]
    %v2338 = vld [vmem:[%s29 + $0x310] sm:$0xf]
    %v2339 = vld [vmem:[%s29 + $0x314] sm:$0xf]
    %v2340 = vld [vmem:[%s29 + $0x318] sm:$0xf]
    %v2341 = vld [vmem:[%s29 + $0x31c] sm:$0xf]
    %v2342 = vld [vmem:[%s29 + $0x320] sm:$0xf]
    %v2343 = vld [vmem:[%s29 + $0x324] sm:$0xf]
    %v2344 = vld [vmem:[%s29 + $0x328] sm:$0xf]
    %v2345 = vld [vmem:[%s29 + $0x32c] sm:$0xf]
    %v2346 = vld [vmem:[%s29 + $0x330] sm:$0xf]
    %v2347 = vld [vmem:[%s29 + $0x334] sm:$0xf]
    %v2348 = vld [vmem:[%s29 + $0x338] sm:$0xf]
    %v2349 = vld [vmem:[%s29 + $0x33c] sm:$0xf]
    %v2350 = vld [vmem:[%s29 + $0x340] sm:$0xf]
    %v2351 = vld [vmem:[%s29 + $0x344] sm:$0xf]
    %v2352 = vld [vmem:[%s29 + $0x348] sm:$0xf]
    %v2353 = vld [vmem:[%s29 + $0x34c] sm:$0xf]
    %v2354 = vld [vmem:[%s29 + $0x350] sm:$0xf]
    %v2355 = vld [vmem:[%s29 + $0x354] sm:$0xf]
    %v2356 = vld [vmem:[%s29 + $0x358] sm:$0xf]
    %v2357 = vld [vmem:[%s29 + $0x35c] sm:$0xf]
    %v2358 = vld [vmem:[%s29 + $0x360] sm:$0xf]
    %v2359 = vld [vmem:[%s29 + $0x364] sm:$0xf]
    %v2360 = vld [vmem:[%s29 + $0x368] sm:$0xf]
    %v2361 = vld [vmem:[%s29 + $0x36c] sm:$0xf]
    %v2362 = vld [vmem:[%s29 + $0x370] sm:$0xf]
    %v2363 = vld [vmem:[%s29 + $0x374] sm:$0xf]
    %v2364 = vld [vmem:[%s29 + $0x378] sm:$0xf]
    %v2365 = vld [vmem:[%s29 + $0x37c] sm:$0xf]
    %v2366 = vld [vmem:[%s29 + $0x380] sm:$0xf]
    %v2367 = vld [vmem:[%s29 + $0x384] sm:$0xf]
    %v2368 = vld [vmem:[%s29 + $0x388] sm:$0xf]
    %v2369 = vld [vmem:[%s29 + $0x38c] sm:$0xf]
    %v2370 = vld [vmem:[%s29 + $0x390] sm:$0xf]
    %v2371 = vld [vmem:[%s29 + $0x394] sm:$0xf]
    %v2372 = vld [vmem:[%s29 + $0x398] sm:$0xf]
    %v2373 = vld [vmem:[%s29 + $0x39c] sm:$0xf]
    %v2374 = vld [vmem:[%s29 + $0x3a0] sm:$0xf]
    %v2375 = vld [vmem:[%s29 + $0x3a4] sm:$0xf]
    %v2376 = vld [vmem:[%s29 + $0x3a8] sm:$0xf]
    %v2377 = vld [vmem:[%s29 + $0x3ac] sm:$0xf]
    %v2378 = vld [vmem:[%s29 + $0x3b0] sm:$0xf]
    %v2379 = vld [vmem:[%s29 + $0x3b4] sm:$0xf]
    %v2380 = vld [vmem:[%s29 + $0x3b8] sm:$0xf]
    %v2381 = vld [vmem:[%s29 + $0x3bc] sm:$0xf]
    %v2382 = vld [vmem:[%s29 + $0x3c0] sm:$0xf]
    %v2383 = vld [vmem:[%s29 + $0x3c4] sm:$0xf]
    %v2384 = vld [vmem:[%s29 + $0x3c8] sm:$0xf]
    %v2385 = vld [vmem:[%s29 + $0x3cc] sm:$0xf]
    %v2386 = vld [vmem:[%s29 + $0x3d0] sm:$0xf]
    %v2387 = vld [vmem:[%s29 + $0x3d4] sm:$0xf]
    %v2388 = vld [vmem:[%s29 + $0x3d8] sm:$0xf]
    %v2389 = vld [vmem:[%s29 + $0x3dc] sm:$0xf]
    %v2390 = vld [vmem:[%s29 + $0x3e0] sm:$0xf]
    %v2391 = vld [vmem:[%s29 + $0x3e4] sm:$0xf]
    %v2392 = vld [vmem:[%s29 + $0x3e8] sm:$0xf]
    %v2393 = vld [vmem:[%s29 + $0x3ec] sm:$0xf]
    %v2394 = vld [vmem:[%s29 + $0x3f0] sm:$0xf]
    %v2395 = vld [vmem:[%s29 + $0x3f4] sm:$0xf]
    %v2396 = vld [vmem:[%s29 + $0x3f8] sm:$0xf]
    %v2397 = vld [vmem:[%s29 + $0x3fc] sm:$0xf]
    %v2398 = vld [vmem:[%s31] sm:$0x1]
    %v2400 = vlaneseq
    %v2401 = vshrl.u32 %v2400, 7
    %v2402 = vsub.s32 0, %v2401
    %v2403 = vrot.slane %v2398, %v2402
    %v2661 = vunpack.c.l.b16 %v2142
    %v2662 = vunpack.c.l.b16 %v2143
    %v2663 = vunpack.c.l.b16 %v2144
    %v2664 = vunpack.c.l.b16 %v2145
    %v2665 = vunpack.c.l.b16 %v2146
    %v2666 = vunpack.c.l.b16 %v2147
    %v2667 = vunpack.c.l.b16 %v2148
    %v2668 = vunpack.c.l.b16 %v2149
    %v2669 = vunpack.c.l.b16 %v2150
    %v2670 = vunpack.c.l.b16 %v2151
    %v2671 = vunpack.c.l.b16 %v2152
    %v2672 = vunpack.c.l.b16 %v2153
    %v2673 = vunpack.c.l.b16 %v2154
    %v2674 = vunpack.c.l.b16 %v2155
    %v2675 = vunpack.c.l.b16 %v2156
    %v2676 = vunpack.c.l.b16 %v2157
    %v2677 = vunpack.c.l.b16 %v2158
    %v2678 = vunpack.c.l.b16 %v2159
    %v2679 = vunpack.c.l.b16 %v2160
    %v2680 = vunpack.c.l.b16 %v2161
    %v2681 = vunpack.c.l.b16 %v2162
    %v2682 = vunpack.c.l.b16 %v2163
    %v2683 = vunpack.c.l.b16 %v2164
    %v2684 = vunpack.c.l.b16 %v2165
    %v2685 = vunpack.c.l.b16 %v2166
    %v2686 = vunpack.c.l.b16 %v2167
    %v2687 = vunpack.c.l.b16 %v2168
    %v2688 = vunpack.c.l.b16 %v2169
    %v2689 = vunpack.c.l.b16 %v2170
    %v2690 = vunpack.c.l.b16 %v2171
    %v2691 = vunpack.c.l.b16 %v2172
    %v2692 = vunpack.c.l.b16 %v2173
    %v2693 = vunpack.c.l.b16 %v2174
    %v2694 = vunpack.c.l.b16 %v2175
    %v2695 = vunpack.c.l.b16 %v2176
    %v2696 = vunpack.c.l.b16 %v2177
    %v2697 = vunpack.c.l.b16 %v2178
    %v2698 = vunpack.c.l.b16 %v2179
    %v2699 = vunpack.c.l.b16 %v2180
    %v2700 = vunpack.c.l.b16 %v2181
    %v2701 = vunpack.c.l.b16 %v2182
    %v2702 = vunpack.c.l.b16 %v2183
    %v2703 = vunpack.c.l.b16 %v2184
    %v2704 = vunpack.c.l.b16 %v2185
    %v2705 = vunpack.c.l.b16 %v2186
    %v2706 = vunpack.c.l.b16 %v2187
    %v2707 = vunpack.c.l.b16 %v2188
    %v2708 = vunpack.c.l.b16 %v2189
    %v2709 = vunpack.c.l.b16 %v2190
    %v2710 = vunpack.c.l.b16 %v2191
    %v2711 = vunpack.c.l.b16 %v2192
    %v2712 = vunpack.c.l.b16 %v2193
    %v2713 = vunpack.c.l.b16 %v2194
    %v2714 = vunpack.c.l.b16 %v2195
    %v2715 = vunpack.c.l.b16 %v2196
    %v2716 = vunpack.c.l.b16 %v2197
    %v2717 = vunpack.c.l.b16 %v2198
    %v2718 = vunpack.c.l.b16 %v2199
    %v2719 = vunpack.c.l.b16 %v2200
    %v2720 = vunpack.c.l.b16 %v2201
    %v2721 = vunpack.c.l.b16 %v2202
    %v2722 = vunpack.c.l.b16 %v2203
    %v2723 = vunpack.c.l.b16 %v2204
    %v2724 = vunpack.c.l.b16 %v2205
    %v2725 = vunpack.c.l.b16 %v2206
    %v2726 = vunpack.c.l.b16 %v2207
    %v2727 = vunpack.c.l.b16 %v2208
    %v2728 = vunpack.c.l.b16 %v2209
    %v2729 = vunpack.c.l.b16 %v2210
    %v2730 = vunpack.c.l.b16 %v2211
    %v2731 = vunpack.c.l.b16 %v2212
    %v2732 = vunpack.c.l.b16 %v2213
    %v2733 = vunpack.c.l.b16 %v2214
    %v2734 = vunpack.c.l.b16 %v2215
    %v2735 = vunpack.c.l.b16 %v2216
    %v2736 = vunpack.c.l.b16 %v2217
    %v2737 = vunpack.c.l.b16 %v2218
    %v2738 = vunpack.c.l.b16 %v2219
    %v2739 = vunpack.c.l.b16 %v2220
    %v2740 = vunpack.c.l.b16 %v2221
    %v2741 = vunpack.c.l.b16 %v2222
    %v2742 = vunpack.c.l.b16 %v2223
    %v2743 = vunpack.c.l.b16 %v2224
    %v2744 = vunpack.c.l.b16 %v2225
    %v2745 = vunpack.c.l.b16 %v2226
    %v2746 = vunpack.c.l.b16 %v2227
    %v2747 = vunpack.c.l.b16 %v2228
    %v2748 = vunpack.c.l.b16 %v2229
    %v2749 = vunpack.c.l.b16 %v2230
    %v2750 = vunpack.c.l.b16 %v2231
    %v2751 = vunpack.c.l.b16 %v2232
    %v2752 = vunpack.c.l.b16 %v2233
    %v2753 = vunpack.c.l.b16 %v2234
    %v2754 = vunpack.c.l.b16 %v2235
    %v2755 = vunpack.c.l.b16 %v2236
    %v2756 = vunpack.c.l.b16 %v2237
    %v2757 = vunpack.c.l.b16 %v2238
    %v2758 = vunpack.c.l.b16 %v2239
    %v2759 = vunpack.c.l.b16 %v2240
    %v2760 = vunpack.c.l.b16 %v2241
    %v2761 = vunpack.c.l.b16 %v2242
    %v2762 = vunpack.c.l.b16 %v2243
    %v2763 = vunpack.c.l.b16 %v2244
    %v2764 = vunpack.c.l.b16 %v2245
    %v2765 = vunpack.c.l.b16 %v2246
    %v2766 = vunpack.c.l.b16 %v2247
    %v2767 = vunpack.c.l.b16 %v2248
    %v2768 = vunpack.c.l.b16 %v2249
    %v2769 = vunpack.c.l.b16 %v2250
    %v2770 = vunpack.c.l.b16 %v2251
    %v2771 = vunpack.c.l.b16 %v2252
    %v2772 = vunpack.c.l.b16 %v2253
    %v2773 = vunpack.c.l.b16 %v2254
    %v2774 = vunpack.c.l.b16 %v2255
    %v2775 = vunpack.c.l.b16 %v2256
    %v2776 = vunpack.c.l.b16 %v2257
    %v2777 = vunpack.c.l.b16 %v2258
    %v2778 = vunpack.c.l.b16 %v2259
    %v2779 = vunpack.c.l.b16 %v2260
    %v2780 = vunpack.c.l.b16 %v2261
    %v2781 = vunpack.c.l.b16 %v2262
    %v2782 = vunpack.c.l.b16 %v2263
    %v2783 = vunpack.c.l.b16 %v2264
    %v2784 = vunpack.c.l.b16 %v2265
    %v2785 = vunpack.c.l.b16 %v2266
    %v2786 = vunpack.c.l.b16 %v2267
    %v2787 = vunpack.c.l.b16 %v2268
    %v2788 = vunpack.c.l.b16 %v2269
    %v2789 = vunpack.c.l.b16 %v2270
    %v2790 = vunpack.c.l.b16 %v2271
    %v2791 = vunpack.c.l.b16 %v2272
    %v2792 = vunpack.c.l.b16 %v2273
    %v2793 = vunpack.c.l.b16 %v2274
    %v2794 = vunpack.c.l.b16 %v2275
    %v2795 = vunpack.c.l.b16 %v2276
    %v2796 = vunpack.c.l.b16 %v2277
    %v2797 = vunpack.c.l.b16 %v2278
    %v2798 = vunpack.c.l.b16 %v2279
    %v2799 = vunpack.c.l.b16 %v2280
    %v2800 = vunpack.c.l.b16 %v2281
    %v2801 = vunpack.c.l.b16 %v2282
    %v2802 = vunpack.c.l.b16 %v2283
    %v2803 = vunpack.c.l.b16 %v2284
    %v2804 = vunpack.c.l.b16 %v2285
    %v2805 = vunpack.c.l.b16 %v2286
    %v2806 = vunpack.c.l.b16 %v2287
    %v2807 = vunpack.c.l.b16 %v2288
    %v2808 = vunpack.c.l.b16 %v2289
    %v2809 = vunpack.c.l.b16 %v2290
    %v2810 = vunpack.c.l.b16 %v2291
    %v2811 = vunpack.c.l.b16 %v2292
    %v2812 = vunpack.c.l.b16 %v2293
    %v2813 = vunpack.c.l.b16 %v2294
    %v2814 = vunpack.c.l.b16 %v2295
    %v2815 = vunpack.c.l.b16 %v2296
    %v2816 = vunpack.c.l.b16 %v2297
    %v2817 = vunpack.c.l.b16 %v2298
    %v2818 = vunpack.c.l.b16 %v2299
    %v2819 = vunpack.c.l.b16 %v2300
    %v2820 = vunpack.c.l.b16 %v2301
    %v2821 = vunpack.c.l.b16 %v2302
    %v2822 = vunpack.c.l.b16 %v2303
    %v2823 = vunpack.c.l.b16 %v2304
    %v2824 = vunpack.c.l.b16 %v2305
    %v2825 = vunpack.c.l.b16 %v2306
    %v2826 = vunpack.c.l.b16 %v2307
    %v2827 = vunpack.c.l.b16 %v2308
    %v2828 = vunpack.c.l.b16 %v2309
    %v2829 = vunpack.c.l.b16 %v2310
    %v2830 = vunpack.c.l.b16 %v2311
    %v2831 = vunpack.c.l.b16 %v2312
    %v2832 = vunpack.c.l.b16 %v2313
    %v2833 = vunpack.c.l.b16 %v2314
    %v2834 = vunpack.c.l.b16 %v2315
    %v2835 = vunpack.c.l.b16 %v2316
    %v2836 = vunpack.c.l.b16 %v2317
    %v2837 = vunpack.c.l.b16 %v2318
    %v2838 = vunpack.c.l.b16 %v2319
    %v2839 = vunpack.c.l.b16 %v2320
    %v2840 = vunpack.c.l.b16 %v2321
    %v2841 = vunpack.c.l.b16 %v2322
    %v2842 = vunpack.c.l.b16 %v2323
    %v2843 = vunpack.c.l.b16 %v2324
    %v2844 = vunpack.c.l.b16 %v2325
    %v2845 = vunpack.c.l.b16 %v2326
    %v2846 = vunpack.c.l.b16 %v2327
    %v2847 = vunpack.c.l.b16 %v2328
    %v2848 = vunpack.c.l.b16 %v2329
    %v2849 = vunpack.c.l.b16 %v2330
    %v2850 = vunpack.c.l.b16 %v2331
    %v2851 = vunpack.c.l.b16 %v2332
    %v2852 = vunpack.c.l.b16 %v2333
    %v2853 = vunpack.c.l.b16 %v2334
    %v2854 = vunpack.c.l.b16 %v2335
    %v2855 = vunpack.c.l.b16 %v2336
    %v2856 = vunpack.c.l.b16 %v2337
    %v2857 = vunpack.c.l.b16 %v2338
    %v2858 = vunpack.c.l.b16 %v2339
    %v2859 = vunpack.c.l.b16 %v2340
    %v2860 = vunpack.c.l.b16 %v2341
    %v2861 = vunpack.c.l.b16 %v2342
    %v2862 = vunpack.c.l.b16 %v2343
    %v2863 = vunpack.c.l.b16 %v2344
    %v2864 = vunpack.c.l.b16 %v2345
    %v2865 = vunpack.c.l.b16 %v2346
    %v2866 = vunpack.c.l.b16 %v2347
    %v2867 = vunpack.c.l.b16 %v2348
    %v2868 = vunpack.c.l.b16 %v2349
    %v2869 = vunpack.c.l.b16 %v2350
    %v2870 = vunpack.c.l.b16 %v2351
    %v2871 = vunpack.c.l.b16 %v2352
    %v2872 = vunpack.c.l.b16 %v2353
    %v2873 = vunpack.c.l.b16 %v2354
    %v2874 = vunpack.c.l.b16 %v2355
    %v2875 = vunpack.c.l.b16 %v2356
    %v2876 = vunpack.c.l.b16 %v2357
    %v2877 = vunpack.c.l.b16 %v2358
    %v2878 = vunpack.c.l.b16 %v2359
    %v2879 = vunpack.c.l.b16 %v2360
    %v2880 = vunpack.c.l.b16 %v2361
    %v2881 = vunpack.c.l.b16 %v2362
    %v2882 = vunpack.c.l.b16 %v2363
    %v2883 = vunpack.c.l.b16 %v2364
    %v2884 = vunpack.c.l.b16 %v2365
    %v2885 = vunpack.c.l.b16 %v2366
    %v2886 = vunpack.c.l.b16 %v2367
    %v2887 = vunpack.c.l.b16 %v2368
    %v2888 = vunpack.c.l.b16 %v2369
    %v2889 = vunpack.c.l.b16 %v2370
    %v2890 = vunpack.c.l.b16 %v2371
    %v2891 = vunpack.c.l.b16 %v2372
    %v2892 = vunpack.c.l.b16 %v2373
    %v2893 = vunpack.c.l.b16 %v2374
    %v2894 = vunpack.c.l.b16 %v2375
    %v2895 = vunpack.c.l.b16 %v2376
    %v2896 = vunpack.c.l.b16 %v2377
    %v2897 = vunpack.c.l.b16 %v2378
    %v2898 = vunpack.c.l.b16 %v2379
    %v2899 = vunpack.c.l.b16 %v2380
    %v2900 = vunpack.c.l.b16 %v2381
    %v2901 = vunpack.c.l.b16 %v2382
    %v2902 = vunpack.c.l.b16 %v2383
    %v2903 = vunpack.c.l.b16 %v2384
    %v2904 = vunpack.c.l.b16 %v2385
    %v2905 = vunpack.c.l.b16 %v2386
    %v2906 = vunpack.c.l.b16 %v2387
    %v2907 = vunpack.c.l.b16 %v2388
    %v2908 = vunpack.c.l.b16 %v2389
    %v2909 = vunpack.c.l.b16 %v2390
    %v2910 = vunpack.c.l.b16 %v2391
    %v2911 = vunpack.c.l.b16 %v2392
    %v2912 = vunpack.c.l.b16 %v2393
    %v2913 = vunpack.c.l.b16 %v2394
    %v2914 = vunpack.c.l.b16 %v2395
    %v2915 = vunpack.c.l.b16 %v2396
    %v2916 = vunpack.c.l.b16 %v2397
    %v2917 = vpack.c.b16 %v2662, %v2661
    %v2918 = vpack.c.b16 %v2664, %v2663
    %v2919 = vpack.c.b16 %v2666, %v2665
    %v2920 = vpack.c.b16 %v2668, %v2667
    %v2921 = vpack.c.b16 %v2670, %v2669
    %v2922 = vpack.c.b16 %v2672, %v2671
    %v2923 = vpack.c.b16 %v2674, %v2673
    %v2924 = vpack.c.b16 %v2676, %v2675
    %v2925 = vpack.c.b16 %v2678, %v2677
    %v2926 = vpack.c.b16 %v2680, %v2679
    %v2927 = vpack.c.b16 %v2682, %v2681
    %v2928 = vpack.c.b16 %v2684, %v2683
    %v2929 = vpack.c.b16 %v2686, %v2685
    %v2930 = vpack.c.b16 %v2688, %v2687
    %v2931 = vpack.c.b16 %v2690, %v2689
    %v2932 = vpack.c.b16 %v2692, %v2691
    %v2933 = vpack.c.b16 %v2694, %v2693
    %v2934 = vpack.c.b16 %v2696, %v2695
    %v2935 = vpack.c.b16 %v2698, %v2697
    %v2936 = vpack.c.b16 %v2700, %v2699
    %v2937 = vpack.c.b16 %v2702, %v2701
    %v2938 = vpack.c.b16 %v2704, %v2703
    %v2939 = vpack.c.b16 %v2706, %v2705
    %v2940 = vpack.c.b16 %v2708, %v2707
    %v2941 = vpack.c.b16 %v2710, %v2709
    %v2942 = vpack.c.b16 %v2712, %v2711
    %v2943 = vpack.c.b16 %v2714, %v2713
    %v2944 = vpack.c.b16 %v2716, %v2715
    %v2945 = vpack.c.b16 %v2718, %v2717
    %v2946 = vpack.c.b16 %v2720, %v2719
    %v2947 = vpack.c.b16 %v2722, %v2721
    %v2948 = vpack.c.b16 %v2724, %v2723
    %v2949 = vpack.c.b16 %v2726, %v2725
    %v2950 = vpack.c.b16 %v2728, %v2727
    %v2951 = vpack.c.b16 %v2730, %v2729
    %v2952 = vpack.c.b16 %v2732, %v2731
    %v2953 = vpack.c.b16 %v2734, %v2733
    %v2954 = vpack.c.b16 %v2736, %v2735
    %v2955 = vpack.c.b16 %v2738, %v2737
    %v2956 = vpack.c.b16 %v2740, %v2739
    %v2957 = vpack.c.b16 %v2742, %v2741
    %v2958 = vpack.c.b16 %v2744, %v2743
    %v2959 = vpack.c.b16 %v2746, %v2745
    %v2960 = vpack.c.b16 %v2748, %v2747
    %v2961 = vpack.c.b16 %v2750, %v2749
    %v2962 = vpack.c.b16 %v2752, %v2751
    %v2963 = vpack.c.b16 %v2754, %v2753
    %v2964 = vpack.c.b16 %v2756, %v2755
    %v2965 = vpack.c.b16 %v2758, %v2757
    %v2966 = vpack.c.b16 %v2760, %v2759
    %v2967 = vpack.c.b16 %v2762, %v2761
    %v2968 = vpack.c.b16 %v2764, %v2763
    %v2969 = vpack.c.b16 %v2766, %v2765
    %v2970 = vpack.c.b16 %v2768, %v2767
    %v2971 = vpack.c.b16 %v2770, %v2769
    %v2972 = vpack.c.b16 %v2772, %v2771
    %v2973 = vpack.c.b16 %v2774, %v2773
    %v2974 = vpack.c.b16 %v2776, %v2775
    %v2975 = vpack.c.b16 %v2778, %v2777
    %v2976 = vpack.c.b16 %v2780, %v2779
    %v2977 = vpack.c.b16 %v2782, %v2781
    %v2978 = vpack.c.b16 %v2784, %v2783
    %v2979 = vpack.c.b16 %v2786, %v2785
    %v2980 = vpack.c.b16 %v2788, %v2787
    %v2981 = vpack.c.b16 %v2790, %v2789
    %v2982 = vpack.c.b16 %v2792, %v2791
    %v2983 = vpack.c.b16 %v2794, %v2793
    %v2984 = vpack.c.b16 %v2796, %v2795
    %v2985 = vpack.c.b16 %v2798, %v2797
    %v2986 = vpack.c.b16 %v2800, %v2799
    %v2987 = vpack.c.b16 %v2802, %v2801
    %v2988 = vpack.c.b16 %v2804, %v2803
    %v2989 = vpack.c.b16 %v2806, %v2805
    %v2990 = vpack.c.b16 %v2808, %v2807
    %v2991 = vpack.c.b16 %v2810, %v2809
    %v2992 = vpack.c.b16 %v2812, %v2811
    %v2993 = vpack.c.b16 %v2814, %v2813
    %v2994 = vpack.c.b16 %v2816, %v2815
    %v2995 = vpack.c.b16 %v2818, %v2817
    %v2996 = vpack.c.b16 %v2820, %v2819
    %v2997 = vpack.c.b16 %v2822, %v2821
    %v2998 = vpack.c.b16 %v2824, %v2823
    %v2999 = vpack.c.b16 %v2826, %v2825
    %v3000 = vpack.c.b16 %v2828, %v2827
    %v3001 = vpack.c.b16 %v2830, %v2829
    %v3002 = vpack.c.b16 %v2832, %v2831
    %v3003 = vpack.c.b16 %v2834, %v2833
    %v3004 = vpack.c.b16 %v2836, %v2835
    %v3005 = vpack.c.b16 %v2838, %v2837
    %v3006 = vpack.c.b16 %v2840, %v2839
    %v3007 = vpack.c.b16 %v2842, %v2841
    %v3008 = vpack.c.b16 %v2844, %v2843
    %v3009 = vpack.c.b16 %v2846, %v2845
    %v3010 = vpack.c.b16 %v2848, %v2847
    %v3011 = vpack.c.b16 %v2850, %v2849
    %v3012 = vpack.c.b16 %v2852, %v2851
    %v3013 = vpack.c.b16 %v2854, %v2853
    %v3014 = vpack.c.b16 %v2856, %v2855
    %v3015 = vpack.c.b16 %v2858, %v2857
    %v3016 = vpack.c.b16 %v2860, %v2859
    %v3017 = vpack.c.b16 %v2862, %v2861
    %v3018 = vpack.c.b16 %v2864, %v2863
    %v3019 = vpack.c.b16 %v2866, %v2865
    %v3020 = vpack.c.b16 %v2868, %v2867
    %v3021 = vpack.c.b16 %v2870, %v2869
    %v3022 = vpack.c.b16 %v2872, %v2871
    %v3023 = vpack.c.b16 %v2874, %v2873
    %v3024 = vpack.c.b16 %v2876, %v2875
    %v3025 = vpack.c.b16 %v2878, %v2877
    %v3026 = vpack.c.b16 %v2880, %v2879
    %v3027 = vpack.c.b16 %v2882, %v2881
    %v3028 = vpack.c.b16 %v2884, %v2883
    %v3029 = vpack.c.b16 %v2886, %v2885
    %v3030 = vpack.c.b16 %v2888, %v2887
    %v3031 = vpack.c.b16 %v2890, %v2889
    %v3032 = vpack.c.b16 %v2892, %v2891
    %v3033 = vpack.c.b16 %v2894, %v2893
    %v3034 = vpack.c.b16 %v2896, %v2895
    %v3035 = vpack.c.b16 %v2898, %v2897
    %v3036 = vpack.c.b16 %v2900, %v2899
    %v3037 = vpack.c.b16 %v2902, %v2901
    %v3038 = vpack.c.b16 %v2904, %v2903
    %v3039 = vpack.c.b16 %v2906, %v2905
    %v3040 = vpack.c.b16 %v2908, %v2907
    %v3041 = vpack.c.b16 %v2910, %v2909
    %v3042 = vpack.c.b16 %v2912, %v2911
    %v3043 = vpack.c.b16 %v2914, %v2913
    %v3044 = vpack.c.b16 %v2916, %v2915
    %3173 = vmatprep.subr.bf16.mxu0 0
    %3174 = vmatpush1.bf16.msra.mxu0 %v2917
    %3175 = vmatprep.subr.bf16.mxu0 0
    %3176 = vmatpush1.bf16.msra.mxu0 %v2918
    %3177 = vmatprep.subr.bf16.mxu0 0
    %3178 = vmatpush1.bf16.msra.mxu0 %v2919
    %3179 = vmatprep.subr.bf16.mxu0 0
    %3180 = vmatpush1.bf16.msra.mxu0 %v2920
    %3181 = vmatprep.subr.bf16.mxu0 0
    %3182 = vmatpush1.bf16.msra.mxu0 %v2921
    %3183 = vmatprep.subr.bf16.mxu0 0
    %3184 = vmatpush1.bf16.msra.mxu0 %v2922
    %3185 = vmatprep.subr.bf16.mxu0 0
    %3186 = vmatpush1.bf16.msra.mxu0 %v2923
    %3187 = vmatprep.subr.bf16.mxu0 0
    %3188 = vmatpush1.bf16.msra.mxu0 %v2924
    %3189 = vmatprep.subr.bf16.mxu0 0
    %3190 = vmatpush1.bf16.msra.mxu0 %v2925
    %3191 = vmatprep.subr.bf16.mxu0 0
    %3192 = vmatpush1.bf16.msra.mxu0 %v2926
    %3193 = vmatprep.subr.bf16.mxu0 0
    %3194 = vmatpush1.bf16.msra.mxu0 %v2927
    %3195 = vmatprep.subr.bf16.mxu0 0
    %3196 = vmatpush1.bf16.msra.mxu0 %v2928
    %3197 = vmatprep.subr.bf16.mxu0 0
    %3198 = vmatpush1.bf16.msra.mxu0 %v2929
    %3199 = vmatprep.subr.bf16.mxu0 0
    %3200 = vmatpush1.bf16.msra.mxu0 %v2930
    %3201 = vmatprep.subr.bf16.mxu0 0
    %3202 = vmatpush1.bf16.msra.mxu0 %v2931
    %3203 = vmatprep.subr.bf16.mxu0 0
    %3204 = vmatpush1.bf16.msra.mxu0 %v2932
    %3205 = vmatprep.mubr.bf16.mxu0 %v2127
    %3206 = vmatmul.mubr.bf16.gmra.mrb[0].mxu0 %v2126
    %v3207 = vpop.f32.mrb[0].mxu0
    %v3208 = vadd.f32 %v2403, %v3207
    %v3209 = vpop.f32.mrb[0].mxu0
    %v3210 = vpop.f32.mrb[0].mxu0
    %v3211 = vpop.f32.mrb[0].mxu0
    %3212 = vdwg.mxu0
    %3213 = vmatprep.subr.bf16.mxu0 0
    %3214 = vmatpush1.bf16.msra.mxu0 %v2933
    %3215 = vmatprep.subr.bf16.mxu0 0
    %3216 = vmatpush1.bf16.msra.mxu0 %v2934
    %3217 = vmatprep.subr.bf16.mxu0 0
    %3218 = vmatpush1.bf16.msra.mxu0 %v2935
    %3219 = vmatprep.subr.bf16.mxu0 0
    %3220 = vmatpush1.bf16.msra.mxu0 %v2936
    %3221 = vmatprep.subr.bf16.mxu0 0
    %3222 = vmatpush1.bf16.msra.mxu0 %v2937
    %3223 = vmatprep.subr.bf16.mxu0 0
    %3224 = vmatpush1.bf16.msra.mxu0 %v2938
    %3225 = vmatprep.subr.bf16.mxu0 0
    %3226 = vmatpush1.bf16.msra.mxu0 %v2939
    %3227 = vmatprep.subr.bf16.mxu0 0
    %3228 = vmatpush1.bf16.msra.mxu0 %v2940
    %3229 = vmatprep.subr.bf16.mxu0 0
    %3230 = vmatpush1.bf16.msra.mxu0 %v2941
    %3231 = vmatprep.subr.bf16.mxu0 0
    %3232 = vmatpush1.bf16.msra.mxu0 %v2942
    %3233 = vmatprep.subr.bf16.mxu0 0
    %3234 = vmatpush1.bf16.msra.mxu0 %v2943
    %3235 = vmatprep.subr.bf16.mxu0 0
    %3236 = vmatpush1.bf16.msra.mxu0 %v2944
    %3237 = vmatprep.subr.bf16.mxu0 0
    %3238 = vmatpush1.bf16.msra.mxu0 %v2945
    %3239 = vmatprep.subr.bf16.mxu0 0
    %3240 = vmatpush1.bf16.msra.mxu0 %v2946
    %3241 = vmatprep.subr.bf16.mxu0 0
    %3242 = vmatpush1.bf16.msra.mxu0 %v2947
    %3243 = vmatprep.subr.bf16.mxu0 0
    %3244 = vmatpush1.bf16.msra.mxu0 %v2948
    %3245 = vmatprep.mubr.bf16.mxu0 %v2129
    %3246 = vmatmul.mubr.bf16.gmra.mrb[0].mxu0 %v2128
    %v3247 = vpop.f32.mrb[0].mxu0
    %v3248 = vadd.f32 %v3208, %v3247
    %v3249 = vpop.f32.mrb[0].mxu0
    %v3250 = vpop.f32.mrb[0].mxu0
    %v3251 = vpop.f32.mrb[0].mxu0
    %3252 = vdwg.mxu0
    %3253 = vmatprep.subr.bf16.mxu0 0
    %3254 = vmatpush1.bf16.msra.mxu0 %v2949
    %3255 = vmatprep.subr.bf16.mxu0 0
    %3256 = vmatpush1.bf16.msra.mxu0 %v2950
    %3257 = vmatprep.subr.bf16.mxu0 0
    %3258 = vmatpush1.bf16.msra.mxu0 %v2951
    %3259 = vmatprep.subr.bf16.mxu0 0
    %3260 = vmatpush1.bf16.msra.mxu0 %v2952
    %3261 = vmatprep.subr.bf16.mxu0 0
    %3262 = vmatpush1.bf16.msra.mxu0 %v2953
    %3263 = vmatprep.subr.bf16.mxu0 0
    %3264 = vmatpush1.bf16.msra.mxu0 %v2954
    %3265 = vmatprep.subr.bf16.mxu0 0
    %3266 = vmatpush1.bf16.msra.mxu0 %v2955
    %3267 = vmatprep.subr.bf16.mxu0 0
    %3268 = vmatpush1.bf16.msra.mxu0 %v2956
    %3269 = vmatprep.subr.bf16.mxu0 0
    %3270 = vmatpush1.bf16.msra.mxu0 %v2957
    %3271 = vmatprep.subr.bf16.mxu0 0
    %3272 = vmatpush1.bf16.msra.mxu0 %v2958
    %3273 = vmatprep.subr.bf16.mxu0 0
    %3274 = vmatpush1.bf16.msra.mxu0 %v2959
    %3275 = vmatprep.subr.bf16.mxu0 0
    %3276 = vmatpush1.bf16.msra.mxu0 %v2960
    %3277 = vmatprep.subr.bf16.mxu0 0
    %3278 = vmatpush1.bf16.msra.mxu0 %v2961
    %3279 = vmatprep.subr.bf16.mxu0 0
    %3280 = vmatpush1.bf16.msra.mxu0 %v2962
    %3281 = vmatprep.subr.bf16.mxu0 0
    %3282 = vmatpush1.bf16.msra.mxu0 %v2963
    %3283 = vmatprep.subr.bf16.mxu0 0
    %3284 = vmatpush1.bf16.msra.mxu0 %v2964
    %3285 = vmatprep.mubr.bf16.mxu0 %v2131
    %3286 = vmatmul.mubr.bf16.gmra.mrb[0].mxu0 %v2130
    %v3287 = vpop.f32.mrb[0].mxu0
    %v3288 = vadd.f32 %v3248, %v3287
    %v3289 = vpop.f32.mrb[0].mxu0
    %v3290 = vpop.f32.mrb[0].mxu0
    %v3291 = vpop.f32.mrb[0].mxu0
    %3292 = vdwg.mxu0
    %3293 = vmatprep.subr.bf16.mxu0 0
    %3294 = vmatpush1.bf16.msra.mxu0 %v2965
    %3295 = vmatprep.subr.bf16.mxu0 0
    %3296 = vmatpush1.bf16.msra.mxu0 %v2966
    %3297 = vmatprep.subr.bf16.mxu0 0
    %3298 = vmatpush1.bf16.msra.mxu0 %v2967
    %3299 = vmatprep.subr.bf16.mxu0 0
    %3300 = vmatpush1.bf16.msra.mxu0 %v2968
    %3301 = vmatprep.subr.bf16.mxu0 0
    %3302 = vmatpush1.bf16.msra.mxu0 %v2969
    %3303 = vmatprep.subr.bf16.mxu0 0
    %3304 = vmatpush1.bf16.msra.mxu0 %v2970
    %3305 = vmatprep.subr.bf16.mxu0 0
    %3306 = vmatpush1.bf16.msra.mxu0 %v2971
    %3307 = vmatprep.subr.bf16.mxu0 0
    %3308 = vmatpush1.bf16.msra.mxu0 %v2972
    %3309 = vmatprep.subr.bf16.mxu0 0
    %3310 = vmatpush1.bf16.msra.mxu0 %v2973
    %3311 = vmatprep.subr.bf16.mxu0 0
    %3312 = vmatpush1.bf16.msra.mxu0 %v2974
    %3313 = vmatprep.subr.bf16.mxu0 0
    %3314 = vmatpush1.bf16.msra.mxu0 %v2975
    %3315 = vmatprep.subr.bf16.mxu0 0
    %3316 = vmatpush1.bf16.msra.mxu0 %v2976
    %3317 = vmatprep.subr.bf16.mxu0 0
    %3318 = vmatpush1.bf16.msra.mxu0 %v2977
    %3319 = vmatprep.subr.bf16.mxu0 0
    %3320 = vmatpush1.bf16.msra.mxu0 %v2978
    %3321 = vmatprep.subr.bf16.mxu0 0
    %3322 = vmatpush1.bf16.msra.mxu0 %v2979
    %3323 = vmatprep.subr.bf16.mxu0 0
    %3324 = vmatpush1.bf16.msra.mxu0 %v2980
    %3325 = vmatprep.mubr.bf16.mxu0 %v2133
    %3326 = vmatmul.mubr.bf16.gmra.mrb[0].mxu0 %v2132
    %v3327 = vpop.f32.mrb[0].mxu0
    %v3328 = vadd.f32 %v3288, %v3327
    %v3329 = vpop.f32.mrb[0].mxu0
    %v3330 = vpop.f32.mrb[0].mxu0
    %v3331 = vpop.f32.mrb[0].mxu0
    %3332 = vdwg.mxu0
    %3333 = vmatprep.subr.bf16.mxu0 0
    %3334 = vmatpush1.bf16.msra.mxu0 %v2981
    %3335 = vmatprep.subr.bf16.mxu0 0
    %3336 = vmatpush1.bf16.msra.mxu0 %v2982
    %3337 = vmatprep.subr.bf16.mxu0 0
    %3338 = vmatpush1.bf16.msra.mxu0 %v2983
    %3339 = vmatprep.subr.bf16.mxu0 0
    %3340 = vmatpush1.bf16.msra.mxu0 %v2984
    %3341 = vmatprep.subr.bf16.mxu0 0
    %3342 = vmatpush1.bf16.msra.mxu0 %v2985
    %3343 = vmatprep.subr.bf16.mxu0 0
    %3344 = vmatpush1.bf16.msra.mxu0 %v2986
    %3345 = vmatprep.subr.bf16.mxu0 0
    %3346 = vmatpush1.bf16.msra.mxu0 %v2987
    %3347 = vmatprep.subr.bf16.mxu0 0
    %3348 = vmatpush1.bf16.msra.mxu0 %v2988
    %3349 = vmatprep.subr.bf16.mxu0 0
    %3350 = vmatpush1.bf16.msra.mxu0 %v2989
    %3351 = vmatprep.subr.bf16.mxu0 0
    %3352 = vmatpush1.bf16.msra.mxu0 %v2990
    %3353 = vmatprep.subr.bf16.mxu0 0
    %3354 = vmatpush1.bf16.msra.mxu0 %v2991
    %3355 = vmatprep.subr.bf16.mxu0 0
    %3356 = vmatpush1.bf16.msra.mxu0 %v2992
    %3357 = vmatprep.subr.bf16.mxu0 0
    %3358 = vmatpush1.bf16.msra.mxu0 %v2993
    %3359 = vmatprep.subr.bf16.mxu0 0
    %3360 = vmatpush1.bf16.msra.mxu0 %v2994
    %3361 = vmatprep.subr.bf16.mxu0 0
    %3362 = vmatpush1.bf16.msra.mxu0 %v2995
    %3363 = vmatprep.subr.bf16.mxu0 0
    %3364 = vmatpush1.bf16.msra.mxu0 %v2996
    %3365 = vmatprep.mubr.bf16.mxu0 %v2135
    %3366 = vmatmul.mubr.bf16.gmra.mrb[0].mxu0 %v2134
    %v3367 = vpop.f32.mrb[0].mxu0
    %v3368 = vadd.f32 %v3328, %v3367
    %v3369 = vpop.f32.mrb[0].mxu0
    %v3370 = vpop.f32.mrb[0].mxu0
    %v3371 = vpop.f32.mrb[0].mxu0
    %3372 = vdwg.mxu0
    %3373 = vmatprep.subr.bf16.mxu0 0
    %3374 = vmatpush1.bf16.msra.mxu0 %v2997
    %3375 = vmatprep.subr.bf16.mxu0 0
    %3376 = vmatpush1.bf16.msra.mxu0 %v2998
    %3377 = vmatprep.subr.bf16.mxu0 0
    %3378 = vmatpush1.bf16.msra.mxu0 %v2999
    %3379 = vmatprep.subr.bf16.mxu0 0
    %3380 = vmatpush1.bf16.msra.mxu0 %v3000
    %3381 = vmatprep.subr.bf16.mxu0 0
    %3382 = vmatpush1.bf16.msra.mxu0 %v3001
    %3383 = vmatprep.subr.bf16.mxu0 0
    %3384 = vmatpush1.bf16.msra.mxu0 %v3002
    %3385 = vmatprep.subr.bf16.mxu0 0
    %3386 = vmatpush1.bf16.msra.mxu0 %v3003
    %3387 = vmatprep.subr.bf16.mxu0 0
    %3388 = vmatpush1.bf16.msra.mxu0 %v3004
    %3389 = vmatprep.subr.bf16.mxu0 0
    %3390 = vmatpush1.bf16.msra.mxu0 %v3005
    %3391 = vmatprep.subr.bf16.mxu0 0
    %3392 = vmatpush1.bf16.msra.mxu0 %v3006
    %3393 = vmatprep.subr.bf16.mxu0 0
    %3394 = vmatpush1.bf16.msra.mxu0 %v3007
    %3395 = vmatprep.subr.bf16.mxu0 0
    %3396 = vmatpush1.bf16.msra.mxu0 %v3008
    %3397 = vmatprep.subr.bf16.mxu0 0
    %3398 = vmatpush1.bf16.msra.mxu0 %v3009
    %3399 = vmatprep.subr.bf16.mxu0 0
    %3400 = vmatpush1.bf16.msra.mxu0 %v3010
    %3401 = vmatprep.subr.bf16.mxu0 0
    %3402 = vmatpush1.bf16.msra.mxu0 %v3011
    %3403 = vmatprep.subr.bf16.mxu0 0
    %3404 = vmatpush1.bf16.msra.mxu0 %v3012
    %3405 = vmatprep.mubr.bf16.mxu0 %v2137
    %3406 = vmatmul.mubr.bf16.gmra.mrb[0].mxu0 %v2136
    %v3407 = vpop.f32.mrb[0].mxu0
    %v3408 = vadd.f32 %v3368, %v3407
    %v3409 = vpop.f32.mrb[0].mxu0
    %v3410 = vpop.f32.mrb[0].mxu0
    %v3411 = vpop.f32.mrb[0].mxu0
    %3412 = vdwg.mxu0
    %3413 = vmatprep.subr.bf16.mxu0 0
    %3414 = vmatpush1.bf16.msra.mxu0 %v3013
    %3415 = vmatprep.subr.bf16.mxu0 0
    %3416 = vmatpush1.bf16.msra.mxu0 %v3014
    %3417 = vmatprep.subr.bf16.mxu0 0
    %3418 = vmatpush1.bf16.msra.mxu0 %v3015
    %3419 = vmatprep.subr.bf16.mxu0 0
    %3420 = vmatpush1.bf16.msra.mxu0 %v3016
    %3421 = vmatprep.subr.bf16.mxu0 0
    %3422 = vmatpush1.bf16.msra.mxu0 %v3017
    %3423 = vmatprep.subr.bf16.mxu0 0
    %3424 = vmatpush1.bf16.msra.mxu0 %v3018
    %3425 = vmatprep.subr.bf16.mxu0 0
    %3426 = vmatpush1.bf16.msra.mxu0 %v3019
    %3427 = vmatprep.subr.bf16.mxu0 0
    %3428 = vmatpush1.bf16.msra.mxu0 %v3020
    %3429 = vmatprep.subr.bf16.mxu0 0
    %3430 = vmatpush1.bf16.msra.mxu0 %v3021
    %3431 = vmatprep.subr.bf16.mxu0 0
    %3432 = vmatpush1.bf16.msra.mxu0 %v3022
    %3433 = vmatprep.subr.bf16.mxu0 0
    %3434 = vmatpush1.bf16.msra.mxu0 %v3023
    %3435 = vmatprep.subr.bf16.mxu0 0
    %3436 = vmatpush1.bf16.msra.mxu0 %v3024
    %3437 = vmatprep.subr.bf16.mxu0 0
    %3438 = vmatpush1.bf16.msra.mxu0 %v3025
    %3439 = vmatprep.subr.bf16.mxu0 0
    %3440 = vmatpush1.bf16.msra.mxu0 %v3026
    %3441 = vmatprep.subr.bf16.mxu0 0
    %3442 = vmatpush1.bf16.msra.mxu0 %v3027
    %3443 = vmatprep.subr.bf16.mxu0 0
    %3444 = vmatpush1.bf16.msra.mxu0 %v3028
    %3445 = vmatprep.mubr.bf16.mxu0 %v2139
    %3446 = vmatmul.mubr.bf16.gmra.mrb[0].mxu0 %v2138
    %v3447 = vpop.f32.mrb[0].mxu0
    %v3448 = vadd.f32 %v3408, %v3447
    %v3449 = vpop.f32.mrb[0].mxu0
    %v3450 = vpop.f32.mrb[0].mxu0
    %v3451 = vpop.f32.mrb[0].mxu0
    %3452 = vdwg.mxu0
    %3453 = vmatprep.subr.bf16.mxu0 0
    %3454 = vmatpush1.bf16.msra.mxu0 %v3029
    %3455 = vmatprep.subr.bf16.mxu0 0
    %3456 = vmatpush1.bf16.msra.mxu0 %v3030
    %3457 = vmatprep.subr.bf16.mxu0 0
    %3458 = vmatpush1.bf16.msra.mxu0 %v3031
    %3459 = vmatprep.subr.bf16.mxu0 0
    %3460 = vmatpush1.bf16.msra.mxu0 %v3032
    %3461 = vmatprep.subr.bf16.mxu0 0
    %3462 = vmatpush1.bf16.msra.mxu0 %v3033
    %3463 = vmatprep.subr.bf16.mxu0 0
    %3464 = vmatpush1.bf16.msra.mxu0 %v3034
    %3465 = vmatprep.subr.bf16.mxu0 0
    %3466 = vmatpush1.bf16.msra.mxu0 %v3035
    %3467 = vmatprep.subr.bf16.mxu0 0
    %3468 = vmatpush1.bf16.msra.mxu0 %v3036
    %3469 = vmatprep.subr.bf16.mxu0 0
    %3470 = vmatpush1.bf16.msra.mxu0 %v3037
    %3471 = vmatprep.subr.bf16.mxu0 0
    %3472 = vmatpush1.bf16.msra.mxu0 %v3038
    %3473 = vmatprep.subr.bf16.mxu0 0
    %3474 = vmatpush1.bf16.msra.mxu0 %v3039
    %3475 = vmatprep.subr.bf16.mxu0 0
    %3476 = vmatpush1.bf16.msra.mxu0 %v3040
    %3477 = vmatprep.subr.bf16.mxu0 0
    %3478 = vmatpush1.bf16.msra.mxu0 %v3041
    %3479 = vmatprep.subr.bf16.mxu0 0
    %3480 = vmatpush1.bf16.msra.mxu0 %v3042
    %3481 = vmatprep.subr.bf16.mxu0 0
    %3482 = vmatpush1.bf16.msra.mxu0 %v3043
    %3483 = vmatprep.subr.bf16.mxu0 0
    %3484 = vmatpush1.bf16.msra.mxu0 %v3044
    %3485 = vmatprep.mubr.bf16.mxu0 %v2141
    %3486 = vmatmul.mubr.bf16.gmra.mrb[0].mxu0 %v2140
    %v3487 = vpop.f32.mrb[0].mxu0
    %v3488 = vadd.f32 %v3448, %v3487
    %v3489 = vpop.f32.mrb[0].mxu0
    %v3490 = vpop.f32.mrb[0].mxu0
    %v3491 = vpop.f32.mrb[0].mxu0
    %3492 = vdwg.mxu0
    %v3493 = vadd.f32 %v1373, %v3488
    %v3494 = vld [vmem:[%s41] sm:$0x1]
    %v3495 = vld [vmem:[%s43] sm:$0x1]
    %v3496 = vsel %vm158, %v3493, 0.0
    %3497 = vadd.xlane.f32.xlu0 %v3496
    %v3498 = vpop.xlane.xlu0 %3497
    %v3499 = vmul.f32 %v3498, %v958
    %v3500 = vsub.f32 %v3493, %v3499
    %v3501 = vmul.f32 %v3500, %v3500
    %v3502 = vsel %vm158, %v3501, 0.0
    %3503 = vadd.xlane.f32.xlu0 %v3502
    %v3504 = vpop.xlane.xlu0 %3503
    %v3505 = vmul.f32 %v3504, %v958
    %v3506 = vadd.f32 %v3505, 1e-05
    %v3507 = vrsqrt.pop %v3506
    %v3508 = vmul.f32 %v3500, %v3507
    %v3510 = vlaneseq
    %v3511 = vshrl.u32 %v3510, 7
    %v3512 = vsub.s32 0, %v3511
    %v3513 = vrot.slane %v3494, %v3512
    %v3515 = vmul.f32 %v3508, %v3513
    %v3517 = vlaneseq
    %v3518 = vshrl.u32 %v3517, 7
    %v3519 = vsub.s32 0, %v3518
    %v3520 = vrot.slane %v3495, %v3519
    %v3522 = vadd.f32 %v3515, %v3520
    %v3523 = vpack.c.bf16 %v3522, %v3522
    %s3524 = scalar_lea.vmem %s5, 16
    %v3525 = vld [vmem:[%s3524] sm:$0xf]
    %v3526 = vld [vmem:[%s3524 + $0x4] sm:$0xf]
    %v3527 = vld [vmem:[%s3524 + $0x8] sm:$0xf]
    %v3528 = vld [vmem:[%s3524 + $0xc] sm:$0xf]
    %s3529 = scalar_lea.vmem %s7, 1
    %v3530 = vld [vmem:[%s3529] sm:$0x1]
    %v3532 = vlaneseq
    %v3533 = vshrl.u32 %v3532, 7
    %v3534 = vsub.s32 0, %v3533
    %v3535 = vrot.slane %v3530, %v3534
    %v3541 = vunpack.c.l.b16 %v3525
    %v3542 = vunpack.c.l.b16 %v3526
    %v3543 = vunpack.c.l.b16 %v3527
    %v3544 = vunpack.c.l.b16 %v3528
    %v3545 = vpack.c.b16 %v3542, %v3541
    %v3546 = vpack.c.b16 %v3544, %v3543
    %v3550 = vsel %vm158, %v3523, 0
    %3552 = vmatprep.subr.bf16.mxu0 0
    %3553 = vmatpush1.bf16.msra.mxu0 %v3545
    %3554 = vmatprep.subr.bf16.mxu0 0
    %3555 = vmatpush1.bf16.msra.mxu0 %v3546
    %3556 = vmatprep.subr.bf16.mxu0 0
    %3557 = vmatpush1.bf16.msra.mxu0 0
    %3558 = vmatprep.subr.bf16.mxu0 0
    %3559 = vmatpush1.bf16.msra.mxu0 0
    %3560 = vmatprep.subr.bf16.mxu0 0
    %3561 = vmatpush1.bf16.msra.mxu0 0
    %3562 = vmatprep.subr.bf16.mxu0 0
    %3563 = vmatpush1.bf16.msra.mxu0 0
    %3564 = vmatprep.subr.bf16.mxu0 0
    %3565 = vmatpush1.bf16.msra.mxu0 0
    %3566 = vmatprep.subr.bf16.mxu0 0
    %3567 = vmatpush1.bf16.msra.mxu0 0
    %3568 = vmatprep.subr.bf16.mxu0 0
    %3569 = vmatpush1.bf16.msra.mxu0 0
    %3570 = vmatprep.subr.bf16.mxu0 0
    %3571 = vmatpush1.bf16.msra.mxu0 0
    %3572 = vmatprep.subr.bf16.mxu0 0
    %3573 = vmatpush1.bf16.msra.mxu0 0
    %3574 = vmatprep.subr.bf16.mxu0 0
    %3575 = vmatpush1.bf16.msra.mxu0 0
    %3576 = vmatprep.subr.bf16.mxu0 0
    %3577 = vmatpush1.bf16.msra.mxu0 0
    %3578 = vmatprep.subr.bf16.mxu0 0
    %3579 = vmatpush1.bf16.msra.mxu0 0
    %3580 = vmatprep.subr.bf16.mxu0 0
    %3581 = vmatpush1.bf16.msra.mxu0 0
    %3582 = vmatprep.subr.bf16.mxu0 0
    %3583 = vmatpush1.bf16.msra.mxu0 0
    %3584 = vmatprep.mubr.bf16.mxu0 0
    %3585 = vmatmul.mubr.bf16.gmra.mrb[0].mxu0 %v3550
    %v3586 = vpop.f32.mrb[0].mxu0
    %v3587 = vadd.f32 %v3535, %v3586
    %v3588 = vpop.f32.mrb[0].mxu0
    %v3589 = vpop.f32.mrb[0].mxu0
    %v3590 = vpop.f32.mrb[0].mxu0
    %3591 = vdwg.mxu0
    %3593 = vrot.lane.b32.xlu0 %v3587, 96
    %v3594 = vpop.permute.xlu0 %3593
    %v3595 = vsel %vm211, %v3587, 0
    %v3597 = vsel %vm211, %v3594, 0
    %3599 = vmatprep.subr.mxu0 0.0
    %3600 = vmatpush1.xpose.msra.mxu0 %v3597
    %3601 = vmatprep.subr.mxu0 0.0
    %3602 = vmatpush1.xpose.msra.mxu0 0.0
    %3603 = vmatprep.subr.mxu0 0.0
    %3604 = vmatpush1.xpose.msra.mxu0 0.0
    %3605 = vmatprep.subr.mxu0 0.0
    %3606 = vmatpush1.xpose.msra.mxu0 0.0
    %3607 = vmatprep.subr.mxu0 0.0
    %3608 = vmatpush1.xpose.msra.mxu0 0.0
    %3609 = vmatprep.subr.mxu0 0.0
    %3610 = vmatpush1.xpose.msra.mxu0 0.0
    %3611 = vmatprep.subr.mxu0 0.0
    %3612 = vmatpush1.xpose.msra.mxu0 0.0
    %3613 = vmatprep.subr.mxu0 0.0
    %3614 = vmatpush1.xpose.msra.mxu0 0.0
    %3615 = vmatprep.subr.mxu0 0.0
    %3616 = vmatpush1.xpose.msra.mxu0 0.0
    %3617 = vmatprep.subr.mxu0 0.0
    %3618 = vmatpush1.xpose.msra.mxu0 0.0
    %3619 = vmatprep.subr.mxu0 0.0
    %3620 = vmatpush1.xpose.msra.mxu0 0.0
    %3621 = vmatprep.subr.mxu0 0.0
    %3622 = vmatpush1.xpose.msra.mxu0 0.0
    %3623 = vmatprep.subr.mxu0 0.0
    %3624 = vmatpush1.xpose.msra.mxu0 0.0
    %3625 = vmatprep.subr.mxu0 0.0
    %3626 = vmatpush1.xpose.msra.mxu0 0.0
    %3627 = vmatprep.subr.mxu0 0.0
    %3628 = vmatpush1.xpose.msra.mxu0 0.0
    %3629 = vmatprep.subr.mxu0 0.0
    %3630 = vmatpush1.xpose.msra.mxu0 0.0
    %3631 = vmatprep.subr.mxu0 0.0
    %3632 = vmatpush1.xpose.msra.mxu0 0.0
    %3633 = vmatprep.subr.mxu0 0.0
    %3634 = vmatpush1.xpose.msra.mxu0 0.0
    %3635 = vmatprep.subr.mxu0 0.0
    %3636 = vmatpush1.xpose.msra.mxu0 0.0
    %3637 = vmatprep.subr.mxu0 0.0
    %3638 = vmatpush1.xpose.msra.mxu0 0.0
    %3639 = vmatprep.subr.mxu0 0.0
    %3640 = vmatpush1.xpose.msra.mxu0 0.0
    %3641 = vmatprep.subr.mxu0 0.0
    %3642 = vmatpush1.xpose.msra.mxu0 0.0
    %3643 = vmatprep.subr.mxu0 0.0
    %3644 = vmatpush1.xpose.msra.mxu0 0.0
    %3645 = vmatprep.subr.mxu0 0.0
    %3646 = vmatpush1.xpose.msra.mxu0 0.0
    %3647 = vmatprep.subr.mxu0 0.0
    %3648 = vmatpush1.xpose.msra.mxu0 0.0
    %3649 = vmatprep.subr.mxu0 0.0
    %3650 = vmatpush1.xpose.msra.mxu0 0.0
    %3651 = vmatprep.subr.mxu0 0.0
    %3652 = vmatpush1.xpose.msra.mxu0 0.0
    %3653 = vmatprep.subr.mxu0 0.0
    %3654 = vmatpush1.xpose.msra.mxu0 0.0
    %3655 = vmatprep.subr.mxu0 0.0
    %3656 = vmatpush1.xpose.msra.mxu0 0.0
    %3657 = vmatprep.subr.mxu0 0.0
    %3658 = vmatpush1.xpose.msra.mxu0 0.0
    %3659 = vmatprep.subr.mxu0 0.0
    %3660 = vmatpush1.xpose.msra.mxu0 0.0
    %3661 = vmatprep.subr.mxu0 0.0
    %3662 = vmatpush1.xpose.msra.mxu0 0.0
    %3663 = vmatprep.mubr.f32.mxu0 0.0
    %3664 = vmatmul.mubr.f32.gmra.mrb[0].mxu0 %v3595
    %v3665 = vpop.f32.mrb[0].mxu0
    %v3666 = vadd.f32 %v206, %v3665
    %v3667 = vpop.f32.mrb[0].mxu0
    %3668 = vdwg.mxu0
    %v3669 = vsel %vm211, %v3666, -inf
    %3670 = vmax.xlane.f32.xlu0 %v3669
    %v3671 = vpop.xlane.xlu0 %3670
    %v3672 = vsub.f32 %v3666, %v3671
    %v3673 = vmul.f32 %v3672, 1.442695
    %v3674 = vpow.pop %v3673
    %v3675 = vsel %vm211, %v3674, 0.0
    %3676 = vadd.xlane.f32.xlu0 %v3675
    %v3677 = vpop.xlane.xlu0 %3676
    %v3678 = vrcp.pop %v3677
    %v3679 = vmul.f32 %v3674, %v3678
    %3680 = vrot.lane.b32.xlu0 %v3587, 64
    %v3681 = vpop.permute.xlu0 %3680
    %v3684 = vsel %vm211, %v3679, 0
    %3686 = vmatprep.subr.mxu0 0.0
    %3687 = vmatpush1.msra.mxu0 %v3681
    %3688 = vmatprep.subr.mxu0 0.0
    %3689 = vmatpush1.msra.mxu0 0.0
    %3690 = vmatprep.subr.mxu0 0.0
    %3691 = vmatpush1.msra.mxu0 0.0
    %3692 = vmatprep.subr.mxu0 0.0
    %3693 = vmatpush1.msra.mxu0 0.0
    %3694 = vmatprep.subr.mxu0 0.0
    %3695 = vmatpush1.msra.mxu0 0.0
    %3696 = vmatprep.subr.mxu0 0.0
    %3697 = vmatpush1.msra.mxu0 0.0
    %3698 = vmatprep.subr.mxu0 0.0
    %3699 = vmatpush1.msra.mxu0 0.0
    %3700 = vmatprep.subr.mxu0 0.0
    %3701 = vmatpush1.msra.mxu0 0.0
    %3702 = vmatprep.subr.mxu0 0.0
    %3703 = vmatpush1.msra.mxu0 0.0
    %3704 = vmatprep.subr.mxu0 0.0
    %3705 = vmatpush1.msra.mxu0 0.0
    %3706 = vmatprep.subr.mxu0 0.0
    %3707 = vmatpush1.msra.mxu0 0.0
    %3708 = vmatprep.subr.mxu0 0.0
    %3709 = vmatpush1.msra.mxu0 0.0
    %3710 = vmatprep.subr.mxu0 0.0
    %3711 = vmatpush1.msra.mxu0 0.0
    %3712 = vmatprep.subr.mxu0 0.0
    %3713 = vmatpush1.msra.mxu0 0.0
    %3714 = vmatprep.subr.mxu0 0.0
    %3715 = vmatpush1.msra.mxu0 0.0
    %3716 = vmatprep.subr.mxu0 0.0
    %3717 = vmatpush1.msra.mxu0 0.0
    %3718 = vmatprep.subr.mxu0 0.0
    %3719 = vmatpush1.msra.mxu0 0.0
    %3720 = vmatprep.subr.mxu0 0.0
    %3721 = vmatpush1.msra.mxu0 0.0
    %3722 = vmatprep.subr.mxu0 0.0
    %3723 = vmatpush1.msra.mxu0 0.0
    %3724 = vmatprep.subr.mxu0 0.0
    %3725 = vmatpush1.msra.mxu0 0.0
    %3726 = vmatprep.subr.mxu0 0.0
    %3727 = vmatpush1.msra.mxu0 0.0
    %3728 = vmatprep.subr.mxu0 0.0
    %3729 = vmatpush1.msra.mxu0 0.0
    %3730 = vmatprep.subr.mxu0 0.0
    %3731 = vmatpush1.msra.mxu0 0.0
    %3732 = vmatprep.subr.mxu0 0.0
    %3733 = vmatpush1.msra.mxu0 0.0
    %3734 = vmatprep.subr.mxu0 0.0
    %3735 = vmatpush1.msra.mxu0 0.0
    %3736 = vmatprep.subr.mxu0 0.0
    %3737 = vmatpush1.msra.mxu0 0.0
    %3738 = vmatprep.subr.mxu0 0.0
    %3739 = vmatpush1.msra.mxu0 0.0
    %3740 = vmatprep.subr.mxu0 0.0
    %3741 = vmatpush1.msra.mxu0 0.0
    %3742 = vmatprep.subr.mxu0 0.0
    %3743 = vmatpush1.msra.mxu0 0.0
    %3744 = vmatprep.subr.mxu0 0.0
    %3745 = vmatpush1.msra.mxu0 0.0
    %3746 = vmatprep.subr.mxu0 0.0
    %3747 = vmatpush1.msra.mxu0 0.0
    %3748 = vmatprep.subr.mxu0 0.0
    %3749 = vmatpush1.msra.mxu0 0.0
    %3750 = vmatprep.mubr.f32.mxu0 0.0
    %3751 = vmatmul.mubr.f32.gmra.mrb[0].mxu0 %v3684
    %v3752 = vpop.f32.mrb[0].mxu0
    %v3753 = vadd.f32 0.0, %v3752
    %v3754 = vpop.f32.mrb[0].mxu0
    %3755 = vdwg.mxu0
    %3756 = vrot.lane.b32.xlu0 %v3587, 120
    %v3757 = vpop.permute.xlu0 %3756
    %3758 = vrot.lane.b32.xlu0 %v3587, 88
    %v3759 = vpop.permute.xlu0 %3758
    %v3760 = vsel %vm211, %v3757, 0
    %v3762 = vsel %vm211, %v3759, 0
    %3764 = vmatprep.subr.mxu0 0.0
    %3765 = vmatpush1.xpose.msra.mxu0 %v3762
    %3766 = vmatprep.subr.mxu0 0.0
    %3767 = vmatpush1.xpose.msra.mxu0 0.0
    %3768 = vmatprep.subr.mxu0 0.0
    %3769 = vmatpush1.xpose.msra.mxu0 0.0
    %3770 = vmatprep.subr.mxu0 0.0
    %3771 = vmatpush1.xpose.msra.mxu0 0.0
    %3772 = vmatprep.subr.mxu0 0.0
    %3773 = vmatpush1.xpose.msra.mxu0 0.0
    %3774 = vmatprep.subr.mxu0 0.0
    %3775 = vmatpush1.xpose.msra.mxu0 0.0
    %3776 = vmatprep.subr.mxu0 0.0
    %3777 = vmatpush1.xpose.msra.mxu0 0.0
    %3778 = vmatprep.subr.mxu0 0.0
    %3779 = vmatpush1.xpose.msra.mxu0 0.0
    %3780 = vmatprep.subr.mxu0 0.0
    %3781 = vmatpush1.xpose.msra.mxu0 0.0
    %3782 = vmatprep.subr.mxu0 0.0
    %3783 = vmatpush1.xpose.msra.mxu0 0.0
    %3784 = vmatprep.subr.mxu0 0.0
    %3785 = vmatpush1.xpose.msra.mxu0 0.0
    %3786 = vmatprep.subr.mxu0 0.0
    %3787 = vmatpush1.xpose.msra.mxu0 0.0
    %3788 = vmatprep.subr.mxu0 0.0
    %3789 = vmatpush1.xpose.msra.mxu0 0.0
    %3790 = vmatprep.subr.mxu0 0.0
    %3791 = vmatpush1.xpose.msra.mxu0 0.0
    %3792 = vmatprep.subr.mxu0 0.0
    %3793 = vmatpush1.xpose.msra.mxu0 0.0
    %3794 = vmatprep.subr.mxu0 0.0
    %3795 = vmatpush1.xpose.msra.mxu0 0.0
    %3796 = vmatprep.subr.mxu0 0.0
    %3797 = vmatpush1.xpose.msra.mxu0 0.0
    %3798 = vmatprep.subr.mxu0 0.0
    %3799 = vmatpush1.xpose.msra.mxu0 0.0
    %3800 = vmatprep.subr.mxu0 0.0
    %3801 = vmatpush1.xpose.msra.mxu0 0.0
    %3802 = vmatprep.subr.mxu0 0.0
    %3803 = vmatpush1.xpose.msra.mxu0 0.0
    %3804 = vmatprep.subr.mxu0 0.0
    %3805 = vmatpush1.xpose.msra.mxu0 0.0
    %3806 = vmatprep.subr.mxu0 0.0
    %3807 = vmatpush1.xpose.msra.mxu0 0.0
    %3808 = vmatprep.subr.mxu0 0.0
    %3809 = vmatpush1.xpose.msra.mxu0 0.0
    %3810 = vmatprep.subr.mxu0 0.0
    %3811 = vmatpush1.xpose.msra.mxu0 0.0
    %3812 = vmatprep.subr.mxu0 0.0
    %3813 = vmatpush1.xpose.msra.mxu0 0.0
    %3814 = vmatprep.subr.mxu0 0.0
    %3815 = vmatpush1.xpose.msra.mxu0 0.0
    %3816 = vmatprep.subr.mxu0 0.0
    %3817 = vmatpush1.xpose.msra.mxu0 0.0
    %3818 = vmatprep.subr.mxu0 0.0
    %3819 = vmatpush1.xpose.msra.mxu0 0.0
    %3820 = vmatprep.subr.mxu0 0.0
    %3821 = vmatpush1.xpose.msra.mxu0 0.0
    %3822 = vmatprep.subr.mxu0 0.0
    %3823 = vmatpush1.xpose.msra.mxu0 0.0
    %3824 = vmatprep.subr.mxu0 0.0
    %3825 = vmatpush1.xpose.msra.mxu0 0.0
    %3826 = vmatprep.subr.mxu0 0.0
    %3827 = vmatpush1.xpose.msra.mxu0 0.0
    %3828 = vmatprep.mubr.f32.mxu0 0.0
    %3829 = vmatmul.mubr.f32.gmra.mrb[0].mxu0 %v3760
    %v3830 = vpop.f32.mrb[0].mxu0
    %v3831 = vadd.f32 %v206, %v3830
    %v3832 = vpop.f32.mrb[0].mxu0
    %3833 = vdwg.mxu0
    %v3834 = vsel %vm211, %v3831, -inf
    %3835 = vmax.xlane.f32.xlu0 %v3834
    %v3836 = vpop.xlane.xlu0 %3835
    %v3837 = vsub.f32 %v3831, %v3836
    %v3838 = vmul.f32 %v3837, 1.442695
    %v3839 = vpow.pop %v3838
    %v3840 = vsel %vm211, %v3839, 0.0
    %3841 = vadd.xlane.f32.xlu0 %v3840
    %v3842 = vpop.xlane.xlu0 %3841
    %v3843 = vrcp.pop %v3842
    %v3844 = vmul.f32 %v3839, %v3843
    %3845 = vrot.lane.b32.xlu0 %v3587, 56
    %v3846 = vpop.permute.xlu0 %3845
    %v3849 = vsel %vm211, %v3844, 0
    %3851 = vmatprep.subr.mxu0 0.0
    %3852 = vmatpush1.msra.mxu0 %v3846
    %3853 = vmatprep.subr.mxu0 0.0
    %3854 = vmatpush1.msra.mxu0 0.0
    %3855 = vmatprep.subr.mxu0 0.0
    %3856 = vmatpush1.msra.mxu0 0.0
    %3857 = vmatprep.subr.mxu0 0.0
    %3858 = vmatpush1.msra.mxu0 0.0
    %3859 = vmatprep.subr.mxu0 0.0
    %3860 = vmatpush1.msra.mxu0 0.0
    %3861 = vmatprep.subr.mxu0 0.0
    %3862 = vmatpush1.msra.mxu0 0.0
    %3863 = vmatprep.subr.mxu0 0.0
    %3864 = vmatpush1.msra.mxu0 0.0
    %3865 = vmatprep.subr.mxu0 0.0
    %3866 = vmatpush1.msra.mxu0 0.0
    %3867 = vmatprep.subr.mxu0 0.0
    %3868 = vmatpush1.msra.mxu0 0.0
    %3869 = vmatprep.subr.mxu0 0.0
    %3870 = vmatpush1.msra.mxu0 0.0
    %3871 = vmatprep.subr.mxu0 0.0
    %3872 = vmatpush1.msra.mxu0 0.0
    %3873 = vmatprep.subr.mxu0 0.0
    %3874 = vmatpush1.msra.mxu0 0.0
    %3875 = vmatprep.subr.mxu0 0.0
    %3876 = vmatpush1.msra.mxu0 0.0
    %3877 = vmatprep.subr.mxu0 0.0
    %3878 = vmatpush1.msra.mxu0 0.0
    %3879 = vmatprep.subr.mxu0 0.0
    %3880 = vmatpush1.msra.mxu0 0.0
    %3881 = vmatprep.subr.mxu0 0.0
    %3882 = vmatpush1.msra.mxu0 0.0
    %3883 = vmatprep.subr.mxu0 0.0
    %3884 = vmatpush1.msra.mxu0 0.0
    %3885 = vmatprep.subr.mxu0 0.0
    %3886 = vmatpush1.msra.mxu0 0.0
    %3887 = vmatprep.subr.mxu0 0.0
    %3888 = vmatpush1.msra.mxu0 0.0
    %3889 = vmatprep.subr.mxu0 0.0
    %3890 = vmatpush1.msra.mxu0 0.0
    %3891 = vmatprep.subr.mxu0 0.0
    %3892 = vmatpush1.msra.mxu0 0.0
    %3893 = vmatprep.subr.mxu0 0.0
    %3894 = vmatpush1.msra.mxu0 0.0
    %3895 = vmatprep.subr.mxu0 0.0
    %3896 = vmatpush1.msra.mxu0 0.0
    %3897 = vmatprep.subr.mxu0 0.0
    %3898 = vmatpush1.msra.mxu0 0.0
    %3899 = vmatprep.subr.mxu0 0.0
    %3900 = vmatpush1.msra.mxu0 0.0
    %3901 = vmatprep.subr.mxu0 0.0
    %3902 = vmatpush1.msra.mxu0 0.0
    %3903 = vmatprep.subr.mxu0 0.0
    %3904 = vmatpush1.msra.mxu0 0.0
    %3905 = vmatprep.subr.mxu0 0.0
    %3906 = vmatpush1.msra.mxu0 0.0
    %3907 = vmatprep.subr.mxu0 0.0
    %3908 = vmatpush1.msra.mxu0 0.0
    %3909 = vmatprep.subr.mxu0 0.0
    %3910 = vmatpush1.msra.mxu0 0.0
    %3911 = vmatprep.subr.mxu0 0.0
    %3912 = vmatpush1.msra.mxu0 0.0
    %3913 = vmatprep.subr.mxu0 0.0
    %3914 = vmatpush1.msra.mxu0 0.0
    %3915 = vmatprep.mubr.f32.mxu0 0.0
    %3916 = vmatmul.mubr.f32.gmra.mrb[0].mxu0 %v3849
    %v3917 = vpop.f32.mrb[0].mxu0
    %v3918 = vadd.f32 0.0, %v3917
    %v3919 = vpop.f32.mrb[0].mxu0
    %3920 = vdwg.mxu0
    %3921 = vrot.lane.b32.xlu0 %v3587, 112
    %v3922 = vpop.permute.xlu0 %3921
    %3923 = vrot.lane.b32.xlu0 %v3587, 80
    %v3924 = vpop.permute.xlu0 %3923
    %v3925 = vsel %vm211, %v3922, 0
    %v3927 = vsel %vm211, %v3924, 0
    %3929 = vmatprep.subr.mxu0 0.0
    %3930 = vmatpush1.xpose.msra.mxu0 %v3927
    %3931 = vmatprep.subr.mxu0 0.0
    %3932 = vmatpush1.xpose.msra.mxu0 0.0
    %3933 = vmatprep.subr.mxu0 0.0
    %3934 = vmatpush1.xpose.msra.mxu0 0.0
    %3935 = vmatprep.subr.mxu0 0.0
    %3936 = vmatpush1.xpose.msra.mxu0 0.0
    %3937 = vmatprep.subr.mxu0 0.0
    %3938 = vmatpush1.xpose.msra.mxu0 0.0
    %3939 = vmatprep.subr.mxu0 0.0
    %3940 = vmatpush1.xpose.msra.mxu0 0.0
    %3941 = vmatprep.subr.mxu0 0.0
    %3942 = vmatpush1.xpose.msra.mxu0 0.0
    %3943 = vmatprep.subr.mxu0 0.0
    %3944 = vmatpush1.xpose.msra.mxu0 0.0
    %3945 = vmatprep.subr.mxu0 0.0
    %3946 = vmatpush1.xpose.msra.mxu0 0.0
    %3947 = vmatprep.subr.mxu0 0.0
    %3948 = vmatpush1.xpose.msra.mxu0 0.0
    %3949 = vmatprep.subr.mxu0 0.0
    %3950 = vmatpush1.xpose.msra.mxu0 0.0
    %3951 = vmatprep.subr.mxu0 0.0
    %3952 = vmatpush1.xpose.msra.mxu0 0.0
    %3953 = vmatprep.subr.mxu0 0.0
    %3954 = vmatpush1.xpose.msra.mxu0 0.0
    %3955 = vmatprep.subr.mxu0 0.0
    %3956 = vmatpush1.xpose.msra.mxu0 0.0
    %3957 = vmatprep.subr.mxu0 0.0
    %3958 = vmatpush1.xpose.msra.mxu0 0.0
    %3959 = vmatprep.subr.mxu0 0.0
    %3960 = vmatpush1.xpose.msra.mxu0 0.0
    %3961 = vmatprep.subr.mxu0 0.0
    %3962 = vmatpush1.xpose.msra.mxu0 0.0
    %3963 = vmatprep.subr.mxu0 0.0
    %3964 = vmatpush1.xpose.msra.mxu0 0.0
    %3965 = vmatprep.subr.mxu0 0.0
    %3966 = vmatpush1.xpose.msra.mxu0 0.0
    %3967 = vmatprep.subr.mxu0 0.0
    %3968 = vmatpush1.xpose.msra.mxu0 0.0
    %3969 = vmatprep.subr.mxu0 0.0
    %3970 = vmatpush1.xpose.msra.mxu0 0.0
    %3971 = vmatprep.subr.mxu0 0.0
    %3972 = vmatpush1.xpose.msra.mxu0 0.0
    %3973 = vmatprep.subr.mxu0 0.0
    %3974 = vmatpush1.xpose.msra.mxu0 0.0
    %3975 = vmatprep.subr.mxu0 0.0
    %3976 = vmatpush1.xpose.msra.mxu0 0.0
    %3977 = vmatprep.subr.mxu0 0.0
    %3978 = vmatpush1.xpose.msra.mxu0 0.0
    %3979 = vmatprep.subr.mxu0 0.0
    %3980 = vmatpush1.xpose.msra.mxu0 0.0
    %3981 = vmatprep.subr.mxu0 0.0
    %3982 = vmatpush1.xpose.msra.mxu0 0.0
    %3983 = vmatprep.subr.mxu0 0.0
    %3984 = vmatpush1.xpose.msra.mxu0 0.0
    %3985 = vmatprep.subr.mxu0 0.0
    %3986 = vmatpush1.xpose.msra.mxu0 0.0
    %3987 = vmatprep.subr.mxu0 0.0
    %3988 = vmatpush1.xpose.msra.mxu0 0.0
    %3989 = vmatprep.subr.mxu0 0.0
    %3990 = vmatpush1.xpose.msra.mxu0 0.0
    %3991 = vmatprep.subr.mxu0 0.0
    %3992 = vmatpush1.xpose.msra.mxu0 0.0
    %3993 = vmatprep.mubr.f32.mxu0 0.0
    %3994 = vmatmul.mubr.f32.gmra.mrb[0].mxu0 %v3925
    %v3995 = vpop.f32.mrb[0].mxu0
    %v3996 = vadd.f32 %v206, %v3995
    %v3997 = vpop.f32.mrb[0].mxu0
    %3998 = vdwg.mxu0
    %v3999 = vsel %vm211, %v3996, -inf
    %4000 = vmax.xlane.f32.xlu0 %v3999
    %v4001 = vpop.xlane.xlu0 %4000
    %v4002 = vsub.f32 %v3996, %v4001
    %v4003 = vmul.f32 %v4002, 1.442695
    %v4004 = vpow.pop %v4003
    %v4005 = vsel %vm211, %v4004, 0.0
    %4006 = vadd.xlane.f32.xlu0 %v4005
    %v4007 = vpop.xlane.xlu0 %4006
    %v4008 = vrcp.pop %v4007
    %v4009 = vmul.f32 %v4004, %v4008
    %4010 = vrot.lane.b32.xlu0 %v3587, 48
    %v4011 = vpop.permute.xlu0 %4010
    %v4014 = vsel %vm211, %v4009, 0
    %4016 = vmatprep.subr.mxu0 0.0
    %4017 = vmatpush1.msra.mxu0 %v4011
    %4018 = vmatprep.subr.mxu0 0.0
    %4019 = vmatpush1.msra.mxu0 0.0
    %4020 = vmatprep.subr.mxu0 0.0
    %4021 = vmatpush1.msra.mxu0 0.0
    %4022 = vmatprep.subr.mxu0 0.0
    %4023 = vmatpush1.msra.mxu0 0.0
    %4024 = vmatprep.subr.mxu0 0.0
    %4025 = vmatpush1.msra.mxu0 0.0
    %4026 = vmatprep.subr.mxu0 0.0
    %4027 = vmatpush1.msra.mxu0 0.0
    %4028 = vmatprep.subr.mxu0 0.0
    %4029 = vmatpush1.msra.mxu0 0.0
    %4030 = vmatprep.subr.mxu0 0.0
    %4031 = vmatpush1.msra.mxu0 0.0
    %4032 = vmatprep.subr.mxu0 0.0
    %4033 = vmatpush1.msra.mxu0 0.0
    %4034 = vmatprep.subr.mxu0 0.0
    %4035 = vmatpush1.msra.mxu0 0.0
    %4036 = vmatprep.subr.mxu0 0.0
    %4037 = vmatpush1.msra.mxu0 0.0
    %4038 = vmatprep.subr.mxu0 0.0
    %4039 = vmatpush1.msra.mxu0 0.0
    %4040 = vmatprep.subr.mxu0 0.0
    %4041 = vmatpush1.msra.mxu0 0.0
    %4042 = vmatprep.subr.mxu0 0.0
    %4043 = vmatpush1.msra.mxu0 0.0
    %4044 = vmatprep.subr.mxu0 0.0
    %4045 = vmatpush1.msra.mxu0 0.0
    %4046 = vmatprep.subr.mxu0 0.0
    %4047 = vmatpush1.msra.mxu0 0.0
    %4048 = vmatprep.subr.mxu0 0.0
    %4049 = vmatpush1.msra.mxu0 0.0
    %4050 = vmatprep.subr.mxu0 0.0
    %4051 = vmatpush1.msra.mxu0 0.0
    %4052 = vmatprep.subr.mxu0 0.0
    %4053 = vmatpush1.msra.mxu0 0.0
    %4054 = vmatprep.subr.mxu0 0.0
    %4055 = vmatpush1.msra.mxu0 0.0
    %4056 = vmatprep.subr.mxu0 0.0
    %4057 = vmatpush1.msra.mxu0 0.0
    %4058 = vmatprep.subr.mxu0 0.0
    %4059 = vmatpush1.msra.mxu0 0.0
    %4060 = vmatprep.subr.mxu0 0.0
    %4061 = vmatpush1.msra.mxu0 0.0
    %4062 = vmatprep.subr.mxu0 0.0
    %4063 = vmatpush1.msra.mxu0 0.0
    %4064 = vmatprep.subr.mxu0 0.0
    %4065 = vmatpush1.msra.mxu0 0.0
    %4066 = vmatprep.subr.mxu0 0.0
    %4067 = vmatpush1.msra.mxu0 0.0
    %4068 = vmatprep.subr.mxu0 0.0
    %4069 = vmatpush1.msra.mxu0 0.0
    %4070 = vmatprep.subr.mxu0 0.0
    %4071 = vmatpush1.msra.mxu0 0.0
    %4072 = vmatprep.subr.mxu0 0.0
    %4073 = vmatpush1.msra.mxu0 0.0
    %4074 = vmatprep.subr.mxu0 0.0
    %4075 = vmatpush1.msra.mxu0 0.0
    %4076 = vmatprep.subr.mxu0 0.0
    %4077 = vmatpush1.msra.mxu0 0.0
    %4078 = vmatprep.subr.mxu0 0.0
    %4079 = vmatpush1.msra.mxu0 0.0
    %4080 = vmatprep.mubr.f32.mxu0 0.0
    %4081 = vmatmul.mubr.f32.gmra.mrb[0].mxu0 %v4014
    %v4082 = vpop.f32.mrb[0].mxu0
    %v4083 = vadd.f32 0.0, %v4082
    %v4084 = vpop.f32.mrb[0].mxu0
    %4085 = vdwg.mxu0
    %4086 = vrot.lane.b32.xlu0 %v3587, 104
    %v4087 = vpop.permute.xlu0 %4086
    %4088 = vrot.lane.b32.xlu0 %v3587, 72
    %v4089 = vpop.permute.xlu0 %4088
    %v4090 = vsel %vm211, %v4087, 0
    %v4092 = vsel %vm211, %v4089, 0
    %4094 = vmatprep.subr.mxu0 0.0
    %4095 = vmatpush1.xpose.msra.mxu0 %v4092
    %4096 = vmatprep.subr.mxu0 0.0
    %4097 = vmatpush1.xpose.msra.mxu0 0.0
    %4098 = vmatprep.subr.mxu0 0.0
    %4099 = vmatpush1.xpose.msra.mxu0 0.0
    %4100 = vmatprep.subr.mxu0 0.0
    %4101 = vmatpush1.xpose.msra.mxu0 0.0
    %4102 = vmatprep.subr.mxu0 0.0
    %4103 = vmatpush1.xpose.msra.mxu0 0.0
    %4104 = vmatprep.subr.mxu0 0.0
    %4105 = vmatpush1.xpose.msra.mxu0 0.0
    %4106 = vmatprep.subr.mxu0 0.0
    %4107 = vmatpush1.xpose.msra.mxu0 0.0
    %4108 = vmatprep.subr.mxu0 0.0
    %4109 = vmatpush1.xpose.msra.mxu0 0.0
    %4110 = vmatprep.subr.mxu0 0.0
    %4111 = vmatpush1.xpose.msra.mxu0 0.0
    %4112 = vmatprep.subr.mxu0 0.0
    %4113 = vmatpush1.xpose.msra.mxu0 0.0
    %4114 = vmatprep.subr.mxu0 0.0
    %4115 = vmatpush1.xpose.msra.mxu0 0.0
    %4116 = vmatprep.subr.mxu0 0.0
    %4117 = vmatpush1.xpose.msra.mxu0 0.0
    %4118 = vmatprep.subr.mxu0 0.0
    %4119 = vmatpush1.xpose.msra.mxu0 0.0
    %4120 = vmatprep.subr.mxu0 0.0
    %4121 = vmatpush1.xpose.msra.mxu0 0.0
    %4122 = vmatprep.subr.mxu0 0.0
    %4123 = vmatpush1.xpose.msra.mxu0 0.0
    %4124 = vmatprep.subr.mxu0 0.0
    %4125 = vmatpush1.xpose.msra.mxu0 0.0
    %4126 = vmatprep.subr.mxu0 0.0
    %4127 = vmatpush1.xpose.msra.mxu0 0.0
    %4128 = vmatprep.subr.mxu0 0.0
    %4129 = vmatpush1.xpose.msra.mxu0 0.0
    %4130 = vmatprep.subr.mxu0 0.0
    %4131 = vmatpush1.xpose.msra.mxu0 0.0
    %4132 = vmatprep.subr.mxu0 0.0
    %4133 = vmatpush1.xpose.msra.mxu0 0.0
    %4134 = vmatprep.subr.mxu0 0.0
    %4135 = vmatpush1.xpose.msra.mxu0 0.0
    %4136 = vmatprep.subr.mxu0 0.0
    %4137 = vmatpush1.xpose.msra.mxu0 0.0
    %4138 = vmatprep.subr.mxu0 0.0
    %4139 = vmatpush1.xpose.msra.mxu0 0.0
    %4140 = vmatprep.subr.mxu0 0.0
    %4141 = vmatpush1.xpose.msra.mxu0 0.0
    %4142 = vmatprep.subr.mxu0 0.0
    %4143 = vmatpush1.xpose.msra.mxu0 0.0
    %4144 = vmatprep.subr.mxu0 0.0
    %4145 = vmatpush1.xpose.msra.mxu0 0.0
    %4146 = vmatprep.subr.mxu0 0.0
    %4147 = vmatpush1.xpose.msra.mxu0 0.0
    %4148 = vmatprep.subr.mxu0 0.0
    %4149 = vmatpush1.xpose.msra.mxu0 0.0
    %4150 = vmatprep.subr.mxu0 0.0
    %4151 = vmatpush1.xpose.msra.mxu0 0.0
    %4152 = vmatprep.subr.mxu0 0.0
    %4153 = vmatpush1.xpose.msra.mxu0 0.0
    %4154 = vmatprep.subr.mxu0 0.0
    %4155 = vmatpush1.xpose.msra.mxu0 0.0
    %4156 = vmatprep.subr.mxu0 0.0
    %4157 = vmatpush1.xpose.msra.mxu0 0.0
    %4158 = vmatprep.mubr.f32.mxu0 0.0
    %4159 = vmatmul.mubr.f32.gmra.mrb[0].mxu0 %v4090
    %v4160 = vpop.f32.mrb[0].mxu0
    %v4161 = vadd.f32 %v206, %v4160
    %v4162 = vpop.f32.mrb[0].mxu0
    %4163 = vdwg.mxu0
    %v4164 = vsel %vm211, %v4161, -inf
    %4165 = vmax.xlane.f32.xlu0 %v4164
    %v4166 = vpop.xlane.xlu0 %4165
    %v4167 = vsub.f32 %v4161, %v4166
    %v4168 = vmul.f32 %v4167, 1.442695
    %v4169 = vpow.pop %v4168
    %v4170 = vsel %vm211, %v4169, 0.0
    %4171 = vadd.xlane.f32.xlu0 %v4170
    %v4172 = vpop.xlane.xlu0 %4171
    %v4173 = vrcp.pop %v4172
    %v4174 = vmul.f32 %v4169, %v4173
    %4175 = vrot.lane.b32.xlu0 %v3587, 40
    %v4176 = vpop.permute.xlu0 %4175
    %v4179 = vsel %vm211, %v4174, 0
    %4181 = vmatprep.subr.mxu0 0.0
    %4182 = vmatpush1.msra.mxu0 %v4176
    %4183 = vmatprep.subr.mxu0 0.0
    %4184 = vmatpush1.msra.mxu0 0.0
    %4185 = vmatprep.subr.mxu0 0.0
    %4186 = vmatpush1.msra.mxu0 0.0
    %4187 = vmatprep.subr.mxu0 0.0
    %4188 = vmatpush1.msra.mxu0 0.0
    %4189 = vmatprep.subr.mxu0 0.0
    %4190 = vmatpush1.msra.mxu0 0.0
    %4191 = vmatprep.subr.mxu0 0.0
    %4192 = vmatpush1.msra.mxu0 0.0
    %4193 = vmatprep.subr.mxu0 0.0
    %4194 = vmatpush1.msra.mxu0 0.0
    %4195 = vmatprep.subr.mxu0 0.0
    %4196 = vmatpush1.msra.mxu0 0.0
    %4197 = vmatprep.subr.mxu0 0.0
    %4198 = vmatpush1.msra.mxu0 0.0
    %4199 = vmatprep.subr.mxu0 0.0
    %4200 = vmatpush1.msra.mxu0 0.0
    %4201 = vmatprep.subr.mxu0 0.0
    %4202 = vmatpush1.msra.mxu0 0.0
    %4203 = vmatprep.subr.mxu0 0.0
    %4204 = vmatpush1.msra.mxu0 0.0
    %4205 = vmatprep.subr.mxu0 0.0
    %4206 = vmatpush1.msra.mxu0 0.0
    %4207 = vmatprep.subr.mxu0 0.0
    %4208 = vmatpush1.msra.mxu0 0.0
    %4209 = vmatprep.subr.mxu0 0.0
    %4210 = vmatpush1.msra.mxu0 0.0
    %4211 = vmatprep.subr.mxu0 0.0
    %4212 = vmatpush1.msra.mxu0 0.0
    %4213 = vmatprep.subr.mxu0 0.0
    %4214 = vmatpush1.msra.mxu0 0.0
    %4215 = vmatprep.subr.mxu0 0.0
    %4216 = vmatpush1.msra.mxu0 0.0
    %4217 = vmatprep.subr.mxu0 0.0
    %4218 = vmatpush1.msra.mxu0 0.0
    %4219 = vmatprep.subr.mxu0 0.0
    %4220 = vmatpush1.msra.mxu0 0.0
    %4221 = vmatprep.subr.mxu0 0.0
    %4222 = vmatpush1.msra.mxu0 0.0
    %4223 = vmatprep.subr.mxu0 0.0
    %4224 = vmatpush1.msra.mxu0 0.0
    %4225 = vmatprep.subr.mxu0 0.0
    %4226 = vmatpush1.msra.mxu0 0.0
    %4227 = vmatprep.subr.mxu0 0.0
    %4228 = vmatpush1.msra.mxu0 0.0
    %4229 = vmatprep.subr.mxu0 0.0
    %4230 = vmatpush1.msra.mxu0 0.0
    %4231 = vmatprep.subr.mxu0 0.0
    %4232 = vmatpush1.msra.mxu0 0.0
    %4233 = vmatprep.subr.mxu0 0.0
    %4234 = vmatpush1.msra.mxu0 0.0
    %4235 = vmatprep.subr.mxu0 0.0
    %4236 = vmatpush1.msra.mxu0 0.0
    %4237 = vmatprep.subr.mxu0 0.0
    %4238 = vmatpush1.msra.mxu0 0.0
    %4239 = vmatprep.subr.mxu0 0.0
    %4240 = vmatpush1.msra.mxu0 0.0
    %4241 = vmatprep.subr.mxu0 0.0
    %4242 = vmatpush1.msra.mxu0 0.0
    %4243 = vmatprep.subr.mxu0 0.0
    %4244 = vmatpush1.msra.mxu0 0.0
    %4245 = vmatprep.mubr.f32.mxu0 0.0
    %4246 = vmatmul.mubr.f32.gmra.mrb[0].mxu0 %v4179
    %v4247 = vpop.f32.mrb[0].mxu0
    %v4248 = vadd.f32 0.0, %v4247
    %v4249 = vpop.f32.mrb[0].mxu0
    %4250 = vdwg.mxu0
    %4252 = vrot.lane.b32.xlu0 %v3918, 8
    %v4253 = vpop.permute.xlu0 %4252
    %4256 = vrot.lane.b32.xlu0 %v4083, 16
    %v4257 = vpop.permute.xlu0 %4256
    %4260 = vrot.lane.b32.xlu0 %v4248, 24
    %v4261 = vpop.permute.xlu0 %4260
    %v4263 = vsel %vm211, %v3753, %v4253
    %v4264 = vsel %vm881, %v4263, %v4257
    %v4265 = vsel %vm883, %v4264, %v4261
    %v4266 = vpack.c.bf16 %v4265, %v4265
    %s4267 = scalar_lea.vmem %s9, 16
    %v4268 = vld [vmem:[%s4267] sm:$0xf]
    %v4269 = vld [vmem:[%s4267 + $0x4] sm:$0xf]
    %v4270 = vld [vmem:[%s4267 + $0x8] sm:$0xf]
    %v4271 = vld [vmem:[%s4267 + $0xc] sm:$0xf]
    %s4272 = scalar_lea.vmem %s11, 1
    %v4273 = vld [vmem:[%s4272] sm:$0x1]
    %v4275 = vlaneseq
    %v4276 = vshrl.u32 %v4275, 7
    %v4277 = vsub.s32 0, %v4276
    %v4278 = vrot.slane %v4273, %v4277
    %v4284 = vunpack.c.l.b16 %v4268
    %v4285 = vunpack.c.l.b16 %v4269
    %v4286 = vunpack.c.l.b16 %v4270
    %v4287 = vunpack.c.l.b16 %v4271
    %v4288 = vpack.c.b16 %v4285, %v4284
    %v4289 = vpack.c.b16 %v4287, %v4286
    %v4293 = vsel %vm158, %v4266, 0
    %4295 = vmatprep.subr.bf16.mxu0 0
    %4296 = vmatpush1.bf16.msra.mxu0 %v4288
    %4297 = vmatprep.subr.bf16.mxu0 0
    %4298 = vmatpush1.bf16.msra.mxu0 %v4289
    %4299 = vmatprep.subr.bf16.mxu0 0
    %4300 = vmatpush1.bf16.msra.mxu0 0
    %4301 = vmatprep.subr.bf16.mxu0 0
    %4302 = vmatpush1.bf16.msra.mxu0 0
    %4303 = vmatprep.subr.bf16.mxu0 0
    %4304 = vmatpush1.bf16.msra.mxu0 0
    %4305 = vmatprep.subr.bf16.mxu0 0
    %4306 = vmatpush1.bf16.msra.mxu0 0
    %4307 = vmatprep.subr.bf16.mxu0 0
    %4308 = vmatpush1.bf16.msra.mxu0 0
    %4309 = vmatprep.subr.bf16.mxu0 0
    %4310 = vmatpush1.bf16.msra.mxu0 0
    %4311 = vmatprep.subr.bf16.mxu0 0
    %4312 = vmatpush1.bf16.msra.mxu0 0
    %4313 = vmatprep.subr.bf16.mxu0 0
    %4314 = vmatpush1.bf16.msra.mxu0 0
    %4315 = vmatprep.subr.bf16.mxu0 0
    %4316 = vmatpush1.bf16.msra.mxu0 0
    %4317 = vmatprep.subr.bf16.mxu0 0
    %4318 = vmatpush1.bf16.msra.mxu0 0
    %4319 = vmatprep.subr.bf16.mxu0 0
    %4320 = vmatpush1.bf16.msra.mxu0 0
    %4321 = vmatprep.subr.bf16.mxu0 0
    %4322 = vmatpush1.bf16.msra.mxu0 0
    %4323 = vmatprep.subr.bf16.mxu0 0
    %4324 = vmatpush1.bf16.msra.mxu0 0
    %4325 = vmatprep.subr.bf16.mxu0 0
    %4326 = vmatpush1.bf16.msra.mxu0 0
    %4327 = vmatprep.mubr.bf16.mxu0 0
    %4328 = vmatmul.mubr.bf16.gmra.mrb[0].mxu0 %v4293
    %v4329 = vpop.f32.mrb[0].mxu0
    %v4330 = vadd.f32 %v4278, %v4329
    %v4331 = vpop.f32.mrb[0].mxu0
    %v4332 = vpop.f32.mrb[0].mxu0
    %v4333 = vpop.f32.mrb[0].mxu0
    %4334 = vdwg.mxu0
    %v4335 = vadd.f32 %v3522, %v4330
    %s4336 = scalar_lea.vmem %s33, 1
    %v4337 = vld [vmem:[%s4336] sm:$0x1]
    %s4338 = scalar_lea.vmem %s35, 1
    %v4339 = vld [vmem:[%s4338] sm:$0x1]
    %v4340 = vsel %vm158, %v4335, 0.0
    %4341 = vadd.xlane.f32.xlu0 %v4340
    %v4342 = vpop.xlane.xlu0 %4341
    %v4343 = vmul.f32 %v4342, %v958
    %v4344 = vsub.f32 %v4335, %v4343
    %v4345 = vmul.f32 %v4344, %v4344
    %v4346 = vsel %vm158, %v4345, 0.0
    %4347 = vadd.xlane.f32.xlu0 %v4346
    %v4348 = vpop.xlane.xlu0 %4347
    %v4349 = vmul.f32 %v4348, %v958
    %v4350 = vadd.f32 %v4349, 1e-05
    %v4351 = vrsqrt.pop %v4350
    %v4352 = vmul.f32 %v4344, %v4351
    %v4354 = vlaneseq
    %v4355 = vshrl.u32 %v4354, 7
    %v4356 = vsub.s32 0, %v4355
    %v4357 = vrot.slane %v4337, %v4356
    %v4359 = vmul.f32 %v4352, %v4357
    %v4361 = vlaneseq
    %v4362 = vshrl.u32 %v4361, 7
    %v4363 = vsub.s32 0, %v4362
    %v4364 = vrot.slane %v4339, %v4363
    %v4366 = vadd.f32 %v4359, %v4364
    %v4367 = vpack.c.bf16 %v4366, %v4366
    %s4368 = scalar_lea.vmem %s13, 16
    %v4369 = vld [vmem:[%s4368] sm:$0xf]
    %v4370 = vld [vmem:[%s4368 + $0x4] sm:$0xf]
    %v4371 = vld [vmem:[%s4368 + $0x8] sm:$0xf]
    %v4372 = vld [vmem:[%s4368 + $0xc] sm:$0xf]
    %s4373 = scalar_lea.vmem %s15, 1
    %v4374 = vld [vmem:[%s4373] sm:$0x1]
    %v4376 = vlaneseq
    %v4377 = vshrl.u32 %v4376, 7
    %v4378 = vsub.s32 0, %v4377
    %v4379 = vrot.slane %v4374, %v4378
    %v4385 = vunpack.c.l.b16 %v4369
    %v4386 = vunpack.c.l.b16 %v4370
    %v4387 = vunpack.c.l.b16 %v4371
    %v4388 = vunpack.c.l.b16 %v4372
    %v4389 = vpack.c.b16 %v4386, %v4385
    %v4390 = vpack.c.b16 %v4388, %v4387
    %v4394 = vsel %vm158, %v4367, 0
    %4396 = vmatprep.subr.bf16.mxu0 0
    %4397 = vmatpush1.bf16.msra.mxu0 %v4389
    %4398 = vmatprep.subr.bf16.mxu0 0
    %4399 = vmatpush1.bf16.msra.mxu0 %v4390
    %4400 = vmatprep.subr.bf16.mxu0 0
    %4401 = vmatpush1.bf16.msra.mxu0 0
    %4402 = vmatprep.subr.bf16.mxu0 0
    %4403 = vmatpush1.bf16.msra.mxu0 0
    %4404 = vmatprep.subr.bf16.mxu0 0
    %4405 = vmatpush1.bf16.msra.mxu0 0
    %4406 = vmatprep.subr.bf16.mxu0 0
    %4407 = vmatpush1.bf16.msra.mxu0 0
    %4408 = vmatprep.subr.bf16.mxu0 0
    %4409 = vmatpush1.bf16.msra.mxu0 0
    %4410 = vmatprep.subr.bf16.mxu0 0
    %4411 = vmatpush1.bf16.msra.mxu0 0
    %4412 = vmatprep.subr.bf16.mxu0 0
    %4413 = vmatpush1.bf16.msra.mxu0 0
    %4414 = vmatprep.subr.bf16.mxu0 0
    %4415 = vmatpush1.bf16.msra.mxu0 0
    %4416 = vmatprep.subr.bf16.mxu0 0
    %4417 = vmatpush1.bf16.msra.mxu0 0
    %4418 = vmatprep.subr.bf16.mxu0 0
    %4419 = vmatpush1.bf16.msra.mxu0 0
    %4420 = vmatprep.subr.bf16.mxu0 0
    %4421 = vmatpush1.bf16.msra.mxu0 0
    %4422 = vmatprep.subr.bf16.mxu0 0
    %4423 = vmatpush1.bf16.msra.mxu0 0
    %4424 = vmatprep.subr.bf16.mxu0 0
    %4425 = vmatpush1.bf16.msra.mxu0 0
    %4426 = vmatprep.subr.bf16.mxu0 0
    %4427 = vmatpush1.bf16.msra.mxu0 0
    %4428 = vmatprep.mubr.bf16.mxu0 0
    %4429 = vmatmul.mubr.bf16.gmra.mrb[0].mxu0 %v4394
    %v4430 = vpop.f32.mrb[0].mxu0
    %v4431 = vadd.f32 %v4379, %v4430
    %v4432 = vpop.f32.mrb[0].mxu0
    %v4433 = vpop.f32.mrb[0].mxu0
    %v4434 = vpop.f32.mrb[0].mxu0
    %4435 = vdwg.mxu0
    %s4436 = scalar_lea.vmem %s17, 32
    %v4437 = vld [vmem:[%s4436] sm:$0xff]
    %v4438 = vld [vmem:[%s4436 + $0x8] sm:$0xff]
    %v4439 = vld [vmem:[%s4436 + $0x10] sm:$0xff]
    %v4440 = vld [vmem:[%s4436 + $0x18] sm:$0xff]
    %v4442 = vsel %vm158, %v4431, 0
    %4444 = vmatprep.subr.mxu0 0.0
    %4445 = vmatpush1.msra.mxu0 %v4437
    %4446 = vmatprep.subr.mxu0 0.0
    %4447 = vmatpush1.msra.mxu0 %v4438
    %4448 = vmatprep.subr.mxu0 0.0
    %4449 = vmatpush1.msra.mxu0 %v4439
    %4450 = vmatprep.subr.mxu0 0.0
    %4451 = vmatpush1.msra.mxu0 %v4440
    %4452 = vmatprep.subr.mxu0 0.0
    %4453 = vmatpush1.msra.mxu0 0.0
    %4454 = vmatprep.subr.mxu0 0.0
    %4455 = vmatpush1.msra.mxu0 0.0
    %4456 = vmatprep.subr.mxu0 0.0
    %4457 = vmatpush1.msra.mxu0 0.0
    %4458 = vmatprep.subr.mxu0 0.0
    %4459 = vmatpush1.msra.mxu0 0.0
    %4460 = vmatprep.subr.mxu0 0.0
    %4461 = vmatpush1.msra.mxu0 0.0
    %4462 = vmatprep.subr.mxu0 0.0
    %4463 = vmatpush1.msra.mxu0 0.0
    %4464 = vmatprep.subr.mxu0 0.0
    %4465 = vmatpush1.msra.mxu0 0.0
    %4466 = vmatprep.subr.mxu0 0.0
    %4467 = vmatpush1.msra.mxu0 0.0
    %4468 = vmatprep.subr.mxu0 0.0
    %4469 = vmatpush1.msra.mxu0 0.0
    %4470 = vmatprep.subr.mxu0 0.0
    %4471 = vmatpush1.msra.mxu0 0.0
    %4472 = vmatprep.subr.mxu0 0.0
    %4473 = vmatpush1.msra.mxu0 0.0
    %4474 = vmatprep.subr.mxu0 0.0
    %4475 = vmatpush1.msra.mxu0 0.0
    %4476 = vmatprep.subr.mxu0 0.0
    %4477 = vmatpush1.msra.mxu0 0.0
    %4478 = vmatprep.subr.mxu0 0.0
    %4479 = vmatpush1.msra.mxu0 0.0
    %4480 = vmatprep.subr.mxu0 0.0
    %4481 = vmatpush1.msra.mxu0 0.0
    %4482 = vmatprep.subr.mxu0 0.0
    %4483 = vmatpush1.msra.mxu0 0.0
    %4484 = vmatprep.subr.mxu0 0.0
    %4485 = vmatpush1.msra.mxu0 0.0
    %4486 = vmatprep.subr.mxu0 0.0
    %4487 = vmatpush1.msra.mxu0 0.0
    %4488 = vmatprep.subr.mxu0 0.0
    %4489 = vmatpush1.msra.mxu0 0.0
    %4490 = vmatprep.subr.mxu0 0.0
    %4491 = vmatpush1.msra.mxu0 0.0
    %4492 = vmatprep.subr.mxu0 0.0
    %4493 = vmatpush1.msra.mxu0 0.0
    %4494 = vmatprep.subr.mxu0 0.0
    %4495 = vmatpush1.msra.mxu0 0.0
    %4496 = vmatprep.subr.mxu0 0.0
    %4497 = vmatpush1.msra.mxu0 0.0
    %4498 = vmatprep.subr.mxu0 0.0
    %4499 = vmatpush1.msra.mxu0 0.0
    %4500 = vmatprep.subr.mxu0 0.0
    %4501 = vmatpush1.msra.mxu0 0.0
    %4502 = vmatprep.subr.mxu0 0.0
    %4503 = vmatpush1.msra.mxu0 0.0
    %4504 = vmatprep.subr.mxu0 0.0
    %4505 = vmatpush1.msra.mxu0 0.0
    %4506 = vmatprep.subr.mxu0 0.0
    %4507 = vmatpush1.msra.mxu0 0.0
    %4508 = vmatprep.mubr.f32.mxu0 0.0
    %4509 = vmatmul.mubr.f32.gmra.mrb[0].mxu0 %v4442
    %v4510 = vpop.f32.mrb[0].mxu0
    %v4511 = vadd.f32 0.0, %v4510
    %v4512 = vpop.f32.mrb[0].mxu0
    %4513 = vdwg.mxu0
    %v4514 = vsel %vm158, %v4511, -inf
    %4515 = vmax.xlane.f32.xlu0 %v4514
    %v4516 = vpop.xlane.xlu0 %4515
    %v4517 = vsub.f32 %v4511, %v4516
    %v4518 = vmul.f32 %v4517, 1.442695
    %v4519 = vpow.pop %v4518
    %v4520 = vsel %vm158, %v4519, 0.0
    %4521 = vadd.xlane.f32.xlu0 %v4520
    %v4522 = vpop.xlane.xlu0 %4521
    %v4523 = vrcp.pop %v4522
    %v4524 = vmul.f32 %v4519, %v4523
    %v4525 = vsel %vm1138, %v4511, -inf
    %4526 = vmax.xlane.f32.xlu0 %v4525
    %v4527 = vpop.xlane.xlu0 %4526
    %v4528 = vsub.f32 %v4511, %v4527
    %v4529 = vmul.f32 %v4528, 1.442695
    %v4530 = vpow.pop %v4529
    %4532 = vrot.lane.b32.xlu0 %v4530, 96
    %v4533 = vpop.permute.xlu0 %4532
    %v4535 = vsel %vm158, %v4533, 0.0
    %4536 = vadd.xlane.f32.xlu0 %v4535
    %v4537 = vpop.xlane.xlu0 %4536
    %v4538 = vrcp.pop %v4537
    %v4539 = vmul.f32 %v4530, %v4538
    %v4540 = vsel %vm1154, %v4511, -inf
    %4541 = vmax.xlane.f32.xlu0 %v4540
    %v4542 = vpop.xlane.xlu0 %4541
    %v4543 = vsub.f32 %v4511, %v4542
    %v4544 = vmul.f32 %v4543, 1.442695
    %v4545 = vpow.pop %v4544
    %4547 = vrot.lane.b32.xlu0 %v4545, 64
    %v4548 = vpop.permute.xlu0 %4547
    %v4550 = vsel %vm158, %v4548, 0.0
    %4551 = vadd.xlane.f32.xlu0 %v4550
    %v4552 = vpop.xlane.xlu0 %4551
    %v4553 = vrcp.pop %v4552
    %v4554 = vmul.f32 %v4545, %v4553
    %v4555 = vsel %vm1170, %v4511, -inf
    %4556 = vmax.xlane.f32.xlu0 %v4555
    %v4557 = vpop.xlane.xlu0 %4556
    %v4558 = vsub.f32 %v4511, %v4557
    %v4559 = vmul.f32 %v4558, 1.442695
    %v4560 = vpow.pop %v4559
    %4562 = vrot.lane.b32.xlu0 %v4560, 32
    %v4563 = vpop.permute.xlu0 %4562
    %v4565 = vsel %vm158, %v4563, 0.0
    %4566 = vadd.xlane.f32.xlu0 %v4565
    %v4567 = vpop.xlane.xlu0 %4566
    %v4568 = vrcp.pop %v4567
    %v4569 = vmul.f32 %v4560, %v4568
    %v4570 = vsel %vm158, %v4524, %v4539
    %v4571 = vsel %vm1187, %v4570, %v4554
    %v4572 = vsel %vm1189, %v4571, %v4569
    %s4573 = scalar_lea.vmem %s19, 128
    %v4574 = vld [vmem:[%s4573] sm:$0xff]
    %v4575 = vld [vmem:[%s4573 + $0x8] sm:$0xff]
    %v4576 = vld [vmem:[%s4573 + $0x10] sm:$0xff]
    %v4577 = vld [vmem:[%s4573 + $0x18] sm:$0xff]
    %v4578 = vld [vmem:[%s4573 + $0x20] sm:$0xff]
    %v4579 = vld [vmem:[%s4573 + $0x28] sm:$0xff]
    %v4580 = vld [vmem:[%s4573 + $0x30] sm:$0xff]
    %v4581 = vld [vmem:[%s4573 + $0x38] sm:$0xff]
    %v4582 = vld [vmem:[%s4573 + $0x40] sm:$0xff]
    %v4583 = vld [vmem:[%s4573 + $0x48] sm:$0xff]
    %v4584 = vld [vmem:[%s4573 + $0x50] sm:$0xff]
    %v4585 = vld [vmem:[%s4573 + $0x58] sm:$0xff]
    %v4586 = vld [vmem:[%s4573 + $0x60] sm:$0xff]
    %v4587 = vld [vmem:[%s4573 + $0x68] sm:$0xff]
    %v4588 = vld [vmem:[%s4573 + $0x70] sm:$0xff]
    %v4589 = vld [vmem:[%s4573 + $0x78] sm:$0xff]
    %4590 = vmatprep.subr.mxu0 0.0
    %4591 = vmatpush1.msra.mxu0 %v4574
    %4592 = vmatprep.subr.mxu0 0.0
    %4593 = vmatpush1.msra.mxu0 %v4575
    %4594 = vmatprep.subr.mxu0 0.0
    %4595 = vmatpush1.msra.mxu0 %v4576
    %4596 = vmatprep.subr.mxu0 0.0
    %4597 = vmatpush1.msra.mxu0 %v4577
    %4598 = vmatprep.subr.mxu0 0.0
    %4599 = vmatpush1.msra.mxu0 %v4578
    %4600 = vmatprep.subr.mxu0 0.0
    %4601 = vmatpush1.msra.mxu0 %v4579
    %4602 = vmatprep.subr.mxu0 0.0
    %4603 = vmatpush1.msra.mxu0 %v4580
    %4604 = vmatprep.subr.mxu0 0.0
    %4605 = vmatpush1.msra.mxu0 %v4581
    %4606 = vmatprep.subr.mxu0 0.0
    %4607 = vmatpush1.msra.mxu0 %v4582
    %4608 = vmatprep.subr.mxu0 0.0
    %4609 = vmatpush1.msra.mxu0 %v4583
    %4610 = vmatprep.subr.mxu0 0.0
    %4611 = vmatpush1.msra.mxu0 %v4584
    %4612 = vmatprep.subr.mxu0 0.0
    %4613 = vmatpush1.msra.mxu0 %v4585
    %4614 = vmatprep.subr.mxu0 0.0
    %4615 = vmatpush1.msra.mxu0 %v4586
    %4616 = vmatprep.subr.mxu0 0.0
    %4617 = vmatpush1.msra.mxu0 %v4587
    %4618 = vmatprep.subr.mxu0 0.0
    %4619 = vmatpush1.msra.mxu0 %v4588
    %4620 = vmatprep.subr.mxu0 0.0
    %4621 = vmatpush1.msra.mxu0 %v4589
    %4622 = vmatprep.subr.mxu0 0.0
    %4623 = vmatpush1.msra.mxu0 0.0
    %4624 = vmatprep.subr.mxu0 0.0
    %4625 = vmatpush1.msra.mxu0 0.0
    %4626 = vmatprep.subr.mxu0 0.0
    %4627 = vmatpush1.msra.mxu0 0.0
    %4628 = vmatprep.subr.mxu0 0.0
    %4629 = vmatpush1.msra.mxu0 0.0
    %4630 = vmatprep.subr.mxu0 0.0
    %4631 = vmatpush1.msra.mxu0 0.0
    %4632 = vmatprep.subr.mxu0 0.0
    %4633 = vmatpush1.msra.mxu0 0.0
    %4634 = vmatprep.subr.mxu0 0.0
    %4635 = vmatpush1.msra.mxu0 0.0
    %4636 = vmatprep.subr.mxu0 0.0
    %4637 = vmatpush1.msra.mxu0 0.0
    %4638 = vmatprep.subr.mxu0 0.0
    %4639 = vmatpush1.msra.mxu0 0.0
    %4640 = vmatprep.subr.mxu0 0.0
    %4641 = vmatpush1.msra.mxu0 0.0
    %4642 = vmatprep.subr.mxu0 0.0
    %4643 = vmatpush1.msra.mxu0 0.0
    %4644 = vmatprep.subr.mxu0 0.0
    %4645 = vmatpush1.msra.mxu0 0.0
    %4646 = vmatprep.subr.mxu0 0.0
    %4647 = vmatpush1.msra.mxu0 0.0
    %4648 = vmatprep.subr.mxu0 0.0
    %4649 = vmatpush1.msra.mxu0 0.0
    %4650 = vmatprep.subr.mxu0 0.0
    %4651 = vmatpush1.msra.mxu0 0.0
    %4652 = vmatprep.subr.mxu0 0.0
    %4653 = vmatpush1.msra.mxu0 0.0
    %4654 = vmatprep.mubr.f32.mxu0 0.0
    %4655 = vmatmul.mubr.f32.gmra.mrb[0].mxu0 %v4572
    %v4656 = vpop.f32.mrb[0].mxu0
    %v4657 = vadd.f32 0.0, %v4656
    %v4658 = vpop.f32.mrb[0].mxu0
    %4659 = vdwg.mxu0
    %v4660 = vpack.c.bf16 %v4657, %v4657
    %s4661 = scalar_lea.vmem %s21, 16
    %v4662 = vld [vmem:[%s4661] sm:$0xf]
    %v4663 = vld [vmem:[%s4661 + $0x4] sm:$0xf]
    %v4664 = vld [vmem:[%s4661 + $0x8] sm:$0xf]
    %v4665 = vld [vmem:[%s4661 + $0xc] sm:$0xf]
    %s4666 = scalar_lea.vmem %s23, 1
    %v4667 = vld [vmem:[%s4666] sm:$0x1]
    %v4669 = vlaneseq
    %v4670 = vshrl.u32 %v4669, 7
    %v4671 = vsub.s32 0, %v4670
    %v4672 = vrot.slane %v4667, %v4671
    %v4678 = vunpack.c.l.b16 %v4662
    %v4679 = vunpack.c.l.b16 %v4663
    %v4680 = vunpack.c.l.b16 %v4664
    %v4681 = vunpack.c.l.b16 %v4665
    %v4682 = vpack.c.b16 %v4679, %v4678
    %v4683 = vpack.c.b16 %v4681, %v4680
    %v4687 = vsel %vm158, %v4660, 0
    %4689 = vmatprep.subr.bf16.mxu0 0
    %4690 = vmatpush1.bf16.msra.mxu0 %v4682
    %4691 = vmatprep.subr.bf16.mxu0 0
    %4692 = vmatpush1.bf16.msra.mxu0 %v4683
    %4693 = vmatprep.subr.bf16.mxu0 0
    %4694 = vmatpush1.bf16.msra.mxu0 0
    %4695 = vmatprep.subr.bf16.mxu0 0
    %4696 = vmatpush1.bf16.msra.mxu0 0
    %4697 = vmatprep.subr.bf16.mxu0 0
    %4698 = vmatpush1.bf16.msra.mxu0 0
    %4699 = vmatprep.subr.bf16.mxu0 0
    %4700 = vmatpush1.bf16.msra.mxu0 0
    %4701 = vmatprep.subr.bf16.mxu0 0
    %4702 = vmatpush1.bf16.msra.mxu0 0
    %4703 = vmatprep.subr.bf16.mxu0 0
    %4704 = vmatpush1.bf16.msra.mxu0 0
    %4705 = vmatprep.subr.bf16.mxu0 0
    %4706 = vmatpush1.bf16.msra.mxu0 0
    %4707 = vmatprep.subr.bf16.mxu0 0
    %4708 = vmatpush1.bf16.msra.mxu0 0
    %4709 = vmatprep.subr.bf16.mxu0 0
    %4710 = vmatpush1.bf16.msra.mxu0 0
    %4711 = vmatprep.subr.bf16.mxu0 0
    %4712 = vmatpush1.bf16.msra.mxu0 0
    %4713 = vmatprep.subr.bf16.mxu0 0
    %4714 = vmatpush1.bf16.msra.mxu0 0
    %4715 = vmatprep.subr.bf16.mxu0 0
    %4716 = vmatpush1.bf16.msra.mxu0 0
    %4717 = vmatprep.subr.bf16.mxu0 0
    %4718 = vmatpush1.bf16.msra.mxu0 0
    %4719 = vmatprep.subr.bf16.mxu0 0
    %4720 = vmatpush1.bf16.msra.mxu0 0
    %4721 = vmatprep.mubr.bf16.mxu0 0
    %4722 = vmatmul.mubr.bf16.gmra.mrb[0].mxu0 %v4687
    %v4723 = vpop.f32.mrb[0].mxu0
    %v4724 = vadd.f32 %v4672, %v4723
    %v4725 = vpop.f32.mrb[0].mxu0
    %v4726 = vpop.f32.mrb[0].mxu0
    %v4727 = vpop.f32.mrb[0].mxu0
    %4728 = vdwg.mxu0
    %v4729 = vadd.f32 %v4366, %v4724
    %s4730 = scalar_lea.vmem %s37, 1
    %v4731 = vld [vmem:[%s4730] sm:$0x1]
    %s4732 = scalar_lea.vmem %s39, 1
    %v4733 = vld [vmem:[%s4732] sm:$0x1]
    %v4734 = vsel %vm158, %v4729, 0.0
    %4735 = vadd.xlane.f32.xlu0 %v4734
    %v4736 = vpop.xlane.xlu0 %4735
    %v4737 = vmul.f32 %v4736, %v958
    %v4738 = vsub.f32 %v4729, %v4737
    %v4739 = vmul.f32 %v4738, %v4738
    %v4740 = vsel %vm158, %v4739, 0.0
    %4741 = vadd.xlane.f32.xlu0 %v4740
    %v4742 = vpop.xlane.xlu0 %4741
    %v4743 = vmul.f32 %v4742, %v958
    %v4744 = vadd.f32 %v4743, 1e-05
    %v4745 = vrsqrt.pop %v4744
    %v4746 = vmul.f32 %v4738, %v4745
    %v4748 = vlaneseq
    %v4749 = vshrl.u32 %v4748, 7
    %v4750 = vsub.s32 0, %v4749
    %v4751 = vrot.slane %v4731, %v4750
    %v4753 = vmul.f32 %v4746, %v4751
    %v4755 = vlaneseq
    %v4756 = vshrl.u32 %v4755, 7
    %v4757 = vsub.s32 0, %v4756
    %v4758 = vrot.slane %v4733, %v4757
    %v4760 = vadd.f32 %v4753, %v4758
    %v4761 = vpack.c.bf16 %v4760, %v4760
    %s4762 = scalar_lea.vmem %s25, 256
    %v4763 = vld [vmem:[%s4762] sm:$0xff]
    %v4764 = vld [vmem:[%s4762 + $0x8] sm:$0xff]
    %v4765 = vld [vmem:[%s4762 + $0x10] sm:$0xff]
    %v4766 = vld [vmem:[%s4762 + $0x18] sm:$0xff]
    %v4767 = vld [vmem:[%s4762 + $0x20] sm:$0xff]
    %v4768 = vld [vmem:[%s4762 + $0x28] sm:$0xff]
    %v4769 = vld [vmem:[%s4762 + $0x30] sm:$0xff]
    %v4770 = vld [vmem:[%s4762 + $0x38] sm:$0xff]
    %v4771 = vld [vmem:[%s4762 + $0x40] sm:$0xff]
    %v4772 = vld [vmem:[%s4762 + $0x48] sm:$0xff]
    %v4773 = vld [vmem:[%s4762 + $0x50] sm:$0xff]
    %v4774 = vld [vmem:[%s4762 + $0x58] sm:$0xff]
    %v4775 = vld [vmem:[%s4762 + $0x60] sm:$0xff]
    %v4776 = vld [vmem:[%s4762 + $0x68] sm:$0xff]
    %v4777 = vld [vmem:[%s4762 + $0x70] sm:$0xff]
    %v4778 = vld [vmem:[%s4762 + $0x78] sm:$0xff]
    %v4779 = vld [vmem:[%s4762 + $0x80] sm:$0xff]
    %v4780 = vld [vmem:[%s4762 + $0x88] sm:$0xff]
    %v4781 = vld [vmem:[%s4762 + $0x90] sm:$0xff]
    %v4782 = vld [vmem:[%s4762 + $0x98] sm:$0xff]
    %v4783 = vld [vmem:[%s4762 + $0xa0] sm:$0xff]
    %v4784 = vld [vmem:[%s4762 + $0xa8] sm:$0xff]
    %v4785 = vld [vmem:[%s4762 + $0xb0] sm:$0xff]
    %v4786 = vld [vmem:[%s4762 + $0xb8] sm:$0xff]
    %v4787 = vld [vmem:[%s4762 + $0xc0] sm:$0xff]
    %v4788 = vld [vmem:[%s4762 + $0xc8] sm:$0xff]
    %v4789 = vld [vmem:[%s4762 + $0xd0] sm:$0xff]
    %v4790 = vld [vmem:[%s4762 + $0xd8] sm:$0xff]
    %v4791 = vld [vmem:[%s4762 + $0xe0] sm:$0xff]
    %v4792 = vld [vmem:[%s4762 + $0xe8] sm:$0xff]
    %v4793 = vld [vmem:[%s4762 + $0xf0] sm:$0xff]
    %v4794 = vld [vmem:[%s4762 + $0xf8] sm:$0xff]
    %s4795 = scalar_lea.vmem %s27, 16
    %v4796 = vld [vmem:[%s4795] sm:$0xff]
    %v4797 = vld [vmem:[%s4795 + $0x8] sm:$0xff]
    %v4800 = vlaneseq
    %v4801 = vshrl.u32 %v4800, 7
    %v4802 = vsub.s32 0, %v4801
    %v4803 = vrot.slane %v4796, %v4802
    %v4804 = vlaneseq
    %v4805 = vshrl.u32 %v4804, 7
    %v4806 = vsub.s32 1, %v4805
    %v4807 = vrot.slane %v4796, %v4806
    %v4808 = vlaneseq
    %v4809 = vshrl.u32 %v4808, 7
    %v4810 = vsub.s32 2, %v4809
    %v4811 = vrot.slane %v4796, %v4810
    %v4812 = vlaneseq
    %v4813 = vshrl.u32 %v4812, 7
    %v4814 = vsub.s32 3, %v4813
    %v4815 = vrot.slane %v4796, %v4814
    %v4816 = vlaneseq
    %v4817 = vshrl.u32 %v4816, 7
    %v4818 = vsub.s32 4, %v4817
    %v4819 = vrot.slane %v4796, %v4818
    %v4820 = vlaneseq
    %v4821 = vshrl.u32 %v4820, 7
    %v4822 = vsub.s32 5, %v4821
    %v4823 = vrot.slane %v4796, %v4822
    %v4824 = vlaneseq
    %v4825 = vshrl.u32 %v4824, 7
    %v4826 = vsub.s32 6, %v4825
    %v4827 = vrot.slane %v4796, %v4826
    %v4828 = vlaneseq
    %v4829 = vshrl.u32 %v4828, 7
    %v4830 = vsub.s32 7, %v4829
    %v4831 = vrot.slane %v4796, %v4830
    %v4832 = vlaneseq
    %v4833 = vshrl.u32 %v4832, 7
    %v4834 = vsub.s32 0, %v4833
    %v4835 = vrot.slane %v4797, %v4834
    %v4836 = vlaneseq
    %v4837 = vshrl.u32 %v4836, 7
    %v4838 = vsub.s32 1, %v4837
    %v4839 = vrot.slane %v4797, %v4838
    %v4840 = vlaneseq
    %v4841 = vshrl.u32 %v4840, 7
    %v4842 = vsub.s32 2, %v4841
    %v4843 = vrot.slane %v4797, %v4842
    %v4844 = vlaneseq
    %v4845 = vshrl.u32 %v4844, 7
    %v4846 = vsub.s32 3, %v4845
    %v4847 = vrot.slane %v4797, %v4846
    %v4848 = vlaneseq
    %v4849 = vshrl.u32 %v4848, 7
    %v4850 = vsub.s32 4, %v4849
    %v4851 = vrot.slane %v4797, %v4850
    %v4852 = vlaneseq
    %v4853 = vshrl.u32 %v4852, 7
    %v4854 = vsub.s32 5, %v4853
    %v4855 = vrot.slane %v4797, %v4854
    %v4856 = vlaneseq
    %v4857 = vshrl.u32 %v4856, 7
    %v4858 = vsub.s32 6, %v4857
    %v4859 = vrot.slane %v4797, %v4858
    %v4860 = vlaneseq
    %v4861 = vshrl.u32 %v4860, 7
    %v4862 = vsub.s32 7, %v4861
    %v4863 = vrot.slane %v4797, %v4862
    %v4912 = vunpack.c.l.b16 %v4763
    %v4913 = vunpack.c.h.b16 %v4763
    %v4914 = vunpack.c.l.b16 %v4764
    %v4915 = vunpack.c.h.b16 %v4764
    %v4916 = vunpack.c.l.b16 %v4765
    %v4917 = vunpack.c.h.b16 %v4765
    %v4918 = vunpack.c.l.b16 %v4766
    %v4919 = vunpack.c.h.b16 %v4766
    %v4920 = vunpack.c.l.b16 %v4767
    %v4921 = vunpack.c.h.b16 %v4767
    %v4922 = vunpack.c.l.b16 %v4768
    %v4923 = vunpack.c.h.b16 %v4768
    %v4924 = vunpack.c.l.b16 %v4769
    %v4925 = vunpack.c.h.b16 %v4769
    %v4926 = vunpack.c.l.b16 %v4770
    %v4927 = vunpack.c.h.b16 %v4770
    %v4928 = vunpack.c.l.b16 %v4771
    %v4929 = vunpack.c.h.b16 %v4771
    %v4930 = vunpack.c.l.b16 %v4772
    %v4931 = vunpack.c.h.b16 %v4772
    %v4932 = vunpack.c.l.b16 %v4773
    %v4933 = vunpack.c.h.b16 %v4773
    %v4934 = vunpack.c.l.b16 %v4774
    %v4935 = vunpack.c.h.b16 %v4774
    %v4936 = vunpack.c.l.b16 %v4775
    %v4937 = vunpack.c.h.b16 %v4775
    %v4938 = vunpack.c.l.b16 %v4776
    %v4939 = vunpack.c.h.b16 %v4776
    %v4940 = vunpack.c.l.b16 %v4777
    %v4941 = vunpack.c.h.b16 %v4777
    %v4942 = vunpack.c.l.b16 %v4778
    %v4943 = vunpack.c.h.b16 %v4778
    %v4944 = vunpack.c.l.b16 %v4779
    %v4945 = vunpack.c.h.b16 %v4779
    %v4946 = vunpack.c.l.b16 %v4780
    %v4947 = vunpack.c.h.b16 %v4780
    %v4948 = vunpack.c.l.b16 %v4781
    %v4949 = vunpack.c.h.b16 %v4781
    %v4950 = vunpack.c.l.b16 %v4782
    %v4951 = vunpack.c.h.b16 %v4782
    %v4952 = vunpack.c.l.b16 %v4783
    %v4953 = vunpack.c.h.b16 %v4783
    %v4954 = vunpack.c.l.b16 %v4784
    %v4955 = vunpack.c.h.b16 %v4784
    %v4956 = vunpack.c.l.b16 %v4785
    %v4957 = vunpack.c.h.b16 %v4785
    %v4958 = vunpack.c.l.b16 %v4786
    %v4959 = vunpack.c.h.b16 %v4786
    %v4960 = vunpack.c.l.b16 %v4787
    %v4961 = vunpack.c.h.b16 %v4787
    %v4962 = vunpack.c.l.b16 %v4788
    %v4963 = vunpack.c.h.b16 %v4788
    %v4964 = vunpack.c.l.b16 %v4789
    %v4965 = vunpack.c.h.b16 %v4789
    %v4966 = vunpack.c.l.b16 %v4790
    %v4967 = vunpack.c.h.b16 %v4790
    %v4968 = vunpack.c.l.b16 %v4791
    %v4969 = vunpack.c.h.b16 %v4791
    %v4970 = vunpack.c.l.b16 %v4792
    %v4971 = vunpack.c.h.b16 %v4792
    %v4972 = vunpack.c.l.b16 %v4793
    %v4973 = vunpack.c.h.b16 %v4793
    %v4974 = vunpack.c.l.b16 %v4794
    %v4975 = vunpack.c.h.b16 %v4794
    %v4976 = vpack.c.b16 %v4928, %v4912
    %v4977 = vpack.c.b16 %v4929, %v4913
    %v4978 = vpack.c.b16 %v4930, %v4914
    %v4979 = vpack.c.b16 %v4931, %v4915
    %v4980 = vpack.c.b16 %v4932, %v4916
    %v4981 = vpack.c.b16 %v4933, %v4917
    %v4982 = vpack.c.b16 %v4934, %v4918
    %v4983 = vpack.c.b16 %v4935, %v4919
    %v4984 = vpack.c.b16 %v4936, %v4920
    %v4985 = vpack.c.b16 %v4937, %v4921
    %v4986 = vpack.c.b16 %v4938, %v4922
    %v4987 = vpack.c.b16 %v4939, %v4923
    %v4988 = vpack.c.b16 %v4940, %v4924
    %v4989 = vpack.c.b16 %v4941, %v4925
    %v4990 = vpack.c.b16 %v4942, %v4926
    %v4991 = vpack.c.b16 %v4943, %v4927
    %v4992 = vpack.c.b16 %v4960, %v4944
    %v4993 = vpack.c.b16 %v4961, %v4945
    %v4994 = vpack.c.b16 %v4962, %v4946
    %v4995 = vpack.c.b16 %v4963, %v4947
    %v4996 = vpack.c.b16 %v4964, %v4948
    %v4997 = vpack.c.b16 %v4965, %v4949
    %v4998 = vpack.c.b16 %v4966, %v4950
    %v4999 = vpack.c.b16 %v4967, %v4951
    %v5000 = vpack.c.b16 %v4968, %v4952
    %v5001 = vpack.c.b16 %v4969, %v4953
    %v5002 = vpack.c.b16 %v4970, %v4954
    %v5003 = vpack.c.b16 %v4971, %v4955
    %v5004 = vpack.c.b16 %v4972, %v4956
    %v5005 = vpack.c.b16 %v4973, %v4957
    %v5006 = vpack.c.b16 %v4974, %v4958
    %v5007 = vpack.c.b16 %v4975, %v4959
    %v5041 = vsel %vm158, %v4761, 0
    %5043 = vmatprep.subr.bf16.mxu0 %v4977
    %5044 = vmatpush1.bf16.msra.mxu0 %v4976
    %5045 = vmatprep.subr.bf16.mxu0 %v4993
    %5046 = vmatpush1.bf16.msra.mxu0 %v4992
    %5047 = vmatprep.subr.bf16.mxu0 0
    %5048 = vmatpush1.bf16.msra.mxu0 0
    %5049 = vmatprep.subr.bf16.mxu0 0
    %5050 = vmatpush1.bf16.msra.mxu0 0
    %5051 = vmatprep.subr.bf16.mxu0 0
    %5052 = vmatpush1.bf16.msra.mxu0 0
    %5053 = vmatprep.subr.bf16.mxu0 0
    %5054 = vmatpush1.bf16.msra.mxu0 0
    %5055 = vmatprep.subr.bf16.mxu0 0
    %5056 = vmatpush1.bf16.msra.mxu0 0
    %5057 = vmatprep.subr.bf16.mxu0 0
    %5058 = vmatpush1.bf16.msra.mxu0 0
    %5059 = vmatprep.subr.bf16.mxu0 0
    %5060 = vmatpush1.bf16.msra.mxu0 0
    %5061 = vmatprep.subr.bf16.mxu0 0
    %5062 = vmatpush1.bf16.msra.mxu0 0
    %5063 = vmatprep.subr.bf16.mxu0 0
    %5064 = vmatpush1.bf16.msra.mxu0 0
    %5065 = vmatprep.subr.bf16.mxu0 0
    %5066 = vmatpush1.bf16.msra.mxu0 0
    %5067 = vmatprep.subr.bf16.mxu0 0
    %5068 = vmatpush1.bf16.msra.mxu0 0
    %5069 = vmatprep.subr.bf16.mxu0 0
    %5070 = vmatpush1.bf16.msra.mxu0 0
    %5071 = vmatprep.subr.bf16.mxu0 0
    %5072 = vmatpush1.bf16.msra.mxu0 0
    %5073 = vmatprep.subr.bf16.mxu0 0
    %5074 = vmatpush1.bf16.msra.mxu0 0
    %5075 = vmatprep.mubr.bf16.mxu0 0
    %5076 = vmatmul.mubr.bf16.gmra.mrb[0].mxu0 %v5041
    %v5077 = vpop.f32.mrb[0].mxu0
    %v5078 = vadd.f32 %v4803, %v5077
    %v5079 = vpop.f32.mrb[0].mxu0
    %v5080 = vadd.f32 %v4807, %v5079
    %v5081 = vpop.f32.mrb[0].mxu0
    %v5082 = vpop.f32.mrb[0].mxu0
    %5083 = vdwg.mxu0
    %5084 = vmatprep.subr.bf16.mxu0 %v4979
    %5085 = vmatpush1.bf16.msra.mxu0 %v4978
    %5086 = vmatprep.subr.bf16.mxu0 %v4995
    %5087 = vmatpush1.bf16.msra.mxu0 %v4994
    %5088 = vmatprep.subr.bf16.mxu0 0
    %5089 = vmatpush1.bf16.msra.mxu0 0
    %5090 = vmatprep.subr.bf16.mxu0 0
    %5091 = vmatpush1.bf16.msra.mxu0 0
    %5092 = vmatprep.subr.bf16.mxu0 0
    %5093 = vmatpush1.bf16.msra.mxu0 0
    %5094 = vmatprep.subr.bf16.mxu0 0
    %5095 = vmatpush1.bf16.msra.mxu0 0
    %5096 = vmatprep.subr.bf16.mxu0 0
    %5097 = vmatpush1.bf16.msra.mxu0 0
    %5098 = vmatprep.subr.bf16.mxu0 0
    %5099 = vmatpush1.bf16.msra.mxu0 0
    %5100 = vmatprep.subr.bf16.mxu0 0
    %5101 = vmatpush1.bf16.msra.mxu0 0
    %5102 = vmatprep.subr.bf16.mxu0 0
    %5103 = vmatpush1.bf16.msra.mxu0 0
    %5104 = vmatprep.subr.bf16.mxu0 0
    %5105 = vmatpush1.bf16.msra.mxu0 0
    %5106 = vmatprep.subr.bf16.mxu0 0
    %5107 = vmatpush1.bf16.msra.mxu0 0
    %5108 = vmatprep.subr.bf16.mxu0 0
    %5109 = vmatpush1.bf16.msra.mxu0 0
    %5110 = vmatprep.subr.bf16.mxu0 0
    %5111 = vmatpush1.bf16.msra.mxu0 0
    %5112 = vmatprep.subr.bf16.mxu0 0
    %5113 = vmatpush1.bf16.msra.mxu0 0
    %5114 = vmatprep.subr.bf16.mxu0 0
    %5115 = vmatpush1.bf16.msra.mxu0 0
    %5116 = vmatprep.mubr.bf16.mxu0 0
    %5117 = vmatmul.mubr.bf16.gmra.mrb[0].mxu0 %v5041
    %v5118 = vpop.f32.mrb[0].mxu0
    %v5119 = vadd.f32 %v4811, %v5118
    %v5120 = vpop.f32.mrb[0].mxu0
    %v5121 = vadd.f32 %v4815, %v5120
    %v5122 = vpop.f32.mrb[0].mxu0
    %v5123 = vpop.f32.mrb[0].mxu0
    %5124 = vdwg.mxu0
    %5125 = vmatprep.subr.bf16.mxu0 %v4981
    %5126 = vmatpush1.bf16.msra.mxu0 %v4980
    %5127 = vmatprep.subr.bf16.mxu0 %v4997
    %5128 = vmatpush1.bf16.msra.mxu0 %v4996
    %5129 = vmatprep.subr.bf16.mxu0 0
    %5130 = vmatpush1.bf16.msra.mxu0 0
    %5131 = vmatprep.subr.bf16.mxu0 0
    %5132 = vmatpush1.bf16.msra.mxu0 0
    %5133 = vmatprep.subr.bf16.mxu0 0
    %5134 = vmatpush1.bf16.msra.mxu0 0
    %5135 = vmatprep.subr.bf16.mxu0 0
    %5136 = vmatpush1.bf16.msra.mxu0 0
    %5137 = vmatprep.subr.bf16.mxu0 0
    %5138 = vmatpush1.bf16.msra.mxu0 0
    %5139 = vmatprep.subr.bf16.mxu0 0
    %5140 = vmatpush1.bf16.msra.mxu0 0
    %5141 = vmatprep.subr.bf16.mxu0 0
    %5142 = vmatpush1.bf16.msra.mxu0 0
    %5143 = vmatprep.subr.bf16.mxu0 0
    %5144 = vmatpush1.bf16.msra.mxu0 0
    %5145 = vmatprep.subr.bf16.mxu0 0
    %5146 = vmatpush1.bf16.msra.mxu0 0
    %5147 = vmatprep.subr.bf16.mxu0 0
    %5148 = vmatpush1.bf16.msra.mxu0 0
    %5149 = vmatprep.subr.bf16.mxu0 0
    %5150 = vmatpush1.bf16.msra.mxu0 0
    %5151 = vmatprep.subr.bf16.mxu0 0
    %5152 = vmatpush1.bf16.msra.mxu0 0
    %5153 = vmatprep.subr.bf16.mxu0 0
    %5154 = vmatpush1.bf16.msra.mxu0 0
    %5155 = vmatprep.subr.bf16.mxu0 0
    %5156 = vmatpush1.bf16.msra.mxu0 0
    %5157 = vmatprep.mubr.bf16.mxu0 0
    %5158 = vmatmul.mubr.bf16.gmra.mrb[0].mxu0 %v5041
    %v5159 = vpop.f32.mrb[0].mxu0
    %v5160 = vadd.f32 %v4819, %v5159
    %v5161 = vpop.f32.mrb[0].mxu0
    %v5162 = vadd.f32 %v4823, %v5161
    %v5163 = vpop.f32.mrb[0].mxu0
    %v5164 = vpop.f32.mrb[0].mxu0
    %5165 = vdwg.mxu0
    %5166 = vmatprep.subr.bf16.mxu0 %v4983
    %5167 = vmatpush1.bf16.msra.mxu0 %v4982
    %5168 = vmatprep.subr.bf16.mxu0 %v4999
    %5169 = vmatpush1.bf16.msra.mxu0 %v4998
    %5170 = vmatprep.subr.bf16.mxu0 0
    %5171 = vmatpush1.bf16.msra.mxu0 0
    %5172 = vmatprep.subr.bf16.mxu0 0
    %5173 = vmatpush1.bf16.msra.mxu0 0
    %5174 = vmatprep.subr.bf16.mxu0 0
    %5175 = vmatpush1.bf16.msra.mxu0 0
    %5176 = vmatprep.subr.bf16.mxu0 0
    %5177 = vmatpush1.bf16.msra.mxu0 0
    %5178 = vmatprep.subr.bf16.mxu0 0
    %5179 = vmatpush1.bf16.msra.mxu0 0
    %5180 = vmatprep.subr.bf16.mxu0 0
    %5181 = vmatpush1.bf16.msra.mxu0 0
    %5182 = vmatprep.subr.bf16.mxu0 0
    %5183 = vmatpush1.bf16.msra.mxu0 0
    %5184 = vmatprep.subr.bf16.mxu0 0
    %5185 = vmatpush1.bf16.msra.mxu0 0
    %5186 = vmatprep.subr.bf16.mxu0 0
    %5187 = vmatpush1.bf16.msra.mxu0 0
    %5188 = vmatprep.subr.bf16.mxu0 0
    %5189 = vmatpush1.bf16.msra.mxu0 0
    %5190 = vmatprep.subr.bf16.mxu0 0
    %5191 = vmatpush1.bf16.msra.mxu0 0
    %5192 = vmatprep.subr.bf16.mxu0 0
    %5193 = vmatpush1.bf16.msra.mxu0 0
    %5194 = vmatprep.subr.bf16.mxu0 0
    %5195 = vmatpush1.bf16.msra.mxu0 0
    %5196 = vmatprep.subr.bf16.mxu0 0
    %5197 = vmatpush1.bf16.msra.mxu0 0
    %5198 = vmatprep.mubr.bf16.mxu0 0
    %5199 = vmatmul.mubr.bf16.gmra.mrb[0].mxu0 %v5041
    %v5200 = vpop.f32.mrb[0].mxu0
    %v5201 = vadd.f32 %v4827, %v5200
    %v5202 = vpop.f32.mrb[0].mxu0
    %v5203 = vadd.f32 %v4831, %v5202
    %v5204 = vpop.f32.mrb[0].mxu0
    %v5205 = vpop.f32.mrb[0].mxu0
    %5206 = vdwg.mxu0
    %5207 = vmatprep.subr.bf16.mxu0 %v4985
    %5208 = vmatpush1.bf16.msra.mxu0 %v4984
    %5209 = vmatprep.subr.bf16.mxu0 %v5001
    %5210 = vmatpush1.bf16.msra.mxu0 %v5000
    %5211 = vmatprep.subr.bf16.mxu0 0
    %5212 = vmatpush1.bf16.msra.mxu0 0
    %5213 = vmatprep.subr.bf16.mxu0 0
    %5214 = vmatpush1.bf16.msra.mxu0 0
    %5215 = vmatprep.subr.bf16.mxu0 0
    %5216 = vmatpush1.bf16.msra.mxu0 0
    %5217 = vmatprep.subr.bf16.mxu0 0
    %5218 = vmatpush1.bf16.msra.mxu0 0
    %5219 = vmatprep.subr.bf16.mxu0 0
    %5220 = vmatpush1.bf16.msra.mxu0 0
    %5221 = vmatprep.subr.bf16.mxu0 0
    %5222 = vmatpush1.bf16.msra.mxu0 0
    %5223 = vmatprep.subr.bf16.mxu0 0
    %5224 = vmatpush1.bf16.msra.mxu0 0
    %5225 = vmatprep.subr.bf16.mxu0 0
    %5226 = vmatpush1.bf16.msra.mxu0 0
    %5227 = vmatprep.subr.bf16.mxu0 0
    %5228 = vmatpush1.bf16.msra.mxu0 0
    %5229 = vmatprep.subr.bf16.mxu0 0
    %5230 = vmatpush1.bf16.msra.mxu0 0
    %5231 = vmatprep.subr.bf16.mxu0 0
    %5232 = vmatpush1.bf16.msra.mxu0 0
    %5233 = vmatprep.subr.bf16.mxu0 0
    %5234 = vmatpush1.bf16.msra.mxu0 0
    %5235 = vmatprep.subr.bf16.mxu0 0
    %5236 = vmatpush1.bf16.msra.mxu0 0
    %5237 = vmatprep.subr.bf16.mxu0 0
    %5238 = vmatpush1.bf16.msra.mxu0 0
    %5239 = vmatprep.mubr.bf16.mxu0 0
    %5240 = vmatmul.mubr.bf16.gmra.mrb[0].mxu0 %v5041
    %v5241 = vpop.f32.mrb[0].mxu0
    %v5242 = vadd.f32 %v4835, %v5241
    %v5243 = vpop.f32.mrb[0].mxu0
    %v5244 = vadd.f32 %v4839, %v5243
    %v5245 = vpop.f32.mrb[0].mxu0
    %v5246 = vpop.f32.mrb[0].mxu0
    %5247 = vdwg.mxu0
    %5248 = vmatprep.subr.bf16.mxu0 %v4987
    %5249 = vmatpush1.bf16.msra.mxu0 %v4986
    %5250 = vmatprep.subr.bf16.mxu0 %v5003
    %5251 = vmatpush1.bf16.msra.mxu0 %v5002
    %5252 = vmatprep.subr.bf16.mxu0 0
    %5253 = vmatpush1.bf16.msra.mxu0 0
    %5254 = vmatprep.subr.bf16.mxu0 0
    %5255 = vmatpush1.bf16.msra.mxu0 0
    %5256 = vmatprep.subr.bf16.mxu0 0
    %5257 = vmatpush1.bf16.msra.mxu0 0
    %5258 = vmatprep.subr.bf16.mxu0 0
    %5259 = vmatpush1.bf16.msra.mxu0 0
    %5260 = vmatprep.subr.bf16.mxu0 0
    %5261 = vmatpush1.bf16.msra.mxu0 0
    %5262 = vmatprep.subr.bf16.mxu0 0
    %5263 = vmatpush1.bf16.msra.mxu0 0
    %5264 = vmatprep.subr.bf16.mxu0 0
    %5265 = vmatpush1.bf16.msra.mxu0 0
    %5266 = vmatprep.subr.bf16.mxu0 0
    %5267 = vmatpush1.bf16.msra.mxu0 0
    %5268 = vmatprep.subr.bf16.mxu0 0
    %5269 = vmatpush1.bf16.msra.mxu0 0
    %5270 = vmatprep.subr.bf16.mxu0 0
    %5271 = vmatpush1.bf16.msra.mxu0 0
    %5272 = vmatprep.subr.bf16.mxu0 0
    %5273 = vmatpush1.bf16.msra.mxu0 0
    %5274 = vmatprep.subr.bf16.mxu0 0
    %5275 = vmatpush1.bf16.msra.mxu0 0
    %5276 = vmatprep.subr.bf16.mxu0 0
    %5277 = vmatpush1.bf16.msra.mxu0 0
    %5278 = vmatprep.subr.bf16.mxu0 0
    %5279 = vmatpush1.bf16.msra.mxu0 0
    %5280 = vmatprep.mubr.bf16.mxu0 0
    %5281 = vmatmul.mubr.bf16.gmra.mrb[0].mxu0 %v5041
    %v5282 = vpop.f32.mrb[0].mxu0
    %v5283 = vadd.f32 %v4843, %v5282
    %v5284 = vpop.f32.mrb[0].mxu0
    %v5285 = vadd.f32 %v4847, %v5284
    %v5286 = vpop.f32.mrb[0].mxu0
    %v5287 = vpop.f32.mrb[0].mxu0
    %5288 = vdwg.mxu0
    %5289 = vmatprep.subr.bf16.mxu0 %v4989
    %5290 = vmatpush1.bf16.msra.mxu0 %v4988
    %5291 = vmatprep.subr.bf16.mxu0 %v5005
    %5292 = vmatpush1.bf16.msra.mxu0 %v5004
    %5293 = vmatprep.subr.bf16.mxu0 0
    %5294 = vmatpush1.bf16.msra.mxu0 0
    %5295 = vmatprep.subr.bf16.mxu0 0
    %5296 = vmatpush1.bf16.msra.mxu0 0
    %5297 = vmatprep.subr.bf16.mxu0 0
    %5298 = vmatpush1.bf16.msra.mxu0 0
    %5299 = vmatprep.subr.bf16.mxu0 0
    %5300 = vmatpush1.bf16.msra.mxu0 0
    %5301 = vmatprep.subr.bf16.mxu0 0
    %5302 = vmatpush1.bf16.msra.mxu0 0
    %5303 = vmatprep.subr.bf16.mxu0 0
    %5304 = vmatpush1.bf16.msra.mxu0 0
    %5305 = vmatprep.subr.bf16.mxu0 0
    %5306 = vmatpush1.bf16.msra.mxu0 0
    %5307 = vmatprep.subr.bf16.mxu0 0
    %5308 = vmatpush1.bf16.msra.mxu0 0
    %5309 = vmatprep.subr.bf16.mxu0 0
    %5310 = vmatpush1.bf16.msra.mxu0 0
    %5311 = vmatprep.subr.bf16.mxu0 0
    %5312 = vmatpush1.bf16.msra.mxu0 0
    %5313 = vmatprep.subr.bf16.mxu0 0
    %5314 = vmatpush1.bf16.msra.mxu0 0
    %5315 = vmatprep.subr.bf16.mxu0 0
    %5316 = vmatpush1.bf16.msra.mxu0 0
    %5317 = vmatprep.subr.bf16.mxu0 0
    %5318 = vmatpush1.bf16.msra.mxu0 0
    %5319 = vmatprep.subr.bf16.mxu0 0
    %5320 = vmatpush1.bf16.msra.mxu0 0
    %5321 = vmatprep.mubr.bf16.mxu0 0
    %5322 = vmatmul.mubr.bf16.gmra.mrb[0].mxu0 %v5041
    %v5323 = vpop.f32.mrb[0].mxu0
    %v5324 = vadd.f32 %v4851, %v5323
    %v5325 = vpop.f32.mrb[0].mxu0
    %v5326 = vadd.f32 %v4855, %v5325
    %v5327 = vpop.f32.mrb[0].mxu0
    %v5328 = vpop.f32.mrb[0].mxu0
    %5329 = vdwg.mxu0
    %5330 = vmatprep.subr.bf16.mxu0 %v4991
    %5331 = vmatpush1.bf16.msra.mxu0 %v4990
    %5332 = vmatprep.subr.bf16.mxu0 %v5007
    %5333 = vmatpush1.bf16.msra.mxu0 %v5006
    %5334 = vmatprep.subr.bf16.mxu0 0
    %5335 = vmatpush1.bf16.msra.mxu0 0
    %5336 = vmatprep.subr.bf16.mxu0 0
    %5337 = vmatpush1.bf16.msra.mxu0 0
    %5338 = vmatprep.subr.bf16.mxu0 0
    %5339 = vmatpush1.bf16.msra.mxu0 0
    %5340 = vmatprep.subr.bf16.mxu0 0
    %5341 = vmatpush1.bf16.msra.mxu0 0
    %5342 = vmatprep.subr.bf16.mxu0 0
    %5343 = vmatpush1.bf16.msra.mxu0 0
    %5344 = vmatprep.subr.bf16.mxu0 0
    %5345 = vmatpush1.bf16.msra.mxu0 0
    %5346 = vmatprep.subr.bf16.mxu0 0
    %5347 = vmatpush1.bf16.msra.mxu0 0
    %5348 = vmatprep.subr.bf16.mxu0 0
    %5349 = vmatpush1.bf16.msra.mxu0 0
    %5350 = vmatprep.subr.bf16.mxu0 0
    %5351 = vmatpush1.bf16.msra.mxu0 0
    %5352 = vmatprep.subr.bf16.mxu0 0
    %5353 = vmatpush1.bf16.msra.mxu0 0
    %5354 = vmatprep.subr.bf16.mxu0 0
    %5355 = vmatpush1.bf16.msra.mxu0 0
    %5356 = vmatprep.subr.bf16.mxu0 0
    %5357 = vmatpush1.bf16.msra.mxu0 0
    %5358 = vmatprep.subr.bf16.mxu0 0
    %5359 = vmatpush1.bf16.msra.mxu0 0
    %5360 = vmatprep.subr.bf16.mxu0 0
    %5361 = vmatpush1.bf16.msra.mxu0 0
    %5362 = vmatprep.mubr.bf16.mxu0 0
    %5363 = vmatmul.mubr.bf16.gmra.mrb[0].mxu0 %v5041
    %v5364 = vpop.f32.mrb[0].mxu0
    %v5365 = vadd.f32 %v4859, %v5364
    %v5366 = vpop.f32.mrb[0].mxu0
    %v5367 = vadd.f32 %v4863, %v5366
    %v5368 = vpop.f32.mrb[0].mxu0
    %v5369 = vpop.f32.mrb[0].mxu0
    %5370 = vdwg.mxu0
    %v5371 = vmul.f32 %v5078, 0.5
    %v5372 = vmul.f32 %v5080, 0.5
    %v5373 = vmul.f32 %v5119, 0.5
    %v5374 = vmul.f32 %v5121, 0.5
    %v5375 = vmul.f32 %v5160, 0.5
    %v5376 = vmul.f32 %v5162, 0.5
    %v5377 = vmul.f32 %v5201, 0.5
    %v5378 = vmul.f32 %v5203, 0.5
    %v5379 = vmul.f32 %v5242, 0.5
    %v5380 = vmul.f32 %v5244, 0.5
    %v5381 = vmul.f32 %v5283, 0.5
    %v5382 = vmul.f32 %v5285, 0.5
    %v5383 = vmul.f32 %v5324, 0.5
    %v5384 = vmul.f32 %v5326, 0.5
    %v5385 = vmul.f32 %v5365, 0.5
    %v5386 = vmul.f32 %v5367, 0.5
    %v5387 = vmul.f32 %v5078, 0.044715
    %v5388 = vmul.f32 %v5080, 0.044715
    %v5389 = vmul.f32 %v5119, 0.044715
    %v5390 = vmul.f32 %v5121, 0.044715
    %v5391 = vmul.f32 %v5160, 0.044715
    %v5392 = vmul.f32 %v5162, 0.044715
    %v5393 = vmul.f32 %v5201, 0.044715
    %v5394 = vmul.f32 %v5203, 0.044715
    %v5395 = vmul.f32 %v5242, 0.044715
    %v5396 = vmul.f32 %v5244, 0.044715
    %v5397 = vmul.f32 %v5283, 0.044715
    %v5398 = vmul.f32 %v5285, 0.044715
    %v5399 = vmul.f32 %v5324, 0.044715
    %v5400 = vmul.f32 %v5326, 0.044715
    %v5401 = vmul.f32 %v5365, 0.044715
    %v5402 = vmul.f32 %v5367, 0.044715
    %v5403 = vmul.f32 %v5387, %v5078
    %v5404 = vmul.f32 %v5388, %v5080
    %v5405 = vmul.f32 %v5389, %v5119
    %v5406 = vmul.f32 %v5390, %v5121
    %v5407 = vmul.f32 %v5391, %v5160
    %v5408 = vmul.f32 %v5392, %v5162
    %v5409 = vmul.f32 %v5393, %v5201
    %v5410 = vmul.f32 %v5394, %v5203
    %v5411 = vmul.f32 %v5395, %v5242
    %v5412 = vmul.f32 %v5396, %v5244
    %v5413 = vmul.f32 %v5397, %v5283
    %v5414 = vmul.f32 %v5398, %v5285
    %v5415 = vmul.f32 %v5399, %v5324
    %v5416 = vmul.f32 %v5400, %v5326
    %v5417 = vmul.f32 %v5401, %v5365
    %v5418 = vmul.f32 %v5402, %v5367
    %v5419 = vmul.f32 %v5403, %v5078
    %v5420 = vmul.f32 %v5404, %v5080
    %v5421 = vmul.f32 %v5405, %v5119
    %v5422 = vmul.f32 %v5406, %v5121
    %v5423 = vmul.f32 %v5407, %v5160
    %v5424 = vmul.f32 %v5408, %v5162
    %v5425 = vmul.f32 %v5409, %v5201
    %v5426 = vmul.f32 %v5410, %v5203
    %v5427 = vmul.f32 %v5411, %v5242
    %v5428 = vmul.f32 %v5412, %v5244
    %v5429 = vmul.f32 %v5413, %v5283
    %v5430 = vmul.f32 %v5414, %v5285
    %v5431 = vmul.f32 %v5415, %v5324
    %v5432 = vmul.f32 %v5416, %v5326
    %v5433 = vmul.f32 %v5417, %v5365
    %v5434 = vmul.f32 %v5418, %v5367
    %v5435 = vadd.f32 %v5078, %v5419
    %v5436 = vadd.f32 %v5080, %v5420
    %v5437 = vadd.f32 %v5119, %v5421
    %v5438 = vadd.f32 %v5121, %v5422
    %v5439 = vadd.f32 %v5160, %v5423
    %v5440 = vadd.f32 %v5162, %v5424
    %v5441 = vadd.f32 %v5201, %v5425
    %v5442 = vadd.f32 %v5203, %v5426
    %v5443 = vadd.f32 %v5242, %v5427
    %v5444 = vadd.f32 %v5244, %v5428
    %v5445 = vadd.f32 %v5283, %v5429
    %v5446 = vadd.f32 %v5285, %v5430
    %v5447 = vadd.f32 %v5324, %v5431
    %v5448 = vadd.f32 %v5326, %v5432
    %v5449 = vadd.f32 %v5365, %v5433
    %v5450 = vadd.f32 %v5367, %v5434
    %v5451 = vmul.f32 %v5435, 0.7978846
    %v5452 = vmul.f32 %v5436, 0.7978846
    %v5453 = vmul.f32 %v5437, 0.7978846
    %v5454 = vmul.f32 %v5438, 0.7978846
    %v5455 = vmul.f32 %v5439, 0.7978846
    %v5456 = vmul.f32 %v5440, 0.7978846
    %v5457 = vmul.f32 %v5441, 0.7978846
    %v5458 = vmul.f32 %v5442, 0.7978846
    %v5459 = vmul.f32 %v5443, 0.7978846
    %v5460 = vmul.f32 %v5444, 0.7978846
    %v5461 = vmul.f32 %v5445, 0.7978846
    %v5462 = vmul.f32 %v5446, 0.7978846
    %v5463 = vmul.f32 %v5447, 0.7978846
    %v5464 = vmul.f32 %v5448, 0.7978846
    %v5465 = vmul.f32 %v5449, 0.7978846
    %v5466 = vmul.f32 %v5450, 0.7978846
    %v5467 = vtanh.pop %v5451
    %v5468 = vtanh.pop %v5452
    %v5469 = vtanh.pop %v5453
    %v5470 = vtanh.pop %v5454
    %v5471 = vtanh.pop %v5455
    %v5472 = vtanh.pop %v5456
    %v5473 = vtanh.pop %v5457
    %v5474 = vtanh.pop %v5458
    %v5475 = vtanh.pop %v5459
    %v5476 = vtanh.pop %v5460
    %v5477 = vtanh.pop %v5461
    %v5478 = vtanh.pop %v5462
    %v5479 = vtanh.pop %v5463
    %v5480 = vtanh.pop %v5464
    %v5481 = vtanh.pop %v5465
    %v5482 = vtanh.pop %v5466
    %v5483 = vadd.f32 %v5467, 1.0
    %v5484 = vadd.f32 %v5468, 1.0
    %v5485 = vadd.f32 %v5469, 1.0
    %v5486 = vadd.f32 %v5470, 1.0
    %v5487 = vadd.f32 %v5471, 1.0
    %v5488 = vadd.f32 %v5472, 1.0
    %v5489 = vadd.f32 %v5473, 1.0
    %v5490 = vadd.f32 %v5474, 1.0
    %v5491 = vadd.f32 %v5475, 1.0
    %v5492 = vadd.f32 %v5476, 1.0
    %v5493 = vadd.f32 %v5477, 1.0
    %v5494 = vadd.f32 %v5478, 1.0
    %v5495 = vadd.f32 %v5479, 1.0
    %v5496 = vadd.f32 %v5480, 1.0
    %v5497 = vadd.f32 %v5481, 1.0
    %v5498 = vadd.f32 %v5482, 1.0
    %v5499 = vmul.f32 %v5371, %v5483
    %v5500 = vmul.f32 %v5372, %v5484
    %v5501 = vmul.f32 %v5373, %v5485
    %v5502 = vmul.f32 %v5374, %v5486
    %v5503 = vmul.f32 %v5375, %v5487
    %v5504 = vmul.f32 %v5376, %v5488
    %v5505 = vmul.f32 %v5377, %v5489
    %v5506 = vmul.f32 %v5378, %v5490
    %v5507 = vmul.f32 %v5379, %v5491
    %v5508 = vmul.f32 %v5380, %v5492
    %v5509 = vmul.f32 %v5381, %v5493
    %v5510 = vmul.f32 %v5382, %v5494
    %v5511 = vmul.f32 %v5383, %v5495
    %v5512 = vmul.f32 %v5384, %v5496
    %v5513 = vmul.f32 %v5385, %v5497
    %v5514 = vmul.f32 %v5386, %v5498
    %v5515 = vpack.c.bf16 %v5499, %v5499
    %v5516 = vpack.c.bf16 %v5500, %v5500
    %v5517 = vpack.c.bf16 %v5501, %v5501
    %v5518 = vpack.c.bf16 %v5502, %v5502
    %v5519 = vpack.c.bf16 %v5503, %v5503
    %v5520 = vpack.c.bf16 %v5504, %v5504
    %v5521 = vpack.c.bf16 %v5505, %v5505
    %v5522 = vpack.c.bf16 %v5506, %v5506
    %v5523 = vpack.c.bf16 %v5507, %v5507
    %v5524 = vpack.c.bf16 %v5508, %v5508
    %v5525 = vpack.c.bf16 %v5509, %v5509
    %v5526 = vpack.c.bf16 %v5510, %v5510
    %v5527 = vpack.c.bf16 %v5511, %v5511
    %v5528 = vpack.c.bf16 %v5512, %v5512
    %v5529 = vpack.c.bf16 %v5513, %v5513
    %v5530 = vpack.c.bf16 %v5514, %v5514
    %s5531 = scalar_lea.vmem %s29, 1024
    %v5532 = vld [vmem:[%s5531] sm:$0xf]
    %v5533 = vld [vmem:[%s5531 + $0x4] sm:$0xf]
    %v5534 = vld [vmem:[%s5531 + $0x8] sm:$0xf]
    %v5535 = vld [vmem:[%s5531 + $0xc] sm:$0xf]
    %v5536 = vld [vmem:[%s5531 + $0x10] sm:$0xf]
    %v5537 = vld [vmem:[%s5531 + $0x14] sm:$0xf]
    %v5538 = vld [vmem:[%s5531 + $0x18] sm:$0xf]
    %v5539 = vld [vmem:[%s5531 + $0x1c] sm:$0xf]
    %v5540 = vld [vmem:[%s5531 + $0x20] sm:$0xf]
    %v5541 = vld [vmem:[%s5531 + $0x24] sm:$0xf]
    %v5542 = vld [vmem:[%s5531 + $0x28] sm:$0xf]
    %v5543 = vld [vmem:[%s5531 + $0x2c] sm:$0xf]
    %v5544 = vld [vmem:[%s5531 + $0x30] sm:$0xf]
    %v5545 = vld [vmem:[%s5531 + $0x34] sm:$0xf]
    %v5546 = vld [vmem:[%s5531 + $0x38] sm:$0xf]
    %v5547 = vld [vmem:[%s5531 + $0x3c] sm:$0xf]
    %v5548 = vld [vmem:[%s5531 + $0x40] sm:$0xf]
    %v5549 = vld [vmem:[%s5531 + $0x44] sm:$0xf]
    %v5550 = vld [vmem:[%s5531 + $0x48] sm:$0xf]
    %v5551 = vld [vmem:[%s5531 + $0x4c] sm:$0xf]
    %v5552 = vld [vmem:[%s5531 + $0x50] sm:$0xf]
    %v5553 = vld [vmem:[%s5531 + $0x54] sm:$0xf]
    %v5554 = vld [vmem:[%s5531 + $0x58] sm:$0xf]
    %v5555 = vld [vmem:[%s5531 + $0x5c] sm:$0xf]
    %v5556 = vld [vmem:[%s5531 + $0x60] sm:$0xf]
    %v5557 = vld [vmem:[%s5531 + $0x64] sm:$0xf]
    %v5558 = vld [vmem:[%s5531 + $0x68] sm:$0xf]
    %v5559 = vld [vmem:[%s5531 + $0x6c] sm:$0xf]
    %v5560 = vld [vmem:[%s5531 + $0x70] sm:$0xf]
    %v5561 = vld [vmem:[%s5531 + $0x74] sm:$0xf]
    %v5562 = vld [vmem:[%s5531 + $0x78] sm:$0xf]
    %v5563 = vld [vmem:[%s5531 + $0x7c] sm:$0xf]
    %v5564 = vld [vmem:[%s5531 + $0x80] sm:$0xf]
    %v5565 = vld [vmem:[%s5531 + $0x84] sm:$0xf]
    %v5566 = vld [vmem:[%s5531 + $0x88] sm:$0xf]
    %v5567 = vld [vmem:[%s5531 + $0x8c] sm:$0xf]
    %v5568 = vld [vmem:[%s5531 + $0x90] sm:$0xf]
    %v5569 = vld [vmem:[%s5531 + $0x94] sm:$0xf]
    %v5570 = vld [vmem:[%s5531 + $0x98] sm:$0xf]
    %v5571 = vld [vmem:[%s5531 + $0x9c] sm:$0xf]
    %v5572 = vld [vmem:[%s5531 + $0xa0] sm:$0xf]
    %v5573 = vld [vmem:[%s5531 + $0xa4] sm:$0xf]
    %v5574 = vld [vmem:[%s5531 + $0xa8] sm:$0xf]
    %v5575 = vld [vmem:[%s5531 + $0xac] sm:$0xf]
    %v5576 = vld [vmem:[%s5531 + $0xb0] sm:$0xf]
    %v5577 = vld [vmem:[%s5531 + $0xb4] sm:$0xf]
    %v5578 = vld [vmem:[%s5531 + $0xb8] sm:$0xf]
    %v5579 = vld [vmem:[%s5531 + $0xbc] sm:$0xf]
    %v5580 = vld [vmem:[%s5531 + $0xc0] sm:$0xf]
    %v5581 = vld [vmem:[%s5531 + $0xc4] sm:$0xf]
    %v5582 = vld [vmem:[%s5531 + $0xc8] sm:$0xf]
    %v5583 = vld [vmem:[%s5531 + $0xcc] sm:$0xf]
    %v5584 = vld [vmem:[%s5531 + $0xd0] sm:$0xf]
    %v5585 = vld [vmem:[%s5531 + $0xd4] sm:$0xf]
    %v5586 = vld [vmem:[%s5531 + $0xd8] sm:$0xf]
    %v5587 = vld [vmem:[%s5531 + $0xdc] sm:$0xf]
    %v5588 = vld [vmem:[%s5531 + $0xe0] sm:$0xf]
    %v5589 = vld [vmem:[%s5531 + $0xe4] sm:$0xf]
    %v5590 = vld [vmem:[%s5531 + $0xe8] sm:$0xf]
    %v5591 = vld [vmem:[%s5531 + $0xec] sm:$0xf]
    %v5592 = vld [vmem:[%s5531 + $0xf0] sm:$0xf]
    %v5593 = vld [vmem:[%s5531 + $0xf4] sm:$0xf]
    %v5594 = vld [vmem:[%s5531 + $0xf8] sm:$0xf]
    %v5595 = vld [vmem:[%s5531 + $0xfc] sm:$0xf]
    %v5596 = vld [vmem:[%s5531 + $0x100] sm:$0xf]
    %v5597 = vld [vmem:[%s5531 + $0x104] sm:$0xf]
    %v5598 = vld [vmem:[%s5531 + $0x108] sm:$0xf]
    %v5599 = vld [vmem:[%s5531 + $0x10c] sm:$0xf]
    %v5600 = vld [vmem:[%s5531 + $0x110] sm:$0xf]
    %v5601 = vld [vmem:[%s5531 + $0x114] sm:$0xf]
    %v5602 = vld [vmem:[%s5531 + $0x118] sm:$0xf]
    %v5603 = vld [vmem:[%s5531 + $0x11c] sm:$0xf]
    %v5604 = vld [vmem:[%s5531 + $0x120] sm:$0xf]
    %v5605 = vld [vmem:[%s5531 + $0x124] sm:$0xf]
    %v5606 = vld [vmem:[%s5531 + $0x128] sm:$0xf]
    %v5607 = vld [vmem:[%s5531 + $0x12c] sm:$0xf]
    %v5608 = vld [vmem:[%s5531 + $0x130] sm:$0xf]
    %v5609 = vld [vmem:[%s5531 + $0x134] sm:$0xf]
    %v5610 = vld [vmem:[%s5531 + $0x138] sm:$0xf]
    %v5611 = vld [vmem:[%s5531 + $0x13c] sm:$0xf]
    %v5612 = vld [vmem:[%s5531 + $0x140] sm:$0xf]
    %v5613 = vld [vmem:[%s5531 + $0x144] sm:$0xf]
    %v5614 = vld [vmem:[%s5531 + $0x148] sm:$0xf]
    %v5615 = vld [vmem:[%s5531 + $0x14c] sm:$0xf]
    %v5616 = vld [vmem:[%s5531 + $0x150] sm:$0xf]
    %v5617 = vld [vmem:[%s5531 + $0x154] sm:$0xf]
    %v5618 = vld [vmem:[%s5531 + $0x158] sm:$0xf]
    %v5619 = vld [vmem:[%s5531 + $0x15c] sm:$0xf]
    %v5620 = vld [vmem:[%s5531 + $0x160] sm:$0xf]
    %v5621 = vld [vmem:[%s5531 + $0x164] sm:$0xf]
    %v5622 = vld [vmem:[%s5531 + $0x168] sm:$0xf]
    %v5623 = vld [vmem:[%s5531 + $0x16c] sm:$0xf]
    %v5624 = vld [vmem:[%s5531 + $0x170] sm:$0xf]
    %v5625 = vld [vmem:[%s5531 + $0x174] sm:$0xf]
    %v5626 = vld [vmem:[%s5531 + $0x178] sm:$0xf]
    %v5627 = vld [vmem:[%s5531 + $0x17c] sm:$0xf]
    %v5628 = vld [vmem:[%s5531 + $0x180] sm:$0xf]
    %v5629 = vld [vmem:[%s5531 + $0x184] sm:$0xf]
    %v5630 = vld [vmem:[%s5531 + $0x188] sm:$0xf]
    %v5631 = vld [vmem:[%s5531 + $0x18c] sm:$0xf]
    %v5632 = vld [vmem:[%s5531 + $0x190] sm:$0xf]
    %v5633 = vld [vmem:[%s5531 + $0x194] sm:$0xf]
    %v5634 = vld [vmem:[%s5531 + $0x198] sm:$0xf]
    %v5635 = vld [vmem:[%s5531 + $0x19c] sm:$0xf]
    %v5636 = vld [vmem:[%s5531 + $0x1a0] sm:$0xf]
    %v5637 = vld [vmem:[%s5531 + $0x1a4] sm:$0xf]
    %v5638 = vld [vmem:[%s5531 + $0x1a8] sm:$0xf]
    %v5639 = vld [vmem:[%s5531 + $0x1ac] sm:$0xf]
    %v5640 = vld [vmem:[%s5531 + $0x1b0] sm:$0xf]
    %v5641 = vld [vmem:[%s5531 + $0x1b4] sm:$0xf]
    %v5642 = vld [vmem:[%s5531 + $0x1b8] sm:$0xf]
    %v5643 = vld [vmem:[%s5531 + $0x1bc] sm:$0xf]
    %v5644 = vld [vmem:[%s5531 + $0x1c0] sm:$0xf]
    %v5645 = vld [vmem:[%s5531 + $0x1c4] sm:$0xf]
    %v5646 = vld [vmem:[%s5531 + $0x1c8] sm:$0xf]
    %v5647 = vld [vmem:[%s5531 + $0x1cc] sm:$0xf]
    %v5648 = vld [vmem:[%s5531 + $0x1d0] sm:$0xf]
    %v5649 = vld [vmem:[%s5531 + $0x1d4] sm:$0xf]
    %v5650 = vld [vmem:[%s5531 + $0x1d8] sm:$0xf]
    %v5651 = vld [vmem:[%s5531 + $0x1dc] sm:$0xf]
    %v5652 = vld [vmem:[%s5531 + $0x1e0] sm:$0xf]
    %v5653 = vld [vmem:[%s5531 + $0x1e4] sm:$0xf]
    %v5654 = vld [vmem:[%s5531 + $0x1e8] sm:$0xf]
    %v5655 = vld [vmem:[%s5531 + $0x1ec] sm:$0xf]
    %v5656 = vld [vmem:[%s5531 + $0x1f0] sm:$0xf]
    %v5657 = vld [vmem:[%s5531 + $0x1f4] sm:$0xf]
    %v5658 = vld [vmem:[%s5531 + $0x1f8] sm:$0xf]
    %v5659 = vld [vmem:[%s5531 + $0x1fc] sm:$0xf]
    %v5660 = vld [vmem:[%s5531 + $0x200] sm:$0xf]
    %v5661 = vld [vmem:[%s5531 + $0x204] sm:$0xf]
    %v5662 = vld [vmem:[%s5531 + $0x208] sm:$0xf]
    %v5663 = vld [vmem:[%s5531 + $0x20c] sm:$0xf]
    %v5664 = vld [vmem:[%s5531 + $0x210] sm:$0xf]
    %v5665 = vld [vmem:[%s5531 + $0x214] sm:$0xf]
    %v5666 = vld [vmem:[%s5531 + $0x218] sm:$0xf]
    %v5667 = vld [vmem:[%s5531 + $0x21c] sm:$0xf]
    %v5668 = vld [vmem:[%s5531 + $0x220] sm:$0xf]
    %v5669 = vld [vmem:[%s5531 + $0x224] sm:$0xf]
    %v5670 = vld [vmem:[%s5531 + $0x228] sm:$0xf]
    %v5671 = vld [vmem:[%s5531 + $0x22c] sm:$0xf]
    %v5672 = vld [vmem:[%s5531 + $0x230] sm:$0xf]
    %v5673 = vld [vmem:[%s5531 + $0x234] sm:$0xf]
    %v5674 = vld [vmem:[%s5531 + $0x238] sm:$0xf]
    %v5675 = vld [vmem:[%s5531 + $0x23c] sm:$0xf]
    %v5676 = vld [vmem:[%s5531 + $0x240] sm:$0xf]
    %v5677 = vld [vmem:[%s5531 + $0x244] sm:$0xf]
    %v5678 = vld [vmem:[%s5531 + $0x248] sm:$0xf]
    %v5679 = vld [vmem:[%s5531 + $0x24c] sm:$0xf]
    %v5680 = vld [vmem:[%s5531 + $0x250] sm:$0xf]
    %v5681 = vld [vmem:[%s5531 + $0x254] sm:$0xf]
    %v5682 = vld [vmem:[%s5531 + $0x258] sm:$0xf]
    %v5683 = vld [vmem:[%s5531 + $0x25c] sm:$0xf]
    %v5684 = vld [vmem:[%s5531 + $0x260] sm:$0xf]
    %v5685 = vld [vmem:[%s5531 + $0x264] sm:$0xf]
    %v5686 = vld [vmem:[%s5531 + $0x268] sm:$0xf]
    %v5687 = vld [vmem:[%s5531 + $0x26c] sm:$0xf]
    %v5688 = vld [vmem:[%s5531 + $0x270] sm:$0xf]
    %v5689 = vld [vmem:[%s5531 + $0x274] sm:$0xf]
    %v5690 = vld [vmem:[%s5531 + $0x278] sm:$0xf]
    %v5691 = vld [vmem:[%s5531 + $0x27c] sm:$0xf]
    %v5692 = vld [vmem:[%s5531 + $0x280] sm:$0xf]
    %v5693 = vld [vmem:[%s5531 + $0x284] sm:$0xf]
    %v5694 = vld [vmem:[%s5531 + $0x288] sm:$0xf]
    %v5695 = vld [vmem:[%s5531 + $0x28c] sm:$0xf]
    %v5696 = vld [vmem:[%s5531 + $0x290] sm:$0xf]
    %v5697 = vld [vmem:[%s5531 + $0x294] sm:$0xf]
    %v5698 = vld [vmem:[%s5531 + $0x298] sm:$0xf]
    %v5699 = vld [vmem:[%s5531 + $0x29c] sm:$0xf]
    %v5700 = vld [vmem:[%s5531 + $0x2a0] sm:$0xf]
    %v5701 = vld [vmem:[%s5531 + $0x2a4] sm:$0xf]
    %v5702 = vld [vmem:[%s5531 + $0x2a8] sm:$0xf]
    %v5703 = vld [vmem:[%s5531 + $0x2ac] sm:$0xf]
    %v5704 = vld [vmem:[%s5531 + $0x2b0] sm:$0xf]
    %v5705 = vld [vmem:[%s5531 + $0x2b4] sm:$0xf]
    %v5706 = vld [vmem:[%s5531 + $0x2b8] sm:$0xf]
    %v5707 = vld [vmem:[%s5531 + $0x2bc] sm:$0xf]
    %v5708 = vld [vmem:[%s5531 + $0x2c0] sm:$0xf]
    %v5709 = vld [vmem:[%s5531 + $0x2c4] sm:$0xf]
    %v5710 = vld [vmem:[%s5531 + $0x2c8] sm:$0xf]
    %v5711 = vld [vmem:[%s5531 + $0x2cc] sm:$0xf]
    %v5712 = vld [vmem:[%s5531 + $0x2d0] sm:$0xf]
    %v5713 = vld [vmem:[%s5531 + $0x2d4] sm:$0xf]
    %v5714 = vld [vmem:[%s5531 + $0x2d8] sm:$0xf]
    %v5715 = vld [vmem:[%s5531 + $0x2dc] sm:$0xf]
    %v5716 = vld [vmem:[%s5531 + $0x2e0] sm:$0xf]
    %v5717 = vld [vmem:[%s5531 + $0x2e4] sm:$0xf]
    %v5718 = vld [vmem:[%s5531 + $0x2e8] sm:$0xf]
    %v5719 = vld [vmem:[%s5531 + $0x2ec] sm:$0xf]
    %v5720 = vld [vmem:[%s5531 + $0x2f0] sm:$0xf]
    %v5721 = vld [vmem:[%s5531 + $0x2f4] sm:$0xf]
    %v5722 = vld [vmem:[%s5531 + $0x2f8] sm:$0xf]
    %v5723 = vld [vmem:[%s5531 + $0x2fc] sm:$0xf]
    %v5724 = vld [vmem:[%s5531 + $0x300] sm:$0xf]
    %v5725 = vld [vmem:[%s5531 + $0x304] sm:$0xf]
    %v5726 = vld [vmem:[%s5531 + $0x308] sm:$0xf]
    %v5727 = vld [vmem:[%s5531 + $0x30c] sm:$0xf]
    %v5728 = vld [vmem:[%s5531 + $0x310] sm:$0xf]
    %v5729 = vld [vmem:[%s5531 + $0x314] sm:$0xf]
    %v5730 = vld [vmem:[%s5531 + $0x318] sm:$0xf]
    %v5731 = vld [vmem:[%s5531 + $0x31c] sm:$0xf]
    %v5732 = vld [vmem:[%s5531 + $0x320] sm:$0xf]
    %v5733 = vld [vmem:[%s5531 + $0x324] sm:$0xf]
    %v5734 = vld [vmem:[%s5531 + $0x328] sm:$0xf]
    %v5735 = vld [vmem:[%s5531 + $0x32c] sm:$0xf]
    %v5736 = vld [vmem:[%s5531 + $0x330] sm:$0xf]
    %v5737 = vld [vmem:[%s5531 + $0x334] sm:$0xf]
    %v5738 = vld [vmem:[%s5531 + $0x338] sm:$0xf]
    %v5739 = vld [vmem:[%s5531 + $0x33c] sm:$0xf]
    %v5740 = vld [vmem:[%s5531 + $0x340] sm:$0xf]
    %v5741 = vld [vmem:[%s5531 + $0x344] sm:$0xf]
    %v5742 = vld [vmem:[%s5531 + $0x348] sm:$0xf]
    %v5743 = vld [vmem:[%s5531 + $0x34c] sm:$0xf]
    %v5744 = vld [vmem:[%s5531 + $0x350] sm:$0xf]
    %v5745 = vld [vmem:[%s5531 + $0x354] sm:$0xf]
    %v5746 = vld [vmem:[%s5531 + $0x358] sm:$0xf]
    %v5747 = vld [vmem:[%s5531 + $0x35c] sm:$0xf]
    %v5748 = vld [vmem:[%s5531 + $0x360] sm:$0xf]
    %v5749 = vld [vmem:[%s5531 + $0x364] sm:$0xf]
    %v5750 = vld [vmem:[%s5531 + $0x368] sm:$0xf]
    %v5751 = vld [vmem:[%s5531 + $0x36c] sm:$0xf]
    %v5752 = vld [vmem:[%s5531 + $0x370] sm:$0xf]
    %v5753 = vld [vmem:[%s5531 + $0x374] sm:$0xf]
    %v5754 = vld [vmem:[%s5531 + $0x378] sm:$0xf]
    %v5755 = vld [vmem:[%s5531 + $0x37c] sm:$0xf]
    %v5756 = vld [vmem:[%s5531 + $0x380] sm:$0xf]
    %v5757 = vld [vmem:[%s5531 + $0x384] sm:$0xf]
    %v5758 = vld [vmem:[%s5531 + $0x388] sm:$0xf]
    %v5759 = vld [vmem:[%s5531 + $0x38c] sm:$0xf]
    %v5760 = vld [vmem:[%s5531 + $0x390] sm:$0xf]
    %v5761 = vld [vmem:[%s5531 + $0x394] sm:$0xf]
    %v5762 = vld [vmem:[%s5531 + $0x398] sm:$0xf]
    %v5763 = vld [vmem:[%s5531 + $0x39c] sm:$0xf]
    %v5764 = vld [vmem:[%s5531 + $0x3a0] sm:$0xf]
    %v5765 = vld [vmem:[%s5531 + $0x3a4] sm:$0xf]
    %v5766 = vld [vmem:[%s5531 + $0x3a8] sm:$0xf]
    %v5767 = vld [vmem:[%s5531 + $0x3ac] sm:$0xf]
    %v5768 = vld [vmem:[%s5531 + $0x3b0] sm:$0xf]
    %v5769 = vld [vmem:[%s5531 + $0x3b4] sm:$0xf]
    %v5770 = vld [vmem:[%s5531 + $0x3b8] sm:$0xf]
    %v5771 = vld [vmem:[%s5531 + $0x3bc] sm:$0xf]
    %v5772 = vld [vmem:[%s5531 + $0x3c0] sm:$0xf]
    %v5773 = vld [vmem:[%s5531 + $0x3c4] sm:$0xf]
    %v5774 = vld [vmem:[%s5531 + $0x3c8] sm:$0xf]
    %v5775 = vld [vmem:[%s5531 + $0x3cc] sm:$0xf]
    %v5776 = vld [vmem:[%s5531 + $0x3d0] sm:$0xf]
    %v5777 = vld [vmem:[%s5531 + $0x3d4] sm:$0xf]
    %v5778 = vld [vmem:[%s5531 + $0x3d8] sm:$0xf]
    %v5779 = vld [vmem:[%s5531 + $0x3dc] sm:$0xf]
    %v5780 = vld [vmem:[%s5531 + $0x3e0] sm:$0xf]
    %v5781 = vld [vmem:[%s5531 + $0x3e4] sm:$0xf]
    %v5782 = vld [vmem:[%s5531 + $0x3e8] sm:$0xf]
    %v5783 = vld [vmem:[%s5531 + $0x3ec] sm:$0xf]
    %v5784 = vld [vmem:[%s5531 + $0x3f0] sm:$0xf]
    %v5785 = vld [vmem:[%s5531 + $0x3f4] sm:$0xf]
    %v5786 = vld [vmem:[%s5531 + $0x3f8] sm:$0xf]
    %v5787 = vld [vmem:[%s5531 + $0x3fc] sm:$0xf]
    %s5788 = scalar_lea.vmem %s31, 1
    %v5789 = vld [vmem:[%s5788] sm:$0x1]
    %v5791 = vlaneseq
    %v5792 = vshrl.u32 %v5791, 7
    %v5793 = vsub.s32 0, %v5792
    %v5794 = vrot.slane %v5789, %v5793
    %v6052 = vunpack.c.l.b16 %v5532
    %v6053 = vunpack.c.l.b16 %v5533
    %v6054 = vunpack.c.l.b16 %v5534
    %v6055 = vunpack.c.l.b16 %v5535
    %v6056 = vunpack.c.l.b16 %v5536
    %v6057 = vunpack.c.l.b16 %v5537
    %v6058 = vunpack.c.l.b16 %v5538
    %v6059 = vunpack.c.l.b16 %v5539
    %v6060 = vunpack.c.l.b16 %v5540
    %v6061 = vunpack.c.l.b16 %v5541
    %v6062 = vunpack.c.l.b16 %v5542
    %v6063 = vunpack.c.l.b16 %v5543
    %v6064 = vunpack.c.l.b16 %v5544
    %v6065 = vunpack.c.l.b16 %v5545
    %v6066 = vunpack.c.l.b16 %v5546
    %v6067 = vunpack.c.l.b16 %v5547
    %v6068 = vunpack.c.l.b16 %v5548
    %v6069 = vunpack.c.l.b16 %v5549
    %v6070 = vunpack.c.l.b16 %v5550
    %v6071 = vunpack.c.l.b16 %v5551
    %v6072 = vunpack.c.l.b16 %v5552
    %v6073 = vunpack.c.l.b16 %v5553
    %v6074 = vunpack.c.l.b16 %v5554
    %v6075 = vunpack.c.l.b16 %v5555
    %v6076 = vunpack.c.l.b16 %v5556
    %v6077 = vunpack.c.l.b16 %v5557
    %v6078 = vunpack.c.l.b16 %v5558
    %v6079 = vunpack.c.l.b16 %v5559
    %v6080 = vunpack.c.l.b16 %v5560
    %v6081 = vunpack.c.l.b16 %v5561
    %v6082 = vunpack.c.l.b16 %v5562
    %v6083 = vunpack.c.l.b16 %v5563
    %v6084 = vunpack.c.l.b16 %v5564
    %v6085 = vunpack.c.l.b16 %v5565
    %v6086 = vunpack.c.l.b16 %v5566
    %v6087 = vunpack.c.l.b16 %v5567
    %v6088 = vunpack.c.l.b16 %v5568
    %v6089 = vunpack.c.l.b16 %v5569
    %v6090 = vunpack.c.l.b16 %v5570
    %v6091 = vunpack.c.l.b16 %v5571
    %v6092 = vunpack.c.l.b16 %v5572
    %v6093 = vunpack.c.l.b16 %v5573
    %v6094 = vunpack.c.l.b16 %v5574
    %v6095 = vunpack.c.l.b16 %v5575
    %v6096 = vunpack.c.l.b16 %v5576
    %v6097 = vunpack.c.l.b16 %v5577
    %v6098 = vunpack.c.l.b16 %v5578
    %v6099 = vunpack.c.l.b16 %v5579
    %v6100 = vunpack.c.l.b16 %v5580
    %v6101 = vunpack.c.l.b16 %v5581
    %v6102 = vunpack.c.l.b16 %v5582
    %v6103 = vunpack.c.l.b16 %v5583
    %v6104 = vunpack.c.l.b16 %v5584
    %v6105 = vunpack.c.l.b16 %v5585
    %v6106 = vunpack.c.l.b16 %v5586
    %v6107 = vunpack.c.l.b16 %v5587
    %v6108 = vunpack.c.l.b16 %v5588
    %v6109 = vunpack.c.l.b16 %v5589
    %v6110 = vunpack.c.l.b16 %v5590
    %v6111 = vunpack.c.l.b16 %v5591
    %v6112 = vunpack.c.l.b16 %v5592
    %v6113 = vunpack.c.l.b16 %v5593
    %v6114 = vunpack.c.l.b16 %v5594
    %v6115 = vunpack.c.l.b16 %v5595
    %v6116 = vunpack.c.l.b16 %v5596
    %v6117 = vunpack.c.l.b16 %v5597
    %v6118 = vunpack.c.l.b16 %v5598
    %v6119 = vunpack.c.l.b16 %v5599
    %v6120 = vunpack.c.l.b16 %v5600
    %v6121 = vunpack.c.l.b16 %v5601
    %v6122 = vunpack.c.l.b16 %v5602
    %v6123 = vunpack.c.l.b16 %v5603
    %v6124 = vunpack.c.l.b16 %v5604
    %v6125 = vunpack.c.l.b16 %v5605
    %v6126 = vunpack.c.l.b16 %v5606
    %v6127 = vunpack.c.l.b16 %v5607
    %v6128 = vunpack.c.l.b16 %v5608
    %v6129 = vunpack.c.l.b16 %v5609
    %v6130 = vunpack.c.l.b16 %v5610
    %v6131 = vunpack.c.l.b16 %v5611
    %v6132 = vunpack.c.l.b16 %v5612
    %v6133 = vunpack.c.l.b16 %v5613
    %v6134 = vunpack.c.l.b16 %v5614
    %v6135 = vunpack.c.l.b16 %v5615
    %v6136 = vunpack.c.l.b16 %v5616
    %v6137 = vunpack.c.l.b16 %v5617
    %v6138 = vunpack.c.l.b16 %v5618
    %v6139 = vunpack.c.l.b16 %v5619
    %v6140 = vunpack.c.l.b16 %v5620
    %v6141 = vunpack.c.l.b16 %v5621
    %v6142 = vunpack.c.l.b16 %v5622
    %v6143 = vunpack.c.l.b16 %v5623
    %v6144 = vunpack.c.l.b16 %v5624
    %v6145 = vunpack.c.l.b16 %v5625
    %v6146 = vunpack.c.l.b16 %v5626
    %v6147 = vunpack.c.l.b16 %v5627
    %v6148 = vunpack.c.l.b16 %v5628
    %v6149 = vunpack.c.l.b16 %v5629
    %v6150 = vunpack.c.l.b16 %v5630
    %v6151 = vunpack.c.l.b16 %v5631
    %v6152 = vunpack.c.l.b16 %v5632
    %v6153 = vunpack.c.l.b16 %v5633
    %v6154 = vunpack.c.l.b16 %v5634
    %v6155 = vunpack.c.l.b16 %v5635
    %v6156 = vunpack.c.l.b16 %v5636
    %v6157 = vunpack.c.l.b16 %v5637
    %v6158 = vunpack.c.l.b16 %v5638
    %v6159 = vunpack.c.l.b16 %v5639
    %v6160 = vunpack.c.l.b16 %v5640
    %v6161 = vunpack.c.l.b16 %v5641
    %v6162 = vunpack.c.l.b16 %v5642
    %v6163 = vunpack.c.l.b16 %v5643
    %v6164 = vunpack.c.l.b16 %v5644
    %v6165 = vunpack.c.l.b16 %v5645
    %v6166 = vunpack.c.l.b16 %v5646
    %v6167 = vunpack.c.l.b16 %v5647
    %v6168 = vunpack.c.l.b16 %v5648
    %v6169 = vunpack.c.l.b16 %v5649
    %v6170 = vunpack.c.l.b16 %v5650
    %v6171 = vunpack.c.l.b16 %v5651
    %v6172 = vunpack.c.l.b16 %v5652
    %v6173 = vunpack.c.l.b16 %v5653
    %v6174 = vunpack.c.l.b16 %v5654
    %v6175 = vunpack.c.l.b16 %v5655
    %v6176 = vunpack.c.l.b16 %v5656
    %v6177 = vunpack.c.l.b16 %v5657
    %v6178 = vunpack.c.l.b16 %v5658
    %v6179 = vunpack.c.l.b16 %v5659
    %v6180 = vunpack.c.l.b16 %v5660
    %v6181 = vunpack.c.l.b16 %v5661
    %v6182 = vunpack.c.l.b16 %v5662
    %v6183 = vunpack.c.l.b16 %v5663
    %v6184 = vunpack.c.l.b16 %v5664
    %v6185 = vunpack.c.l.b16 %v5665
    %v6186 = vunpack.c.l.b16 %v5666
    %v6187 = vunpack.c.l.b16 %v5667
    %v6188 = vunpack.c.l.b16 %v5668
    %v6189 = vunpack.c.l.b16 %v5669
    %v6190 = vunpack.c.l.b16 %v5670
    %v6191 = vunpack.c.l.b16 %v5671
    %v6192 = vunpack.c.l.b16 %v5672
    %v6193 = vunpack.c.l.b16 %v5673
    %v6194 = vunpack.c.l.b16 %v5674
    %v6195 = vunpack.c.l.b16 %v5675
    %v6196 = vunpack.c.l.b16 %v5676
    %v6197 = vunpack.c.l.b16 %v5677
    %v6198 = vunpack.c.l.b16 %v5678
    %v6199 = vunpack.c.l.b16 %v5679
    %v6200 = vunpack.c.l.b16 %v5680
    %v6201 = vunpack.c.l.b16 %v5681
    %v6202 = vunpack.c.l.b16 %v5682
    %v6203 = vunpack.c.l.b16 %v5683
    %v6204 = vunpack.c.l.b16 %v5684
    %v6205 = vunpack.c.l.b16 %v5685
    %v6206 = vunpack.c.l.b16 %v5686
    %v6207 = vunpack.c.l.b16 %v5687
    %v6208 = vunpack.c.l.b16 %v5688
    %v6209 = vunpack.c.l.b16 %v5689
    %v6210 = vunpack.c.l.b16 %v5690
    %v6211 = vunpack.c.l.b16 %v5691
    %v6212 = vunpack.c.l.b16 %v5692
    %v6213 = vunpack.c.l.b16 %v5693
    %v6214 = vunpack.c.l.b16 %v5694
    %v6215 = vunpack.c.l.b16 %v5695
    %v6216 = vunpack.c.l.b16 %v5696
    %v6217 = vunpack.c.l.b16 %v5697
    %v6218 = vunpack.c.l.b16 %v5698
    %v6219 = vunpack.c.l.b16 %v5699
    %v6220 = vunpack.c.l.b16 %v5700
    %v6221 = vunpack.c.l.b16 %v5701
    %v6222 = vunpack.c.l.b16 %v5702
    %v6223 = vunpack.c.l.b16 %v5703
    %v6224 = vunpack.c.l.b16 %v5704
    %v6225 = vunpack.c.l.b16 %v5705
    %v6226 = vunpack.c.l.b16 %v5706
    %v6227 = vunpack.c.l.b16 %v5707
    %v6228 = vunpack.c.l.b16 %v5708
    %v6229 = vunpack.c.l.b16 %v5709
    %v6230 = vunpack.c.l.b16 %v5710
    %v6231 = vunpack.c.l.b16 %v5711
    %v6232 = vunpack.c.l.b16 %v5712
    %v6233 = vunpack.c.l.b16 %v5713
    %v6234 = vunpack.c.l.b16 %v5714
    %v6235 = vunpack.c.l.b16 %v5715
    %v6236 = vunpack.c.l.b16 %v5716
    %v6237 = vunpack.c.l.b16 %v5717
    %v6238 = vunpack.c.l.b16 %v5718
    %v6239 = vunpack.c.l.b16 %v5719
    %v6240 = vunpack.c.l.b16 %v5720
    %v6241 = vunpack.c.l.b16 %v5721
    %v6242 = vunpack.c.l.b16 %v5722
    %v6243 = vunpack.c.l.b16 %v5723
    %v6244 = vunpack.c.l.b16 %v5724
    %v6245 = vunpack.c.l.b16 %v5725
    %v6246 = vunpack.c.l.b16 %v5726
    %v6247 = vunpack.c.l.b16 %v5727
    %v6248 = vunpack.c.l.b16 %v5728
    %v6249 = vunpack.c.l.b16 %v5729
    %v6250 = vunpack.c.l.b16 %v5730
    %v6251 = vunpack.c.l.b16 %v5731
    %v6252 = vunpack.c.l.b16 %v5732
    %v6253 = vunpack.c.l.b16 %v5733
    %v6254 = vunpack.c.l.b16 %v5734
    %v6255 = vunpack.c.l.b16 %v5735
    %v6256 = vunpack.c.l.b16 %v5736
    %v6257 = vunpack.c.l.b16 %v5737
    %v6258 = vunpack.c.l.b16 %v5738
    %v6259 = vunpack.c.l.b16 %v5739
    %v6260 = vunpack.c.l.b16 %v5740
    %v6261 = vunpack.c.l.b16 %v5741
    %v6262 = vunpack.c.l.b16 %v5742
    %v6263 = vunpack.c.l.b16 %v5743
    %v6264 = vunpack.c.l.b16 %v5744
    %v6265 = vunpack.c.l.b16 %v5745
    %v6266 = vunpack.c.l.b16 %v5746
    %v6267 = vunpack.c.l.b16 %v5747
    %v6268 = vunpack.c.l.b16 %v5748
    %v6269 = vunpack.c.l.b16 %v5749
    %v6270 = vunpack.c.l.b16 %v5750
    %v6271 = vunpack.c.l.b16 %v5751
    %v6272 = vunpack.c.l.b16 %v5752
    %v6273 = vunpack.c.l.b16 %v5753
    %v6274 = vunpack.c.l.b16 %v5754
    %v6275 = vunpack.c.l.b16 %v5755
    %v6276 = vunpack.c.l.b16 %v5756
    %v6277 = vunpack.c.l.b16 %v5757
    %v6278 = vunpack.c.l.b16 %v5758
    %v6279 = vunpack.c.l.b16 %v5759
    %v6280 = vunpack.c.l.b16 %v5760
    %v6281 = vunpack.c.l.b16 %v5761
    %v6282 = vunpack.c.l.b16 %v5762
    %v6283 = vunpack.c.l.b16 %v5763
    %v6284 = vunpack.c.l.b16 %v5764
    %v6285 = vunpack.c.l.b16 %v5765
    %v6286 = vunpack.c.l.b16 %v5766
    %v6287 = vunpack.c.l.b16 %v5767
    %v6288 = vunpack.c.l.b16 %v5768
    %v6289 = vunpack.c.l.b16 %v5769
    %v6290 = vunpack.c.l.b16 %v5770
    %v6291 = vunpack.c.l.b16 %v5771
    %v6292 = vunpack.c.l.b16 %v5772
    %v6293 = vunpack.c.l.b16 %v5773
    %v6294 = vunpack.c.l.b16 %v5774
    %v6295 = vunpack.c.l.b16 %v5775
    %v6296 = vunpack.c.l.b16 %v5776
    %v6297 = vunpack.c.l.b16 %v5777
    %v6298 = vunpack.c.l.b16 %v5778
    %v6299 = vunpack.c.l.b16 %v5779
    %v6300 = vunpack.c.l.b16 %v5780
    %v6301 = vunpack.c.l.b16 %v5781
    %v6302 = vunpack.c.l.b16 %v5782
    %v6303 = vunpack.c.l.b16 %v5783
    %v6304 = vunpack.c.l.b16 %v5784
    %v6305 = vunpack.c.l.b16 %v5785
    %v6306 = vunpack.c.l.b16 %v5786
    %v6307 = vunpack.c.l.b16 %v5787
    %v6308 = vpack.c.b16 %v6053, %v6052
    %v6309 = vpack.c.b16 %v6055, %v6054
    %v6310 = vpack.c.b16 %v6057, %v6056
    %v6311 = vpack.c.b16 %v6059, %v6058
    %v6312 = vpack.c.b16 %v6061, %v6060
    %v6313 = vpack.c.b16 %v6063, %v6062
    %v6314 = vpack.c.b16 %v6065, %v6064
    %v6315 = vpack.c.b16 %v6067, %v6066
    %v6316 = vpack.c.b16 %v6069, %v6068
    %v6317 = vpack.c.b16 %v6071, %v6070
    %v6318 = vpack.c.b16 %v6073, %v6072
    %v6319 = vpack.c.b16 %v6075, %v6074
    %v6320 = vpack.c.b16 %v6077, %v6076
    %v6321 = vpack.c.b16 %v6079, %v6078
    %v6322 = vpack.c.b16 %v6081, %v6080
    %v6323 = vpack.c.b16 %v6083, %v6082
    %v6324 = vpack.c.b16 %v6085, %v6084
    %v6325 = vpack.c.b16 %v6087, %v6086
    %v6326 = vpack.c.b16 %v6089, %v6088
    %v6327 = vpack.c.b16 %v6091, %v6090
    %v6328 = vpack.c.b16 %v6093, %v6092
    %v6329 = vpack.c.b16 %v6095, %v6094
    %v6330 = vpack.c.b16 %v6097, %v6096
    %v6331 = vpack.c.b16 %v6099, %v6098
    %v6332 = vpack.c.b16 %v6101, %v6100
    %v6333 = vpack.c.b16 %v6103, %v6102
    %v6334 = vpack.c.b16 %v6105, %v6104
    %v6335 = vpack.c.b16 %v6107, %v6106
    %v6336 = vpack.c.b16 %v6109, %v6108
    %v6337 = vpack.c.b16 %v6111, %v6110
    %v6338 = vpack.c.b16 %v6113, %v6112
    %v6339 = vpack.c.b16 %v6115, %v6114
    %v6340 = vpack.c.b16 %v6117, %v6116
    %v6341 = vpack.c.b16 %v6119, %v6118
    %v6342 = vpack.c.b16 %v6121, %v6120
    %v6343 = vpack.c.b16 %v6123, %v6122
    %v6344 = vpack.c.b16 %v6125, %v6124
    %v6345 = vpack.c.b16 %v6127, %v6126
    %v6346 = vpack.c.b16 %v6129, %v6128
    %v6347 = vpack.c.b16 %v6131, %v6130
    %v6348 = vpack.c.b16 %v6133, %v6132
    %v6349 = vpack.c.b16 %v6135, %v6134
    %v6350 = vpack.c.b16 %v6137, %v6136
    %v6351 = vpack.c.b16 %v6139, %v6138
    %v6352 = vpack.c.b16 %v6141, %v6140
    %v6353 = vpack.c.b16 %v6143, %v6142
    %v6354 = vpack.c.b16 %v6145, %v6144
    %v6355 = vpack.c.b16 %v6147, %v6146
    %v6356 = vpack.c.b16 %v6149, %v6148
    %v6357 = vpack.c.b16 %v6151, %v6150
    %v6358 = vpack.c.b16 %v6153, %v6152
    %v6359 = vpack.c.b16 %v6155, %v6154
    %v6360 = vpack.c.b16 %v6157, %v6156
    %v6361 = vpack.c.b16 %v6159, %v6158
    %v6362 = vpack.c.b16 %v6161, %v6160
    %v6363 = vpack.c.b16 %v6163, %v6162
    %v6364 = vpack.c.b16 %v6165, %v6164
    %v6365 = vpack.c.b16 %v6167, %v6166
    %v6366 = vpack.c.b16 %v6169, %v6168
    %v6367 = vpack.c.b16 %v6171, %v6170
    %v6368 = vpack.c.b16 %v6173, %v6172
    %v6369 = vpack.c.b16 %v6175, %v6174
    %v6370 = vpack.c.b16 %v6177, %v6176
    %v6371 = vpack.c.b16 %v6179, %v6178
    %v6372 = vpack.c.b16 %v6181, %v6180
    %v6373 = vpack.c.b16 %v6183, %v6182
    %v6374 = vpack.c.b16 %v6185, %v6184
    %v6375 = vpack.c.b16 %v6187, %v6186
    %v6376 = vpack.c.b16 %v6189, %v6188
    %v6377 = vpack.c.b16 %v6191, %v6190
    %v6378 = vpack.c.b16 %v6193, %v6192
    %v6379 = vpack.c.b16 %v6195, %v6194
    %v6380 = vpack.c.b16 %v6197, %v6196
    %v6381 = vpack.c.b16 %v6199, %v6198
    %v6382 = vpack.c.b16 %v6201, %v6200
    %v6383 = vpack.c.b16 %v6203, %v6202
    %v6384 = vpack.c.b16 %v6205, %v6204
    %v6385 = vpack.c.b16 %v6207, %v6206
    %v6386 = vpack.c.b16 %v6209, %v6208
    %v6387 = vpack.c.b16 %v6211, %v6210
    %v6388 = vpack.c.b16 %v6213, %v6212
    %v6389 = vpack.c.b16 %v6215, %v6214
    %v6390 = vpack.c.b16 %v6217, %v6216
    %v6391 = vpack.c.b16 %v6219, %v6218
    %v6392 = vpack.c.b16 %v6221, %v6220
    %v6393 = vpack.c.b16 %v6223, %v6222
    %v6394 = vpack.c.b16 %v6225, %v6224
    %v6395 = vpack.c.b16 %v6227, %v6226
    %v6396 = vpack.c.b16 %v6229, %v6228
    %v6397 = vpack.c.b16 %v6231, %v6230
    %v6398 = vpack.c.b16 %v6233, %v6232
    %v6399 = vpack.c.b16 %v6235, %v6234
    %v6400 = vpack.c.b16 %v6237, %v6236
    %v6401 = vpack.c.b16 %v6239, %v6238
    %v6402 = vpack.c.b16 %v6241, %v6240
    %v6403 = vpack.c.b16 %v6243, %v6242
    %v6404 = vpack.c.b16 %v6245, %v6244
    %v6405 = vpack.c.b16 %v6247, %v6246
    %v6406 = vpack.c.b16 %v6249, %v6248
    %v6407 = vpack.c.b16 %v6251, %v6250
    %v6408 = vpack.c.b16 %v6253, %v6252
    %v6409 = vpack.c.b16 %v6255, %v6254
    %v6410 = vpack.c.b16 %v6257, %v6256
    %v6411 = vpack.c.b16 %v6259, %v6258
    %v6412 = vpack.c.b16 %v6261, %v6260
    %v6413 = vpack.c.b16 %v6263, %v6262
    %v6414 = vpack.c.b16 %v6265, %v6264
    %v6415 = vpack.c.b16 %v6267, %v6266
    %v6416 = vpack.c.b16 %v6269, %v6268
    %v6417 = vpack.c.b16 %v6271, %v6270
    %v6418 = vpack.c.b16 %v6273, %v6272
    %v6419 = vpack.c.b16 %v6275, %v6274
    %v6420 = vpack.c.b16 %v6277, %v6276
    %v6421 = vpack.c.b16 %v6279, %v6278
    %v6422 = vpack.c.b16 %v6281, %v6280
    %v6423 = vpack.c.b16 %v6283, %v6282
    %v6424 = vpack.c.b16 %v6285, %v6284
    %v6425 = vpack.c.b16 %v6287, %v6286
    %v6426 = vpack.c.b16 %v6289, %v6288
    %v6427 = vpack.c.b16 %v6291, %v6290
    %v6428 = vpack.c.b16 %v6293, %v6292
    %v6429 = vpack.c.b16 %v6295, %v6294
    %v6430 = vpack.c.b16 %v6297, %v6296
    %v6431 = vpack.c.b16 %v6299, %v6298
    %v6432 = vpack.c.b16 %v6301, %v6300
    %v6433 = vpack.c.b16 %v6303, %v6302
    %v6434 = vpack.c.b16 %v6305, %v6304
    %v6435 = vpack.c.b16 %v6307, %v6306
    %6564 = vmatprep.subr.bf16.mxu0 0
    %6565 = vmatpush1.bf16.msra.mxu0 %v6308
    %6566 = vmatprep.subr.bf16.mxu0 0
    %6567 = vmatpush1.bf16.msra.mxu0 %v6309
    %6568 = vmatprep.subr.bf16.mxu0 0
    %6569 = vmatpush1.bf16.msra.mxu0 %v6310
    %6570 = vmatprep.subr.bf16.mxu0 0
    %6571 = vmatpush1.bf16.msra.mxu0 %v6311
    %6572 = vmatprep.subr.bf16.mxu0 0
    %6573 = vmatpush1.bf16.msra.mxu0 %v6312
    %6574 = vmatprep.subr.bf16.mxu0 0
    %6575 = vmatpush1.bf16.msra.mxu0 %v6313
    %6576 = vmatprep.subr.bf16.mxu0 0
    %6577 = vmatpush1.bf16.msra.mxu0 %v6314
    %6578 = vmatprep.subr.bf16.mxu0 0
    %6579 = vmatpush1.bf16.msra.mxu0 %v6315
    %6580 = vmatprep.subr.bf16.mxu0 0
    %6581 = vmatpush1.bf16.msra.mxu0 %v6316
    %6582 = vmatprep.subr.bf16.mxu0 0
    %6583 = vmatpush1.bf16.msra.mxu0 %v6317
    %6584 = vmatprep.subr.bf16.mxu0 0
    %6585 = vmatpush1.bf16.msra.mxu0 %v6318
    %6586 = vmatprep.subr.bf16.mxu0 0
    %6587 = vmatpush1.bf16.msra.mxu0 %v6319
    %6588 = vmatprep.subr.bf16.mxu0 0
    %6589 = vmatpush1.bf16.msra.mxu0 %v6320
    %6590 = vmatprep.subr.bf16.mxu0 0
    %6591 = vmatpush1.bf16.msra.mxu0 %v6321
    %6592 = vmatprep.subr.bf16.mxu0 0
    %6593 = vmatpush1.bf16.msra.mxu0 %v6322
    %6594 = vmatprep.subr.bf16.mxu0 0
    %6595 = vmatpush1.bf16.msra.mxu0 %v6323
    %6596 = vmatprep.mubr.bf16.mxu0 %v5516
    %6597 = vmatmul.mubr.bf16.gmra.mrb[0].mxu0 %v5515
    %v6598 = vpop.f32.mrb[0].mxu0
    %v6599 = vadd.f32 %v5794, %v6598
    %v6600 = vpop.f32.mrb[0].mxu0
    %v6601 = vpop.f32.mrb[0].mxu0
    %v6602 = vpop.f32.mrb[0].mxu0
    %6603 = vdwg.mxu0
    %6604 = vmatprep.subr.bf16.mxu0 0
    %6605 = vmatpush1.bf16.msra.mxu0 %v6324
    %6606 = vmatprep.subr.bf16.mxu0 0
    %6607 = vmatpush1.bf16.msra.mxu0 %v6325
    %6608 = vmatprep.subr.bf16.mxu0 0
    %6609 = vmatpush1.bf16.msra.mxu0 %v6326
    %6610 = vmatprep.subr.bf16.mxu0 0
    %6611 = vmatpush1.bf16.msra.mxu0 %v6327
    %6612 = vmatprep.subr.bf16.mxu0 0
    %6613 = vmatpush1.bf16.msra.mxu0 %v6328
    %6614 = vmatprep.subr.bf16.mxu0 0
    %6615 = vmatpush1.bf16.msra.mxu0 %v6329
    %6616 = vmatprep.subr.bf16.mxu0 0
    %6617 = vmatpush1.bf16.msra.mxu0 %v6330
    %6618 = vmatprep.subr.bf16.mxu0 0
    %6619 = vmatpush1.bf16.msra.mxu0 %v6331
    %6620 = vmatprep.subr.bf16.mxu0 0
    %6621 = vmatpush1.bf16.msra.mxu0 %v6332
    %6622 = vmatprep.subr.bf16.mxu0 0
    %6623 = vmatpush1.bf16.msra.mxu0 %v6333
    %6624 = vmatprep.subr.bf16.mxu0 0
    %6625 = vmatpush1.bf16.msra.mxu0 %v6334
    %6626 = vmatprep.subr.bf16.mxu0 0
    %6627 = vmatpush1.bf16.msra.mxu0 %v6335
    %6628 = vmatprep.subr.bf16.mxu0 0
    %6629 = vmatpush1.bf16.msra.mxu0 %v6336
    %6630 = vmatprep.subr.bf16.mxu0 0
    %6631 = vmatpush1.bf16.msra.mxu0 %v6337
    %6632 = vmatprep.subr.bf16.mxu0 0
    %6633 = vmatpush1.bf16.msra.mxu0 %v6338
    %6634 = vmatprep.subr.bf16.mxu0 0
    %6635 = vmatpush1.bf16.msra.mxu0 %v6339
    %6636 = vmatprep.mubr.bf16.mxu0 %v5518
    %6637 = vmatmul.mubr.bf16.gmra.mrb[0].mxu0 %v5517
    %v6638 = vpop.f32.mrb[0].mxu0
    %v6639 = vadd.f32 %v6599, %v6638
    %v6640 = vpop.f32.mrb[0].mxu0
    %v6641 = vpop.f32.mrb[0].mxu0
    %v6642 = vpop.f32.mrb[0].mxu0
    %6643 = vdwg.mxu0
    %6644 = vmatprep.subr.bf16.mxu0 0
    %6645 = vmatpush1.bf16.msra.mxu0 %v6340
    %6646 = vmatprep.subr.bf16.mxu0 0
    %6647 = vmatpush1.bf16.msra.mxu0 %v6341
    %6648 = vmatprep.subr.bf16.mxu0 0
    %6649 = vmatpush1.bf16.msra.mxu0 %v6342
    %6650 = vmatprep.subr.bf16.mxu0 0
    %6651 = vmatpush1.bf16.msra.mxu0 %v6343
    %6652 = vmatprep.subr.bf16.mxu0 0
    %6653 = vmatpush1.bf16.msra.mxu0 %v6344
    %6654 = vmatprep.subr.bf16.mxu0 0
    %6655 = vmatpush1.bf16.msra.mxu0 %v6345
    %6656 = vmatprep.subr.bf16.mxu0 0
    %6657 = vmatpush1.bf16.msra.mxu0 %v6346
    %6658 = vmatprep.subr.bf16.mxu0 0
    %6659 = vmatpush1.bf16.msra.mxu0 %v6347
    %6660 = vmatprep.subr.bf16.mxu0 0
    %6661 = vmatpush1.bf16.msra.mxu0 %v6348
    %6662 = vmatprep.subr.bf16.mxu0 0
    %6663 = vmatpush1.bf16.msra.mxu0 %v6349
    %6664 = vmatprep.subr.bf16.mxu0 0
    %6665 = vmatpush1.bf16.msra.mxu0 %v6350
    %6666 = vmatprep.subr.bf16.mxu0 0
    %6667 = vmatpush1.bf16.msra.mxu0 %v6351
    %6668 = vmatprep.subr.bf16.mxu0 0
    %6669 = vmatpush1.bf16.msra.mxu0 %v6352
    %6670 = vmatprep.subr.bf16.mxu0 0
    %6671 = vmatpush1.bf16.msra.mxu0 %v6353
    %6672 = vmatprep.subr.bf16.mxu0 0
    %6673 = vmatpush1.bf16.msra.mxu0 %v6354
    %6674 = vmatprep.subr.bf16.mxu0 0
    %6675 = vmatpush1.bf16.msra.mxu0 %v6355
    %6676 = vmatprep.mubr.bf16.mxu0 %v5520
    %6677 = vmatmul.mubr.bf16.gmra.mrb[0].mxu0 %v5519
    %v6678 = vpop.f32.mrb[0].mxu0
    %v6679 = vadd.f32 %v6639, %v6678
    %v6680 = vpop.f32.mrb[0].mxu0
    %v6681 = vpop.f32.mrb[0].mxu0
    %v6682 = vpop.f32.mrb[0].mxu0
    %6683 = vdwg.mxu0
    %6684 = vmatprep.subr.bf16.mxu0 0
    %6685 = vmatpush1.bf16.msra.mxu0 %v6356
    %6686 = vmatprep.subr.bf16.mxu0 0
    %6687 = vmatpush1.bf16.msra.mxu0 %v6357
    %6688 = vmatprep.subr.bf16.mxu0 0
    %6689 = vmatpush1.bf16.msra.mxu0 %v6358
    %6690 = vmatprep.subr.bf16.mxu0 0
    %6691 = vmatpush1.bf16.msra.mxu0 %v6359
    %6692 = vmatprep.subr.bf16.mxu0 0
    %6693 = vmatpush1.bf16.msra.mxu0 %v6360
    %6694 = vmatprep.subr.bf16.mxu0 0
    %6695 = vmatpush1.bf16.msra.mxu0 %v6361
    %6696 = vmatprep.subr.bf16.mxu0 0
    %6697 = vmatpush1.bf16.msra.mxu0 %v6362
    %6698 = vmatprep.subr.bf16.mxu0 0
    %6699 = vmatpush1.bf16.msra.mxu0 %v6363
    %6700 = vmatprep.subr.bf16.mxu0 0
    %6701 = vmatpush1.bf16.msra.mxu0 %v6364
    %6702 = vmatprep.subr.bf16.mxu0 0
    %6703 = vmatpush1.bf16.msra.mxu0 %v6365
    %6704 = vmatprep.subr.bf16.mxu0 0
    %6705 = vmatpush1.bf16.msra.mxu0 %v6366
    %6706 = vmatprep.subr.bf16.mxu0 0
    %6707 = vmatpush1.bf16.msra.mxu0 %v6367
    %6708 = vmatprep.subr.bf16.mxu0 0
    %6709 = vmatpush1.bf16.msra.mxu0 %v6368
    %6710 = vmatprep.subr.bf16.mxu0 0
    %6711 = vmatpush1.bf16.msra.mxu0 %v6369
    %6712 = vmatprep.subr.bf16.mxu0 0
    %6713 = vmatpush1.bf16.msra.mxu0 %v6370
    %6714 = vmatprep.subr.bf16.mxu0 0
    %6715 = vmatpush1.bf16.msra.mxu0 %v6371
    %6716 = vmatprep.mubr.bf16.mxu0 %v5522
    %6717 = vmatmul.mubr.bf16.gmra.mrb[0].mxu0 %v5521
    %v6718 = vpop.f32.mrb[0].mxu0
    %v6719 = vadd.f32 %v6679, %v6718
    %v6720 = vpop.f32.mrb[0].mxu0
    %v6721 = vpop.f32.mrb[0].mxu0
    %v6722 = vpop.f32.mrb[0].mxu0
    %6723 = vdwg.mxu0
    %6724 = vmatprep.subr.bf16.mxu0 0
    %6725 = vmatpush1.bf16.msra.mxu0 %v6372
    %6726 = vmatprep.subr.bf16.mxu0 0
    %6727 = vmatpush1.bf16.msra.mxu0 %v6373
    %6728 = vmatprep.subr.bf16.mxu0 0
    %6729 = vmatpush1.bf16.msra.mxu0 %v6374
    %6730 = vmatprep.subr.bf16.mxu0 0
    %6731 = vmatpush1.bf16.msra.mxu0 %v6375
    %6732 = vmatprep.subr.bf16.mxu0 0
    %6733 = vmatpush1.bf16.msra.mxu0 %v6376
    %6734 = vmatprep.subr.bf16.mxu0 0
    %6735 = vmatpush1.bf16.msra.mxu0 %v6377
    %6736 = vmatprep.subr.bf16.mxu0 0
    %6737 = vmatpush1.bf16.msra.mxu0 %v6378
    %6738 = vmatprep.subr.bf16.mxu0 0
    %6739 = vmatpush1.bf16.msra.mxu0 %v6379
    %6740 = vmatprep.subr.bf16.mxu0 0
    %6741 = vmatpush1.bf16.msra.mxu0 %v6380
    %6742 = vmatprep.subr.bf16.mxu0 0
    %6743 = vmatpush1.bf16.msra.mxu0 %v6381
    %6744 = vmatprep.subr.bf16.mxu0 0
    %6745 = vmatpush1.bf16.msra.mxu0 %v6382
    %6746 = vmatprep.subr.bf16.mxu0 0
    %6747 = vmatpush1.bf16.msra.mxu0 %v6383
    %6748 = vmatprep.subr.bf16.mxu0 0
    %6749 = vmatpush1.bf16.msra.mxu0 %v6384
    %6750 = vmatprep.subr.bf16.mxu0 0
    %6751 = vmatpush1.bf16.msra.mxu0 %v6385
    %6752 = vmatprep.subr.bf16.mxu0 0
    %6753 = vmatpush1.bf16.msra.mxu0 %v6386
    %6754 = vmatprep.subr.bf16.mxu0 0
    %6755 = vmatpush1.bf16.msra.mxu0 %v6387
    %6756 = vmatprep.mubr.bf16.mxu0 %v5524
    %6757 = vmatmul.mubr.bf16.gmra.mrb[0].mxu0 %v5523
    %v6758 = vpop.f32.mrb[0].mxu0
    %v6759 = vadd.f32 %v6719, %v6758
    %v6760 = vpop.f32.mrb[0].mxu0
    %v6761 = vpop.f32.mrb[0].mxu0
    %v6762 = vpop.f32.mrb[0].mxu0
    %6763 = vdwg.mxu0
    %6764 = vmatprep.subr.bf16.mxu0 0
    %6765 = vmatpush1.bf16.msra.mxu0 %v6388
    %6766 = vmatprep.subr.bf16.mxu0 0
    %6767 = vmatpush1.bf16.msra.mxu0 %v6389
    %6768 = vmatprep.subr.bf16.mxu0 0
    %6769 = vmatpush1.bf16.msra.mxu0 %v6390
    %6770 = vmatprep.subr.bf16.mxu0 0
    %6771 = vmatpush1.bf16.msra.mxu0 %v6391
    %6772 = vmatprep.subr.bf16.mxu0 0
    %6773 = vmatpush1.bf16.msra.mxu0 %v6392
    %6774 = vmatprep.subr.bf16.mxu0 0
    %6775 = vmatpush1.bf16.msra.mxu0 %v6393
    %6776 = vmatprep.subr.bf16.mxu0 0
    %6777 = vmatpush1.bf16.msra.mxu0 %v6394
    %6778 = vmatprep.subr.bf16.mxu0 0
    %6779 = vmatpush1.bf16.msra.mxu0 %v6395
    %6780 = vmatprep.subr.bf16.mxu0 0
    %6781 = vmatpush1.bf16.msra.mxu0 %v6396
    %6782 = vmatprep.subr.bf16.mxu0 0
    %6783 = vmatpush1.bf16.msra.mxu0 %v6397
    %6784 = vmatprep.subr.bf16.mxu0 0
    %6785 = vmatpush1.bf16.msra.mxu0 %v6398
    %6786 = vmatprep.subr.bf16.mxu0 0
    %6787 = vmatpush1.bf16.msra.mxu0 %v6399
    %6788 = vmatprep.subr.bf16.mxu0 0
    %6789 = vmatpush1.bf16.msra.mxu0 %v6400
    %6790 = vmatprep.subr.bf16.mxu0 0
    %6791 = vmatpush1.bf16.msra.mxu0 %v6401
    %6792 = vmatprep.subr.bf16.mxu0 0
    %6793 = vmatpush1.bf16.msra.mxu0 %v6402
    %6794 = vmatprep.subr.bf16.mxu0 0
    %6795 = vmatpush1.bf16.msra.mxu0 %v6403
    %6796 = vmatprep.mubr.bf16.mxu0 %v5526
    %6797 = vmatmul.mubr.bf16.gmra.mrb[0].mxu0 %v5525
    %v6798 = vpop.f32.mrb[0].mxu0
    %v6799 = vadd.f32 %v6759, %v6798
    %v6800 = vpop.f32.mrb[0].mxu0
    %v6801 = vpop.f32.mrb[0].mxu0
    %v6802 = vpop.f32.mrb[0].mxu0
    %6803 = vdwg.mxu0
    %6804 = vmatprep.subr.bf16.mxu0 0
    %6805 = vmatpush1.bf16.msra.mxu0 %v6404
    %6806 = vmatprep.subr.bf16.mxu0 0
    %6807 = vmatpush1.bf16.msra.mxu0 %v6405
    %6808 = vmatprep.subr.bf16.mxu0 0
    %6809 = vmatpush1.bf16.msra.mxu0 %v6406
    %6810 = vmatprep.subr.bf16.mxu0 0
    %6811 = vmatpush1.bf16.msra.mxu0 %v6407
    %6812 = vmatprep.subr.bf16.mxu0 0
    %6813 = vmatpush1.bf16.msra.mxu0 %v6408
    %6814 = vmatprep.subr.bf16.mxu0 0
    %6815 = vmatpush1.bf16.msra.mxu0 %v6409
    %6816 = vmatprep.subr.bf16.mxu0 0
    %6817 = vmatpush1.bf16.msra.mxu0 %v6410
    %6818 = vmatprep.subr.bf16.mxu0 0
    %6819 = vmatpush1.bf16.msra.mxu0 %v6411
    %6820 = vmatprep.subr.bf16.mxu0 0
    %6821 = vmatpush1.bf16.msra.mxu0 %v6412
    %6822 = vmatprep.subr.bf16.mxu0 0
    %6823 = vmatpush1.bf16.msra.mxu0 %v6413
    %6824 = vmatprep.subr.bf16.mxu0 0
    %6825 = vmatpush1.bf16.msra.mxu0 %v6414
    %6826 = vmatprep.subr.bf16.mxu0 0
    %6827 = vmatpush1.bf16.msra.mxu0 %v6415
    %6828 = vmatprep.subr.bf16.mxu0 0
    %6829 = vmatpush1.bf16.msra.mxu0 %v6416
    %6830 = vmatprep.subr.bf16.mxu0 0
    %6831 = vmatpush1.bf16.msra.mxu0 %v6417
    %6832 = vmatprep.subr.bf16.mxu0 0
    %6833 = vmatpush1.bf16.msra.mxu0 %v6418
    %6834 = vmatprep.subr.bf16.mxu0 0
    %6835 = vmatpush1.bf16.msra.mxu0 %v6419
    %6836 = vmatprep.mubr.bf16.mxu0 %v5528
    %6837 = vmatmul.mubr.bf16.gmra.mrb[0].mxu0 %v5527
    %v6838 = vpop.f32.mrb[0].mxu0
    %v6839 = vadd.f32 %v6799, %v6838
    %v6840 = vpop.f32.mrb[0].mxu0
    %v6841 = vpop.f32.mrb[0].mxu0
    %v6842 = vpop.f32.mrb[0].mxu0
    %6843 = vdwg.mxu0
    %6844 = vmatprep.subr.bf16.mxu0 0
    %6845 = vmatpush1.bf16.msra.mxu0 %v6420
    %6846 = vmatprep.subr.bf16.mxu0 0
    %6847 = vmatpush1.bf16.msra.mxu0 %v6421
    %6848 = vmatprep.subr.bf16.mxu0 0
    %6849 = vmatpush1.bf16.msra.mxu0 %v6422
    %6850 = vmatprep.subr.bf16.mxu0 0
    %6851 = vmatpush1.bf16.msra.mxu0 %v6423
    %6852 = vmatprep.subr.bf16.mxu0 0
    %6853 = vmatpush1.bf16.msra.mxu0 %v6424
    %6854 = vmatprep.subr.bf16.mxu0 0
    %6855 = vmatpush1.bf16.msra.mxu0 %v6425
    %6856 = vmatprep.subr.bf16.mxu0 0
    %6857 = vmatpush1.bf16.msra.mxu0 %v6426
    %6858 = vmatprep.subr.bf16.mxu0 0
    %6859 = vmatpush1.bf16.msra.mxu0 %v6427
    %6860 = vmatprep.subr.bf16.mxu0 0
    %6861 = vmatpush1.bf16.msra.mxu0 %v6428
    %6862 = vmatprep.subr.bf16.mxu0 0
    %6863 = vmatpush1.bf16.msra.mxu0 %v6429
    %6864 = vmatprep.subr.bf16.mxu0 0
    %6865 = vmatpush1.bf16.msra.mxu0 %v6430
    %6866 = vmatprep.subr.bf16.mxu0 0
    %6867 = vmatpush1.bf16.msra.mxu0 %v6431
    %6868 = vmatprep.subr.bf16.mxu0 0
    %6869 = vmatpush1.bf16.msra.mxu0 %v6432
    %6870 = vmatprep.subr.bf16.mxu0 0
    %6871 = vmatpush1.bf16.msra.mxu0 %v6433
    %6872 = vmatprep.subr.bf16.mxu0 0
    %6873 = vmatpush1.bf16.msra.mxu0 %v6434
    %6874 = vmatprep.subr.bf16.mxu0 0
    %6875 = vmatpush1.bf16.msra.mxu0 %v6435
    %6876 = vmatprep.mubr.bf16.mxu0 %v5530
    %6877 = vmatmul.mubr.bf16.gmra.mrb[0].mxu0 %v5529
    %v6878 = vpop.f32.mrb[0].mxu0
    %v6879 = vadd.f32 %v6839, %v6878
    %v6880 = vpop.f32.mrb[0].mxu0
    %v6881 = vpop.f32.mrb[0].mxu0
    %v6882 = vpop.f32.mrb[0].mxu0
    %6883 = vdwg.mxu0
    %v6884 = vadd.f32 %v4760, %v6879
    %s6885 = scalar_lea.vmem %s41, 1
    %v6886 = vld [vmem:[%s6885] sm:$0x1]
    %s6887 = scalar_lea.vmem %s43, 1
    %v6888 = vld [vmem:[%s6887] sm:$0x1]
    %v6889 = vsel %vm158, %v6884, 0.0
    %6890 = vadd.xlane.f32.xlu0 %v6889
    %v6891 = vpop.xlane.xlu0 %6890
    %v6892 = vmul.f32 %v6891, %v958
    %v6893 = vsub.f32 %v6884, %v6892
    %v6894 = vmul.f32 %v6893, %v6893
    %v6895 = vsel %vm158, %v6894, 0.0
    %6896 = vadd.xlane.f32.xlu0 %v6895
    %v6897 = vpop.xlane.xlu0 %6896
    %v6898 = vmul.f32 %v6897, %v958
    %v6899 = vadd.f32 %v6898, 1e-05
    %v6900 = vrsqrt.pop %v6899
    %v6901 = vmul.f32 %v6893, %v6900
    %v6903 = vlaneseq
    %v6904 = vshrl.u32 %v6903, 7
    %v6905 = vsub.s32 0, %v6904
    %v6906 = vrot.slane %v6886, %v6905
    %v6908 = vmul.f32 %v6901, %v6906
    %v6910 = vlaneseq
    %v6911 = vshrl.u32 %v6910, 7
    %v6912 = vsub.s32 0, %v6911
    %v6913 = vrot.slane %v6888, %v6912
    %v6915 = vadd.f32 %v6908, %v6913
    %v6916 = vpack.c.bf16 %v6915, %v6915
    %v6917 = vld [vmem:[%s45] sm:$0xf]
    %v6918 = vld [vmem:[%s45 + $0x4] sm:$0xf]
    %v6919 = vld [vmem:[%s45 + $0x8] sm:$0xf]
    %v6920 = vld [vmem:[%s45 + $0xc] sm:$0xf]
    %v6921 = vld [vmem:[%s47] sm:$0x1]
    %v6923 = vlaneseq
    %v6924 = vshrl.u32 %v6923, 7
    %v6925 = vsub.s32 0, %v6924
    %v6926 = vrot.slane %v6921, %v6925
    %v6932 = vunpack.c.l.b16 %v6917
    %v6933 = vunpack.c.l.b16 %v6918
    %v6934 = vunpack.c.l.b16 %v6919
    %v6935 = vunpack.c.l.b16 %v6920
    %v6936 = vpack.c.b16 %v6933, %v6932
    %v6937 = vpack.c.b16 %v6935, %v6934
    %v6941 = vsel %vm158, %v6916, 0
    %6943 = vmatprep.subr.bf16.mxu0 0
    %6944 = vmatpush1.bf16.msra.mxu0 %v6936
    %6945 = vmatprep.subr.bf16.mxu0 0
    %6946 = vmatpush1.bf16.msra.mxu0 %v6937
    %6947 = vmatprep.subr.bf16.mxu0 0
    %6948 = vmatpush1.bf16.msra.mxu0 0
    %6949 = vmatprep.subr.bf16.mxu0 0
    %6950 = vmatpush1.bf16.msra.mxu0 0
    %6951 = vmatprep.subr.bf16.mxu0 0
    %6952 = vmatpush1.bf16.msra.mxu0 0
    %6953 = vmatprep.subr.bf16.mxu0 0
    %6954 = vmatpush1.bf16.msra.mxu0 0
    %6955 = vmatprep.subr.bf16.mxu0 0
    %6956 = vmatpush1.bf16.msra.mxu0 0
    %6957 = vmatprep.subr.bf16.mxu0 0
    %6958 = vmatpush1.bf16.msra.mxu0 0
    %6959 = vmatprep.subr.bf16.mxu0 0
    %6960 = vmatpush1.bf16.msra.mxu0 0
    %6961 = vmatprep.subr.bf16.mxu0 0
    %6962 = vmatpush1.bf16.msra.mxu0 0
    %6963 = vmatprep.subr.bf16.mxu0 0
    %6964 = vmatpush1.bf16.msra.mxu0 0
    %6965 = vmatprep.subr.bf16.mxu0 0
    %6966 = vmatpush1.bf16.msra.mxu0 0
    %6967 = vmatprep.subr.bf16.mxu0 0
    %6968 = vmatpush1.bf16.msra.mxu0 0
    %6969 = vmatprep.subr.bf16.mxu0 0
    %6970 = vmatpush1.bf16.msra.mxu0 0
    %6971 = vmatprep.subr.bf16.mxu0 0
    %6972 = vmatpush1.bf16.msra.mxu0 0
    %6973 = vmatprep.subr.bf16.mxu0 0
    %6974 = vmatpush1.bf16.msra.mxu0 0
    %6975 = vmatprep.mubr.bf16.mxu0 0
    %6976 = vmatmul.mubr.bf16.gmra.mrb[0].mxu0 %v6941
    %v6977 = vpop.f32.mrb[0].mxu0
    %v6978 = vadd.f32 %v6926, %v6977
    %v6979 = vpop.f32.mrb[0].mxu0
    %v6980 = vpop.f32.mrb[0].mxu0
    %v6981 = vpop.f32.mrb[0].mxu0
    %6982 = vdwg.mxu0
    %v6983 = vsub.f32 0.0, %v6978
    %v6984 = vmul.f32 %v6983, 1.442695
    %v6985 = vpow.pop %v6984
    %v6986 = vadd.f32 %v6985, 1.0
    %v6987 = vrcp.pop %v6986
    %v6988 = vmul.f32 1.0, %v6987
    %v6989 = vmul.f32 %v6978, %v6988
    %v6990 = vpack.c.bf16 %v6989, %v6989
    %v6991 = vld [vmem:[%s49] sm:$0xf]
    %v6992 = vld [vmem:[%s49 + $0x4] sm:$0xf]
    %v6993 = vld [vmem:[%s49 + $0x8] sm:$0xf]
    %v6994 = vld [vmem:[%s49 + $0xc] sm:$0xf]
    %v6995 = vld [vmem:[%s51] sm:$0x1]
    %v6997 = vlaneseq
    %v6998 = vshrl.u32 %v6997, 7
    %v6999 = vsub.s32 0, %v6998
    %v7000 = vrot.slane %v6995, %v6999
    %v7006 = vunpack.c.l.b16 %v6991
    %v7007 = vunpack.c.l.b16 %v6992
    %v7008 = vunpack.c.l.b16 %v6993
    %v7009 = vunpack.c.l.b16 %v6994
    %v7010 = vpack.c.b16 %v7007, %v7006
    %v7011 = vpack.c.b16 %v7009, %v7008
    %v7015 = vsel %vm158, %v6990, 0
    %7017 = vmatprep.subr.bf16.mxu0 0
    %7018 = vmatpush1.bf16.msra.mxu0 %v7010
    %7019 = vmatprep.subr.bf16.mxu0 0
    %7020 = vmatpush1.bf16.msra.mxu0 %v7011
    %7021 = vmatprep.subr.bf16.mxu0 0
    %7022 = vmatpush1.bf16.msra.mxu0 0
    %7023 = vmatprep.subr.bf16.mxu0 0
    %7024 = vmatpush1.bf16.msra.mxu0 0
    %7025 = vmatprep.subr.bf16.mxu0 0
    %7026 = vmatpush1.bf16.msra.mxu0 0
    %7027 = vmatprep.subr.bf16.mxu0 0
    %7028 = vmatpush1.bf16.msra.mxu0 0
    %7029 = vmatprep.subr.bf16.mxu0 0
    %7030 = vmatpush1.bf16.msra.mxu0 0
    %7031 = vmatprep.subr.bf16.mxu0 0
    %7032 = vmatpush1.bf16.msra.mxu0 0
    %7033 = vmatprep.subr.bf16.mxu0 0
    %7034 = vmatpush1.bf16.msra.mxu0 0
    %7035 = vmatprep.subr.bf16.mxu0 0
    %7036 = vmatpush1.bf16.msra.mxu0 0
    %7037 = vmatprep.subr.bf16.mxu0 0
    %7038 = vmatpush1.bf16.msra.mxu0 0
    %7039 = vmatprep.subr.bf16.mxu0 0
    %7040 = vmatpush1.bf16.msra.mxu0 0
    %7041 = vmatprep.subr.bf16.mxu0 0
    %7042 = vmatpush1.bf16.msra.mxu0 0
    %7043 = vmatprep.subr.bf16.mxu0 0
    %7044 = vmatpush1.bf16.msra.mxu0 0
    %7045 = vmatprep.subr.bf16.mxu0 0
    %7046 = vmatpush1.bf16.msra.mxu0 0
    %7047 = vmatprep.subr.bf16.mxu0 0
    %7048 = vmatpush1.bf16.msra.mxu0 0
    %7049 = vmatprep.mubr.bf16.mxu0 0
    %7050 = vmatmul.mubr.bf16.gmra.mrb[0].mxu0 %v7015
    %v7051 = vpop.f32.mrb[0].mxu0
    %v7052 = vadd.f32 %v7000, %v7051
    %v7053 = vpop.f32.mrb[0].mxu0
    %v7054 = vpop.f32.mrb[0].mxu0
    %v7055 = vpop.f32.mrb[0].mxu0
    %7056 = vdwg.mxu0
    %v7057 = vmax.f32 %v7052, 0.0
    %v7058 = vand.u32 2147483647, %v7052
    %v7059 = vsub.f32 0.0, %v7058
    %v7060 = vmul.f32 %v7059, 1.442695
    %v7061 = vpow.pop %v7060
    %v7062 = vadd.f32 %v7061, 1.0
    %v7063 = vlog2.pop %v7062
    %v7064 = vmul.f32 %v7063, 0.6931472
    %v7065 = vadd.f32 %v7057, %v7064
    %7066 = vst [vmem:[#allocation2] sm:$0xff] %v7065
    %v7067 = vld [vmem:[%s53] sm:$0xf]
    %v7068 = vld [vmem:[%s53 + $0x4] sm:$0xf]
    %v7069 = vld [vmem:[%s53 + $0x8] sm:$0xf]
    %v7070 = vld [vmem:[%s53 + $0xc] sm:$0xf]
    %v7071 = vld [vmem:[%s55] sm:$0x1]
    %v7073 = vlaneseq
    %v7074 = vshrl.u32 %v7073, 7
    %v7075 = vsub.s32 0, %v7074
    %v7076 = vrot.slane %v7071, %v7075
    %v7082 = vunpack.c.l.b16 %v7067
    %v7083 = vunpack.c.l.b16 %v7068
    %v7084 = vunpack.c.l.b16 %v7069
    %v7085 = vunpack.c.l.b16 %v7070
    %v7086 = vpack.c.b16 %v7083, %v7082
    %v7087 = vpack.c.b16 %v7085, %v7084
    %7090 = vmatprep.subr.bf16.mxu0 0
    %7091 = vmatpush1.bf16.msra.mxu0 %v7086
    %7092 = vmatprep.subr.bf16.mxu0 0
    %7093 = vmatpush1.bf16.msra.mxu0 %v7087
    %7094 = vmatprep.subr.bf16.mxu0 0
    %7095 = vmatpush1.bf16.msra.mxu0 0
    %7096 = vmatprep.subr.bf16.mxu0 0
    %7097 = vmatpush1.bf16.msra.mxu0 0
    %7098 = vmatprep.subr.bf16.mxu0 0
    %7099 = vmatpush1.bf16.msra.mxu0 0
    %7100 = vmatprep.subr.bf16.mxu0 0
    %7101 = vmatpush1.bf16.msra.mxu0 0
    %7102 = vmatprep.subr.bf16.mxu0 0
    %7103 = vmatpush1.bf16.msra.mxu0 0
    %7104 = vmatprep.subr.bf16.mxu0 0
    %7105 = vmatpush1.bf16.msra.mxu0 0
    %7106 = vmatprep.subr.bf16.mxu0 0
    %7107 = vmatpush1.bf16.msra.mxu0 0
    %7108 = vmatprep.subr.bf16.mxu0 0
    %7109 = vmatpush1.bf16.msra.mxu0 0
    %7110 = vmatprep.subr.bf16.mxu0 0
    %7111 = vmatpush1.bf16.msra.mxu0 0
    %7112 = vmatprep.subr.bf16.mxu0 0
    %7113 = vmatpush1.bf16.msra.mxu0 0
    %7114 = vmatprep.subr.bf16.mxu0 0
    %7115 = vmatpush1.bf16.msra.mxu0 0
    %7116 = vmatprep.subr.bf16.mxu0 0
    %7117 = vmatpush1.bf16.msra.mxu0 0
    %7118 = vmatprep.subr.bf16.mxu0 0
    %7119 = vmatpush1.bf16.msra.mxu0 0
    %7120 = vmatprep.subr.bf16.mxu0 0
    %7121 = vmatpush1.bf16.msra.mxu0 0
    %7122 = vmatprep.mubr.bf16.mxu0 0
    %7123 = vmatmul.mubr.bf16.gmra.mrb[0].mxu0 %v6941
    %v7124 = vpop.f32.mrb[0].mxu0
    %v7125 = vadd.f32 %v7076, %v7124
    %v7126 = vpop.f32.mrb[0].mxu0
    %v7127 = vpop.f32.mrb[0].mxu0
    %v7128 = vpop.f32.mrb[0].mxu0
    %7129 = vdwg.mxu0
    %v7130 = vsub.f32 0.0, %v7125
    %v7131 = vmul.f32 %v7130, 1.442695
    %v7132 = vpow.pop %v7131
    %v7133 = vadd.f32 %v7132, 1.0
    %v7134 = vrcp.pop %v7133
    %v7135 = vmul.f32 1.0, %v7134
    %v7136 = vmul.f32 %v7125, %v7135
    %v7137 = vpack.c.bf16 %v7136, %v7136
    %v7138 = vld [vmem:[%s57] sm:$0xf]
    %v7139 = vld [vmem:[%s57 + $0x4] sm:$0xf]
    %v7140 = vld [vmem:[%s57 + $0x8] sm:$0xf]
    %v7141 = vld [vmem:[%s57 + $0xc] sm:$0xf]
    %v7142 = vld [vmem:[%s59] sm:$0x1]
    %v7144 = vlaneseq
    %v7145 = vshrl.u32 %v7144, 7
    %v7146 = vsub.s32 0, %v7145
    %v7147 = vrot.slane %v7142, %v7146
    %v7153 = vunpack.c.l.b16 %v7138
    %v7154 = vunpack.c.l.b16 %v7139
    %v7155 = vunpack.c.l.b16 %v7140
    %v7156 = vunpack.c.l.b16 %v7141
    %v7157 = vpack.c.b16 %v7154, %v7153
    %v7158 = vpack.c.b16 %v7156, %v7155
    %v7162 = vsel %vm158, %v7137, 0
    %7164 = vmatprep.subr.bf16.mxu0 0
    %7165 = vmatpush1.bf16.msra.mxu0 %v7157
    %7166 = vmatprep.subr.bf16.mxu0 0
    %7167 = vmatpush1.bf16.msra.mxu0 %v7158
    %7168 = vmatprep.subr.bf16.mxu0 0
    %7169 = vmatpush1.bf16.msra.mxu0 0
    %7170 = vmatprep.subr.bf16.mxu0 0
    %7171 = vmatpush1.bf16.msra.mxu0 0
    %7172 = vmatprep.subr.bf16.mxu0 0
    %7173 = vmatpush1.bf16.msra.mxu0 0
    %7174 = vmatprep.subr.bf16.mxu0 0
    %7175 = vmatpush1.bf16.msra.mxu0 0
    %7176 = vmatprep.subr.bf16.mxu0 0
    %7177 = vmatpush1.bf16.msra.mxu0 0
    %7178 = vmatprep.subr.bf16.mxu0 0
    %7179 = vmatpush1.bf16.msra.mxu0 0
    %7180 = vmatprep.subr.bf16.mxu0 0
    %7181 = vmatpush1.bf16.msra.mxu0 0
    %7182 = vmatprep.subr.bf16.mxu0 0
    %7183 = vmatpush1.bf16.msra.mxu0 0
    %7184 = vmatprep.subr.bf16.mxu0 0
    %7185 = vmatpush1.bf16.msra.mxu0 0
    %7186 = vmatprep.subr.bf16.mxu0 0
    %7187 = vmatpush1.bf16.msra.mxu0 0
    %7188 = vmatprep.subr.bf16.mxu0 0
    %7189 = vmatpush1.bf16.msra.mxu0 0
    %7190 = vmatprep.subr.bf16.mxu0 0
    %7191 = vmatpush1.bf16.msra.mxu0 0
    %7192 = vmatprep.subr.bf16.mxu0 0
    %7193 = vmatpush1.bf16.msra.mxu0 0
    %7194 = vmatprep.subr.bf16.mxu0 0
    %7195 = vmatpush1.bf16.msra.mxu0 0
    %7196 = vmatprep.mubr.bf16.mxu0 0
    %7197 = vmatmul.mubr.bf16.gmra.mrb[0].mxu0 %v7162
    %v7198 = vpop.f32.mrb[0].mxu0
    %v7199 = vadd.f32 %v7147, %v7198
    %v7200 = vpop.f32.mrb[0].mxu0
    %v7201 = vpop.f32.mrb[0].mxu0
    %v7202 = vpop.f32.mrb[0].mxu0
    %7203 = vdwg.mxu0
    %v7204 = vsub.f32 0.0, %v7199
    %v7205 = vmul.f32 %v7204, 1.442695
    %v7206 = vpow.pop %v7205
    %v7207 = vadd.f32 %v7206, 1.0
    %v7208 = vrcp.pop %v7207
    %v7209 = vmul.f32 1.0, %v7208
    %7210 = vst [vmem:[#allocation4] sm:$0xff] %v7209
    // Predicated region
    $region122: #{tpu_custom_call.1} parent=1 // pred_check
      _
    $region123: #{tpu_custom_call.1} parent=1 // pred_check_branch
      %7212 = sbr.rel (0) target = $region125
    $region124: #{tpu_custom_call.1} parent=1 // pred_region
      %s7214 = ssub.s32 128, 128
      %7215 = vsyncadd [#allocation3], %s7214
      %s7217 = sshll.u32 [#allocation2], 4
      %s7218 = int_to_ptr.vmem [resolvable:$true] %s7217
      %7220 = dma.vmem_to_hbm [thread:$0]  %s7218, 128, %s61, [#allocation3]
    $region125: #{tpu_custom_call.1} parent=1 // pred_fallthru
      _
    // Predicated region
    $region126: #{tpu_custom_call.1} parent=1 // pred_check
      _
    $region127: #{tpu_custom_call.1} parent=1 // pred_check_branch
      %7222 = sbr.rel (0) target = $region129
    $region128: #{tpu_custom_call.1} parent=1 // pred_region
      %s7224 = ssub.s32 128, 128
      %7225 = vsyncadd [#allocation5], %s7224
      %s7227 = sshll.u32 [#allocation4], 4
      %s7228 = int_to_ptr.vmem [resolvable:$true] %s7227
      %7230 = dma.vmem_to_hbm [thread:$0]  %s7228, 128, %s63, [#allocation5]
    $region129: #{tpu_custom_call.1} parent=1 // pred_fallthru
      _
    // Predicated region
    $region130: #{tpu_custom_call.1} parent=1 // pred_check
      _
    $region131: #{tpu_custom_call.1} parent=1 // pred_check_branch
      %7232 = sbr.rel (0) target = $region133
    $region132: #{tpu_custom_call.1} parent=1 // pred_region
      %7233 = dma.done [#allocation3], 128
    $region133: #{tpu_custom_call.1} parent=1 // pred_fallthru
      _
    // Predicated region
    $region134: #{tpu_custom_call.1} parent=1 // pred_check
      _
    $region135: #{tpu_custom_call.1} parent=1 // pred_check_branch
      %7235 = sbr.rel (0) target = $region137
    $region136: #{tpu_custom_call.1} parent=1 // pred_region
      %7236 = dma.done [#allocation5], 128
    $region137: #{tpu_custom_call.1} parent=1 // pred_fallthru
      _
    %7237 = vsyncpa [#allocation3], 1
    %7238 = vsyncpa [#allocation5], 1

</llo_original>
